<compile_context>
chip_gen: v6e
topology: v6e:2x2x1
jax: 0.10.0
libtpu: 0.0.40
codegen_flags: <defaults>
</compile_context>

<pallas_src>
import numpy as np
import jax
import jax.numpy as jnp
from jax.experimental import pallas as pl
from jax.experimental.pallas import tpu as pltpu

LRELU_SLOPE = 0.2
BN_EPS = 1e-5
LANE = 128


def _round_up(x, m):
    return ((x + m - 1) // m) * m


def _conv_index_table(B, H, W, OH, OW, k, s, p):
    """int32 [B*OH*OW, k*k]: flat source row in (b, h, w) order, or -1 for zero-pad."""
    m = np.arange(B * OH * OW)
    b = m // (OH * OW)
    rem = m % (OH * OW)
    oh = rem // OW
    ow = rem % OW
    tbl = np.full((B * OH * OW, k * k), -1, dtype=np.int32)
    for i in range(k):
        for j in range(k):
            hi = oh * s + i - p
            wi = ow * s + j - p
            valid = (hi >= 0) & (hi < H) & (wi >= 0) & (wi < W)
            tbl[:, i * k + j] = np.where(valid, (b * H + hi) * W + wi, -1)
    return jnp.asarray(tbl)


# ----------------------------- Pallas kernel -------------------------------

def _conv_accumulate(act_bf16, idx_ref, w_ref):
    """out = sum_pos onehot(idx[:, pos]) @ act @ W[pos]   ->  f32 [M, Cout_pad].

    act_bf16: (R, Cin_pad) bf16 activation matrix (rows in (b, h, w) order).
    idx_ref : (M, k*k) int32 gather table (-1 rows produce all-zero = padding).
    w_ref   : (k*k, Cin_pad, Cout_pad) bf16 conv weights.
    """
    M, kk = idx_ref.shape
    cout = w_ref.shape[2]
    R = act_bf16.shape[0]
    r_iota = jax.lax.broadcasted_iota(jnp.int32, (1, R), 1)   # hoisted per layer
    acc = jnp.zeros((M, cout), jnp.float32)
    for pos in range(kk):
        tgt = idx_ref[:, pos:pos + 1]                                  # (M, 1)
        onehot = jnp.where(r_iota == tgt, 1.0, 0.0).astype(jnp.bfloat16)
        rows = jnp.dot(onehot, act_bf16,
                       preferred_element_type=jnp.float32)             # gather
        acc = acc + jnp.dot(rows.astype(jnp.bfloat16), w_ref[pos],
                            preferred_element_type=jnp.float32)
    return acc


def _lrelu_bn(x, g_ref, b_ref):
    """LeakyReLU(0.2) -> BatchNorm (training-mode batch stats), f32 in/out."""
    x = jnp.where(x >= 0, x, LRELU_SLOPE * x)
    m = x.shape[0]
    mean = jnp.sum(x, axis=0, keepdims=True) * (1.0 / m)
    d = x - mean
    var = jnp.sum(d * d, axis=0, keepdims=True) * (1.0 / m)            # biased
    x = d * jax.lax.rsqrt(var + BN_EPS)
    return x * g_ref[...] + b_ref[...]


def _make_kernel(n_mid):
    def kernel(*refs):
        # refs = (patches0, w0, gamma0, beta0,
        #         [idx, w, gamma, beta] * n_mid,
        #         idx_final, w_final, out)
        x_ref = refs[0]
        out_ref = refs[-1]

        # Layer 1: host-built lane-dense im2col -> single MXU matmul.
        w0_ref, g0_ref, b0_ref = refs[1:4]
        x = jnp.dot(x_ref[...], w0_ref[...], preferred_element_type=jnp.float32)
        act = _lrelu_bn(x, g0_ref, b0_ref).astype(jnp.bfloat16)

        ptr = 4
        for _ in range(n_mid):
            idx_ref, w_ref, g_ref, b_ref = refs[ptr:ptr + 4]
            ptr += 4
            # Conv -> LeakyReLU(0.2) -> BatchNorm, exactly the PyTorch order.
            x = _conv_accumulate(act, idx_ref, w_ref)
            act = _lrelu_bn(x, g_ref, b_ref).astype(jnp.bfloat16)

        idx_f, w_f = refs[ptr], refs[ptr + 1]
        logits = _conv_accumulate(act, idx_f, w_f)
        out_ref[...] = jax.nn.sigmoid(logits)              # (B, 128) lane-dense
    return kernel


# ------------------------------- parameters --------------------------------

def make_dc_discriminator_params(key, imgsize, ndf, nc=3, max_depth=7, batch=2):
    """Mirror the PyTorch __init__ architecture with deterministic random weights.

    The int32 gather tables enumerate rows of the flattened in-kernel
    activation matrices, so they depend on the (static) batch size.
    """
    depth0 = int(np.minimum(np.floor(np.log2(imgsize)), max_depth - 1))
    rest = imgsize / np.power(2, depth0)
    depth = depth0 + 1 if rest > 1 else depth0

    k, s, p = 4, 2, 1
    H = imgsize
    cin_real = nc

    # ---- first hidden block: host-side im2col + single matmul in-kernel ----
    cout_real = int(ndf)
    cout_pad = _round_up(cout_real, LANE)
    OH = (H + 2 * p - k) // s + 1
    kk_cin = k * k * cin_real
    kk_cin_pad = _round_up(kk_cin, LANE)
    key, sub = jax.random.split(key)
    w = jax.random.normal(sub, (k, k, cin_real, cout_real), jnp.float32) * 0.05
    w_flat = jnp.zeros((kk_cin_pad, cout_pad), jnp.float32)
    w_flat = w_flat.at[:kk_cin, :cout_real].set(w.reshape(kk_cin, cout_real))
    first = dict(
        w=w_flat.astype(jnp.bfloat16),
        gamma=jnp.ones((1, cout_pad), jnp.float32),
        beta=jnp.zeros((1, cout_pad), jnp.float32),
        k=k, s=s, p=p, H=H, OH=OH, kk_cin=kk_cin, kk_cin_pad=kk_cin_pad,
    )
    H = OH
    cin_real, cin_pad = cout_real, cout_pad

    # ---- remaining hidden blocks: in-kernel one-hot gather convolutions ----
    hidden = []
    for i in range(1, depth - 1):
        cout_real = int(ndf * np.power(2, i))
        cout_pad = _round_up(cout_real, LANE)
        OH = (H + 2 * p - k) // s + 1
        key, sub = jax.random.split(key)
        w = jax.random.normal(sub, (k, k, cin_real, cout_real), jnp.float32) * 0.05
        w_pad = jnp.zeros((k * k, cin_pad, cout_pad), jnp.float32)
        w_pad = w_pad.at[:, :cin_real, :cout_real].set(
            w.reshape(k * k, cin_real, cout_real))
        hidden.append(dict(
            idx=_conv_index_table(batch, H, H, OH, OH, k, s, p),
            w=w_pad.astype(jnp.bfloat16),
            gamma=jnp.ones((1, cout_pad), jnp.float32),
            beta=jnp.zeros((1, cout_pad), jnp.float32),
        ))
        H = OH
        cin_real, cin_pad = cout_real, cout_pad

    # ---- final layer: Conv(k_final, stride 1, no pad) -> Sigmoid, Cout=1 ----
    k_f = int(rest) if rest > 1 else 2
    OHf = (H - k_f) // 1 + 1
    key, sub = jax.random.split(key)
    wf = jax.random.normal(sub, (k_f, k_f, cin_real, 1), jnp.float32) * 0.05
    wf_pad = jnp.zeros((k_f * k_f, cin_pad, LANE), jnp.float32)
    wf_pad = wf_pad.at[:, :cin_real, :1].set(wf.reshape(k_f * k_f, cin_real, 1))
    final = dict(idx=_conv_index_table(batch, H, H, OHf, OHf, k_f, 1, 0),
                 w=wf_pad.astype(jnp.bfloat16))
    return dict(first=first, hidden=hidden, final=final)


# ------------------------------- forward -----------------------------------

def dc_discriminator_forward(params, x_nchw):
    first, hidden, final = params["first"], params["hidden"], params["final"]

    # First-layer im2col in the wrapper (tiny: B*OH*OW x k*k*nc), lane-padded.
    B = x_nchw.shape[0]
    k, s, p, OH = first["k"], first["s"], first["p"], first["OH"]
    x = jnp.transpose(x_nchw.astype(jnp.float32), (0, 2, 3, 1))        # NHWC
    x = jnp.pad(x, ((0, 0), (p, p), (p, p), (0, 0)))
    cols = []
    for ki in range(k):
        for kj in range(k):
            cols.append(x[:, ki:ki + (OH - 1) * s + 1:s,
                            kj:kj + (OH - 1) * s + 1:s, :])            # (B,OH,OH,nc)
    patches = jnp.concatenate(cols, axis=-1).reshape(B * OH * OH, first["kk_cin"])
    patches = jnp.pad(patches,
                      ((0, 0), (0, first["kk_cin_pad"] - first["kk_cin"])))
    patches = patches.astype(jnp.bfloat16)

    args = [patches, first["w"], first["gamma"], first["beta"]]
    for lyr in hidden:
        args += [lyr["idx"], lyr["w"], lyr["gamma"], lyr["beta"]]
    args += [final["idx"], final["w"]]

    m_out = final["idx"].shape[0]          # = batch (final spatial is 1x1)
    n_out = final["w"].shape[2]            # 128 (lane-dense padded output)
    vmem = pl.BlockSpec(memory_space=pltpu.MemorySpace.VMEM)

    out = pl.pallas_call(
        _make_kernel(len(hidden)),
        out_shape=jax.ShapeDtypeStruct((m_out, n_out), jnp.float32),
        in_specs=[vmem] * len(args),
        out_specs=vmem,
        compiler_params=pltpu.CompilerParams(vmem_limit_bytes=32 * 1024 * 1024),
    )(*args)

    # Real discriminator output lives in channel 0 (other lanes are padding);
    # matches `.view(-1, 1).squeeze(1)` since the final spatial size is 1x1.
    return out[:, 0]


# --------------------------------- main -------------------------------------

if __name__ == "__main__":
    imgsize, ndf, nc, batch = 16, 8, 3, 2

    key = jax.random.PRNGKey(0)
    key, pkey, xkey = jax.random.split(key, 3)
    params = make_dc_discriminator_params(pkey, imgsize, ndf, nc, batch=batch)
    x = jax.random.normal(xkey, (batch, nc, imgsize, imgsize), jnp.float32)

    fwd = jax.jit(lambda inp: dc_discriminator_forward(params, inp))
    out = jax.block_until_ready(fwd(x))
    assert out.shape == (batch,), out.shape
    assert bool(jnp.all(jnp.isfinite(out))), "non-finite output"
    print("KERNEL_OK")
</pallas_src>

<mosaic_0001>
module attributes {stable_mosaic.version = 11 : i64} {
  func.func @kernel(%arg0: memref<128x128xbf16, #tpu.memory_space<vmem>>, %arg1: memref<128x128xbf16, #tpu.memory_space<vmem>>, %arg2: memref<1x128xf32, #tpu.memory_space<vmem>>, %arg3: memref<1x128xf32, #tpu.memory_space<vmem>>, %arg4: memref<32x16xi32, #tpu.memory_space<vmem>>, %arg5: memref<16x128x128xbf16, #tpu.memory_space<vmem>>, %arg6: memref<1x128xf32, #tpu.memory_space<vmem>>, %arg7: memref<1x128xf32, #tpu.memory_space<vmem>>, %arg8: memref<8x16xi32, #tpu.memory_space<vmem>>, %arg9: memref<16x128x128xbf16, #tpu.memory_space<vmem>>, %arg10: memref<1x128xf32, #tpu.memory_space<vmem>>, %arg11: memref<1x128xf32, #tpu.memory_space<vmem>>, %arg12: memref<2x4xi32, #tpu.memory_space<vmem>>, %arg13: memref<4x128x128xbf16, #tpu.memory_space<vmem>>, %arg14: memref<2x128xf32, #tpu.memory_space<vmem>>) attributes {dimension_semantics = [], scalar_prefetch = 0 : i64, scratch_operands = 0 : i64, tpu.core_type = #tpu.core_type<tc>} {
    %c0 = arith.constant 0 : index
    %c0_0 = arith.constant 0 : index
    %0 = vector.load %arg0[%c0, %c0_0] : memref<128x128xbf16, #tpu.memory_space<vmem>>, vector<128x128xbf16>
    %c0_1 = arith.constant 0 : index
    %c0_2 = arith.constant 0 : index
    %1 = vector.load %arg1[%c0_1, %c0_2] : memref<128x128xbf16, #tpu.memory_space<vmem>>, vector<128x128xbf16>
    %cst = arith.constant dense<0.000000e+00> : vector<128x128xf32>
    %2 = tpu.matmul %0, %1, %cst {dimension_numbers = #tpu.dot_dimension_numbers<[1], [0], [0], [1], [0, 0, 1, 1], [], []>} : vector<128x128xbf16>, vector<128x128xbf16>, vector<128x128xf32> -> vector<128x128xf32>
    %cst_3 = arith.constant 0.000000e+00 : f32
    %3 = vector.broadcast %cst_3 : f32 to vector<128x128xf32>
    %4 = arith.cmpf oge, %2, %3 : vector<128x128xf32>
    %cst_4 = arith.constant 2.000000e-01 : f32
    %5 = vector.broadcast %cst_4 : f32 to vector<128x128xf32>
    %6 = arith.mulf %5, %2 : vector<128x128xf32>
    %7 = arith.select %4, %2, %6 : vector<128x128xi1>, vector<128x128xf32>
    %cst_5 = arith.constant dense<0.000000e+00> : vector<128xf32>
    %8 = vector.multi_reduction <add>, %7, %cst_5 [0] : vector<128x128xf32> to vector<128xf32>
    %9 = vector.shape_cast %8 : vector<128xf32> to vector<1x128xf32>
    %cst_6 = arith.constant 7.812500e-03 : f32
    %10 = vector.broadcast %cst_6 : f32 to vector<1x128xf32>
    %11 = arith.mulf %9, %10 : vector<1x128xf32>
    %12 = vector.broadcast %11 : vector<1x128xf32> to vector<128x128xf32>
    %13 = arith.subf %7, %12 : vector<128x128xf32>
    %14 = arith.mulf %13, %13 : vector<128x128xf32>
    %cst_7 = arith.constant dense<0.000000e+00> : vector<128xf32>
    %15 = vector.multi_reduction <add>, %14, %cst_7 [0] : vector<128x128xf32> to vector<128xf32>
    %16 = vector.shape_cast %15 : vector<128xf32> to vector<1x128xf32>
    %cst_8 = arith.constant 7.812500e-03 : f32
    %17 = vector.broadcast %cst_8 : f32 to vector<1x128xf32>
    %18 = arith.mulf %16, %17 : vector<1x128xf32>
    %cst_9 = arith.constant 9.99999974E-6 : f32
    %19 = vector.broadcast %cst_9 : f32 to vector<1x128xf32>
    %20 = arith.addf %18, %19 : vector<1x128xf32>
    %21 = math.rsqrt %20 : vector<1x128xf32>
    %22 = vector.broadcast %21 : vector<1x128xf32> to vector<128x128xf32>
    %23 = arith.mulf %13, %22 : vector<128x128xf32>
    %c0_10 = arith.constant 0 : index
    %c0_11 = arith.constant 0 : index
    %24 = vector.load %arg2[%c0_10, %c0_11] : memref<1x128xf32, #tpu.memory_space<vmem>>, vector<1x128xf32>
    %25 = vector.broadcast %24 : vector<1x128xf32> to vector<128x128xf32>
    %26 = arith.mulf %23, %25 : vector<128x128xf32>
    %c0_12 = arith.constant 0 : index
    %c0_13 = arith.constant 0 : index
    %27 = vector.load %arg3[%c0_12, %c0_13] : memref<1x128xf32, #tpu.memory_space<vmem>>, vector<1x128xf32>
    %28 = vector.broadcast %27 : vector<1x128xf32> to vector<128x128xf32>
    %29 = arith.addf %26, %28 : vector<128x128xf32>
    %30 = arith.truncf %29 : vector<128x128xf32> to vector<128x128xbf16>
    %31 = tpu.iota {dimensions = array<i32: 1>} : vector<1x128xi32>
    %cst_14 = arith.constant 0.000000e+00 : f32
    %32 = vector.broadcast %cst_14 : f32 to vector<32x128xf32>
    %c0_15 = arith.constant 0 : index
    %c0_16 = arith.constant 0 : index
    %33 = vector.load %arg4[%c0_15, %c0_16] : memref<32x16xi32, #tpu.memory_space<vmem>>, vector<32x1xi32>
    %34 = vector.broadcast %31 : vector<1x128xi32> to vector<32x128xi32>
    %35 = vector.broadcast %33 : vector<32x1xi32> to vector<32x128xi32>
    %36 = arith.cmpi eq, %34, %35 : vector<32x128xi32>
    %cst_17 = arith.constant 1.000000e+00 : f32
    %cst_18 = arith.constant 0.000000e+00 : f32
    %37 = vector.broadcast %cst_17 : f32 to vector<32x128xf32>
    %38 = vector.broadcast %cst_18 : f32 to vector<32x128xf32>
    %39 = arith.select %36, %37, %38 : vector<32x128xi1>, vector<32x128xf32>
    %40 = arith.truncf %39 : vector<32x128xf32> to vector<32x128xbf16>
    %cst_19 = arith.constant dense<0.000000e+00> : vector<32x128xf32>
    %41 = tpu.matmul %40, %30, %cst_19 {dimension_numbers = #tpu.dot_dimension_numbers<[1], [0], [0], [1], [0, 0, 1, 1], [], []>} : vector<32x128xbf16>, vector<128x128xbf16>, vector<32x128xf32> -> vector<32x128xf32>
    %42 = arith.truncf %41 : vector<32x128xf32> to vector<32x128xbf16>
    %c0_20 = arith.constant 0 : index
    %c0_21 = arith.constant 0 : index
    %c0_22 = arith.constant 0 : index
    %43 = vector.load %arg5[%c0_20, %c0_21, %c0_22] : memref<16x128x128xbf16, #tpu.memory_space<vmem>>, vector<1x128x128xbf16>
    %44 = vector.shape_cast %43 : vector<1x128x128xbf16> to vector<128x128xbf16>
    %cst_23 = arith.constant dense<0.000000e+00> : vector<32x128xf32>
    %45 = tpu.matmul %42, %44, %cst_23 {dimension_numbers = #tpu.dot_dimension_numbers<[1], [0], [0], [1], [0, 0, 1, 1], [], []>} : vector<32x128xbf16>, vector<128x128xbf16>, vector<32x128xf32> -> vector<32x128xf32>
    %46 = arith.addf %32, %45 : vector<32x128xf32>
    %c0_24 = arith.constant 0 : index
    %c1 = arith.constant 1 : index
    %47 = vector.load %arg4[%c0_24, %c1] : memref<32x16xi32, #tpu.memory_space<vmem>>, vector<32x1xi32>
    %48 = vector.broadcast %31 : vector<1x128xi32> to vector<32x128xi32>
    %49 = vector.broadcast %47 : vector<32x1xi32> to vector<32x128xi32>
    %50 = arith.cmpi eq, %48, %49 : vector<32x128xi32>
    %cst_25 = arith.constant 1.000000e+00 : f32
    %cst_26 = arith.constant 0.000000e+00 : f32
    %51 = vector.broadcast %cst_25 : f32 to vector<32x128xf32>
    %52 = vector.broadcast %cst_26 : f32 to vector<32x128xf32>
    %53 = arith.select %50, %51, %52 : vector<32x128xi1>, vector<32x128xf32>
    %54 = arith.truncf %53 : vector<32x128xf32> to vector<32x128xbf16>
    %cst_27 = arith.constant dense<0.000000e+00> : vector<32x128xf32>
    %55 = tpu.matmul %54, %30, %cst_27 {dimension_numbers = #tpu.dot_dimension_numbers<[1], [0], [0], [1], [0, 0, 1, 1], [], []>} : vector<32x128xbf16>, vector<128x128xbf16>, vector<32x128xf32> -> vector<32x128xf32>
    %56 = arith.truncf %55 : vector<32x128xf32> to vector<32x128xbf16>
    %c1_28 = arith.constant 1 : index
    %c0_29 = arith.constant 0 : index
    %c0_30 = arith.constant 0 : index
    %57 = vector.load %arg5[%c1_28, %c0_29, %c0_30] : memref<16x128x128xbf16, #tpu.memory_space<vmem>>, vector<1x128x128xbf16>
    %58 = vector.shape_cast %57 : vector<1x128x128xbf16> to vector<128x128xbf16>
    %cst_31 = arith.constant dense<0.000000e+00> : vector<32x128xf32>
    %59 = tpu.matmul %56, %58, %cst_31 {dimension_numbers = #tpu.dot_dimension_numbers<[1], [0], [0], [1], [0, 0, 1, 1], [], []>} : vector<32x128xbf16>, vector<128x128xbf16>, vector<32x128xf32> -> vector<32x128xf32>
    %60 = arith.addf %46, %59 : vector<32x128xf32>
    %c0_32 = arith.constant 0 : index
    %c2 = arith.constant 2 : index
    %61 = vector.load %arg4[%c0_32, %c2] : memref<32x16xi32, #tpu.memory_space<vmem>>, vector<32x1xi32>
    %62 = vector.broadcast %31 : vector<1x128xi32> to vector<32x128xi32>
    %63 = vector.broadcast %61 : vector<32x1xi32> to vector<32x128xi32>
    %64 = arith.cmpi eq, %62, %63 : vector<32x128xi32>
    %cst_33 = arith.constant 1.000000e+00 : f32
    %cst_34 = arith.constant 0.000000e+00 : f32
    %65 = vector.broadcast %cst_33 : f32 to vector<32x128xf32>
    %66 = vector.broadcast %cst_34 : f32 to vector<32x128xf32>
    %67 = arith.select %64, %65, %66 : vector<32x128xi1>, vector<32x128xf32>
    %68 = arith.truncf %67 : vector<32x128xf32> to vector<32x128xbf16>
    %cst_35 = arith.constant dense<0.000000e+00> : vector<32x128xf32>
    %69 = tpu.matmul %68, %30, %cst_35 {dimension_numbers = #tpu.dot_dimension_numbers<[1], [0], [0], [1], [0, 0, 1, 1], [], []>} : vector<32x128xbf16>, vector<128x128xbf16>, vector<32x128xf32> -> vector<32x128xf32>
    %70 = arith.truncf %69 : vector<32x128xf32> to vector<32x128xbf16>
    %c2_36 = arith.constant 2 : index
    %c0_37 = arith.constant 0 : index
    %c0_38 = arith.constant 0 : index
    %71 = vector.load %arg5[%c2_36, %c0_37, %c0_38] : memref<16x128x128xbf16, #tpu.memory_space<vmem>>, vector<1x128x128xbf16>
    %72 = vector.shape_cast %71 : vector<1x128x128xbf16> to vector<128x128xbf16>
    %cst_39 = arith.constant dense<0.000000e+00> : vector<32x128xf32>
    %73 = tpu.matmul %70, %72, %cst_39 {dimension_numbers = #tpu.dot_dimension_numbers<[1], [0], [0], [1], [0, 0, 1, 1], [], []>} : vector<32x128xbf16>, vector<128x128xbf16>, vector<32x128xf32> -> vector<32x128xf32>
    %74 = arith.addf %60, %73 : vector<32x128xf32>
    %c0_40 = arith.constant 0 : index
    %c3 = arith.constant 3 : index
    %75 = vector.load %arg4[%c0_40, %c3] : memref<32x16xi32, #tpu.memory_space<vmem>>, vector<32x1xi32>
    %76 = vector.broadcast %31 : vector<1x128xi32> to vector<32x128xi32>
    %77 = vector.broadcast %75 : vector<32x1xi32> to vector<32x128xi32>
    %78 = arith.cmpi eq, %76, %77 : vector<32x128xi32>
    %cst_41 = arith.constant 1.000000e+00 : f32
    %cst_42 = arith.constant 0.000000e+00 : f32
    %79 = vector.broadcast %cst_41 : f32 to vector<32x128xf32>
    %80 = vector.broadcast %cst_42 : f32 to vector<32x128xf32>
    %81 = arith.select %78, %79, %80 : vector<32x128xi1>, vector<32x128xf32>
    %82 = arith.truncf %81 : vector<32x128xf32> to vector<32x128xbf16>
    %cst_43 = arith.constant dense<0.000000e+00> : vector<32x128xf32>
    %83 = tpu.matmul %82, %30, %cst_43 {dimension_numbers = #tpu.dot_dimension_numbers<[1], [0], [0], [1], [0, 0, 1, 1], [], []>} : vector<32x128xbf16>, vector<128x128xbf16>, vector<32x128xf32> -> vector<32x128xf32>
    %84 = arith.truncf %83 : vector<32x128xf32> to vector<32x128xbf16>
    %c3_44 = arith.constant 3 : index
    %c0_45 = arith.constant 0 : index
    %c0_46 = arith.constant 0 : index
    %85 = vector.load %arg5[%c3_44, %c0_45, %c0_46] : memref<16x128x128xbf16, #tpu.memory_space<vmem>>, vector<1x128x128xbf16>
    %86 = vector.shape_cast %85 : vector<1x128x128xbf16> to vector<128x128xbf16>
    %cst_47 = arith.constant dense<0.000000e+00> : vector<32x128xf32>
    %87 = tpu.matmul %84, %86, %cst_47 {dimension_numbers = #tpu.dot_dimension_numbers<[1], [0], [0], [1], [0, 0, 1, 1], [], []>} : vector<32x128xbf16>, vector<128x128xbf16>, vector<32x128xf32> -> vector<32x128xf32>
    %88 = arith.addf %74, %87 : vector<32x128xf32>
    %c0_48 = arith.constant 0 : index
    %c4 = arith.constant 4 : index
    %89 = vector.load %arg4[%c0_48, %c4] : memref<32x16xi32, #tpu.memory_space<vmem>>, vector<32x1xi32>
    %90 = vector.broadcast %31 : vector<1x128xi32> to vector<32x128xi32>
    %91 = vector.broadcast %89 : vector<32x1xi32> to vector<32x128xi32>
    %92 = arith.cmpi eq, %90, %91 : vector<32x128xi32>
    %cst_49 = arith.constant 1.000000e+00 : f32
    %cst_50 = arith.constant 0.000000e+00 : f32
    %93 = vector.broadcast %cst_49 : f32 to vector<32x128xf32>
    %94 = vector.broadcast %cst_50 : f32 to vector<32x128xf32>
    %95 = arith.select %92, %93, %94 : vector<32x128xi1>, vector<32x128xf32>
    %96 = arith.truncf %95 : vector<32x128xf32> to vector<32x128xbf16>
    %cst_51 = arith.constant dense<0.000000e+00> : vector<32x128xf32>
    %97 = tpu.matmul %96, %30, %cst_51 {dimension_numbers = #tpu.dot_dimension_numbers<[1], [0], [0], [1], [0, 0, 1, 1], [], []>} : vector<32x128xbf16>, vector<128x128xbf16>, vector<32x128xf32> -> vector<32x128xf32>
    %98 = arith.truncf %97 : vector<32x128xf32> to vector<32x128xbf16>
    %c4_52 = arith.constant 4 : index
    %c0_53 = arith.constant 0 : index
    %c0_54 = arith.constant 0 : index
    %99 = vector.load %arg5[%c4_52, %c0_53, %c0_54] : memref<16x128x128xbf16, #tpu.memory_space<vmem>>, vector<1x128x128xbf16>
    %100 = vector.shape_cast %99 : vector<1x128x128xbf16> to vector<128x128xbf16>
    %cst_55 = arith.constant dense<0.000000e+00> : vector<32x128xf32>
    %101 = tpu.matmul %98, %100, %cst_55 {dimension_numbers = #tpu.dot_dimension_numbers<[1], [0], [0], [1], [0, 0, 1, 1], [], []>} : vector<32x128xbf16>, vector<128x128xbf16>, vector<32x128xf32> -> vector<32x128xf32>
    %102 = arith.addf %88, %101 : vector<32x128xf32>
    %c0_56 = arith.constant 0 : index
    %c5 = arith.constant 5 : index
    %103 = vector.load %arg4[%c0_56, %c5] : memref<32x16xi32, #tpu.memory_space<vmem>>, vector<32x1xi32>
    %104 = vector.broadcast %31 : vector<1x128xi32> to vector<32x128xi32>
    %105 = vector.broadcast %103 : vector<32x1xi32> to vector<32x128xi32>
    %106 = arith.cmpi eq, %104, %105 : vector<32x128xi32>
    %cst_57 = arith.constant 1.000000e+00 : f32
    %cst_58 = arith.constant 0.000000e+00 : f32
    %107 = vector.broadcast %cst_57 : f32 to vector<32x128xf32>
    %108 = vector.broadcast %cst_58 : f32 to vector<32x128xf32>
    %109 = arith.select %106, %107, %108 : vector<32x128xi1>, vector<32x128xf32>
    %110 = arith.truncf %109 : vector<32x128xf32> to vector<32x128xbf16>
    %cst_59 = arith.constant dense<0.000000e+00> : vector<32x128xf32>
    %111 = tpu.matmul %110, %30, %cst_59 {dimension_numbers = #tpu.dot_dimension_numbers<[1], [0], [0], [1], [0, 0, 1, 1], [], []>} : vector<32x128xbf16>, vector<128x128xbf16>, vector<32x128xf32> -> vector<32x128xf32>
    %112 = arith.truncf %111 : vector<32x128xf32> to vector<32x128xbf16>
    %c5_60 = arith.constant 5 : index
    %c0_61 = arith.constant 0 : index
    %c0_62 = arith.constant 0 : index
    %113 = vector.load %arg5[%c5_60, %c0_61, %c0_62] : memref<16x128x128xbf16, #tpu.memory_space<vmem>>, vector<1x128x128xbf16>
    %114 = vector.shape_cast %113 : vector<1x128x128xbf16> to vector<128x128xbf16>
    %cst_63 = arith.constant dense<0.000000e+00> : vector<32x128xf32>
    %115 = tpu.matmul %112, %114, %cst_63 {dimension_numbers = #tpu.dot_dimension_numbers<[1], [0], [0], [1], [0, 0, 1, 1], [], []>} : vector<32x128xbf16>, vector<128x128xbf16>, vector<32x128xf32> -> vector<32x128xf32>
    %116 = arith.addf %102, %115 : vector<32x128xf32>
    %c0_64 = arith.constant 0 : index
    %c6 = arith.constant 6 : index
    %117 = vector.load %arg4[%c0_64, %c6] : memref<32x16xi32, #tpu.memory_space<vmem>>, vector<32x1xi32>
    %118 = vector.broadcast %31 : vector<1x128xi32> to vector<32x128xi32>
    %119 = vector.broadcast %117 : vector<32x1xi32> to vector<32x128xi32>
    %120 = arith.cmpi eq, %118, %119 : vector<32x128xi32>
    %cst_65 = arith.constant 1.000000e+00 : f32
    %cst_66 = arith.constant 0.000000e+00 : f32
    %121 = vector.broadcast %cst_65 : f32 to vector<32x128xf32>
    %122 = vector.broadcast %cst_66 : f32 to vector<32x128xf32>
    %123 = arith.select %120, %121, %122 : vector<32x128xi1>, vector<32x128xf32>
    %124 = arith.truncf %123 : vector<32x128xf32> to vector<32x128xbf16>
    %cst_67 = arith.constant dense<0.000000e+00> : vector<32x128xf32>
    %125 = tpu.matmul %124, %30, %cst_67 {dimension_numbers = #tpu.dot_dimension_numbers<[1], [0], [0], [1], [0, 0, 1, 1], [], []>} : vector<32x128xbf16>, vector<128x128xbf16>, vector<32x128xf32> -> vector<32x128xf32>
    %126 = arith.truncf %125 : vector<32x128xf32> to vector<32x128xbf16>
    %c6_68 = arith.constant 6 : index
    %c0_69 = arith.constant 0 : index
    %c0_70 = arith.constant 0 : index
    %127 = vector.load %arg5[%c6_68, %c0_69, %c0_70] : memref<16x128x128xbf16, #tpu.memory_space<vmem>>, vector<1x128x128xbf16>
    %128 = vector.shape_cast %127 : vector<1x128x128xbf16> to vector<128x128xbf16>
    %cst_71 = arith.constant dense<0.000000e+00> : vector<32x128xf32>
    %129 = tpu.matmul %126, %128, %cst_71 {dimension_numbers = #tpu.dot_dimension_numbers<[1], [0], [0], [1], [0, 0, 1, 1], [], []>} : vector<32x128xbf16>, vector<128x128xbf16>, vector<32x128xf32> -> vector<32x128xf32>
    %130 = arith.addf %116, %129 : vector<32x128xf32>
    %c0_72 = arith.constant 0 : index
    %c7 = arith.constant 7 : index
    %131 = vector.load %arg4[%c0_72, %c7] : memref<32x16xi32, #tpu.memory_space<vmem>>, vector<32x1xi32>
    %132 = vector.broadcast %31 : vector<1x128xi32> to vector<32x128xi32>
    %133 = vector.broadcast %131 : vector<32x1xi32> to vector<32x128xi32>
    %134 = arith.cmpi eq, %132, %133 : vector<32x128xi32>
    %cst_73 = arith.constant 1.000000e+00 : f32
    %cst_74 = arith.constant 0.000000e+00 : f32
    %135 = vector.broadcast %cst_73 : f32 to vector<32x128xf32>
    %136 = vector.broadcast %cst_74 : f32 to vector<32x128xf32>
    %137 = arith.select %134, %135, %136 : vector<32x128xi1>, vector<32x128xf32>
    %138 = arith.truncf %137 : vector<32x128xf32> to vector<32x128xbf16>
    %cst_75 = arith.constant dense<0.000000e+00> : vector<32x128xf32>
    %139 = tpu.matmul %138, %30, %cst_75 {dimension_numbers = #tpu.dot_dimension_numbers<[1], [0], [0], [1], [0, 0, 1, 1], [], []>} : vector<32x128xbf16>, vector<128x128xbf16>, vector<32x128xf32> -> vector<32x128xf32>
    %140 = arith.truncf %139 : vector<32x128xf32> to vector<32x128xbf16>
    %c7_76 = arith.constant 7 : index
    %c0_77 = arith.constant 0 : index
    %c0_78 = arith.constant 0 : index
    %141 = vector.load %arg5[%c7_76, %c0_77, %c0_78] : memref<16x128x128xbf16, #tpu.memory_space<vmem>>, vector<1x128x128xbf16>
    %142 = vector.shape_cast %141 : vector<1x128x128xbf16> to vector<128x128xbf16>
    %cst_79 = arith.constant dense<0.000000e+00> : vector<32x128xf32>
    %143 = tpu.matmul %140, %142, %cst_79 {dimension_numbers = #tpu.dot_dimension_numbers<[1], [0], [0], [1], [0, 0, 1, 1], [], []>} : vector<32x128xbf16>, vector<128x128xbf16>, vector<32x128xf32> -> vector<32x128xf32>
    %144 = arith.addf %130, %143 : vector<32x128xf32>
    %c0_80 = arith.constant 0 : index
    %c8 = arith.constant 8 : index
    %145 = vector.load %arg4[%c0_80, %c8] : memref<32x16xi32, #tpu.memory_space<vmem>>, vector<32x1xi32>
    %146 = vector.broadcast %31 : vector<1x128xi32> to vector<32x128xi32>
    %147 = vector.broadcast %145 : vector<32x1xi32> to vector<32x128xi32>
    %148 = arith.cmpi eq, %146, %147 : vector<32x128xi32>
    %cst_81 = arith.constant 1.000000e+00 : f32
    %cst_82 = arith.constant 0.000000e+00 : f32
    %149 = vector.broadcast %cst_81 : f32 to vector<32x128xf32>
    %150 = vector.broadcast %cst_82 : f32 to vector<32x128xf32>
    %151 = arith.select %148, %149, %150 : vector<32x128xi1>, vector<32x128xf32>
    %152 = arith.truncf %151 : vector<32x128xf32> to vector<32x128xbf16>
    %cst_83 = arith.constant dense<0.000000e+00> : vector<32x128xf32>
    %153 = tpu.matmul %152, %30, %cst_83 {dimension_numbers = #tpu.dot_dimension_numbers<[1], [0], [0], [1], [0, 0, 1, 1], [], []>} : vector<32x128xbf16>, vector<128x128xbf16>, vector<32x128xf32> -> vector<32x128xf32>
    %154 = arith.truncf %153 : vector<32x128xf32> to vector<32x128xbf16>
    %c8_84 = arith.constant 8 : index
    %c0_85 = arith.constant 0 : index
    %c0_86 = arith.constant 0 : index
    %155 = vector.load %arg5[%c8_84, %c0_85, %c0_86] : memref<16x128x128xbf16, #tpu.memory_space<vmem>>, vector<1x128x128xbf16>
    %156 = vector.shape_cast %155 : vector<1x128x128xbf16> to vector<128x128xbf16>
    %cst_87 = arith.constant dense<0.000000e+00> : vector<32x128xf32>
    %157 = tpu.matmul %154, %156, %cst_87 {dimension_numbers = #tpu.dot_dimension_numbers<[1], [0], [0], [1], [0, 0, 1, 1], [], []>} : vector<32x128xbf16>, vector<128x128xbf16>, vector<32x128xf32> -> vector<32x128xf32>
    %158 = arith.addf %144, %157 : vector<32x128xf32>
    %c0_88 = arith.constant 0 : index
    %c9 = arith.constant 9 : index
    %159 = vector.load %arg4[%c0_88, %c9] : memref<32x16xi32, #tpu.memory_space<vmem>>, vector<32x1xi32>
    %160 = vector.broadcast %31 : vector<1x128xi32> to vector<32x128xi32>
    %161 = vector.broadcast %159 : vector<32x1xi32> to vector<32x128xi32>
    %162 = arith.cmpi eq, %160, %161 : vector<32x128xi32>
    %cst_89 = arith.constant 1.000000e+00 : f32
    %cst_90 = arith.constant 0.000000e+00 : f32
    %163 = vector.broadcast %cst_89 : f32 to vector<32x128xf32>
    %164 = vector.broadcast %cst_90 : f32 to vector<32x128xf32>
    %165 = arith.select %162, %163, %164 : vector<32x128xi1>, vector<32x128xf32>
    %166 = arith.truncf %165 : vector<32x128xf32> to vector<32x128xbf16>
    %cst_91 = arith.constant dense<0.000000e+00> : vector<32x128xf32>
    %167 = tpu.matmul %166, %30, %cst_91 {dimension_numbers = #tpu.dot_dimension_numbers<[1], [0], [0], [1], [0, 0, 1, 1], [], []>} : vector<32x128xbf16>, vector<128x128xbf16>, vector<32x128xf32> -> vector<32x128xf32>
    %168 = arith.truncf %167 : vector<32x128xf32> to vector<32x128xbf16>
    %c9_92 = arith.constant 9 : index
    %c0_93 = arith.constant 0 : index
    %c0_94 = arith.constant 0 : index
    %169 = vector.load %arg5[%c9_92, %c0_93, %c0_94] : memref<16x128x128xbf16, #tpu.memory_space<vmem>>, vector<1x128x128xbf16>
    %170 = vector.shape_cast %169 : vector<1x128x128xbf16> to vector<128x128xbf16>
    %cst_95 = arith.constant dense<0.000000e+00> : vector<32x128xf32>
    %171 = tpu.matmul %168, %170, %cst_95 {dimension_numbers = #tpu.dot_dimension_numbers<[1], [0], [0], [1], [0, 0, 1, 1], [], []>} : vector<32x128xbf16>, vector<128x128xbf16>, vector<32x128xf32> -> vector<32x128xf32>
    %172 = arith.addf %158, %171 : vector<32x128xf32>
    %c0_96 = arith.constant 0 : index
    %c10 = arith.constant 10 : index
    %173 = vector.load %arg4[%c0_96, %c10] : memref<32x16xi32, #tpu.memory_space<vmem>>, vector<32x1xi32>
    %174 = vector.broadcast %31 : vector<1x128xi32> to vector<32x128xi32>
    %175 = vector.broadcast %173 : vector<32x1xi32> to vector<32x128xi32>
    %176 = arith.cmpi eq, %174, %175 : vector<32x128xi32>
    %cst_97 = arith.constant 1.000000e+00 : f32
    %cst_98 = arith.constant 0.000000e+00 : f32
    %177 = vector.broadcast %cst_97 : f32 to vector<32x128xf32>
    %178 = vector.broadcast %cst_98 : f32 to vector<32x128xf32>
    %179 = arith.select %176, %177, %178 : vector<32x128xi1>, vector<32x128xf32>
    %180 = arith.truncf %179 : vector<32x128xf32> to vector<32x128xbf16>
    %cst_99 = arith.constant dense<0.000000e+00> : vector<32x128xf32>
    %181 = tpu.matmul %180, %30, %cst_99 {dimension_numbers = #tpu.dot_dimension_numbers<[1], [0], [0], [1], [0, 0, 1, 1], [], []>} : vector<32x128xbf16>, vector<128x128xbf16>, vector<32x128xf32> -> vector<32x128xf32>
    %182 = arith.truncf %181 : vector<32x128xf32> to vector<32x128xbf16>
    %c10_100 = arith.constant 10 : index
    %c0_101 = arith.constant 0 : index
    %c0_102 = arith.constant 0 : index
    %183 = vector.load %arg5[%c10_100, %c0_101, %c0_102] : memref<16x128x128xbf16, #tpu.memory_space<vmem>>, vector<1x128x128xbf16>
    %184 = vector.shape_cast %183 : vector<1x128x128xbf16> to vector<128x128xbf16>
    %cst_103 = arith.constant dense<0.000000e+00> : vector<32x128xf32>
    %185 = tpu.matmul %182, %184, %cst_103 {dimension_numbers = #tpu.dot_dimension_numbers<[1], [0], [0], [1], [0, 0, 1, 1], [], []>} : vector<32x128xbf16>, vector<128x128xbf16>, vector<32x128xf32> -> vector<32x128xf32>
    %186 = arith.addf %172, %185 : vector<32x128xf32>
    %c0_104 = arith.constant 0 : index
    %c11 = arith.constant 11 : index
    %187 = vector.load %arg4[%c0_104, %c11] : memref<32x16xi32, #tpu.memory_space<vmem>>, vector<32x1xi32>
    %188 = vector.broadcast %31 : vector<1x128xi32> to vector<32x128xi32>
    %189 = vector.broadcast %187 : vector<32x1xi32> to vector<32x128xi32>
    %190 = arith.cmpi eq, %188, %189 : vector<32x128xi32>
    %cst_105 = arith.constant 1.000000e+00 : f32
    %cst_106 = arith.constant 0.000000e+00 : f32
    %191 = vector.broadcast %cst_105 : f32 to vector<32x128xf32>
    %192 = vector.broadcast %cst_106 : f32 to vector<32x128xf32>
    %193 = arith.select %190, %191, %192 : vector<32x128xi1>, vector<32x128xf32>
    %194 = arith.truncf %193 : vector<32x128xf32> to vector<32x128xbf16>
    %cst_107 = arith.constant dense<0.000000e+00> : vector<32x128xf32>
    %195 = tpu.matmul %194, %30, %cst_107 {dimension_numbers = #tpu.dot_dimension_numbers<[1], [0], [0], [1], [0, 0, 1, 1], [], []>} : vector<32x128xbf16>, vector<128x128xbf16>, vector<32x128xf32> -> vector<32x128xf32>
    %196 = arith.truncf %195 : vector<32x128xf32> to vector<32x128xbf16>
    %c11_108 = arith.constant 11 : index
    %c0_109 = arith.constant 0 : index
    %c0_110 = arith.constant 0 : index
    %197 = vector.load %arg5[%c11_108, %c0_109, %c0_110] : memref<16x128x128xbf16, #tpu.memory_space<vmem>>, vector<1x128x128xbf16>
    %198 = vector.shape_cast %197 : vector<1x128x128xbf16> to vector<128x128xbf16>
    %cst_111 = arith.constant dense<0.000000e+00> : vector<32x128xf32>
    %199 = tpu.matmul %196, %198, %cst_111 {dimension_numbers = #tpu.dot_dimension_numbers<[1], [0], [0], [1], [0, 0, 1, 1], [], []>} : vector<32x128xbf16>, vector<128x128xbf16>, vector<32x128xf32> -> vector<32x128xf32>
    %200 = arith.addf %186, %199 : vector<32x128xf32>
    %c0_112 = arith.constant 0 : index
    %c12 = arith.constant 12 : index
    %201 = vector.load %arg4[%c0_112, %c12] : memref<32x16xi32, #tpu.memory_space<vmem>>, vector<32x1xi32>
    %202 = vector.broadcast %31 : vector<1x128xi32> to vector<32x128xi32>
    %203 = vector.broadcast %201 : vector<32x1xi32> to vector<32x128xi32>
    %204 = arith.cmpi eq, %202, %203 : vector<32x128xi32>
    %cst_113 = arith.constant 1.000000e+00 : f32
    %cst_114 = arith.constant 0.000000e+00 : f32
    %205 = vector.broadcast %cst_113 : f32 to vector<32x128xf32>
    %206 = vector.broadcast %cst_114 : f32 to vector<32x128xf32>
    %207 = arith.select %204, %205, %206 : vector<32x128xi1>, vector<32x128xf32>
    %208 = arith.truncf %207 : vector<32x128xf32> to vector<32x128xbf16>
    %cst_115 = arith.constant dense<0.000000e+00> : vector<32x128xf32>
    %209 = tpu.matmul %208, %30, %cst_115 {dimension_numbers = #tpu.dot_dimension_numbers<[1], [0], [0], [1], [0, 0, 1, 1], [], []>} : vector<32x128xbf16>, vector<128x128xbf16>, vector<32x128xf32> -> vector<32x128xf32>
    %210 = arith.truncf %209 : vector<32x128xf32> to vector<32x128xbf16>
    %c12_116 = arith.constant 12 : index
    %c0_117 = arith.constant 0 : index
    %c0_118 = arith.constant 0 : index
    %211 = vector.load %arg5[%c12_116, %c0_117, %c0_118] : memref<16x128x128xbf16, #tpu.memory_space<vmem>>, vector<1x128x128xbf16>
    %212 = vector.shape_cast %211 : vector<1x128x128xbf16> to vector<128x128xbf16>
    %cst_119 = arith.constant dense<0.000000e+00> : vector<32x128xf32>
    %213 = tpu.matmul %210, %212, %cst_119 {dimension_numbers = #tpu.dot_dimension_numbers<[1], [0], [0], [1], [0, 0, 1, 1], [], []>} : vector<32x128xbf16>, vector<128x128xbf16>, vector<32x128xf32> -> vector<32x128xf32>
    %214 = arith.addf %200, %213 : vector<32x128xf32>
    %c0_120 = arith.constant 0 : index
    %c13 = arith.constant 13 : index
    %215 = vector.load %arg4[%c0_120, %c13] : memref<32x16xi32, #tpu.memory_space<vmem>>, vector<32x1xi32>
    %216 = vector.broadcast %31 : vector<1x128xi32> to vector<32x128xi32>
    %217 = vector.broadcast %215 : vector<32x1xi32> to vector<32x128xi32>
    %218 = arith.cmpi eq, %216, %217 : vector<32x128xi32>
    %cst_121 = arith.constant 1.000000e+00 : f32
    %cst_122 = arith.constant 0.000000e+00 : f32
    %219 = vector.broadcast %cst_121 : f32 to vector<32x128xf32>
    %220 = vector.broadcast %cst_122 : f32 to vector<32x128xf32>
    %221 = arith.select %218, %219, %220 : vector<32x128xi1>, vector<32x128xf32>
    %222 = arith.truncf %221 : vector<32x128xf32> to vector<32x128xbf16>
    %cst_123 = arith.constant dense<0.000000e+00> : vector<32x128xf32>
    %223 = tpu.matmul %222, %30, %cst_123 {dimension_numbers = #tpu.dot_dimension_numbers<[1], [0], [0], [1], [0, 0, 1, 1], [], []>} : vector<32x128xbf16>, vector<128x128xbf16>, vector<32x128xf32> -> vector<32x128xf32>
    %224 = arith.truncf %223 : vector<32x128xf32> to vector<32x128xbf16>
    %c13_124 = arith.constant 13 : index
    %c0_125 = arith.constant 0 : index
    %c0_126 = arith.constant 0 : index
    %225 = vector.load %arg5[%c13_124, %c0_125, %c0_126] : memref<16x128x128xbf16, #tpu.memory_space<vmem>>, vector<1x128x128xbf16>
    %226 = vector.shape_cast %225 : vector<1x128x128xbf16> to vector<128x128xbf16>
    %cst_127 = arith.constant dense<0.000000e+00> : vector<32x128xf32>
    %227 = tpu.matmul %224, %226, %cst_127 {dimension_numbers = #tpu.dot_dimension_numbers<[1], [0], [0], [1], [0, 0, 1, 1], [], []>} : vector<32x128xbf16>, vector<128x128xbf16>, vector<32x128xf32> -> vector<32x128xf32>
    %228 = arith.addf %214, %227 : vector<32x128xf32>
    %c0_128 = arith.constant 0 : index
    %c14 = arith.constant 14 : index
    %229 = vector.load %arg4[%c0_128, %c14] : memref<32x16xi32, #tpu.memory_space<vmem>>, vector<32x1xi32>
    %230 = vector.broadcast %31 : vector<1x128xi32> to vector<32x128xi32>
    %231 = vector.broadcast %229 : vector<32x1xi32> to vector<32x128xi32>
    %232 = arith.cmpi eq, %230, %231 : vector<32x128xi32>
    %cst_129 = arith.constant 1.000000e+00 : f32
    %cst_130 = arith.constant 0.000000e+00 : f32
    %233 = vector.broadcast %cst_129 : f32 to vector<32x128xf32>
    %234 = vector.broadcast %cst_130 : f32 to vector<32x128xf32>
    %235 = arith.select %232, %233, %234 : vector<32x128xi1>, vector<32x128xf32>
    %236 = arith.truncf %235 : vector<32x128xf32> to vector<32x128xbf16>
    %cst_131 = arith.constant dense<0.000000e+00> : vector<32x128xf32>
    %237 = tpu.matmul %236, %30, %cst_131 {dimension_numbers = #tpu.dot_dimension_numbers<[1], [0], [0], [1], [0, 0, 1, 1], [], []>} : vector<32x128xbf16>, vector<128x128xbf16>, vector<32x128xf32> -> vector<32x128xf32>
    %238 = arith.truncf %237 : vector<32x128xf32> to vector<32x128xbf16>
    %c14_132 = arith.constant 14 : index
    %c0_133 = arith.constant 0 : index
    %c0_134 = arith.constant 0 : index
    %239 = vector.load %arg5[%c14_132, %c0_133, %c0_134] : memref<16x128x128xbf16, #tpu.memory_space<vmem>>, vector<1x128x128xbf16>
    %240 = vector.shape_cast %239 : vector<1x128x128xbf16> to vector<128x128xbf16>
    %cst_135 = arith.constant dense<0.000000e+00> : vector<32x128xf32>
    %241 = tpu.matmul %238, %240, %cst_135 {dimension_numbers = #tpu.dot_dimension_numbers<[1], [0], [0], [1], [0, 0, 1, 1], [], []>} : vector<32x128xbf16>, vector<128x128xbf16>, vector<32x128xf32> -> vector<32x128xf32>
    %242 = arith.addf %228, %241 : vector<32x128xf32>
    %c0_136 = arith.constant 0 : index
    %c15 = arith.constant 15 : index
    %243 = vector.load %arg4[%c0_136, %c15] : memref<32x16xi32, #tpu.memory_space<vmem>>, vector<32x1xi32>
    %244 = vector.broadcast %31 : vector<1x128xi32> to vector<32x128xi32>
    %245 = vector.broadcast %243 : vector<32x1xi32> to vector<32x128xi32>
    %246 = arith.cmpi eq, %244, %245 : vector<32x128xi32>
    %cst_137 = arith.constant 1.000000e+00 : f32
    %cst_138 = arith.constant 0.000000e+00 : f32
    %247 = vector.broadcast %cst_137 : f32 to vector<32x128xf32>
    %248 = vector.broadcast %cst_138 : f32 to vector<32x128xf32>
    %249 = arith.select %246, %247, %248 : vector<32x128xi1>, vector<32x128xf32>
    %250 = arith.truncf %249 : vector<32x128xf32> to vector<32x128xbf16>
    %cst_139 = arith.constant dense<0.000000e+00> : vector<32x128xf32>
    %251 = tpu.matmul %250, %30, %cst_139 {dimension_numbers = #tpu.dot_dimension_numbers<[1], [0], [0], [1], [0, 0, 1, 1], [], []>} : vector<32x128xbf16>, vector<128x128xbf16>, vector<32x128xf32> -> vector<32x128xf32>
    %252 = arith.truncf %251 : vector<32x128xf32> to vector<32x128xbf16>
    %c15_140 = arith.constant 15 : index
    %c0_141 = arith.constant 0 : index
    %c0_142 = arith.constant 0 : index
    %253 = vector.load %arg5[%c15_140, %c0_141, %c0_142] : memref<16x128x128xbf16, #tpu.memory_space<vmem>>, vector<1x128x128xbf16>
    %254 = vector.shape_cast %253 : vector<1x128x128xbf16> to vector<128x128xbf16>
    %cst_143 = arith.constant dense<0.000000e+00> : vector<32x128xf32>
    %255 = tpu.matmul %252, %254, %cst_143 {dimension_numbers = #tpu.dot_dimension_numbers<[1], [0], [0], [1], [0, 0, 1, 1], [], []>} : vector<32x128xbf16>, vector<128x128xbf16>, vector<32x128xf32> -> vector<32x128xf32>
    %256 = arith.addf %242, %255 : vector<32x128xf32>
    %cst_144 = arith.constant 0.000000e+00 : f32
    %257 = vector.broadcast %cst_144 : f32 to vector<32x128xf32>
    %258 = arith.cmpf oge, %256, %257 : vector<32x128xf32>
    %cst_145 = arith.constant 2.000000e-01 : f32
    %259 = vector.broadcast %cst_145 : f32 to vector<32x128xf32>
    %260 = arith.mulf %259, %256 : vector<32x128xf32>
    %261 = arith.select %258, %256, %260 : vector<32x128xi1>, vector<32x128xf32>
    %cst_146 = arith.constant dense<0.000000e+00> : vector<128xf32>
    %262 = vector.multi_reduction <add>, %261, %cst_146 [0] : vector<32x128xf32> to vector<128xf32>
    %263 = vector.shape_cast %262 : vector<128xf32> to vector<1x128xf32>
    %cst_147 = arith.constant 3.125000e-02 : f32
    %264 = vector.broadcast %cst_147 : f32 to vector<1x128xf32>
    %265 = arith.mulf %263, %264 : vector<1x128xf32>
    %266 = vector.broadcast %265 : vector<1x128xf32> to vector<32x128xf32>
    %267 = arith.subf %261, %266 : vector<32x128xf32>
    %268 = arith.mulf %267, %267 : vector<32x128xf32>
    %cst_148 = arith.constant dense<0.000000e+00> : vector<128xf32>
    %269 = vector.multi_reduction <add>, %268, %cst_148 [0] : vector<32x128xf32> to vector<128xf32>
    %270 = vector.shape_cast %269 : vector<128xf32> to vector<1x128xf32>
    %cst_149 = arith.constant 3.125000e-02 : f32
    %271 = vector.broadcast %cst_149 : f32 to vector<1x128xf32>
    %272 = arith.mulf %270, %271 : vector<1x128xf32>
    %cst_150 = arith.constant 9.99999974E-6 : f32
    %273 = vector.broadcast %cst_150 : f32 to vector<1x128xf32>
    %274 = arith.addf %272, %273 : vector<1x128xf32>
    %275 = math.rsqrt %274 : vector<1x128xf32>
    %276 = vector.broadcast %275 : vector<1x128xf32> to vector<32x128xf32>
    %277 = arith.mulf %267, %276 : vector<32x128xf32>
    %c0_151 = arith.constant 0 : index
    %c0_152 = arith.constant 0 : index
    %278 = vector.load %arg6[%c0_151, %c0_152] : memref<1x128xf32, #tpu.memory_space<vmem>>, vector<1x128xf32>
    %279 = vector.broadcast %278 : vector<1x128xf32> to vector<32x128xf32>
    %280 = arith.mulf %277, %279 : vector<32x128xf32>
    %c0_153 = arith.constant 0 : index
    %c0_154 = arith.constant 0 : index
    %281 = vector.load %arg7[%c0_153, %c0_154] : memref<1x128xf32, #tpu.memory_space<vmem>>, vector<1x128xf32>
    %282 = vector.broadcast %281 : vector<1x128xf32> to vector<32x128xf32>
    %283 = arith.addf %280, %282 : vector<32x128xf32>
    %284 = arith.truncf %283 : vector<32x128xf32> to vector<32x128xbf16>
    %285 = tpu.iota {dimensions = array<i32: 1>} : vector<1x32xi32>
    %cst_155 = arith.constant 0.000000e+00 : f32
    %286 = vector.broadcast %cst_155 : f32 to vector<8x128xf32>
    %c0_156 = arith.constant 0 : index
    %c0_157 = arith.constant 0 : index
    %287 = vector.load %arg8[%c0_156, %c0_157] : memref<8x16xi32, #tpu.memory_space<vmem>>, vector<8x1xi32>
    %288 = vector.broadcast %285 : vector<1x32xi32> to vector<8x32xi32>
    %289 = vector.broadcast %287 : vector<8x1xi32> to vector<8x32xi32>
    %290 = arith.cmpi eq, %288, %289 : vector<8x32xi32>
    %cst_158 = arith.constant 1.000000e+00 : f32
    %cst_159 = arith.constant 0.000000e+00 : f32
    %291 = vector.broadcast %cst_158 : f32 to vector<8x32xf32>
    %292 = vector.broadcast %cst_159 : f32 to vector<8x32xf32>
    %293 = arith.select %290, %291, %292 : vector<8x32xi1>, vector<8x32xf32>
    %294 = arith.truncf %293 : vector<8x32xf32> to vector<8x32xbf16>
    %cst_160 = arith.constant dense<0.000000e+00> : vector<8x128xf32>
    %295 = tpu.matmul %294, %284, %cst_160 {dimension_numbers = #tpu.dot_dimension_numbers<[1], [0], [0], [1], [0, 0, 1, 1], [], []>} : vector<8x32xbf16>, vector<32x128xbf16>, vector<8x128xf32> -> vector<8x128xf32>
    %296 = arith.truncf %295 : vector<8x128xf32> to vector<8x128xbf16>
    %c0_161 = arith.constant 0 : index
    %c0_162 = arith.constant 0 : index
    %c0_163 = arith.constant 0 : index
    %297 = vector.load %arg9[%c0_161, %c0_162, %c0_163] : memref<16x128x128xbf16, #tpu.memory_space<vmem>>, vector<1x128x128xbf16>
    %298 = vector.shape_cast %297 : vector<1x128x128xbf16> to vector<128x128xbf16>
    %cst_164 = arith.constant dense<0.000000e+00> : vector<8x128xf32>
    %299 = tpu.matmul %296, %298, %cst_164 {dimension_numbers = #tpu.dot_dimension_numbers<[1], [0], [0], [1], [0, 0, 1, 1], [], []>} : vector<8x128xbf16>, vector<128x128xbf16>, vector<8x128xf32> -> vector<8x128xf32>
    %300 = arith.addf %286, %299 : vector<8x128xf32>
    %c0_165 = arith.constant 0 : index
    %c1_166 = arith.constant 1 : index
    %301 = vector.load %arg8[%c0_165, %c1_166] : memref<8x16xi32, #tpu.memory_space<vmem>>, vector<8x1xi32>
    %302 = vector.broadcast %285 : vector<1x32xi32> to vector<8x32xi32>
    %303 = vector.broadcast %301 : vector<8x1xi32> to vector<8x32xi32>
    %304 = arith.cmpi eq, %302, %303 : vector<8x32xi32>
    %cst_167 = arith.constant 1.000000e+00 : f32
    %cst_168 = arith.constant 0.000000e+00 : f32
    %305 = vector.broadcast %cst_167 : f32 to vector<8x32xf32>
    %306 = vector.broadcast %cst_168 : f32 to vector<8x32xf32>
    %307 = arith.select %304, %305, %306 : vector<8x32xi1>, vector<8x32xf32>
    %308 = arith.truncf %307 : vector<8x32xf32> to vector<8x32xbf16>
    %cst_169 = arith.constant dense<0.000000e+00> : vector<8x128xf32>
    %309 = tpu.matmul %308, %284, %cst_169 {dimension_numbers = #tpu.dot_dimension_numbers<[1], [0], [0], [1], [0, 0, 1, 1], [], []>} : vector<8x32xbf16>, vector<32x128xbf16>, vector<8x128xf32> -> vector<8x128xf32>
    %310 = arith.truncf %309 : vector<8x128xf32> to vector<8x128xbf16>
    %c1_170 = arith.constant 1 : index
    %c0_171 = arith.constant 0 : index
    %c0_172 = arith.constant 0 : index
    %311 = vector.load %arg9[%c1_170, %c0_171, %c0_172] : memref<16x128x128xbf16, #tpu.memory_space<vmem>>, vector<1x128x128xbf16>
    %312 = vector.shape_cast %311 : vector<1x128x128xbf16> to vector<128x128xbf16>
    %cst_173 = arith.constant dense<0.000000e+00> : vector<8x128xf32>
    %313 = tpu.matmul %310, %312, %cst_173 {dimension_numbers = #tpu.dot_dimension_numbers<[1], [0], [0], [1], [0, 0, 1, 1], [], []>} : vector<8x128xbf16>, vector<128x128xbf16>, vector<8x128xf32> -> vector<8x128xf32>
    %314 = arith.addf %300, %313 : vector<8x128xf32>
    %c0_174 = arith.constant 0 : index
    %c2_175 = arith.constant 2 : index
    %315 = vector.load %arg8[%c0_174, %c2_175] : memref<8x16xi32, #tpu.memory_space<vmem>>, vector<8x1xi32>
    %316 = vector.broadcast %285 : vector<1x32xi32> to vector<8x32xi32>
    %317 = vector.broadcast %315 : vector<8x1xi32> to vector<8x32xi32>
    %318 = arith.cmpi eq, %316, %317 : vector<8x32xi32>
    %cst_176 = arith.constant 1.000000e+00 : f32
    %cst_177 = arith.constant 0.000000e+00 : f32
    %319 = vector.broadcast %cst_176 : f32 to vector<8x32xf32>
    %320 = vector.broadcast %cst_177 : f32 to vector<8x32xf32>
    %321 = arith.select %318, %319, %320 : vector<8x32xi1>, vector<8x32xf32>
    %322 = arith.truncf %321 : vector<8x32xf32> to vector<8x32xbf16>
    %cst_178 = arith.constant dense<0.000000e+00> : vector<8x128xf32>
    %323 = tpu.matmul %322, %284, %cst_178 {dimension_numbers = #tpu.dot_dimension_numbers<[1], [0], [0], [1], [0, 0, 1, 1], [], []>} : vector<8x32xbf16>, vector<32x128xbf16>, vector<8x128xf32> -> vector<8x128xf32>
    %324 = arith.truncf %323 : vector<8x128xf32> to vector<8x128xbf16>
    %c2_179 = arith.constant 2 : index
    %c0_180 = arith.constant 0 : index
    %c0_181 = arith.constant 0 : index
    %325 = vector.load %arg9[%c2_179, %c0_180, %c0_181] : memref<16x128x128xbf16, #tpu.memory_space<vmem>>, vector<1x128x128xbf16>
    %326 = vector.shape_cast %325 : vector<1x128x128xbf16> to vector<128x128xbf16>
    %cst_182 = arith.constant dense<0.000000e+00> : vector<8x128xf32>
    %327 = tpu.matmul %324, %326, %cst_182 {dimension_numbers = #tpu.dot_dimension_numbers<[1], [0], [0], [1], [0, 0, 1, 1], [], []>} : vector<8x128xbf16>, vector<128x128xbf16>, vector<8x128xf32> -> vector<8x128xf32>
    %328 = arith.addf %314, %327 : vector<8x128xf32>
    %c0_183 = arith.constant 0 : index
    %c3_184 = arith.constant 3 : index
    %329 = vector.load %arg8[%c0_183, %c3_184] : memref<8x16xi32, #tpu.memory_space<vmem>>, vector<8x1xi32>
    %330 = vector.broadcast %285 : vector<1x32xi32> to vector<8x32xi32>
    %331 = vector.broadcast %329 : vector<8x1xi32> to vector<8x32xi32>
    %332 = arith.cmpi eq, %330, %331 : vector<8x32xi32>
    %cst_185 = arith.constant 1.000000e+00 : f32
    %cst_186 = arith.constant 0.000000e+00 : f32
    %333 = vector.broadcast %cst_185 : f32 to vector<8x32xf32>
    %334 = vector.broadcast %cst_186 : f32 to vector<8x32xf32>
    %335 = arith.select %332, %333, %334 : vector<8x32xi1>, vector<8x32xf32>
    %336 = arith.truncf %335 : vector<8x32xf32> to vector<8x32xbf16>
    %cst_187 = arith.constant dense<0.000000e+00> : vector<8x128xf32>
    %337 = tpu.matmul %336, %284, %cst_187 {dimension_numbers = #tpu.dot_dimension_numbers<[1], [0], [0], [1], [0, 0, 1, 1], [], []>} : vector<8x32xbf16>, vector<32x128xbf16>, vector<8x128xf32> -> vector<8x128xf32>
    %338 = arith.truncf %337 : vector<8x128xf32> to vector<8x128xbf16>
    %c3_188 = arith.constant 3 : index
    %c0_189 = arith.constant 0 : index
    %c0_190 = arith.constant 0 : index
    %339 = vector.load %arg9[%c3_188, %c0_189, %c0_190] : memref<16x128x128xbf16, #tpu.memory_space<vmem>>, vector<1x128x128xbf16>
    %340 = vector.shape_cast %339 : vector<1x128x128xbf16> to vector<128x128xbf16>
    %cst_191 = arith.constant dense<0.000000e+00> : vector<8x128xf32>
    %341 = tpu.matmul %338, %340, %cst_191 {dimension_numbers = #tpu.dot_dimension_numbers<[1], [0], [0], [1], [0, 0, 1, 1], [], []>} : vector<8x128xbf16>, vector<128x128xbf16>, vector<8x128xf32> -> vector<8x128xf32>
    %342 = arith.addf %328, %341 : vector<8x128xf32>
    %c0_192 = arith.constant 0 : index
    %c4_193 = arith.constant 4 : index
    %343 = vector.load %arg8[%c0_192, %c4_193] : memref<8x16xi32, #tpu.memory_space<vmem>>, vector<8x1xi32>
    %344 = vector.broadcast %285 : vector<1x32xi32> to vector<8x32xi32>
    %345 = vector.broadcast %343 : vector<8x1xi32> to vector<8x32xi32>
    %346 = arith.cmpi eq, %344, %345 : vector<8x32xi32>
    %cst_194 = arith.constant 1.000000e+00 : f32
    %cst_195 = arith.constant 0.000000e+00 : f32
    %347 = vector.broadcast %cst_194 : f32 to vector<8x32xf32>
    %348 = vector.broadcast %cst_195 : f32 to vector<8x32xf32>
    %349 = arith.select %346, %347, %348 : vector<8x32xi1>, vector<8x32xf32>
    %350 = arith.truncf %349 : vector<8x32xf32> to vector<8x32xbf16>
    %cst_196 = arith.constant dense<0.000000e+00> : vector<8x128xf32>
    %351 = tpu.matmul %350, %284, %cst_196 {dimension_numbers = #tpu.dot_dimension_numbers<[1], [0], [0], [1], [0, 0, 1, 1], [], []>} : vector<8x32xbf16>, vector<32x128xbf16>, vector<8x128xf32> -> vector<8x128xf32>
    %352 = arith.truncf %351 : vector<8x128xf32> to vector<8x128xbf16>
    %c4_197 = arith.constant 4 : index
    %c0_198 = arith.constant 0 : index
    %c0_199 = arith.constant 0 : index
    %353 = vector.load %arg9[%c4_197, %c0_198, %c0_199] : memref<16x128x128xbf16, #tpu.memory_space<vmem>>, vector<1x128x128xbf16>
    %354 = vector.shape_cast %353 : vector<1x128x128xbf16> to vector<128x128xbf16>
    %cst_200 = arith.constant dense<0.000000e+00> : vector<8x128xf32>
    %355 = tpu.matmul %352, %354, %cst_200 {dimension_numbers = #tpu.dot_dimension_numbers<[1], [0], [0], [1], [0, 0, 1, 1], [], []>} : vector<8x128xbf16>, vector<128x128xbf16>, vector<8x128xf32> -> vector<8x128xf32>
    %356 = arith.addf %342, %355 : vector<8x128xf32>
    %c0_201 = arith.constant 0 : index
    %c5_202 = arith.constant 5 : index
    %357 = vector.load %arg8[%c0_201, %c5_202] : memref<8x16xi32, #tpu.memory_space<vmem>>, vector<8x1xi32>
    %358 = vector.broadcast %285 : vector<1x32xi32> to vector<8x32xi32>
    %359 = vector.broadcast %357 : vector<8x1xi32> to vector<8x32xi32>
    %360 = arith.cmpi eq, %358, %359 : vector<8x32xi32>
    %cst_203 = arith.constant 1.000000e+00 : f32
    %cst_204 = arith.constant 0.000000e+00 : f32
    %361 = vector.broadcast %cst_203 : f32 to vector<8x32xf32>
    %362 = vector.broadcast %cst_204 : f32 to vector<8x32xf32>
    %363 = arith.select %360, %361, %362 : vector<8x32xi1>, vector<8x32xf32>
    %364 = arith.truncf %363 : vector<8x32xf32> to vector<8x32xbf16>
    %cst_205 = arith.constant dense<0.000000e+00> : vector<8x128xf32>
    %365 = tpu.matmul %364, %284, %cst_205 {dimension_numbers = #tpu.dot_dimension_numbers<[1], [0], [0], [1], [0, 0, 1, 1], [], []>} : vector<8x32xbf16>, vector<32x128xbf16>, vector<8x128xf32> -> vector<8x128xf32>
    %366 = arith.truncf %365 : vector<8x128xf32> to vector<8x128xbf16>
    %c5_206 = arith.constant 5 : index
    %c0_207 = arith.constant 0 : index
    %c0_208 = arith.constant 0 : index
    %367 = vector.load %arg9[%c5_206, %c0_207, %c0_208] : memref<16x128x128xbf16, #tpu.memory_space<vmem>>, vector<1x128x128xbf16>
    %368 = vector.shape_cast %367 : vector<1x128x128xbf16> to vector<128x128xbf16>
    %cst_209 = arith.constant dense<0.000000e+00> : vector<8x128xf32>
    %369 = tpu.matmul %366, %368, %cst_209 {dimension_numbers = #tpu.dot_dimension_numbers<[1], [0], [0], [1], [0, 0, 1, 1], [], []>} : vector<8x128xbf16>, vector<128x128xbf16>, vector<8x128xf32> -> vector<8x128xf32>
    %370 = arith.addf %356, %369 : vector<8x128xf32>
    %c0_210 = arith.constant 0 : index
    %c6_211 = arith.constant 6 : index
    %371 = vector.load %arg8[%c0_210, %c6_211] : memref<8x16xi32, #tpu.memory_space<vmem>>, vector<8x1xi32>
    %372 = vector.broadcast %285 : vector<1x32xi32> to vector<8x32xi32>
    %373 = vector.broadcast %371 : vector<8x1xi32> to vector<8x32xi32>
    %374 = arith.cmpi eq, %372, %373 : vector<8x32xi32>
    %cst_212 = arith.constant 1.000000e+00 : f32
    %cst_213 = arith.constant 0.000000e+00 : f32
    %375 = vector.broadcast %cst_212 : f32 to vector<8x32xf32>
    %376 = vector.broadcast %cst_213 : f32 to vector<8x32xf32>
    %377 = arith.select %374, %375, %376 : vector<8x32xi1>, vector<8x32xf32>
    %378 = arith.truncf %377 : vector<8x32xf32> to vector<8x32xbf16>
    %cst_214 = arith.constant dense<0.000000e+00> : vector<8x128xf32>
    %379 = tpu.matmul %378, %284, %cst_214 {dimension_numbers = #tpu.dot_dimension_numbers<[1], [0], [0], [1], [0, 0, 1, 1], [], []>} : vector<8x32xbf16>, vector<32x128xbf16>, vector<8x128xf32> -> vector<8x128xf32>
    %380 = arith.truncf %379 : vector<8x128xf32> to vector<8x128xbf16>
    %c6_215 = arith.constant 6 : index
    %c0_216 = arith.constant 0 : index
    %c0_217 = arith.constant 0 : index
    %381 = vector.load %arg9[%c6_215, %c0_216, %c0_217] : memref<16x128x128xbf16, #tpu.memory_space<vmem>>, vector<1x128x128xbf16>
    %382 = vector.shape_cast %381 : vector<1x128x128xbf16> to vector<128x128xbf16>
    %cst_218 = arith.constant dense<0.000000e+00> : vector<8x128xf32>
    %383 = tpu.matmul %380, %382, %cst_218 {dimension_numbers = #tpu.dot_dimension_numbers<[1], [0], [0], [1], [0, 0, 1, 1], [], []>} : vector<8x128xbf16>, vector<128x128xbf16>, vector<8x128xf32> -> vector<8x128xf32>
    %384 = arith.addf %370, %383 : vector<8x128xf32>
    %c0_219 = arith.constant 0 : index
    %c7_220 = arith.constant 7 : index
    %385 = vector.load %arg8[%c0_219, %c7_220] : memref<8x16xi32, #tpu.memory_space<vmem>>, vector<8x1xi32>
    %386 = vector.broadcast %285 : vector<1x32xi32> to vector<8x32xi32>
    %387 = vector.broadcast %385 : vector<8x1xi32> to vector<8x32xi32>
    %388 = arith.cmpi eq, %386, %387 : vector<8x32xi32>
    %cst_221 = arith.constant 1.000000e+00 : f32
    %cst_222 = arith.constant 0.000000e+00 : f32
    %389 = vector.broadcast %cst_221 : f32 to vector<8x32xf32>
    %390 = vector.broadcast %cst_222 : f32 to vector<8x32xf32>
    %391 = arith.select %388, %389, %390 : vector<8x32xi1>, vector<8x32xf32>
    %392 = arith.truncf %391 : vector<8x32xf32> to vector<8x32xbf16>
    %cst_223 = arith.constant dense<0.000000e+00> : vector<8x128xf32>
    %393 = tpu.matmul %392, %284, %cst_223 {dimension_numbers = #tpu.dot_dimension_numbers<[1], [0], [0], [1], [0, 0, 1, 1], [], []>} : vector<8x32xbf16>, vector<32x128xbf16>, vector<8x128xf32> -> vector<8x128xf32>
    %394 = arith.truncf %393 : vector<8x128xf32> to vector<8x128xbf16>
    %c7_224 = arith.constant 7 : index
    %c0_225 = arith.constant 0 : index
    %c0_226 = arith.constant 0 : index
    %395 = vector.load %arg9[%c7_224, %c0_225, %c0_226] : memref<16x128x128xbf16, #tpu.memory_space<vmem>>, vector<1x128x128xbf16>
    %396 = vector.shape_cast %395 : vector<1x128x128xbf16> to vector<128x128xbf16>
    %cst_227 = arith.constant dense<0.000000e+00> : vector<8x128xf32>
    %397 = tpu.matmul %394, %396, %cst_227 {dimension_numbers = #tpu.dot_dimension_numbers<[1], [0], [0], [1], [0, 0, 1, 1], [], []>} : vector<8x128xbf16>, vector<128x128xbf16>, vector<8x128xf32> -> vector<8x128xf32>
    %398 = arith.addf %384, %397 : vector<8x128xf32>
    %c0_228 = arith.constant 0 : index
    %c8_229 = arith.constant 8 : index
    %399 = vector.load %arg8[%c0_228, %c8_229] : memref<8x16xi32, #tpu.memory_space<vmem>>, vector<8x1xi32>
    %400 = vector.broadcast %285 : vector<1x32xi32> to vector<8x32xi32>
    %401 = vector.broadcast %399 : vector<8x1xi32> to vector<8x32xi32>
    %402 = arith.cmpi eq, %400, %401 : vector<8x32xi32>
    %cst_230 = arith.constant 1.000000e+00 : f32
    %cst_231 = arith.constant 0.000000e+00 : f32
    %403 = vector.broadcast %cst_230 : f32 to vector<8x32xf32>
    %404 = vector.broadcast %cst_231 : f32 to vector<8x32xf32>
    %405 = arith.select %402, %403, %404 : vector<8x32xi1>, vector<8x32xf32>
    %406 = arith.truncf %405 : vector<8x32xf32> to vector<8x32xbf16>
    %cst_232 = arith.constant dense<0.000000e+00> : vector<8x128xf32>
    %407 = tpu.matmul %406, %284, %cst_232 {dimension_numbers = #tpu.dot_dimension_numbers<[1], [0], [0], [1], [0, 0, 1, 1], [], []>} : vector<8x32xbf16>, vector<32x128xbf16>, vector<8x128xf32> -> vector<8x128xf32>
    %408 = arith.truncf %407 : vector<8x128xf32> to vector<8x128xbf16>
    %c8_233 = arith.constant 8 : index
    %c0_234 = arith.constant 0 : index
    %c0_235 = arith.constant 0 : index
    %409 = vector.load %arg9[%c8_233, %c0_234, %c0_235] : memref<16x128x128xbf16, #tpu.memory_space<vmem>>, vector<1x128x128xbf16>
    %410 = vector.shape_cast %409 : vector<1x128x128xbf16> to vector<128x128xbf16>
    %cst_236 = arith.constant dense<0.000000e+00> : vector<8x128xf32>
    %411 = tpu.matmul %408, %410, %cst_236 {dimension_numbers = #tpu.dot_dimension_numbers<[1], [0], [0], [1], [0, 0, 1, 1], [], []>} : vector<8x128xbf16>, vector<128x128xbf16>, vector<8x128xf32> -> vector<8x128xf32>
    %412 = arith.addf %398, %411 : vector<8x128xf32>
    %c0_237 = arith.constant 0 : index
    %c9_238 = arith.constant 9 : index
    %413 = vector.load %arg8[%c0_237, %c9_238] : memref<8x16xi32, #tpu.memory_space<vmem>>, vector<8x1xi32>
    %414 = vector.broadcast %285 : vector<1x32xi32> to vector<8x32xi32>
    %415 = vector.broadcast %413 : vector<8x1xi32> to vector<8x32xi32>
    %416 = arith.cmpi eq, %414, %415 : vector<8x32xi32>
    %cst_239 = arith.constant 1.000000e+00 : f32
    %cst_240 = arith.constant 0.000000e+00 : f32
    %417 = vector.broadcast %cst_239 : f32 to vector<8x32xf32>
    %418 = vector.broadcast %cst_240 : f32 to vector<8x32xf32>
    %419 = arith.select %416, %417, %418 : vector<8x32xi1>, vector<8x32xf32>
    %420 = arith.truncf %419 : vector<8x32xf32> to vector<8x32xbf16>
    %cst_241 = arith.constant dense<0.000000e+00> : vector<8x128xf32>
    %421 = tpu.matmul %420, %284, %cst_241 {dimension_numbers = #tpu.dot_dimension_numbers<[1], [0], [0], [1], [0, 0, 1, 1], [], []>} : vector<8x32xbf16>, vector<32x128xbf16>, vector<8x128xf32> -> vector<8x128xf32>
    %422 = arith.truncf %421 : vector<8x128xf32> to vector<8x128xbf16>
    %c9_242 = arith.constant 9 : index
    %c0_243 = arith.constant 0 : index
    %c0_244 = arith.constant 0 : index
    %423 = vector.load %arg9[%c9_242, %c0_243, %c0_244] : memref<16x128x128xbf16, #tpu.memory_space<vmem>>, vector<1x128x128xbf16>
    %424 = vector.shape_cast %423 : vector<1x128x128xbf16> to vector<128x128xbf16>
    %cst_245 = arith.constant dense<0.000000e+00> : vector<8x128xf32>
    %425 = tpu.matmul %422, %424, %cst_245 {dimension_numbers = #tpu.dot_dimension_numbers<[1], [0], [0], [1], [0, 0, 1, 1], [], []>} : vector<8x128xbf16>, vector<128x128xbf16>, vector<8x128xf32> -> vector<8x128xf32>
    %426 = arith.addf %412, %425 : vector<8x128xf32>
    %c0_246 = arith.constant 0 : index
    %c10_247 = arith.constant 10 : index
    %427 = vector.load %arg8[%c0_246, %c10_247] : memref<8x16xi32, #tpu.memory_space<vmem>>, vector<8x1xi32>
    %428 = vector.broadcast %285 : vector<1x32xi32> to vector<8x32xi32>
    %429 = vector.broadcast %427 : vector<8x1xi32> to vector<8x32xi32>
    %430 = arith.cmpi eq, %428, %429 : vector<8x32xi32>
    %cst_248 = arith.constant 1.000000e+00 : f32
    %cst_249 = arith.constant 0.000000e+00 : f32
    %431 = vector.broadcast %cst_248 : f32 to vector<8x32xf32>
    %432 = vector.broadcast %cst_249 : f32 to vector<8x32xf32>
    %433 = arith.select %430, %431, %432 : vector<8x32xi1>, vector<8x32xf32>
    %434 = arith.truncf %433 : vector<8x32xf32> to vector<8x32xbf16>
    %cst_250 = arith.constant dense<0.000000e+00> : vector<8x128xf32>
    %435 = tpu.matmul %434, %284, %cst_250 {dimension_numbers = #tpu.dot_dimension_numbers<[1], [0], [0], [1], [0, 0, 1, 1], [], []>} : vector<8x32xbf16>, vector<32x128xbf16>, vector<8x128xf32> -> vector<8x128xf32>
    %436 = arith.truncf %435 : vector<8x128xf32> to vector<8x128xbf16>
    %c10_251 = arith.constant 10 : index
    %c0_252 = arith.constant 0 : index
    %c0_253 = arith.constant 0 : index
    %437 = vector.load %arg9[%c10_251, %c0_252, %c0_253] : memref<16x128x128xbf16, #tpu.memory_space<vmem>>, vector<1x128x128xbf16>
    %438 = vector.shape_cast %437 : vector<1x128x128xbf16> to vector<128x128xbf16>
    %cst_254 = arith.constant dense<0.000000e+00> : vector<8x128xf32>
    %439 = tpu.matmul %436, %438, %cst_254 {dimension_numbers = #tpu.dot_dimension_numbers<[1], [0], [0], [1], [0, 0, 1, 1], [], []>} : vector<8x128xbf16>, vector<128x128xbf16>, vector<8x128xf32> -> vector<8x128xf32>
    %440 = arith.addf %426, %439 : vector<8x128xf32>
    %c0_255 = arith.constant 0 : index
    %c11_256 = arith.constant 11 : index
    %441 = vector.load %arg8[%c0_255, %c11_256] : memref<8x16xi32, #tpu.memory_space<vmem>>, vector<8x1xi32>
    %442 = vector.broadcast %285 : vector<1x32xi32> to vector<8x32xi32>
    %443 = vector.broadcast %441 : vector<8x1xi32> to vector<8x32xi32>
    %444 = arith.cmpi eq, %442, %443 : vector<8x32xi32>
    %cst_257 = arith.constant 1.000000e+00 : f32
    %cst_258 = arith.constant 0.000000e+00 : f32
    %445 = vector.broadcast %cst_257 : f32 to vector<8x32xf32>
    %446 = vector.broadcast %cst_258 : f32 to vector<8x32xf32>
    %447 = arith.select %444, %445, %446 : vector<8x32xi1>, vector<8x32xf32>
    %448 = arith.truncf %447 : vector<8x32xf32> to vector<8x32xbf16>
    %cst_259 = arith.constant dense<0.000000e+00> : vector<8x128xf32>
    %449 = tpu.matmul %448, %284, %cst_259 {dimension_numbers = #tpu.dot_dimension_numbers<[1], [0], [0], [1], [0, 0, 1, 1], [], []>} : vector<8x32xbf16>, vector<32x128xbf16>, vector<8x128xf32> -> vector<8x128xf32>
    %450 = arith.truncf %449 : vector<8x128xf32> to vector<8x128xbf16>
    %c11_260 = arith.constant 11 : index
    %c0_261 = arith.constant 0 : index
    %c0_262 = arith.constant 0 : index
    %451 = vector.load %arg9[%c11_260, %c0_261, %c0_262] : memref<16x128x128xbf16, #tpu.memory_space<vmem>>, vector<1x128x128xbf16>
    %452 = vector.shape_cast %451 : vector<1x128x128xbf16> to vector<128x128xbf16>
    %cst_263 = arith.constant dense<0.000000e+00> : vector<8x128xf32>
    %453 = tpu.matmul %450, %452, %cst_263 {dimension_numbers = #tpu.dot_dimension_numbers<[1], [0], [0], [1], [0, 0, 1, 1], [], []>} : vector<8x128xbf16>, vector<128x128xbf16>, vector<8x128xf32> -> vector<8x128xf32>
    %454 = arith.addf %440, %453 : vector<8x128xf32>
    %c0_264 = arith.constant 0 : index
    %c12_265 = arith.constant 12 : index
    %455 = vector.load %arg8[%c0_264, %c12_265] : memref<8x16xi32, #tpu.memory_space<vmem>>, vector<8x1xi32>
    %456 = vector.broadcast %285 : vector<1x32xi32> to vector<8x32xi32>
    %457 = vector.broadcast %455 : vector<8x1xi32> to vector<8x32xi32>
    %458 = arith.cmpi eq, %456, %457 : vector<8x32xi32>
    %cst_266 = arith.constant 1.000000e+00 : f32
    %cst_267 = arith.constant 0.000000e+00 : f32
    %459 = vector.broadcast %cst_266 : f32 to vector<8x32xf32>
    %460 = vector.broadcast %cst_267 : f32 to vector<8x32xf32>
    %461 = arith.select %458, %459, %460 : vector<8x32xi1>, vector<8x32xf32>
    %462 = arith.truncf %461 : vector<8x32xf32> to vector<8x32xbf16>
    %cst_268 = arith.constant dense<0.000000e+00> : vector<8x128xf32>
    %463 = tpu.matmul %462, %284, %cst_268 {dimension_numbers = #tpu.dot_dimension_numbers<[1], [0], [0], [1], [0, 0, 1, 1], [], []>} : vector<8x32xbf16>, vector<32x128xbf16>, vector<8x128xf32> -> vector<8x128xf32>
    %464 = arith.truncf %463 : vector<8x128xf32> to vector<8x128xbf16>
    %c12_269 = arith.constant 12 : index
    %c0_270 = arith.constant 0 : index
    %c0_271 = arith.constant 0 : index
    %465 = vector.load %arg9[%c12_269, %c0_270, %c0_271] : memref<16x128x128xbf16, #tpu.memory_space<vmem>>, vector<1x128x128xbf16>
    %466 = vector.shape_cast %465 : vector<1x128x128xbf16> to vector<128x128xbf16>
    %cst_272 = arith.constant dense<0.000000e+00> : vector<8x128xf32>
    %467 = tpu.matmul %464, %466, %cst_272 {dimension_numbers = #tpu.dot_dimension_numbers<[1], [0], [0], [1], [0, 0, 1, 1], [], []>} : vector<8x128xbf16>, vector<128x128xbf16>, vector<8x128xf32> -> vector<8x128xf32>
    %468 = arith.addf %454, %467 : vector<8x128xf32>
    %c0_273 = arith.constant 0 : index
    %c13_274 = arith.constant 13 : index
    %469 = vector.load %arg8[%c0_273, %c13_274] : memref<8x16xi32, #tpu.memory_space<vmem>>, vector<8x1xi32>
    %470 = vector.broadcast %285 : vector<1x32xi32> to vector<8x32xi32>
    %471 = vector.broadcast %469 : vector<8x1xi32> to vector<8x32xi32>
    %472 = arith.cmpi eq, %470, %471 : vector<8x32xi32>
    %cst_275 = arith.constant 1.000000e+00 : f32
    %cst_276 = arith.constant 0.000000e+00 : f32
    %473 = vector.broadcast %cst_275 : f32 to vector<8x32xf32>
    %474 = vector.broadcast %cst_276 : f32 to vector<8x32xf32>
    %475 = arith.select %472, %473, %474 : vector<8x32xi1>, vector<8x32xf32>
    %476 = arith.truncf %475 : vector<8x32xf32> to vector<8x32xbf16>
    %cst_277 = arith.constant dense<0.000000e+00> : vector<8x128xf32>
    %477 = tpu.matmul %476, %284, %cst_277 {dimension_numbers = #tpu.dot_dimension_numbers<[1], [0], [0], [1], [0, 0, 1, 1], [], []>} : vector<8x32xbf16>, vector<32x128xbf16>, vector<8x128xf32> -> vector<8x128xf32>
    %478 = arith.truncf %477 : vector<8x128xf32> to vector<8x128xbf16>
    %c13_278 = arith.constant 13 : index
    %c0_279 = arith.constant 0 : index
    %c0_280 = arith.constant 0 : index
    %479 = vector.load %arg9[%c13_278, %c0_279, %c0_280] : memref<16x128x128xbf16, #tpu.memory_space<vmem>>, vector<1x128x128xbf16>
    %480 = vector.shape_cast %479 : vector<1x128x128xbf16> to vector<128x128xbf16>
    %cst_281 = arith.constant dense<0.000000e+00> : vector<8x128xf32>
    %481 = tpu.matmul %478, %480, %cst_281 {dimension_numbers = #tpu.dot_dimension_numbers<[1], [0], [0], [1], [0, 0, 1, 1], [], []>} : vector<8x128xbf16>, vector<128x128xbf16>, vector<8x128xf32> -> vector<8x128xf32>
    %482 = arith.addf %468, %481 : vector<8x128xf32>
    %c0_282 = arith.constant 0 : index
    %c14_283 = arith.constant 14 : index
    %483 = vector.load %arg8[%c0_282, %c14_283] : memref<8x16xi32, #tpu.memory_space<vmem>>, vector<8x1xi32>
    %484 = vector.broadcast %285 : vector<1x32xi32> to vector<8x32xi32>
    %485 = vector.broadcast %483 : vector<8x1xi32> to vector<8x32xi32>
    %486 = arith.cmpi eq, %484, %485 : vector<8x32xi32>
    %cst_284 = arith.constant 1.000000e+00 : f32
    %cst_285 = arith.constant 0.000000e+00 : f32
    %487 = vector.broadcast %cst_284 : f32 to vector<8x32xf32>
    %488 = vector.broadcast %cst_285 : f32 to vector<8x32xf32>
    %489 = arith.select %486, %487, %488 : vector<8x32xi1>, vector<8x32xf32>
    %490 = arith.truncf %489 : vector<8x32xf32> to vector<8x32xbf16>
    %cst_286 = arith.constant dense<0.000000e+00> : vector<8x128xf32>
    %491 = tpu.matmul %490, %284, %cst_286 {dimension_numbers = #tpu.dot_dimension_numbers<[1], [0], [0], [1], [0, 0, 1, 1], [], []>} : vector<8x32xbf16>, vector<32x128xbf16>, vector<8x128xf32> -> vector<8x128xf32>
    %492 = arith.truncf %491 : vector<8x128xf32> to vector<8x128xbf16>
    %c14_287 = arith.constant 14 : index
    %c0_288 = arith.constant 0 : index
    %c0_289 = arith.constant 0 : index
    %493 = vector.load %arg9[%c14_287, %c0_288, %c0_289] : memref<16x128x128xbf16, #tpu.memory_space<vmem>>, vector<1x128x128xbf16>
    %494 = vector.shape_cast %493 : vector<1x128x128xbf16> to vector<128x128xbf16>
    %cst_290 = arith.constant dense<0.000000e+00> : vector<8x128xf32>
    %495 = tpu.matmul %492, %494, %cst_290 {dimension_numbers = #tpu.dot_dimension_numbers<[1], [0], [0], [1], [0, 0, 1, 1], [], []>} : vector<8x128xbf16>, vector<128x128xbf16>, vector<8x128xf32> -> vector<8x128xf32>
    %496 = arith.addf %482, %495 : vector<8x128xf32>
    %c0_291 = arith.constant 0 : index
    %c15_292 = arith.constant 15 : index
    %497 = vector.load %arg8[%c0_291, %c15_292] : memref<8x16xi32, #tpu.memory_space<vmem>>, vector<8x1xi32>
    %498 = vector.broadcast %285 : vector<1x32xi32> to vector<8x32xi32>
    %499 = vector.broadcast %497 : vector<8x1xi32> to vector<8x32xi32>
    %500 = arith.cmpi eq, %498, %499 : vector<8x32xi32>
    %cst_293 = arith.constant 1.000000e+00 : f32
    %cst_294 = arith.constant 0.000000e+00 : f32
    %501 = vector.broadcast %cst_293 : f32 to vector<8x32xf32>
    %502 = vector.broadcast %cst_294 : f32 to vector<8x32xf32>
    %503 = arith.select %500, %501, %502 : vector<8x32xi1>, vector<8x32xf32>
    %504 = arith.truncf %503 : vector<8x32xf32> to vector<8x32xbf16>
    %cst_295 = arith.constant dense<0.000000e+00> : vector<8x128xf32>
    %505 = tpu.matmul %504, %284, %cst_295 {dimension_numbers = #tpu.dot_dimension_numbers<[1], [0], [0], [1], [0, 0, 1, 1], [], []>} : vector<8x32xbf16>, vector<32x128xbf16>, vector<8x128xf32> -> vector<8x128xf32>
    %506 = arith.truncf %505 : vector<8x128xf32> to vector<8x128xbf16>
    %c15_296 = arith.constant 15 : index
    %c0_297 = arith.constant 0 : index
    %c0_298 = arith.constant 0 : index
    %507 = vector.load %arg9[%c15_296, %c0_297, %c0_298] : memref<16x128x128xbf16, #tpu.memory_space<vmem>>, vector<1x128x128xbf16>
    %508 = vector.shape_cast %507 : vector<1x128x128xbf16> to vector<128x128xbf16>
    %cst_299 = arith.constant dense<0.000000e+00> : vector<8x128xf32>
    %509 = tpu.matmul %506, %508, %cst_299 {dimension_numbers = #tpu.dot_dimension_numbers<[1], [0], [0], [1], [0, 0, 1, 1], [], []>} : vector<8x128xbf16>, vector<128x128xbf16>, vector<8x128xf32> -> vector<8x128xf32>
    %510 = arith.addf %496, %509 : vector<8x128xf32>
    %cst_300 = arith.constant 0.000000e+00 : f32
    %511 = vector.broadcast %cst_300 : f32 to vector<8x128xf32>
    %512 = arith.cmpf oge, %510, %511 : vector<8x128xf32>
    %cst_301 = arith.constant 2.000000e-01 : f32
    %513 = vector.broadcast %cst_301 : f32 to vector<8x128xf32>
    %514 = arith.mulf %513, %510 : vector<8x128xf32>
    %515 = arith.select %512, %510, %514 : vector<8x128xi1>, vector<8x128xf32>
    %cst_302 = arith.constant dense<0.000000e+00> : vector<128xf32>
    %516 = vector.multi_reduction <add>, %515, %cst_302 [0] : vector<8x128xf32> to vector<128xf32>
    %517 = vector.shape_cast %516 : vector<128xf32> to vector<1x128xf32>
    %cst_303 = arith.constant 1.250000e-01 : f32
    %518 = vector.broadcast %cst_303 : f32 to vector<1x128xf32>
    %519 = arith.mulf %517, %518 : vector<1x128xf32>
    %520 = vector.broadcast %519 : vector<1x128xf32> to vector<8x128xf32>
    %521 = arith.subf %515, %520 : vector<8x128xf32>
    %522 = arith.mulf %521, %521 : vector<8x128xf32>
    %cst_304 = arith.constant dense<0.000000e+00> : vector<128xf32>
    %523 = vector.multi_reduction <add>, %522, %cst_304 [0] : vector<8x128xf32> to vector<128xf32>
    %524 = vector.shape_cast %523 : vector<128xf32> to vector<1x128xf32>
    %cst_305 = arith.constant 1.250000e-01 : f32
    %525 = vector.broadcast %cst_305 : f32 to vector<1x128xf32>
    %526 = arith.mulf %524, %525 : vector<1x128xf32>
    %cst_306 = arith.constant 9.99999974E-6 : f32
    %527 = vector.broadcast %cst_306 : f32 to vector<1x128xf32>
    %528 = arith.addf %526, %527 : vector<1x128xf32>
    %529 = math.rsqrt %528 : vector<1x128xf32>
    %530 = vector.broadcast %529 : vector<1x128xf32> to vector<8x128xf32>
    %531 = arith.mulf %521, %530 : vector<8x128xf32>
    %c0_307 = arith.constant 0 : index
    %c0_308 = arith.constant 0 : index
    %532 = vector.load %arg10[%c0_307, %c0_308] : memref<1x128xf32, #tpu.memory_space<vmem>>, vector<1x128xf32>
    %533 = vector.broadcast %532 : vector<1x128xf32> to vector<8x128xf32>
    %534 = arith.mulf %531, %533 : vector<8x128xf32>
    %c0_309 = arith.constant 0 : index
    %c0_310 = arith.constant 0 : index
    %535 = vector.load %arg11[%c0_309, %c0_310] : memref<1x128xf32, #tpu.memory_space<vmem>>, vector<1x128xf32>
    %536 = vector.broadcast %535 : vector<1x128xf32> to vector<8x128xf32>
    %537 = arith.addf %534, %536 : vector<8x128xf32>
    %538 = arith.truncf %537 : vector<8x128xf32> to vector<8x128xbf16>
    %539 = tpu.iota {dimensions = array<i32: 1>} : vector<1x8xi32>
    %cst_311 = arith.constant 0.000000e+00 : f32
    %540 = vector.broadcast %cst_311 : f32 to vector<2x128xf32>
    %c0_312 = arith.constant 0 : index
    %c0_313 = arith.constant 0 : index
    %541 = vector.load %arg12[%c0_312, %c0_313] : memref<2x4xi32, #tpu.memory_space<vmem>>, vector<2x1xi32>
    %542 = vector.broadcast %539 : vector<1x8xi32> to vector<2x8xi32>
    %543 = vector.broadcast %541 : vector<2x1xi32> to vector<2x8xi32>
    %544 = arith.cmpi eq, %542, %543 : vector<2x8xi32>
    %cst_314 = arith.constant 1.000000e+00 : f32
    %cst_315 = arith.constant 0.000000e+00 : f32
    %545 = vector.broadcast %cst_314 : f32 to vector<2x8xf32>
    %546 = vector.broadcast %cst_315 : f32 to vector<2x8xf32>
    %547 = arith.select %544, %545, %546 : vector<2x8xi1>, vector<2x8xf32>
    %548 = arith.truncf %547 : vector<2x8xf32> to vector<2x8xbf16>
    %cst_316 = arith.constant dense<0.000000e+00> : vector<2x128xf32>
    %549 = tpu.matmul %548, %538, %cst_316 {dimension_numbers = #tpu.dot_dimension_numbers<[1], [0], [0], [1], [0, 0, 1, 1], [], []>} : vector<2x8xbf16>, vector<8x128xbf16>, vector<2x128xf32> -> vector<2x128xf32>
    %550 = arith.truncf %549 : vector<2x128xf32> to vector<2x128xbf16>
    %c0_317 = arith.constant 0 : index
    %c0_318 = arith.constant 0 : index
    %c0_319 = arith.constant 0 : index
    %551 = vector.load %arg13[%c0_317, %c0_318, %c0_319] : memref<4x128x128xbf16, #tpu.memory_space<vmem>>, vector<1x128x128xbf16>
    %552 = vector.shape_cast %551 : vector<1x128x128xbf16> to vector<128x128xbf16>
    %cst_320 = arith.constant dense<0.000000e+00> : vector<2x128xf32>
    %553 = tpu.matmul %550, %552, %cst_320 {dimension_numbers = #tpu.dot_dimension_numbers<[1], [0], [0], [1], [0, 0, 1, 1], [], []>} : vector<2x128xbf16>, vector<128x128xbf16>, vector<2x128xf32> -> vector<2x128xf32>
    %554 = arith.addf %540, %553 : vector<2x128xf32>
    %c0_321 = arith.constant 0 : index
    %c1_322 = arith.constant 1 : index
    %555 = vector.load %arg12[%c0_321, %c1_322] : memref<2x4xi32, #tpu.memory_space<vmem>>, vector<2x1xi32>
    %556 = vector.broadcast %539 : vector<1x8xi32> to vector<2x8xi32>
    %557 = vector.broadcast %555 : vector<2x1xi32> to vector<2x8xi32>
    %558 = arith.cmpi eq, %556, %557 : vector<2x8xi32>
    %cst_323 = arith.constant 1.000000e+00 : f32
    %cst_324 = arith.constant 0.000000e+00 : f32
    %559 = vector.broadcast %cst_323 : f32 to vector<2x8xf32>
    %560 = vector.broadcast %cst_324 : f32 to vector<2x8xf32>
    %561 = arith.select %558, %559, %560 : vector<2x8xi1>, vector<2x8xf32>
    %562 = arith.truncf %561 : vector<2x8xf32> to vector<2x8xbf16>
    %cst_325 = arith.constant dense<0.000000e+00> : vector<2x128xf32>
    %563 = tpu.matmul %562, %538, %cst_325 {dimension_numbers = #tpu.dot_dimension_numbers<[1], [0], [0], [1], [0, 0, 1, 1], [], []>} : vector<2x8xbf16>, vector<8x128xbf16>, vector<2x128xf32> -> vector<2x128xf32>
    %564 = arith.truncf %563 : vector<2x128xf32> to vector<2x128xbf16>
    %c1_326 = arith.constant 1 : index
    %c0_327 = arith.constant 0 : index
    %c0_328 = arith.constant 0 : index
    %565 = vector.load %arg13[%c1_326, %c0_327, %c0_328] : memref<4x128x128xbf16, #tpu.memory_space<vmem>>, vector<1x128x128xbf16>
    %566 = vector.shape_cast %565 : vector<1x128x128xbf16> to vector<128x128xbf16>
    %cst_329 = arith.constant dense<0.000000e+00> : vector<2x128xf32>
    %567 = tpu.matmul %564, %566, %cst_329 {dimension_numbers = #tpu.dot_dimension_numbers<[1], [0], [0], [1], [0, 0, 1, 1], [], []>} : vector<2x128xbf16>, vector<128x128xbf16>, vector<2x128xf32> -> vector<2x128xf32>
    %568 = arith.addf %554, %567 : vector<2x128xf32>
    %c0_330 = arith.constant 0 : index
    %c2_331 = arith.constant 2 : index
    %569 = vector.load %arg12[%c0_330, %c2_331] : memref<2x4xi32, #tpu.memory_space<vmem>>, vector<2x1xi32>
    %570 = vector.broadcast %539 : vector<1x8xi32> to vector<2x8xi32>
    %571 = vector.broadcast %569 : vector<2x1xi32> to vector<2x8xi32>
    %572 = arith.cmpi eq, %570, %571 : vector<2x8xi32>
    %cst_332 = arith.constant 1.000000e+00 : f32
    %cst_333 = arith.constant 0.000000e+00 : f32
    %573 = vector.broadcast %cst_332 : f32 to vector<2x8xf32>
    %574 = vector.broadcast %cst_333 : f32 to vector<2x8xf32>
    %575 = arith.select %572, %573, %574 : vector<2x8xi1>, vector<2x8xf32>
    %576 = arith.truncf %575 : vector<2x8xf32> to vector<2x8xbf16>
    %cst_334 = arith.constant dense<0.000000e+00> : vector<2x128xf32>
    %577 = tpu.matmul %576, %538, %cst_334 {dimension_numbers = #tpu.dot_dimension_numbers<[1], [0], [0], [1], [0, 0, 1, 1], [], []>} : vector<2x8xbf16>, vector<8x128xbf16>, vector<2x128xf32> -> vector<2x128xf32>
    %578 = arith.truncf %577 : vector<2x128xf32> to vector<2x128xbf16>
    %c2_335 = arith.constant 2 : index
    %c0_336 = arith.constant 0 : index
    %c0_337 = arith.constant 0 : index
    %579 = vector.load %arg13[%c2_335, %c0_336, %c0_337] : memref<4x128x128xbf16, #tpu.memory_space<vmem>>, vector<1x128x128xbf16>
    %580 = vector.shape_cast %579 : vector<1x128x128xbf16> to vector<128x128xbf16>
    %cst_338 = arith.constant dense<0.000000e+00> : vector<2x128xf32>
    %581 = tpu.matmul %578, %580, %cst_338 {dimension_numbers = #tpu.dot_dimension_numbers<[1], [0], [0], [1], [0, 0, 1, 1], [], []>} : vector<2x128xbf16>, vector<128x128xbf16>, vector<2x128xf32> -> vector<2x128xf32>
    %582 = arith.addf %568, %581 : vector<2x128xf32>
    %c0_339 = arith.constant 0 : index
    %c3_340 = arith.constant 3 : index
    %583 = vector.load %arg12[%c0_339, %c3_340] : memref<2x4xi32, #tpu.memory_space<vmem>>, vector<2x1xi32>
    %584 = vector.broadcast %539 : vector<1x8xi32> to vector<2x8xi32>
    %585 = vector.broadcast %583 : vector<2x1xi32> to vector<2x8xi32>
    %586 = arith.cmpi eq, %584, %585 : vector<2x8xi32>
    %cst_341 = arith.constant 1.000000e+00 : f32
    %cst_342 = arith.constant 0.000000e+00 : f32
    %587 = vector.broadcast %cst_341 : f32 to vector<2x8xf32>
    %588 = vector.broadcast %cst_342 : f32 to vector<2x8xf32>
    %589 = arith.select %586, %587, %588 : vector<2x8xi1>, vector<2x8xf32>
    %590 = arith.truncf %589 : vector<2x8xf32> to vector<2x8xbf16>
    %cst_343 = arith.constant dense<0.000000e+00> : vector<2x128xf32>
    %591 = tpu.matmul %590, %538, %cst_343 {dimension_numbers = #tpu.dot_dimension_numbers<[1], [0], [0], [1], [0, 0, 1, 1], [], []>} : vector<2x8xbf16>, vector<8x128xbf16>, vector<2x128xf32> -> vector<2x128xf32>
    %592 = arith.truncf %591 : vector<2x128xf32> to vector<2x128xbf16>
    %c3_344 = arith.constant 3 : index
    %c0_345 = arith.constant 0 : index
    %c0_346 = arith.constant 0 : index
    %593 = vector.load %arg13[%c3_344, %c0_345, %c0_346] : memref<4x128x128xbf16, #tpu.memory_space<vmem>>, vector<1x128x128xbf16>
    %594 = vector.shape_cast %593 : vector<1x128x128xbf16> to vector<128x128xbf16>
    %cst_347 = arith.constant dense<0.000000e+00> : vector<2x128xf32>
    %595 = tpu.matmul %592, %594, %cst_347 {dimension_numbers = #tpu.dot_dimension_numbers<[1], [0], [0], [1], [0, 0, 1, 1], [], []>} : vector<2x128xbf16>, vector<128x128xbf16>, vector<2x128xf32> -> vector<2x128xf32>
    %596 = arith.addf %582, %595 : vector<2x128xf32>
    %597 = arith.negf %596 : vector<2x128xf32>
    %598 = math.exp %597 : vector<2x128xf32>
    %cst_348 = arith.constant 1.000000e+00 : f32
    %599 = vector.broadcast %cst_348 : f32 to vector<2x128xf32>
    %600 = arith.addf %599, %598 : vector<2x128xf32>
    %601 = arith.divf %599, %600 : vector<2x128xf32>
    %c0_349 = arith.constant 0 : index
    %c0_350 = arith.constant 0 : index
    %602 = vector.load %arg14[%c0_349, %c0_350] : memref<2x128xf32, #tpu.memory_space<vmem>>, vector<2x128xf32>
    tpu.vector_store %arg14[%c0_349, %c0_350], %601 {strides = array<i32>} : memref<2x128xf32, #tpu.memory_space<vmem>>, vector<2x128xf32>,
    return
  }
}

</mosaic_0001>

<llo_original>
// kernel: _lambda_.1
$region0: #{_lambda_.1}
  #allocation0 [shape = 'u32[]', space=smem, size = 0x4, offset = 0x4, fixed_abs, tag = 'smem constant byte address 0x4 - core index']
  #allocation1 [shape = 'u32[144,128]{1,0:T(1,128)}', space=vmem, size = 0x12000, scoped, tag = 'internal scratch']
  %s0 = inlined_call_operand.vmem [shape: bf16[128,128], index: 0, kind: input, shape index: {}]
  %s1 = inlined_call_operand.vmem [shape: bf16[128,128], index: 1, kind: input, shape index: {}]
  %s2 = inlined_call_operand.vmem [shape: f32[1,128], index: 2, kind: input, shape index: {}, may-alias: {2,6,10}]
  %s3 = inlined_call_operand.vmem [shape: f32[1,128], index: 3, kind: input, shape index: {}, may-alias: {3,7,11}]
  %s4 = inlined_call_operand.vmem [shape: s32[32,16], index: 4, kind: input, shape index: {}]
  %s5 = inlined_call_operand.vmem [shape: bf16[16,128,128], index: 5, kind: input, shape index: {}]
  %s6 = inlined_call_operand.vmem [shape: f32[1,128], index: 6, kind: input, shape index: {}, may-alias: {2,6,10}]
  %s7 = inlined_call_operand.vmem [shape: f32[1,128], index: 7, kind: input, shape index: {}, may-alias: {3,7,11}]
  %s8 = inlined_call_operand.vmem [shape: s32[8,16], index: 8, kind: input, shape index: {}]
  %s9 = inlined_call_operand.vmem [shape: bf16[16,128,128], index: 9, kind: input, shape index: {}]
  %s10 = inlined_call_operand.vmem [shape: f32[1,128], index: 10, kind: input, shape index: {}, may-alias: {2,6,10}]
  %s11 = inlined_call_operand.vmem [shape: f32[1,128], index: 11, kind: input, shape index: {}, may-alias: {3,7,11}]
  %s12 = inlined_call_operand.vmem [shape: s32[2,4], index: 12, kind: input, shape index: {}]
  %s13 = inlined_call_operand.vmem [shape: bf16[4,128,128], index: 13, kind: input, shape index: {}]
  %s14 = inlined_call_operand.vmem [shape: f32[2,128], index: 14, kind: output, shape index: {}]
  %s15 = sld [smem:[#allocation0]]
  $region66: #{_lambda_.1} parent=0
    _
  %s17 = ssub.s32 1, %s15
  %s18 = scalar_select 0, %s17, %s15
  // Predicated region
  $region2: #{_lambda_.1} parent=0 // pred_check
    _
  $region3: #{_lambda_.1} parent=0 // pred_check_branch
    %20 = sbr.rel (0) target = $region5
  $region4: #{_lambda_.1} parent=0 // pred_region
    _
  $region5: #{_lambda_.1} parent=0 // pred_fallthru
    _
  // Predicated region
  $region6: #{_lambda_.1} parent=0 // pred_check
    _
  $region7: #{_lambda_.1} parent=0 // pred_check_branch
    %22 = sbr.rel (0) target = $region9
  $region8: #{_lambda_.1} parent=0 // pred_region
    _
  $region9: #{_lambda_.1} parent=0 // pred_fallthru
    _
  // Predicated region
  $region10: #{_lambda_.1} parent=0 // pred_check
    _
  $region11: #{_lambda_.1} parent=0 // pred_check_branch
    %24 = sbr.rel (0) target = $region13
  $region12: #{_lambda_.1} parent=0 // pred_region
    _
  $region13: #{_lambda_.1} parent=0 // pred_fallthru
    _
  // Predicated region
  $region14: #{_lambda_.1} parent=0 // pred_check
    _
  $region15: #{_lambda_.1} parent=0 // pred_check_branch
    %26 = sbr.rel (0) target = $region17
  $region16: #{_lambda_.1} parent=0 // pred_region
    _
  $region17: #{_lambda_.1} parent=0 // pred_fallthru
    _
  // Predicated region
  $region18: #{_lambda_.1} parent=0 // pred_check
    _
  $region19: #{_lambda_.1} parent=0 // pred_check_branch
    %28 = sbr.rel (0) target = $region21
  $region20: #{_lambda_.1} parent=0 // pred_region
    _
  $region21: #{_lambda_.1} parent=0 // pred_fallthru
    _
  // Predicated region
  $region22: #{_lambda_.1} parent=0 // pred_check
    _
  $region23: #{_lambda_.1} parent=0 // pred_check_branch
    %30 = sbr.rel (0) target = $region25
  $region24: #{_lambda_.1} parent=0 // pred_region
    _
  $region25: #{_lambda_.1} parent=0 // pred_fallthru
    _
  // Predicated region
  $region26: #{_lambda_.1} parent=0 // pred_check
    _
  $region27: #{_lambda_.1} parent=0 // pred_check_branch
    %32 = sbr.rel (0) target = $region29
  $region28: #{_lambda_.1} parent=0 // pred_region
    _
  $region29: #{_lambda_.1} parent=0 // pred_fallthru
    _
  // Predicated region
  $region30: #{_lambda_.1} parent=0 // pred_check
    _
  $region31: #{_lambda_.1} parent=0 // pred_check_branch
    %34 = sbr.rel (0) target = $region33
  $region32: #{_lambda_.1} parent=0 // pred_region
    _
  $region33: #{_lambda_.1} parent=0 // pred_fallthru
    _
  // Predicated region
  $region34: #{_lambda_.1} parent=0 // pred_check
    _
  $region35: #{_lambda_.1} parent=0 // pred_check_branch
    %36 = sbr.rel (0) target = $region37
  $region36: #{_lambda_.1} parent=0 // pred_region
    _
  $region37: #{_lambda_.1} parent=0 // pred_fallthru
    _
  // Predicated region
  $region38: #{_lambda_.1} parent=0 // pred_check
    _
  $region39: #{_lambda_.1} parent=0 // pred_check_branch
    %38 = sbr.rel (0) target = $region41
  $region40: #{_lambda_.1} parent=0 // pred_region
    _
  $region41: #{_lambda_.1} parent=0 // pred_fallthru
    _
  // Predicated region
  $region42: #{_lambda_.1} parent=0 // pred_check
    _
  $region43: #{_lambda_.1} parent=0 // pred_check_branch
    %40 = sbr.rel (0) target = $region45
  $region44: #{_lambda_.1} parent=0 // pred_region
    _
  $region45: #{_lambda_.1} parent=0 // pred_fallthru
    _
  // Predicated region
  $region46: #{_lambda_.1} parent=0 // pred_check
    _
  $region47: #{_lambda_.1} parent=0 // pred_check_branch
    %42 = sbr.rel (0) target = $region49
  $region48: #{_lambda_.1} parent=0 // pred_region
    _
  $region49: #{_lambda_.1} parent=0 // pred_fallthru
    _
  // Predicated region
  $region50: #{_lambda_.1} parent=0 // pred_check
    _
  $region51: #{_lambda_.1} parent=0 // pred_check_branch
    %44 = sbr.rel (0) target = $region53
  $region52: #{_lambda_.1} parent=0 // pred_region
    _
  $region53: #{_lambda_.1} parent=0 // pred_fallthru
    _
  // Predicated region
  $region54: #{_lambda_.1} parent=0 // pred_check
    _
  $region55: #{_lambda_.1} parent=0 // pred_check_branch
    %46 = sbr.rel (0) target = $region57
  $region56: #{_lambda_.1} parent=0 // pred_region
    _
  $region57: #{_lambda_.1} parent=0 // pred_fallthru
    _
  %v48 = vld [vmem:[%s0] sm:$0xf]
  %v49 = vld [vmem:[%s0 + $0x4] sm:$0xf]
  %v50 = vld [vmem:[%s0 + $0x8] sm:$0xf]
  %v51 = vld [vmem:[%s0 + $0xc] sm:$0xf]
  %v52 = vld [vmem:[%s0 + $0x10] sm:$0xf]
  %v53 = vld [vmem:[%s0 + $0x14] sm:$0xf]
  %v54 = vld [vmem:[%s0 + $0x18] sm:$0xf]
  %v55 = vld [vmem:[%s0 + $0x1c] sm:$0xf]
  %v56 = vld [vmem:[%s0 + $0x20] sm:$0xf]
  %v57 = vld [vmem:[%s0 + $0x24] sm:$0xf]
  %v58 = vld [vmem:[%s0 + $0x28] sm:$0xf]
  %v59 = vld [vmem:[%s0 + $0x2c] sm:$0xf]
  %v60 = vld [vmem:[%s0 + $0x30] sm:$0xf]
  %v61 = vld [vmem:[%s0 + $0x34] sm:$0xf]
  %v62 = vld [vmem:[%s0 + $0x38] sm:$0xf]
  %v63 = vld [vmem:[%s0 + $0x3c] sm:$0xf]
  %v64 = vld [vmem:[%s1] sm:$0xf]
  %v65 = vld [vmem:[%s1 + $0x4] sm:$0xf]
  %v66 = vld [vmem:[%s1 + $0x8] sm:$0xf]
  %v67 = vld [vmem:[%s1 + $0xc] sm:$0xf]
  %v68 = vld [vmem:[%s1 + $0x10] sm:$0xf]
  %v69 = vld [vmem:[%s1 + $0x14] sm:$0xf]
  %v70 = vld [vmem:[%s1 + $0x18] sm:$0xf]
  %v71 = vld [vmem:[%s1 + $0x1c] sm:$0xf]
  %v72 = vld [vmem:[%s1 + $0x20] sm:$0xf]
  %v73 = vld [vmem:[%s1 + $0x24] sm:$0xf]
  %v74 = vld [vmem:[%s1 + $0x28] sm:$0xf]
  %v75 = vld [vmem:[%s1 + $0x2c] sm:$0xf]
  %v76 = vld [vmem:[%s1 + $0x30] sm:$0xf]
  %v77 = vld [vmem:[%s1 + $0x34] sm:$0xf]
  %v78 = vld [vmem:[%s1 + $0x38] sm:$0xf]
  %v79 = vld [vmem:[%s1 + $0x3c] sm:$0xf]
  %v96 = vunpack.c.l.b16 %v48
  %v97 = vunpack.c.l.b16 %v49
  %v98 = vunpack.c.l.b16 %v50
  %v99 = vunpack.c.l.b16 %v51
  %v100 = vunpack.c.l.b16 %v52
  %v101 = vunpack.c.l.b16 %v53
  %v102 = vunpack.c.l.b16 %v54
  %v103 = vunpack.c.l.b16 %v55
  %v104 = vunpack.c.l.b16 %v56
  %v105 = vunpack.c.l.b16 %v57
  %v106 = vunpack.c.l.b16 %v58
  %v107 = vunpack.c.l.b16 %v59
  %v108 = vunpack.c.l.b16 %v60
  %v109 = vunpack.c.l.b16 %v61
  %v110 = vunpack.c.l.b16 %v62
  %v111 = vunpack.c.l.b16 %v63
  %v112 = vpack.c.b16 %v97, %v96
  %v113 = vpack.c.b16 %v99, %v98
  %v114 = vpack.c.b16 %v101, %v100
  %v115 = vpack.c.b16 %v103, %v102
  %v116 = vpack.c.b16 %v105, %v104
  %v117 = vpack.c.b16 %v107, %v106
  %v118 = vpack.c.b16 %v109, %v108
  %v119 = vpack.c.b16 %v111, %v110
  %v144 = vunpack.c.l.b16 %v64
  %v145 = vunpack.c.l.b16 %v65
  %v146 = vunpack.c.l.b16 %v66
  %v147 = vunpack.c.l.b16 %v67
  %v148 = vunpack.c.l.b16 %v68
  %v149 = vunpack.c.l.b16 %v69
  %v150 = vunpack.c.l.b16 %v70
  %v151 = vunpack.c.l.b16 %v71
  %v152 = vunpack.c.l.b16 %v72
  %v153 = vunpack.c.l.b16 %v73
  %v154 = vunpack.c.l.b16 %v74
  %v155 = vunpack.c.l.b16 %v75
  %v156 = vunpack.c.l.b16 %v76
  %v157 = vunpack.c.l.b16 %v77
  %v158 = vunpack.c.l.b16 %v78
  %v159 = vunpack.c.l.b16 %v79
  %v160 = vpack.c.b16 %v145, %v144
  %v161 = vpack.c.b16 %v147, %v146
  %v162 = vpack.c.b16 %v149, %v148
  %v163 = vpack.c.b16 %v151, %v150
  %v164 = vpack.c.b16 %v153, %v152
  %v165 = vpack.c.b16 %v155, %v154
  %v166 = vpack.c.b16 %v157, %v156
  %v167 = vpack.c.b16 %v159, %v158
  %176 = vmatprep.subr.bf16.mxu0 0
  %177 = vmatpush1.bf16.msra.mxu0 %v167
  %178 = vmatprep.subr.bf16.mxu0 0
  %179 = vmatpush1.bf16.msra.mxu0 %v166
  %180 = vmatprep.subr.bf16.mxu0 0
  %181 = vmatpush1.bf16.msra.mxu0 %v165
  %182 = vmatprep.subr.bf16.mxu0 0
  %183 = vmatpush1.bf16.msra.mxu0 %v164
  %184 = vmatprep.subr.bf16.mxu0 0
  %185 = vmatpush1.bf16.msra.mxu0 %v163
  %186 = vmatprep.subr.bf16.mxu0 0
  %187 = vmatpush1.bf16.msra.mxu0 %v162
  %188 = vmatprep.subr.bf16.mxu0 0
  %189 = vmatpush1.bf16.msra.mxu0 %v161
  %190 = vmatprep.subr.bf16.mxu0 0
  %191 = vmatpush1.bf16.msra.mxu0 %v160
  %192 = vmatprep.subr.bf16.mxu0 0
  %193 = vmatpush2.bf16.msra.mxu0 0
  %194 = vmatprep.subr.bf16.mxu0 0
  %195 = vmatpush2.bf16.msra.mxu0 0
  %196 = vmatprep.subr.bf16.mxu0 0
  %197 = vmatpush2.bf16.msra.mxu0 0
  %198 = vmatprep.subr.bf16.mxu0 0
  %199 = vmatpush2.bf16.msra.mxu0 0
  %200 = vmatprep.subr.bf16.mxu0 0
  %201 = vmatpush2.bf16.msra.mxu0 0
  %202 = vmatprep.subr.bf16.mxu0 0
  %203 = vmatpush2.bf16.msra.mxu0 0
  %204 = vmatprep.subr.bf16.mxu0 0
  %205 = vmatpush2.bf16.msra.mxu0 0
  %206 = vmatprep.subr.bf16.mxu0 0
  %207 = vmatpush2.bf16.msra.mxu0 0
  %208 = vmatprep.mubr.bf16.mxu0 0
  %209 = vmatmul.mubr.bf16.gmra.mxu0 %v112
  %v210 = vpop.f32.mrf.mxu0
  %v211 = vadd.f32 0.0, %v210
  %v212 = vpop.f32.mrf.mxu0
  %v213 = vpop.f32.mrf.mxu0
  %v214 = vadd.f32 0.0, %v213
  %v215 = vpop.f32.mrf.mxu0
  %216 = vmatprep.mubr.bf16.mxu0 0
  %217 = vmatmul.mubr.bf16.gmra.mxu0 %v113
  %v218 = vpop.f32.mrf.mxu0
  %v219 = vadd.f32 0.0, %v218
  %v220 = vpop.f32.mrf.mxu0
  %v221 = vpop.f32.mrf.mxu0
  %v222 = vadd.f32 0.0, %v221
  %v223 = vpop.f32.mrf.mxu0
  %224 = vmatprep.mubr.bf16.mxu0 0
  %225 = vmatmul.mubr.bf16.gmra.mxu0 %v114
  %v226 = vpop.f32.mrf.mxu0
  %v227 = vadd.f32 0.0, %v226
  %v228 = vpop.f32.mrf.mxu0
  %v229 = vpop.f32.mrf.mxu0
  %v230 = vadd.f32 0.0, %v229
  %v231 = vpop.f32.mrf.mxu0
  %232 = vmatprep.mubr.bf16.mxu0 0
  %233 = vmatmul.mubr.bf16.gmra.mxu0 %v115
  %v234 = vpop.f32.mrf.mxu0
  %v235 = vadd.f32 0.0, %v234
  %v236 = vpop.f32.mrf.mxu0
  %v237 = vpop.f32.mrf.mxu0
  %v238 = vadd.f32 0.0, %v237
  %v239 = vpop.f32.mrf.mxu0
  %240 = vmatprep.mubr.bf16.mxu0 0
  %241 = vmatmul.mubr.bf16.gmra.mxu0 %v116
  %v242 = vpop.f32.mrf.mxu0
  %v243 = vadd.f32 0.0, %v242
  %v244 = vpop.f32.mrf.mxu0
  %v245 = vpop.f32.mrf.mxu0
  %v246 = vadd.f32 0.0, %v245
  %v247 = vpop.f32.mrf.mxu0
  %248 = vmatprep.mubr.bf16.mxu0 0
  %249 = vmatmul.mubr.bf16.gmra.mxu0 %v117
  %v250 = vpop.f32.mrf.mxu0
  %v251 = vadd.f32 0.0, %v250
  %v252 = vpop.f32.mrf.mxu0
  %v253 = vpop.f32.mrf.mxu0
  %v254 = vadd.f32 0.0, %v253
  %v255 = vpop.f32.mrf.mxu0
  %256 = vmatprep.mubr.bf16.mxu0 0
  %257 = vmatmul.mubr.bf16.gmra.mxu0 %v118
  %v258 = vpop.f32.mrf.mxu0
  %v259 = vadd.f32 0.0, %v258
  %v260 = vpop.f32.mrf.mxu0
  %v261 = vpop.f32.mrf.mxu0
  %v262 = vadd.f32 0.0, %v261
  %v263 = vpop.f32.mrf.mxu0
  %264 = vmatprep.mubr.bf16.mxu0 0
  %265 = vmatmul.mubr.bf16.gmra.mxu0 %v119
  %v266 = vpop.f32.mrf.mxu0
  %v267 = vadd.f32 0.0, %v266
  %v268 = vpop.f32.mrf.mxu0
  %v269 = vpop.f32.mrf.mxu0
  %v270 = vadd.f32 0.0, %v269
  %v271 = vpop.f32.mrf.mxu0
  %272 = vdwg.mxu0
  %vm273 = vcmp.ge.f32.partialorder %v211, 0.0
  %vm274 = vcmp.ge.f32.partialorder %v214, 0.0
  %vm275 = vcmp.ge.f32.partialorder %v219, 0.0
  %vm276 = vcmp.ge.f32.partialorder %v222, 0.0
  %vm277 = vcmp.ge.f32.partialorder %v227, 0.0
  %vm278 = vcmp.ge.f32.partialorder %v230, 0.0
  %vm279 = vcmp.ge.f32.partialorder %v235, 0.0
  %vm280 = vcmp.ge.f32.partialorder %v238, 0.0
  %vm281 = vcmp.ge.f32.partialorder %v243, 0.0
  %vm282 = vcmp.ge.f32.partialorder %v246, 0.0
  %vm283 = vcmp.ge.f32.partialorder %v251, 0.0
  %vm284 = vcmp.ge.f32.partialorder %v254, 0.0
  %vm285 = vcmp.ge.f32.partialorder %v259, 0.0
  %vm286 = vcmp.ge.f32.partialorder %v262, 0.0
  %vm287 = vcmp.ge.f32.partialorder %v267, 0.0
  %vm288 = vcmp.ge.f32.partialorder %v270, 0.0
  %v289 = vmul.f32 %v211, 0.2
  %v290 = vmul.f32 %v214, 0.2
  %v291 = vmul.f32 %v219, 0.2
  %v292 = vmul.f32 %v222, 0.2
  %v293 = vmul.f32 %v227, 0.2
  %v294 = vmul.f32 %v230, 0.2
  %v295 = vmul.f32 %v235, 0.2
  %v296 = vmul.f32 %v238, 0.2
  %v297 = vmul.f32 %v243, 0.2
  %v298 = vmul.f32 %v246, 0.2
  %v299 = vmul.f32 %v251, 0.2
  %v300 = vmul.f32 %v254, 0.2
  %v301 = vmul.f32 %v259, 0.2
  %v302 = vmul.f32 %v262, 0.2
  %v303 = vmul.f32 %v267, 0.2
  %v304 = vmul.f32 %v270, 0.2
  %v305 = vsel %vm273, %v211, %v289
  %v306 = vsel %vm274, %v214, %v290
  %v307 = vsel %vm275, %v219, %v291
  %v308 = vsel %vm276, %v222, %v292
  %v309 = vsel %vm277, %v227, %v293
  %v310 = vsel %vm278, %v230, %v294
  %v311 = vsel %vm279, %v235, %v295
  %v312 = vsel %vm280, %v238, %v296
  %v313 = vsel %vm281, %v243, %v297
  %v314 = vsel %vm282, %v246, %v298
  %v315 = vsel %vm283, %v251, %v299
  %v316 = vsel %vm284, %v254, %v300
  %v317 = vsel %vm285, %v259, %v301
  %v318 = vsel %vm286, %v262, %v302
  %v319 = vsel %vm287, %v267, %v303
  %v320 = vsel %vm288, %v270, %v304
  %v321 = vadd.f32 %v305, %v306
  %v322 = vadd.f32 %v321, %v307
  %v323 = vadd.f32 %v322, %v308
  %v324 = vadd.f32 %v323, %v309
  %v325 = vadd.f32 %v324, %v310
  %v326 = vadd.f32 %v325, %v311
  %v327 = vadd.f32 %v326, %v312
  %v328 = vadd.f32 %v327, %v313
  %v329 = vadd.f32 %v328, %v314
  %v330 = vadd.f32 %v329, %v315
  %v331 = vadd.f32 %v330, %v316
  %v332 = vadd.f32 %v331, %v317
  %v333 = vadd.f32 %v332, %v318
  %v334 = vadd.f32 %v333, %v319
  %v335 = vadd.f32 %v334, %v320
  %v336 = vrot.slane %v335, 4
  %v337 = vadd.f32 %v335, %v336
  %v338 = vrot.slane %v337, 2
  %v339 = vadd.f32 %v337, %v338
  %v340 = vrot.slane %v339, 1
  %v341 = vadd.f32 %v339, %v340
  %v342 = vmul.f32 %v341, 0.0078125
  %v343 = vsub.f32 %v305, %v342
  %v344 = vsub.f32 %v306, %v342
  %v345 = vsub.f32 %v307, %v342
  %v346 = vsub.f32 %v308, %v342
  %v347 = vsub.f32 %v309, %v342
  %v348 = vsub.f32 %v310, %v342
  %v349 = vsub.f32 %v311, %v342
  %v350 = vsub.f32 %v312, %v342
  %v351 = vsub.f32 %v313, %v342
  %v352 = vsub.f32 %v314, %v342
  %v353 = vsub.f32 %v315, %v342
  %v354 = vsub.f32 %v316, %v342
  %v355 = vsub.f32 %v317, %v342
  %v356 = vsub.f32 %v318, %v342
  %v357 = vsub.f32 %v319, %v342
  %v358 = vsub.f32 %v320, %v342
  %v359 = vmul.f32 %v343, %v343
  %v360 = vmul.f32 %v344, %v344
  %v361 = vmul.f32 %v345, %v345
  %v362 = vmul.f32 %v346, %v346
  %v363 = vmul.f32 %v347, %v347
  %v364 = vmul.f32 %v348, %v348
  %v365 = vmul.f32 %v349, %v349
  %v366 = vmul.f32 %v350, %v350
  %v367 = vmul.f32 %v351, %v351
  %v368 = vmul.f32 %v352, %v352
  %v369 = vmul.f32 %v353, %v353
  %v370 = vmul.f32 %v354, %v354
  %v371 = vmul.f32 %v355, %v355
  %v372 = vmul.f32 %v356, %v356
  %v373 = vmul.f32 %v357, %v357
  %v374 = vmul.f32 %v358, %v358
  %v375 = vadd.f32 %v359, %v360
  %v376 = vadd.f32 %v375, %v361
  %v377 = vadd.f32 %v376, %v362
  %v378 = vadd.f32 %v377, %v363
  %v379 = vadd.f32 %v378, %v364
  %v380 = vadd.f32 %v379, %v365
  %v381 = vadd.f32 %v380, %v366
  %v382 = vadd.f32 %v381, %v367
  %v383 = vadd.f32 %v382, %v368
  %v384 = vadd.f32 %v383, %v369
  %v385 = vadd.f32 %v384, %v370
  %v386 = vadd.f32 %v385, %v371
  %v387 = vadd.f32 %v386, %v372
  %v388 = vadd.f32 %v387, %v373
  %v389 = vadd.f32 %v388, %v374
  %v390 = vrot.slane %v389, 4
  %v391 = vadd.f32 %v389, %v390
  %v392 = vrot.slane %v391, 2
  %v393 = vadd.f32 %v391, %v392
  %v394 = vrot.slane %v393, 1
  %v395 = vadd.f32 %v393, %v394
  %v396 = vmul.f32 %v395, 0.0078125
  %v397 = vadd.f32 %v396, 1e-05
  %v398 = vrsqrt.pop %v397
  %v399 = vmul.f32 %v343, %v398
  %v400 = vmul.f32 %v344, %v398
  %v401 = vmul.f32 %v345, %v398
  %v402 = vmul.f32 %v346, %v398
  %v403 = vmul.f32 %v347, %v398
  %v404 = vmul.f32 %v348, %v398
  %v405 = vmul.f32 %v349, %v398
  %v406 = vmul.f32 %v350, %v398
  %v407 = vmul.f32 %v351, %v398
  %v408 = vmul.f32 %v352, %v398
  %v409 = vmul.f32 %v353, %v398
  %v410 = vmul.f32 %v354, %v398
  %v411 = vmul.f32 %v355, %v398
  %v412 = vmul.f32 %v356, %v398
  %v413 = vmul.f32 %v357, %v398
  %v414 = vmul.f32 %v358, %v398
  %v415 = vld [vmem:[%s2] sm:$0x1]
  %v417 = vlaneseq
  %v418 = vshrl.u32 %v417, 7
  %v419 = vsub.s32 0, %v418
  %v420 = vrot.slane %v415, %v419
  %v422 = vmul.f32 %v399, %v420
  %v423 = vmul.f32 %v400, %v420
  %v424 = vmul.f32 %v401, %v420
  %v425 = vmul.f32 %v402, %v420
  %v426 = vmul.f32 %v403, %v420
  %v427 = vmul.f32 %v404, %v420
  %v428 = vmul.f32 %v405, %v420
  %v429 = vmul.f32 %v406, %v420
  %v430 = vmul.f32 %v407, %v420
  %v431 = vmul.f32 %v408, %v420
  %v432 = vmul.f32 %v409, %v420
  %v433 = vmul.f32 %v410, %v420
  %v434 = vmul.f32 %v411, %v420
  %v435 = vmul.f32 %v412, %v420
  %v436 = vmul.f32 %v413, %v420
  %v437 = vmul.f32 %v414, %v420
  %v438 = vld [vmem:[%s3] sm:$0x1]
  %v440 = vlaneseq
  %v441 = vshrl.u32 %v440, 7
  %v442 = vsub.s32 0, %v441
  %v443 = vrot.slane %v438, %v442
  %v445 = vadd.f32 %v422, %v443
  %v446 = vadd.f32 %v423, %v443
  %v447 = vadd.f32 %v424, %v443
  %v448 = vadd.f32 %v425, %v443
  %v449 = vadd.f32 %v426, %v443
  %v450 = vadd.f32 %v427, %v443
  %v451 = vadd.f32 %v428, %v443
  %v452 = vadd.f32 %v429, %v443
  %v453 = vadd.f32 %v430, %v443
  %v454 = vadd.f32 %v431, %v443
  %v455 = vadd.f32 %v432, %v443
  %v456 = vadd.f32 %v433, %v443
  %v457 = vadd.f32 %v434, %v443
  %v458 = vadd.f32 %v435, %v443
  %v459 = vadd.f32 %v436, %v443
  %v460 = vadd.f32 %v437, %v443
  %v461 = vpack.c.bf16 %v446, %v445
  %v462 = vpack.c.bf16 %v448, %v447
  %v463 = vpack.c.bf16 %v450, %v449
  %v464 = vpack.c.bf16 %v452, %v451
  %v465 = vpack.c.bf16 %v454, %v453
  %v466 = vpack.c.bf16 %v456, %v455
  %v467 = vpack.c.bf16 %v458, %v457
  %v468 = vpack.c.bf16 %v460, %v459
  %v469 = vlaneseq
  %v470 = vand.u32 %v469, 127
  %v471 = vld [vmem:[%s4] sm:$0xff]
  %v472 = vld [vmem:[%s4 + $0x8] sm:$0xff]
  %v473 = vld [vmem:[%s4 + $0x10] sm:$0xff]
  %v474 = vld [vmem:[%s4 + $0x18] sm:$0xff]
  %475 = vset.pattern.permute.xlu0 0
  %476 = vperm.xlu0 %475, %v471
  %v477 = vpop.permute.xlu0 %476
  %478 = vset.pattern.permute.xlu0 0
  %479 = vperm.xlu0 %478, %v472
  %v480 = vpop.permute.xlu0 %479
  %481 = vset.pattern.permute.xlu0 0
  %482 = vperm.xlu0 %481, %v473
  %v483 = vpop.permute.xlu0 %482
  %484 = vset.pattern.permute.xlu0 0
  %485 = vperm.xlu0 %484, %v474
  %v486 = vpop.permute.xlu0 %485
  %vm487 = vcmp.eq.s32.totalorder %v470, %v477
  %vm488 = vcmp.eq.s32.totalorder %v470, %v480
  %vm489 = vcmp.eq.s32.totalorder %v470, %v483
  %vm490 = vcmp.eq.s32.totalorder %v470, %v486
  %v491 = vsel %vm487, 1.0, 0.0
  %v492 = vsel %vm488, 1.0, 0.0
  %v493 = vsel %vm489, 1.0, 0.0
  %v494 = vsel %vm490, 1.0, 0.0
  %v495 = vpack.c.bf16 %v492, %v491
  %v496 = vpack.c.bf16 %v494, %v493
  %497 = vmatprep.subr.bf16.mxu0 0
  %498 = vmatpush1.bf16.msra.mxu0 %v468
  %499 = vmatprep.subr.bf16.mxu0 0
  %500 = vmatpush1.bf16.msra.mxu0 %v467
  %501 = vmatprep.subr.bf16.mxu0 0
  %502 = vmatpush1.bf16.msra.mxu0 %v466
  %503 = vmatprep.subr.bf16.mxu0 0
  %504 = vmatpush1.bf16.msra.mxu0 %v465
  %505 = vmatprep.subr.bf16.mxu0 0
  %506 = vmatpush1.bf16.msra.mxu0 %v464
  %507 = vmatprep.subr.bf16.mxu0 0
  %508 = vmatpush1.bf16.msra.mxu0 %v463
  %509 = vmatprep.subr.bf16.mxu0 0
  %510 = vmatpush1.bf16.msra.mxu0 %v462
  %511 = vmatprep.subr.bf16.mxu0 0
  %512 = vmatpush1.bf16.msra.mxu0 %v461
  %513 = vmatprep.subr.bf16.mxu0 0
  %514 = vmatpush2.bf16.msra.mxu0 0
  %515 = vmatprep.subr.bf16.mxu0 0
  %516 = vmatpush2.bf16.msra.mxu0 0
  %517 = vmatprep.subr.bf16.mxu0 0
  %518 = vmatpush2.bf16.msra.mxu0 0
  %519 = vmatprep.subr.bf16.mxu0 0
  %520 = vmatpush2.bf16.msra.mxu0 0
  %521 = vmatprep.subr.bf16.mxu0 0
  %522 = vmatpush2.bf16.msra.mxu0 0
  %523 = vmatprep.subr.bf16.mxu0 0
  %524 = vmatpush2.bf16.msra.mxu0 0
  %525 = vmatprep.subr.bf16.mxu0 0
  %526 = vmatpush2.bf16.msra.mxu0 0
  %527 = vmatprep.subr.bf16.mxu0 0
  %528 = vmatpush2.bf16.msra.mxu0 0
  %529 = vmatprep.mubr.bf16.mxu0 0
  %530 = vmatmul.mubr.bf16.gmra.mxu0 %v495
  %v531 = vpop.f32.mrf.mxu0
  %v532 = vadd.f32 0.0, %v531
  %v533 = vpop.f32.mrf.mxu0
  %v534 = vpop.f32.mrf.mxu0
  %v535 = vadd.f32 0.0, %v534
  %v536 = vpop.f32.mrf.mxu0
  %537 = vmatprep.mubr.bf16.mxu0 0
  %538 = vmatmul.mubr.bf16.gmra.mxu0 %v496
  %v539 = vpop.f32.mrf.mxu0
  %v540 = vadd.f32 0.0, %v539
  %v541 = vpop.f32.mrf.mxu0
  %v542 = vpop.f32.mrf.mxu0
  %v543 = vadd.f32 0.0, %v542
  %v544 = vpop.f32.mrf.mxu0
  %545 = vdwg.mxu0
  %v546 = vpack.c.bf16 %v535, %v532
  %v547 = vpack.c.bf16 %v543, %v540
  %v548 = vld [vmem:[%s5] sm:$0xf]
  %v549 = vld [vmem:[%s5 + $0x4] sm:$0xf]
  %v550 = vld [vmem:[%s5 + $0x8] sm:$0xf]
  %v551 = vld [vmem:[%s5 + $0xc] sm:$0xf]
  %v552 = vld [vmem:[%s5 + $0x10] sm:$0xf]
  %v553 = vld [vmem:[%s5 + $0x14] sm:$0xf]
  %v554 = vld [vmem:[%s5 + $0x18] sm:$0xf]
  %v555 = vld [vmem:[%s5 + $0x1c] sm:$0xf]
  %v556 = vld [vmem:[%s5 + $0x20] sm:$0xf]
  %v557 = vld [vmem:[%s5 + $0x24] sm:$0xf]
  %v558 = vld [vmem:[%s5 + $0x28] sm:$0xf]
  %v559 = vld [vmem:[%s5 + $0x2c] sm:$0xf]
  %v560 = vld [vmem:[%s5 + $0x30] sm:$0xf]
  %v561 = vld [vmem:[%s5 + $0x34] sm:$0xf]
  %v562 = vld [vmem:[%s5 + $0x38] sm:$0xf]
  %v563 = vld [vmem:[%s5 + $0x3c] sm:$0xf]
  %564 = vset.pattern.permute.xlu0 1
  %565 = vperm.xlu0 %564, %v471
  %v566 = vpop.permute.xlu0 %565
  %567 = vset.pattern.permute.xlu0 1
  %568 = vperm.xlu0 %567, %v472
  %v569 = vpop.permute.xlu0 %568
  %570 = vset.pattern.permute.xlu0 1
  %571 = vperm.xlu0 %570, %v473
  %v572 = vpop.permute.xlu0 %571
  %573 = vset.pattern.permute.xlu0 1
  %574 = vperm.xlu0 %573, %v474
  %v575 = vpop.permute.xlu0 %574
  %vm576 = vcmp.eq.s32.totalorder %v470, %v566
  %vm577 = vcmp.eq.s32.totalorder %v470, %v569
  %vm578 = vcmp.eq.s32.totalorder %v470, %v572
  %vm579 = vcmp.eq.s32.totalorder %v470, %v575
  %v580 = vsel %vm576, 1.0, 0.0
  %v581 = vsel %vm577, 1.0, 0.0
  %v582 = vsel %vm578, 1.0, 0.0
  %v583 = vsel %vm579, 1.0, 0.0
  %v584 = vpack.c.bf16 %v581, %v580
  %v585 = vpack.c.bf16 %v583, %v582
  %586 = vmatprep.subr.bf16.mxu0 0
  %587 = vmatpush1.bf16.msra.mxu0 %v468
  %588 = vmatprep.subr.bf16.mxu0 0
  %589 = vmatpush1.bf16.msra.mxu0 %v467
  %590 = vmatprep.subr.bf16.mxu0 0
  %591 = vmatpush1.bf16.msra.mxu0 %v466
  %592 = vmatprep.subr.bf16.mxu0 0
  %593 = vmatpush1.bf16.msra.mxu0 %v465
  %594 = vmatprep.subr.bf16.mxu0 0
  %595 = vmatpush1.bf16.msra.mxu0 %v464
  %596 = vmatprep.subr.bf16.mxu0 0
  %597 = vmatpush1.bf16.msra.mxu0 %v463
  %598 = vmatprep.subr.bf16.mxu0 0
  %599 = vmatpush1.bf16.msra.mxu0 %v462
  %600 = vmatprep.subr.bf16.mxu0 0
  %601 = vmatpush1.bf16.msra.mxu0 %v461
  %602 = vmatprep.subr.bf16.mxu0 0
  %603 = vmatpush2.bf16.msra.mxu0 0
  %604 = vmatprep.subr.bf16.mxu0 0
  %605 = vmatpush2.bf16.msra.mxu0 0
  %606 = vmatprep.subr.bf16.mxu0 0
  %607 = vmatpush2.bf16.msra.mxu0 0
  %608 = vmatprep.subr.bf16.mxu0 0
  %609 = vmatpush2.bf16.msra.mxu0 0
  %610 = vmatprep.subr.bf16.mxu0 0
  %611 = vmatpush2.bf16.msra.mxu0 0
  %612 = vmatprep.subr.bf16.mxu0 0
  %613 = vmatpush2.bf16.msra.mxu0 0
  %614 = vmatprep.subr.bf16.mxu0 0
  %615 = vmatpush2.bf16.msra.mxu0 0
  %616 = vmatprep.subr.bf16.mxu0 0
  %617 = vmatpush2.bf16.msra.mxu0 0
  %618 = vmatprep.mubr.bf16.mxu0 0
  %619 = vmatmul.mubr.bf16.gmra.mxu0 %v584
  %v620 = vpop.f32.mrf.mxu0
  %v621 = vadd.f32 0.0, %v620
  %v622 = vpop.f32.mrf.mxu0
  %v623 = vpop.f32.mrf.mxu0
  %v624 = vadd.f32 0.0, %v623
  %v625 = vpop.f32.mrf.mxu0
  %626 = vmatprep.mubr.bf16.mxu0 0
  %627 = vmatmul.mubr.bf16.gmra.mxu0 %v585
  %v628 = vpop.f32.mrf.mxu0
  %v629 = vadd.f32 0.0, %v628
  %v630 = vpop.f32.mrf.mxu0
  %v631 = vpop.f32.mrf.mxu0
  %v632 = vadd.f32 0.0, %v631
  %v633 = vpop.f32.mrf.mxu0
  %634 = vdwg.mxu0
  %v635 = vpack.c.bf16 %v624, %v621
  %v636 = vpack.c.bf16 %v632, %v629
  %s637 = scalar_lea.vmem %s5, 64
  %v638 = vld [vmem:[%s637] sm:$0xf]
  %v639 = vld [vmem:[%s637 + $0x4] sm:$0xf]
  %v640 = vld [vmem:[%s637 + $0x8] sm:$0xf]
  %v641 = vld [vmem:[%s637 + $0xc] sm:$0xf]
  %v642 = vld [vmem:[%s637 + $0x10] sm:$0xf]
  %v643 = vld [vmem:[%s637 + $0x14] sm:$0xf]
  %v644 = vld [vmem:[%s637 + $0x18] sm:$0xf]
  %v645 = vld [vmem:[%s637 + $0x1c] sm:$0xf]
  %v646 = vld [vmem:[%s637 + $0x20] sm:$0xf]
  %v647 = vld [vmem:[%s637 + $0x24] sm:$0xf]
  %v648 = vld [vmem:[%s637 + $0x28] sm:$0xf]
  %v649 = vld [vmem:[%s637 + $0x2c] sm:$0xf]
  %v650 = vld [vmem:[%s637 + $0x30] sm:$0xf]
  %v651 = vld [vmem:[%s637 + $0x34] sm:$0xf]
  %v652 = vld [vmem:[%s637 + $0x38] sm:$0xf]
  %v653 = vld [vmem:[%s637 + $0x3c] sm:$0xf]
  %v670 = vunpack.c.l.b16 %v638
  %v671 = vunpack.c.l.b16 %v639
  %v672 = vunpack.c.l.b16 %v640
  %v673 = vunpack.c.l.b16 %v641
  %v674 = vunpack.c.l.b16 %v642
  %v675 = vunpack.c.l.b16 %v643
  %v676 = vunpack.c.l.b16 %v644
  %v677 = vunpack.c.l.b16 %v645
  %v678 = vunpack.c.l.b16 %v646
  %v679 = vunpack.c.l.b16 %v647
  %v680 = vunpack.c.l.b16 %v648
  %v681 = vunpack.c.l.b16 %v649
  %v682 = vunpack.c.l.b16 %v650
  %v683 = vunpack.c.l.b16 %v651
  %v684 = vunpack.c.l.b16 %v652
  %v685 = vunpack.c.l.b16 %v653
  %v686 = vpack.c.b16 %v671, %v670
  %v687 = vpack.c.b16 %v673, %v672
  %v688 = vpack.c.b16 %v675, %v674
  %v689 = vpack.c.b16 %v677, %v676
  %v690 = vpack.c.b16 %v679, %v678
  %v691 = vpack.c.b16 %v681, %v680
  %v692 = vpack.c.b16 %v683, %v682
  %v693 = vpack.c.b16 %v685, %v684
  %702 = vmatprep.subr.bf16.mxu0 0
  %703 = vmatpush1.bf16.msra.mxu0 %v693
  %704 = vmatprep.subr.bf16.mxu0 0
  %705 = vmatpush1.bf16.msra.mxu0 %v692
  %706 = vmatprep.subr.bf16.mxu0 0
  %707 = vmatpush1.bf16.msra.mxu0 %v691
  %708 = vmatprep.subr.bf16.mxu0 0
  %709 = vmatpush1.bf16.msra.mxu0 %v690
  %710 = vmatprep.subr.bf16.mxu0 0
  %711 = vmatpush1.bf16.msra.mxu0 %v689
  %712 = vmatprep.subr.bf16.mxu0 0
  %713 = vmatpush1.bf16.msra.mxu0 %v688
  %714 = vmatprep.subr.bf16.mxu0 0
  %715 = vmatpush1.bf16.msra.mxu0 %v687
  %716 = vmatprep.subr.bf16.mxu0 0
  %717 = vmatpush1.bf16.msra.mxu0 %v686
  %718 = vmatprep.subr.bf16.mxu0 0
  %719 = vmatpush2.bf16.msra.mxu0 0
  %720 = vmatprep.subr.bf16.mxu0 0
  %721 = vmatpush2.bf16.msra.mxu0 0
  %722 = vmatprep.subr.bf16.mxu0 0
  %723 = vmatpush2.bf16.msra.mxu0 0
  %724 = vmatprep.subr.bf16.mxu0 0
  %725 = vmatpush2.bf16.msra.mxu0 0
  %726 = vmatprep.subr.bf16.mxu0 0
  %727 = vmatpush2.bf16.msra.mxu0 0
  %728 = vmatprep.subr.bf16.mxu0 0
  %729 = vmatpush2.bf16.msra.mxu0 0
  %730 = vmatprep.subr.bf16.mxu0 0
  %731 = vmatpush2.bf16.msra.mxu0 0
  %732 = vmatprep.subr.bf16.mxu0 0
  %733 = vmatpush2.bf16.msra.mxu0 0
  %734 = vmatprep.mubr.bf16.mxu0 0
  %735 = vmatmul.mubr.bf16.gmra.mxu0 %v635
  %v736 = vpop.f32.mrf.mxu0
  %v737 = vadd.f32 0.0, %v736
  %v738 = vpop.f32.mrf.mxu0
  %v739 = vpop.f32.mrf.mxu0
  %v740 = vadd.f32 0.0, %v739
  %v741 = vpop.f32.mrf.mxu0
  %742 = vmatprep.mubr.bf16.mxu0 0
  %743 = vmatmul.mubr.bf16.gmra.mxu0 %v636
  %v744 = vpop.f32.mrf.mxu0
  %v745 = vadd.f32 0.0, %v744
  %v746 = vpop.f32.mrf.mxu0
  %v747 = vpop.f32.mrf.mxu0
  %v748 = vadd.f32 0.0, %v747
  %v749 = vpop.f32.mrf.mxu0
  %750 = vdwg.mxu0
  %v767 = vunpack.c.l.b16 %v548
  %v768 = vunpack.c.l.b16 %v549
  %v769 = vunpack.c.l.b16 %v550
  %v770 = vunpack.c.l.b16 %v551
  %v771 = vunpack.c.l.b16 %v552
  %v772 = vunpack.c.l.b16 %v553
  %v773 = vunpack.c.l.b16 %v554
  %v774 = vunpack.c.l.b16 %v555
  %v775 = vunpack.c.l.b16 %v556
  %v776 = vunpack.c.l.b16 %v557
  %v777 = vunpack.c.l.b16 %v558
  %v778 = vunpack.c.l.b16 %v559
  %v779 = vunpack.c.l.b16 %v560
  %v780 = vunpack.c.l.b16 %v561
  %v781 = vunpack.c.l.b16 %v562
  %v782 = vunpack.c.l.b16 %v563
  %v783 = vpack.c.b16 %v768, %v767
  %v784 = vpack.c.b16 %v770, %v769
  %v785 = vpack.c.b16 %v772, %v771
  %v786 = vpack.c.b16 %v774, %v773
  %v787 = vpack.c.b16 %v776, %v775
  %v788 = vpack.c.b16 %v778, %v777
  %v789 = vpack.c.b16 %v780, %v779
  %v790 = vpack.c.b16 %v782, %v781
  %799 = vmatprep.subr.bf16.mxu0 0
  %800 = vmatpush1.bf16.msra.mxu0 %v790
  %801 = vmatprep.subr.bf16.mxu0 0
  %802 = vmatpush1.bf16.msra.mxu0 %v789
  %803 = vmatprep.subr.bf16.mxu0 0
  %804 = vmatpush1.bf16.msra.mxu0 %v788
  %805 = vmatprep.subr.bf16.mxu0 0
  %806 = vmatpush1.bf16.msra.mxu0 %v787
  %807 = vmatprep.subr.bf16.mxu0 0
  %808 = vmatpush1.bf16.msra.mxu0 %v786
  %809 = vmatprep.subr.bf16.mxu0 0
  %810 = vmatpush1.bf16.msra.mxu0 %v785
  %811 = vmatprep.subr.bf16.mxu0 0
  %812 = vmatpush1.bf16.msra.mxu0 %v784
  %813 = vmatprep.subr.bf16.mxu0 0
  %814 = vmatpush1.bf16.msra.mxu0 %v783
  %815 = vmatprep.subr.bf16.mxu0 0
  %816 = vmatpush2.bf16.msra.mxu0 0
  %817 = vmatprep.subr.bf16.mxu0 0
  %818 = vmatpush2.bf16.msra.mxu0 0
  %819 = vmatprep.subr.bf16.mxu0 0
  %820 = vmatpush2.bf16.msra.mxu0 0
  %821 = vmatprep.subr.bf16.mxu0 0
  %822 = vmatpush2.bf16.msra.mxu0 0
  %823 = vmatprep.subr.bf16.mxu0 0
  %824 = vmatpush2.bf16.msra.mxu0 0
  %825 = vmatprep.subr.bf16.mxu0 0
  %826 = vmatpush2.bf16.msra.mxu0 0
  %827 = vmatprep.subr.bf16.mxu0 0
  %828 = vmatpush2.bf16.msra.mxu0 0
  %829 = vmatprep.subr.bf16.mxu0 0
  %830 = vmatpush2.bf16.msra.mxu0 0
  %831 = vmatprep.mubr.bf16.mxu0 0
  %832 = vmatmul.mubr.bf16.gmra.mxu0 %v546
  %v833 = vpop.f32.mrf.mxu0
  %v834 = vadd.f32 %v737, %v833
  %v835 = vpop.f32.mrf.mxu0
  %v836 = vpop.f32.mrf.mxu0
  %v837 = vadd.f32 %v740, %v836
  %v838 = vpop.f32.mrf.mxu0
  %839 = vmatprep.mubr.bf16.mxu0 0
  %840 = vmatmul.mubr.bf16.gmra.mxu0 %v547
  %v841 = vpop.f32.mrf.mxu0
  %v842 = vadd.f32 %v745, %v841
  %v843 = vpop.f32.mrf.mxu0
  %v844 = vpop.f32.mrf.mxu0
  %v845 = vadd.f32 %v748, %v844
  %v846 = vpop.f32.mrf.mxu0
  %847 = vdwg.mxu0
  %848 = vset.pattern.permute.xlu0 2
  %849 = vperm.xlu0 %848, %v471
  %v850 = vpop.permute.xlu0 %849
  %851 = vset.pattern.permute.xlu0 2
  %852 = vperm.xlu0 %851, %v472
  %v853 = vpop.permute.xlu0 %852
  %854 = vset.pattern.permute.xlu0 2
  %855 = vperm.xlu0 %854, %v473
  %v856 = vpop.permute.xlu0 %855
  %857 = vset.pattern.permute.xlu0 2
  %858 = vperm.xlu0 %857, %v474
  %v859 = vpop.permute.xlu0 %858
  %vm860 = vcmp.eq.s32.totalorder %v470, %v850
  %vm861 = vcmp.eq.s32.totalorder %v470, %v853
  %vm862 = vcmp.eq.s32.totalorder %v470, %v856
  %vm863 = vcmp.eq.s32.totalorder %v470, %v859
  %v864 = vsel %vm860, 1.0, 0.0
  %v865 = vsel %vm861, 1.0, 0.0
  %v866 = vsel %vm862, 1.0, 0.0
  %v867 = vsel %vm863, 1.0, 0.0
  %v868 = vpack.c.bf16 %v865, %v864
  %v869 = vpack.c.bf16 %v867, %v866
  %870 = vmatprep.subr.bf16.mxu0 0
  %871 = vmatpush1.bf16.msra.mxu0 %v468
  %872 = vmatprep.subr.bf16.mxu0 0
  %873 = vmatpush1.bf16.msra.mxu0 %v467
  %874 = vmatprep.subr.bf16.mxu0 0
  %875 = vmatpush1.bf16.msra.mxu0 %v466
  %876 = vmatprep.subr.bf16.mxu0 0
  %877 = vmatpush1.bf16.msra.mxu0 %v465
  %878 = vmatprep.subr.bf16.mxu0 0
  %879 = vmatpush1.bf16.msra.mxu0 %v464
  %880 = vmatprep.subr.bf16.mxu0 0
  %881 = vmatpush1.bf16.msra.mxu0 %v463
  %882 = vmatprep.subr.bf16.mxu0 0
  %883 = vmatpush1.bf16.msra.mxu0 %v462
  %884 = vmatprep.subr.bf16.mxu0 0
  %885 = vmatpush1.bf16.msra.mxu0 %v461
  %886 = vmatprep.subr.bf16.mxu0 0
  %887 = vmatpush2.bf16.msra.mxu0 0
  %888 = vmatprep.subr.bf16.mxu0 0
  %889 = vmatpush2.bf16.msra.mxu0 0
  %890 = vmatprep.subr.bf16.mxu0 0
  %891 = vmatpush2.bf16.msra.mxu0 0
  %892 = vmatprep.subr.bf16.mxu0 0
  %893 = vmatpush2.bf16.msra.mxu0 0
  %894 = vmatprep.subr.bf16.mxu0 0
  %895 = vmatpush2.bf16.msra.mxu0 0
  %896 = vmatprep.subr.bf16.mxu0 0
  %897 = vmatpush2.bf16.msra.mxu0 0
  %898 = vmatprep.subr.bf16.mxu0 0
  %899 = vmatpush2.bf16.msra.mxu0 0
  %900 = vmatprep.subr.bf16.mxu0 0
  %901 = vmatpush2.bf16.msra.mxu0 0
  %902 = vmatprep.mubr.bf16.mxu0 0
  %903 = vmatmul.mubr.bf16.gmra.mxu0 %v868
  %v904 = vpop.f32.mrf.mxu0
  %v905 = vadd.f32 0.0, %v904
  %v906 = vpop.f32.mrf.mxu0
  %v907 = vpop.f32.mrf.mxu0
  %v908 = vadd.f32 0.0, %v907
  %v909 = vpop.f32.mrf.mxu0
  %910 = vmatprep.mubr.bf16.mxu0 0
  %911 = vmatmul.mubr.bf16.gmra.mxu0 %v869
  %v912 = vpop.f32.mrf.mxu0
  %v913 = vadd.f32 0.0, %v912
  %v914 = vpop.f32.mrf.mxu0
  %v915 = vpop.f32.mrf.mxu0
  %v916 = vadd.f32 0.0, %v915
  %v917 = vpop.f32.mrf.mxu0
  %918 = vdwg.mxu0
  %v919 = vpack.c.bf16 %v908, %v905
  %v920 = vpack.c.bf16 %v916, %v913
  %s921 = scalar_lea.vmem %s5, 128
  %v922 = vld [vmem:[%s921] sm:$0xf]
  %v923 = vld [vmem:[%s921 + $0x4] sm:$0xf]
  %v924 = vld [vmem:[%s921 + $0x8] sm:$0xf]
  %v925 = vld [vmem:[%s921 + $0xc] sm:$0xf]
  %v926 = vld [vmem:[%s921 + $0x10] sm:$0xf]
  %v927 = vld [vmem:[%s921 + $0x14] sm:$0xf]
  %v928 = vld [vmem:[%s921 + $0x18] sm:$0xf]
  %v929 = vld [vmem:[%s921 + $0x1c] sm:$0xf]
  %v930 = vld [vmem:[%s921 + $0x20] sm:$0xf]
  %v931 = vld [vmem:[%s921 + $0x24] sm:$0xf]
  %v932 = vld [vmem:[%s921 + $0x28] sm:$0xf]
  %v933 = vld [vmem:[%s921 + $0x2c] sm:$0xf]
  %v934 = vld [vmem:[%s921 + $0x30] sm:$0xf]
  %v935 = vld [vmem:[%s921 + $0x34] sm:$0xf]
  %v936 = vld [vmem:[%s921 + $0x38] sm:$0xf]
  %v937 = vld [vmem:[%s921 + $0x3c] sm:$0xf]
  %v954 = vunpack.c.l.b16 %v922
  %v955 = vunpack.c.l.b16 %v923
  %v956 = vunpack.c.l.b16 %v924
  %v957 = vunpack.c.l.b16 %v925
  %v958 = vunpack.c.l.b16 %v926
  %v959 = vunpack.c.l.b16 %v927
  %v960 = vunpack.c.l.b16 %v928
  %v961 = vunpack.c.l.b16 %v929
  %v962 = vunpack.c.l.b16 %v930
  %v963 = vunpack.c.l.b16 %v931
  %v964 = vunpack.c.l.b16 %v932
  %v965 = vunpack.c.l.b16 %v933
  %v966 = vunpack.c.l.b16 %v934
  %v967 = vunpack.c.l.b16 %v935
  %v968 = vunpack.c.l.b16 %v936
  %v969 = vunpack.c.l.b16 %v937
  %v970 = vpack.c.b16 %v955, %v954
  %v971 = vpack.c.b16 %v957, %v956
  %v972 = vpack.c.b16 %v959, %v958
  %v973 = vpack.c.b16 %v961, %v960
  %v974 = vpack.c.b16 %v963, %v962
  %v975 = vpack.c.b16 %v965, %v964
  %v976 = vpack.c.b16 %v967, %v966
  %v977 = vpack.c.b16 %v969, %v968
  %986 = vmatprep.subr.bf16.mxu0 0
  %987 = vmatpush1.bf16.msra.mxu0 %v977
  %988 = vmatprep.subr.bf16.mxu0 0
  %989 = vmatpush1.bf16.msra.mxu0 %v976
  %990 = vmatprep.subr.bf16.mxu0 0
  %991 = vmatpush1.bf16.msra.mxu0 %v975
  %992 = vmatprep.subr.bf16.mxu0 0
  %993 = vmatpush1.bf16.msra.mxu0 %v974
  %994 = vmatprep.subr.bf16.mxu0 0
  %995 = vmatpush1.bf16.msra.mxu0 %v973
  %996 = vmatprep.subr.bf16.mxu0 0
  %997 = vmatpush1.bf16.msra.mxu0 %v972
  %998 = vmatprep.subr.bf16.mxu0 0
  %999 = vmatpush1.bf16.msra.mxu0 %v971
  %1000 = vmatprep.subr.bf16.mxu0 0
  %1001 = vmatpush1.bf16.msra.mxu0 %v970
  %1002 = vmatprep.subr.bf16.mxu0 0
  %1003 = vmatpush2.bf16.msra.mxu0 0
  %1004 = vmatprep.subr.bf16.mxu0 0
  %1005 = vmatpush2.bf16.msra.mxu0 0
  %1006 = vmatprep.subr.bf16.mxu0 0
  %1007 = vmatpush2.bf16.msra.mxu0 0
  %1008 = vmatprep.subr.bf16.mxu0 0
  %1009 = vmatpush2.bf16.msra.mxu0 0
  %1010 = vmatprep.subr.bf16.mxu0 0
  %1011 = vmatpush2.bf16.msra.mxu0 0
  %1012 = vmatprep.subr.bf16.mxu0 0
  %1013 = vmatpush2.bf16.msra.mxu0 0
  %1014 = vmatprep.subr.bf16.mxu0 0
  %1015 = vmatpush2.bf16.msra.mxu0 0
  %1016 = vmatprep.subr.bf16.mxu0 0
  %1017 = vmatpush2.bf16.msra.mxu0 0
  %1018 = vmatprep.mubr.bf16.mxu0 0
  %1019 = vmatmul.mubr.bf16.gmra.mxu0 %v919
  %v1020 = vpop.f32.mrf.mxu0
  %v1021 = vadd.f32 0.0, %v1020
  %v1022 = vpop.f32.mrf.mxu0
  %v1023 = vpop.f32.mrf.mxu0
  %v1024 = vadd.f32 0.0, %v1023
  %v1025 = vpop.f32.mrf.mxu0
  %1026 = vmatprep.mubr.bf16.mxu0 0
  %1027 = vmatmul.mubr.bf16.gmra.mxu0 %v920
  %v1028 = vpop.f32.mrf.mxu0
  %v1029 = vadd.f32 0.0, %v1028
  %v1030 = vpop.f32.mrf.mxu0
  %v1031 = vpop.f32.mrf.mxu0
  %v1032 = vadd.f32 0.0, %v1031
  %v1033 = vpop.f32.mrf.mxu0
  %1034 = vdwg.mxu0
  %v1035 = vadd.f32 %v834, %v1021
  %v1036 = vadd.f32 %v837, %v1024
  %v1037 = vadd.f32 %v842, %v1029
  %v1038 = vadd.f32 %v845, %v1032
  %1039 = vset.pattern.permute.xlu0 3
  %1040 = vperm.xlu0 %1039, %v471
  %v1041 = vpop.permute.xlu0 %1040
  %1042 = vset.pattern.permute.xlu0 3
  %1043 = vperm.xlu0 %1042, %v472
  %v1044 = vpop.permute.xlu0 %1043
  %1045 = vset.pattern.permute.xlu0 3
  %1046 = vperm.xlu0 %1045, %v473
  %v1047 = vpop.permute.xlu0 %1046
  %1048 = vset.pattern.permute.xlu0 3
  %1049 = vperm.xlu0 %1048, %v474
  %v1050 = vpop.permute.xlu0 %1049
  %vm1051 = vcmp.eq.s32.totalorder %v470, %v1041
  %vm1052 = vcmp.eq.s32.totalorder %v470, %v1044
  %vm1053 = vcmp.eq.s32.totalorder %v470, %v1047
  %vm1054 = vcmp.eq.s32.totalorder %v470, %v1050
  %v1055 = vsel %vm1051, 1.0, 0.0
  %v1056 = vsel %vm1052, 1.0, 0.0
  %v1057 = vsel %vm1053, 1.0, 0.0
  %v1058 = vsel %vm1054, 1.0, 0.0
  %v1059 = vpack.c.bf16 %v1056, %v1055
  %v1060 = vpack.c.bf16 %v1058, %v1057
  %1061 = vmatprep.subr.bf16.mxu0 0
  %1062 = vmatpush1.bf16.msra.mxu0 %v468
  %1063 = vmatprep.subr.bf16.mxu0 0
  %1064 = vmatpush1.bf16.msra.mxu0 %v467
  %1065 = vmatprep.subr.bf16.mxu0 0
  %1066 = vmatpush1.bf16.msra.mxu0 %v466
  %1067 = vmatprep.subr.bf16.mxu0 0
  %1068 = vmatpush1.bf16.msra.mxu0 %v465
  %1069 = vmatprep.subr.bf16.mxu0 0
  %1070 = vmatpush1.bf16.msra.mxu0 %v464
  %1071 = vmatprep.subr.bf16.mxu0 0
  %1072 = vmatpush1.bf16.msra.mxu0 %v463
  %1073 = vmatprep.subr.bf16.mxu0 0
  %1074 = vmatpush1.bf16.msra.mxu0 %v462
  %1075 = vmatprep.subr.bf16.mxu0 0
  %1076 = vmatpush1.bf16.msra.mxu0 %v461
  %1077 = vmatprep.subr.bf16.mxu0 0
  %1078 = vmatpush2.bf16.msra.mxu0 0
  %1079 = vmatprep.subr.bf16.mxu0 0
  %1080 = vmatpush2.bf16.msra.mxu0 0
  %1081 = vmatprep.subr.bf16.mxu0 0
  %1082 = vmatpush2.bf16.msra.mxu0 0
  %1083 = vmatprep.subr.bf16.mxu0 0
  %1084 = vmatpush2.bf16.msra.mxu0 0
  %1085 = vmatprep.subr.bf16.mxu0 0
  %1086 = vmatpush2.bf16.msra.mxu0 0
  %1087 = vmatprep.subr.bf16.mxu0 0
  %1088 = vmatpush2.bf16.msra.mxu0 0
  %1089 = vmatprep.subr.bf16.mxu0 0
  %1090 = vmatpush2.bf16.msra.mxu0 0
  %1091 = vmatprep.subr.bf16.mxu0 0
  %1092 = vmatpush2.bf16.msra.mxu0 0
  %1093 = vmatprep.mubr.bf16.mxu0 0
  %1094 = vmatmul.mubr.bf16.gmra.mxu0 %v1059
  %v1095 = vpop.f32.mrf.mxu0
  %v1096 = vadd.f32 0.0, %v1095
  %v1097 = vpop.f32.mrf.mxu0
  %v1098 = vpop.f32.mrf.mxu0
  %v1099 = vadd.f32 0.0, %v1098
  %v1100 = vpop.f32.mrf.mxu0
  %1101 = vmatprep.mubr.bf16.mxu0 0
  %1102 = vmatmul.mubr.bf16.gmra.mxu0 %v1060
  %v1103 = vpop.f32.mrf.mxu0
  %v1104 = vadd.f32 0.0, %v1103
  %v1105 = vpop.f32.mrf.mxu0
  %v1106 = vpop.f32.mrf.mxu0
  %v1107 = vadd.f32 0.0, %v1106
  %v1108 = vpop.f32.mrf.mxu0
  %1109 = vdwg.mxu0
  %v1110 = vpack.c.bf16 %v1099, %v1096
  %v1111 = vpack.c.bf16 %v1107, %v1104
  %s1112 = scalar_lea.vmem %s5, 192
  %v1113 = vld [vmem:[%s1112] sm:$0xf]
  %v1114 = vld [vmem:[%s1112 + $0x4] sm:$0xf]
  %v1115 = vld [vmem:[%s1112 + $0x8] sm:$0xf]
  %v1116 = vld [vmem:[%s1112 + $0xc] sm:$0xf]
  %v1117 = vld [vmem:[%s1112 + $0x10] sm:$0xf]
  %v1118 = vld [vmem:[%s1112 + $0x14] sm:$0xf]
  %v1119 = vld [vmem:[%s1112 + $0x18] sm:$0xf]
  %v1120 = vld [vmem:[%s1112 + $0x1c] sm:$0xf]
  %v1121 = vld [vmem:[%s1112 + $0x20] sm:$0xf]
  %v1122 = vld [vmem:[%s1112 + $0x24] sm:$0xf]
  %v1123 = vld [vmem:[%s1112 + $0x28] sm:$0xf]
  %v1124 = vld [vmem:[%s1112 + $0x2c] sm:$0xf]
  %v1125 = vld [vmem:[%s1112 + $0x30] sm:$0xf]
  %v1126 = vld [vmem:[%s1112 + $0x34] sm:$0xf]
  %v1127 = vld [vmem:[%s1112 + $0x38] sm:$0xf]
  %v1128 = vld [vmem:[%s1112 + $0x3c] sm:$0xf]
  %v1145 = vunpack.c.l.b16 %v1113
  %v1146 = vunpack.c.l.b16 %v1114
  %v1147 = vunpack.c.l.b16 %v1115
  %v1148 = vunpack.c.l.b16 %v1116
  %v1149 = vunpack.c.l.b16 %v1117
  %v1150 = vunpack.c.l.b16 %v1118
  %v1151 = vunpack.c.l.b16 %v1119
  %v1152 = vunpack.c.l.b16 %v1120
  %v1153 = vunpack.c.l.b16 %v1121
  %v1154 = vunpack.c.l.b16 %v1122
  %v1155 = vunpack.c.l.b16 %v1123
  %v1156 = vunpack.c.l.b16 %v1124
  %v1157 = vunpack.c.l.b16 %v1125
  %v1158 = vunpack.c.l.b16 %v1126
  %v1159 = vunpack.c.l.b16 %v1127
  %v1160 = vunpack.c.l.b16 %v1128
  %v1161 = vpack.c.b16 %v1146, %v1145
  %v1162 = vpack.c.b16 %v1148, %v1147
  %v1163 = vpack.c.b16 %v1150, %v1149
  %v1164 = vpack.c.b16 %v1152, %v1151
  %v1165 = vpack.c.b16 %v1154, %v1153
  %v1166 = vpack.c.b16 %v1156, %v1155
  %v1167 = vpack.c.b16 %v1158, %v1157
  %v1168 = vpack.c.b16 %v1160, %v1159
  %1177 = vmatprep.subr.bf16.mxu0 0
  %1178 = vmatpush1.bf16.msra.mxu0 %v1168
  %1179 = vmatprep.subr.bf16.mxu0 0
  %1180 = vmatpush1.bf16.msra.mxu0 %v1167
  %1181 = vmatprep.subr.bf16.mxu0 0
  %1182 = vmatpush1.bf16.msra.mxu0 %v1166
  %1183 = vmatprep.subr.bf16.mxu0 0
  %1184 = vmatpush1.bf16.msra.mxu0 %v1165
  %1185 = vmatprep.subr.bf16.mxu0 0
  %1186 = vmatpush1.bf16.msra.mxu0 %v1164
  %1187 = vmatprep.subr.bf16.mxu0 0
  %1188 = vmatpush1.bf16.msra.mxu0 %v1163
  %1189 = vmatprep.subr.bf16.mxu0 0
  %1190 = vmatpush1.bf16.msra.mxu0 %v1162
  %1191 = vmatprep.subr.bf16.mxu0 0
  %1192 = vmatpush1.bf16.msra.mxu0 %v1161
  %1193 = vmatprep.subr.bf16.mxu0 0
  %1194 = vmatpush2.bf16.msra.mxu0 0
  %1195 = vmatprep.subr.bf16.mxu0 0
  %1196 = vmatpush2.bf16.msra.mxu0 0
  %1197 = vmatprep.subr.bf16.mxu0 0
  %1198 = vmatpush2.bf16.msra.mxu0 0
  %1199 = vmatprep.subr.bf16.mxu0 0
  %1200 = vmatpush2.bf16.msra.mxu0 0
  %1201 = vmatprep.subr.bf16.mxu0 0
  %1202 = vmatpush2.bf16.msra.mxu0 0
  %1203 = vmatprep.subr.bf16.mxu0 0
  %1204 = vmatpush2.bf16.msra.mxu0 0
  %1205 = vmatprep.subr.bf16.mxu0 0
  %1206 = vmatpush2.bf16.msra.mxu0 0
  %1207 = vmatprep.subr.bf16.mxu0 0
  %1208 = vmatpush2.bf16.msra.mxu0 0
  %1209 = vmatprep.mubr.bf16.mxu0 0
  %1210 = vmatmul.mubr.bf16.gmra.mxu0 %v1110
  %v1211 = vpop.f32.mrf.mxu0
  %v1212 = vadd.f32 0.0, %v1211
  %v1213 = vpop.f32.mrf.mxu0
  %v1214 = vpop.f32.mrf.mxu0
  %v1215 = vadd.f32 0.0, %v1214
  %v1216 = vpop.f32.mrf.mxu0
  %1217 = vmatprep.mubr.bf16.mxu0 0
  %1218 = vmatmul.mubr.bf16.gmra.mxu0 %v1111
  %v1219 = vpop.f32.mrf.mxu0
  %v1220 = vadd.f32 0.0, %v1219
  %v1221 = vpop.f32.mrf.mxu0
  %v1222 = vpop.f32.mrf.mxu0
  %v1223 = vadd.f32 0.0, %v1222
  %v1224 = vpop.f32.mrf.mxu0
  %1225 = vdwg.mxu0
  %v1226 = vadd.f32 %v1035, %v1212
  %v1227 = vadd.f32 %v1036, %v1215
  %v1228 = vadd.f32 %v1037, %v1220
  %v1229 = vadd.f32 %v1038, %v1223
  %1230 = vset.pattern.permute.xlu0 4
  %1231 = vperm.xlu0 %1230, %v471
  %v1232 = vpop.permute.xlu0 %1231
  %1233 = vset.pattern.permute.xlu0 4
  %1234 = vperm.xlu0 %1233, %v472
  %v1235 = vpop.permute.xlu0 %1234
  %1236 = vset.pattern.permute.xlu0 4
  %1237 = vperm.xlu0 %1236, %v473
  %v1238 = vpop.permute.xlu0 %1237
  %1239 = vset.pattern.permute.xlu0 4
  %1240 = vperm.xlu0 %1239, %v474
  %v1241 = vpop.permute.xlu0 %1240
  %vm1242 = vcmp.eq.s32.totalorder %v470, %v1232
  %vm1243 = vcmp.eq.s32.totalorder %v470, %v1235
  %vm1244 = vcmp.eq.s32.totalorder %v470, %v1238
  %vm1245 = vcmp.eq.s32.totalorder %v470, %v1241
  %v1246 = vsel %vm1242, 1.0, 0.0
  %v1247 = vsel %vm1243, 1.0, 0.0
  %v1248 = vsel %vm1244, 1.0, 0.0
  %v1249 = vsel %vm1245, 1.0, 0.0
  %v1250 = vpack.c.bf16 %v1247, %v1246
  %v1251 = vpack.c.bf16 %v1249, %v1248
  %1252 = vmatprep.subr.bf16.mxu0 0
  %1253 = vmatpush1.bf16.msra.mxu0 %v468
  %1254 = vmatprep.subr.bf16.mxu0 0
  %1255 = vmatpush1.bf16.msra.mxu0 %v467
  %1256 = vmatprep.subr.bf16.mxu0 0
  %1257 = vmatpush1.bf16.msra.mxu0 %v466
  %1258 = vmatprep.subr.bf16.mxu0 0
  %1259 = vmatpush1.bf16.msra.mxu0 %v465
  %1260 = vmatprep.subr.bf16.mxu0 0
  %1261 = vmatpush1.bf16.msra.mxu0 %v464
  %1262 = vmatprep.subr.bf16.mxu0 0
  %1263 = vmatpush1.bf16.msra.mxu0 %v463
  %1264 = vmatprep.subr.bf16.mxu0 0
  %1265 = vmatpush1.bf16.msra.mxu0 %v462
  %1266 = vmatprep.subr.bf16.mxu0 0
  %1267 = vmatpush1.bf16.msra.mxu0 %v461
  %1268 = vmatprep.subr.bf16.mxu0 0
  %1269 = vmatpush2.bf16.msra.mxu0 0
  %1270 = vmatprep.subr.bf16.mxu0 0
  %1271 = vmatpush2.bf16.msra.mxu0 0
  %1272 = vmatprep.subr.bf16.mxu0 0
  %1273 = vmatpush2.bf16.msra.mxu0 0
  %1274 = vmatprep.subr.bf16.mxu0 0
  %1275 = vmatpush2.bf16.msra.mxu0 0
  %1276 = vmatprep.subr.bf16.mxu0 0
  %1277 = vmatpush2.bf16.msra.mxu0 0
  %1278 = vmatprep.subr.bf16.mxu0 0
  %1279 = vmatpush2.bf16.msra.mxu0 0
  %1280 = vmatprep.subr.bf16.mxu0 0
  %1281 = vmatpush2.bf16.msra.mxu0 0
  %1282 = vmatprep.subr.bf16.mxu0 0
  %1283 = vmatpush2.bf16.msra.mxu0 0
  %1284 = vmatprep.mubr.bf16.mxu0 0
  %1285 = vmatmul.mubr.bf16.gmra.mxu0 %v1250
  %v1286 = vpop.f32.mrf.mxu0
  %v1287 = vadd.f32 0.0, %v1286
  %v1288 = vpop.f32.mrf.mxu0
  %v1289 = vpop.f32.mrf.mxu0
  %v1290 = vadd.f32 0.0, %v1289
  %v1291 = vpop.f32.mrf.mxu0
  %1292 = vmatprep.mubr.bf16.mxu0 0
  %1293 = vmatmul.mubr.bf16.gmra.mxu0 %v1251
  %v1294 = vpop.f32.mrf.mxu0
  %v1295 = vadd.f32 0.0, %v1294
  %v1296 = vpop.f32.mrf.mxu0
  %v1297 = vpop.f32.mrf.mxu0
  %v1298 = vadd.f32 0.0, %v1297
  %v1299 = vpop.f32.mrf.mxu0
  %1300 = vdwg.mxu0
  %v1301 = vpack.c.bf16 %v1290, %v1287
  %v1302 = vpack.c.bf16 %v1298, %v1295
  %s1303 = scalar_lea.vmem %s5, 256
  %v1304 = vld [vmem:[%s1303] sm:$0xf]
  %v1305 = vld [vmem:[%s1303 + $0x4] sm:$0xf]
  %v1306 = vld [vmem:[%s1303 + $0x8] sm:$0xf]
  %v1307 = vld [vmem:[%s1303 + $0xc] sm:$0xf]
  %v1308 = vld [vmem:[%s1303 + $0x10] sm:$0xf]
  %v1309 = vld [vmem:[%s1303 + $0x14] sm:$0xf]
  %v1310 = vld [vmem:[%s1303 + $0x18] sm:$0xf]
  %v1311 = vld [vmem:[%s1303 + $0x1c] sm:$0xf]
  %v1312 = vld [vmem:[%s1303 + $0x20] sm:$0xf]
  %v1313 = vld [vmem:[%s1303 + $0x24] sm:$0xf]
  %v1314 = vld [vmem:[%s1303 + $0x28] sm:$0xf]
  %v1315 = vld [vmem:[%s1303 + $0x2c] sm:$0xf]
  %v1316 = vld [vmem:[%s1303 + $0x30] sm:$0xf]
  %v1317 = vld [vmem:[%s1303 + $0x34] sm:$0xf]
  %v1318 = vld [vmem:[%s1303 + $0x38] sm:$0xf]
  %v1319 = vld [vmem:[%s1303 + $0x3c] sm:$0xf]
  %v1336 = vunpack.c.l.b16 %v1304
  %v1337 = vunpack.c.l.b16 %v1305
  %v1338 = vunpack.c.l.b16 %v1306
  %v1339 = vunpack.c.l.b16 %v1307
  %v1340 = vunpack.c.l.b16 %v1308
  %v1341 = vunpack.c.l.b16 %v1309
  %v1342 = vunpack.c.l.b16 %v1310
  %v1343 = vunpack.c.l.b16 %v1311
  %v1344 = vunpack.c.l.b16 %v1312
  %v1345 = vunpack.c.l.b16 %v1313
  %v1346 = vunpack.c.l.b16 %v1314
  %v1347 = vunpack.c.l.b16 %v1315
  %v1348 = vunpack.c.l.b16 %v1316
  %v1349 = vunpack.c.l.b16 %v1317
  %v1350 = vunpack.c.l.b16 %v1318
  %v1351 = vunpack.c.l.b16 %v1319
  %v1352 = vpack.c.b16 %v1337, %v1336
  %v1353 = vpack.c.b16 %v1339, %v1338
  %v1354 = vpack.c.b16 %v1341, %v1340
  %v1355 = vpack.c.b16 %v1343, %v1342
  %v1356 = vpack.c.b16 %v1345, %v1344
  %v1357 = vpack.c.b16 %v1347, %v1346
  %v1358 = vpack.c.b16 %v1349, %v1348
  %v1359 = vpack.c.b16 %v1351, %v1350
  %1368 = vmatprep.subr.bf16.mxu0 0
  %1369 = vmatpush1.bf16.msra.mxu0 %v1359
  %1370 = vmatprep.subr.bf16.mxu0 0
  %1371 = vmatpush1.bf16.msra.mxu0 %v1358
  %1372 = vmatprep.subr.bf16.mxu0 0
  %1373 = vmatpush1.bf16.msra.mxu0 %v1357
  %1374 = vmatprep.subr.bf16.mxu0 0
  %1375 = vmatpush1.bf16.msra.mxu0 %v1356
  %1376 = vmatprep.subr.bf16.mxu0 0
  %1377 = vmatpush1.bf16.msra.mxu0 %v1355
  %1378 = vmatprep.subr.bf16.mxu0 0
  %1379 = vmatpush1.bf16.msra.mxu0 %v1354
  %1380 = vmatprep.subr.bf16.mxu0 0
  %1381 = vmatpush1.bf16.msra.mxu0 %v1353
  %1382 = vmatprep.subr.bf16.mxu0 0
  %1383 = vmatpush1.bf16.msra.mxu0 %v1352
  %1384 = vmatprep.subr.bf16.mxu0 0
  %1385 = vmatpush2.bf16.msra.mxu0 0
  %1386 = vmatprep.subr.bf16.mxu0 0
  %1387 = vmatpush2.bf16.msra.mxu0 0
  %1388 = vmatprep.subr.bf16.mxu0 0
  %1389 = vmatpush2.bf16.msra.mxu0 0
  %1390 = vmatprep.subr.bf16.mxu0 0
  %1391 = vmatpush2.bf16.msra.mxu0 0
  %1392 = vmatprep.subr.bf16.mxu0 0
  %1393 = vmatpush2.bf16.msra.mxu0 0
  %1394 = vmatprep.subr.bf16.mxu0 0
  %1395 = vmatpush2.bf16.msra.mxu0 0
  %1396 = vmatprep.subr.bf16.mxu0 0
  %1397 = vmatpush2.bf16.msra.mxu0 0
  %1398 = vmatprep.subr.bf16.mxu0 0
  %1399 = vmatpush2.bf16.msra.mxu0 0
  %1400 = vmatprep.mubr.bf16.mxu0 0
  %1401 = vmatmul.mubr.bf16.gmra.mxu0 %v1301
  %v1402 = vpop.f32.mrf.mxu0
  %v1403 = vadd.f32 0.0, %v1402
  %v1404 = vpop.f32.mrf.mxu0
  %v1405 = vpop.f32.mrf.mxu0
  %v1406 = vadd.f32 0.0, %v1405
  %v1407 = vpop.f32.mrf.mxu0
  %1408 = vmatprep.mubr.bf16.mxu0 0
  %1409 = vmatmul.mubr.bf16.gmra.mxu0 %v1302
  %v1410 = vpop.f32.mrf.mxu0
  %v1411 = vadd.f32 0.0, %v1410
  %v1412 = vpop.f32.mrf.mxu0
  %v1413 = vpop.f32.mrf.mxu0
  %v1414 = vadd.f32 0.0, %v1413
  %v1415 = vpop.f32.mrf.mxu0
  %1416 = vdwg.mxu0
  %v1417 = vadd.f32 %v1226, %v1403
  %v1418 = vadd.f32 %v1227, %v1406
  %v1419 = vadd.f32 %v1228, %v1411
  %v1420 = vadd.f32 %v1229, %v1414
  %1421 = vset.pattern.permute.xlu0 5
  %1422 = vperm.xlu0 %1421, %v471
  %v1423 = vpop.permute.xlu0 %1422
  %1424 = vset.pattern.permute.xlu0 5
  %1425 = vperm.xlu0 %1424, %v472
  %v1426 = vpop.permute.xlu0 %1425
  %1427 = vset.pattern.permute.xlu0 5
  %1428 = vperm.xlu0 %1427, %v473
  %v1429 = vpop.permute.xlu0 %1428
  %1430 = vset.pattern.permute.xlu0 5
  %1431 = vperm.xlu0 %1430, %v474
  %v1432 = vpop.permute.xlu0 %1431
  %vm1433 = vcmp.eq.s32.totalorder %v470, %v1423
  %vm1434 = vcmp.eq.s32.totalorder %v470, %v1426
  %vm1435 = vcmp.eq.s32.totalorder %v470, %v1429
  %vm1436 = vcmp.eq.s32.totalorder %v470, %v1432
  %v1437 = vsel %vm1433, 1.0, 0.0
  %v1438 = vsel %vm1434, 1.0, 0.0
  %v1439 = vsel %vm1435, 1.0, 0.0
  %v1440 = vsel %vm1436, 1.0, 0.0
  %v1441 = vpack.c.bf16 %v1438, %v1437
  %v1442 = vpack.c.bf16 %v1440, %v1439
  %1443 = vmatprep.subr.bf16.mxu0 0
  %1444 = vmatpush1.bf16.msra.mxu0 %v468
  %1445 = vmatprep.subr.bf16.mxu0 0
  %1446 = vmatpush1.bf16.msra.mxu0 %v467
  %1447 = vmatprep.subr.bf16.mxu0 0
  %1448 = vmatpush1.bf16.msra.mxu0 %v466
  %1449 = vmatprep.subr.bf16.mxu0 0
  %1450 = vmatpush1.bf16.msra.mxu0 %v465
  %1451 = vmatprep.subr.bf16.mxu0 0
  %1452 = vmatpush1.bf16.msra.mxu0 %v464
  %1453 = vmatprep.subr.bf16.mxu0 0
  %1454 = vmatpush1.bf16.msra.mxu0 %v463
  %1455 = vmatprep.subr.bf16.mxu0 0
  %1456 = vmatpush1.bf16.msra.mxu0 %v462
  %1457 = vmatprep.subr.bf16.mxu0 0
  %1458 = vmatpush1.bf16.msra.mxu0 %v461
  %1459 = vmatprep.subr.bf16.mxu0 0
  %1460 = vmatpush2.bf16.msra.mxu0 0
  %1461 = vmatprep.subr.bf16.mxu0 0
  %1462 = vmatpush2.bf16.msra.mxu0 0
  %1463 = vmatprep.subr.bf16.mxu0 0
  %1464 = vmatpush2.bf16.msra.mxu0 0
  %1465 = vmatprep.subr.bf16.mxu0 0
  %1466 = vmatpush2.bf16.msra.mxu0 0
  %1467 = vmatprep.subr.bf16.mxu0 0
  %1468 = vmatpush2.bf16.msra.mxu0 0
  %1469 = vmatprep.subr.bf16.mxu0 0
  %1470 = vmatpush2.bf16.msra.mxu0 0
  %1471 = vmatprep.subr.bf16.mxu0 0
  %1472 = vmatpush2.bf16.msra.mxu0 0
  %1473 = vmatprep.subr.bf16.mxu0 0
  %1474 = vmatpush2.bf16.msra.mxu0 0
  %1475 = vmatprep.mubr.bf16.mxu0 0
  %1476 = vmatmul.mubr.bf16.gmra.mxu0 %v1441
  %v1477 = vpop.f32.mrf.mxu0
  %v1478 = vadd.f32 0.0, %v1477
  %v1479 = vpop.f32.mrf.mxu0
  %v1480 = vpop.f32.mrf.mxu0
  %v1481 = vadd.f32 0.0, %v1480
  %v1482 = vpop.f32.mrf.mxu0
  %1483 = vmatprep.mubr.bf16.mxu0 0
  %1484 = vmatmul.mubr.bf16.gmra.mxu0 %v1442
  %v1485 = vpop.f32.mrf.mxu0
  %v1486 = vadd.f32 0.0, %v1485
  %v1487 = vpop.f32.mrf.mxu0
  %v1488 = vpop.f32.mrf.mxu0
  %v1489 = vadd.f32 0.0, %v1488
  %v1490 = vpop.f32.mrf.mxu0
  %1491 = vdwg.mxu0
  %v1492 = vpack.c.bf16 %v1481, %v1478
  %v1493 = vpack.c.bf16 %v1489, %v1486
  %s1494 = scalar_lea.vmem %s5, 320
  %v1495 = vld [vmem:[%s1494] sm:$0xf]
  %v1496 = vld [vmem:[%s1494 + $0x4] sm:$0xf]
  %v1497 = vld [vmem:[%s1494 + $0x8] sm:$0xf]
  %v1498 = vld [vmem:[%s1494 + $0xc] sm:$0xf]
  %v1499 = vld [vmem:[%s1494 + $0x10] sm:$0xf]
  %v1500 = vld [vmem:[%s1494 + $0x14] sm:$0xf]
  %v1501 = vld [vmem:[%s1494 + $0x18] sm:$0xf]
  %v1502 = vld [vmem:[%s1494 + $0x1c] sm:$0xf]
  %v1503 = vld [vmem:[%s1494 + $0x20] sm:$0xf]
  %v1504 = vld [vmem:[%s1494 + $0x24] sm:$0xf]
  %v1505 = vld [vmem:[%s1494 + $0x28] sm:$0xf]
  %v1506 = vld [vmem:[%s1494 + $0x2c] sm:$0xf]
  %v1507 = vld [vmem:[%s1494 + $0x30] sm:$0xf]
  %v1508 = vld [vmem:[%s1494 + $0x34] sm:$0xf]
  %v1509 = vld [vmem:[%s1494 + $0x38] sm:$0xf]
  %v1510 = vld [vmem:[%s1494 + $0x3c] sm:$0xf]
  %v1527 = vunpack.c.l.b16 %v1495
  %v1528 = vunpack.c.l.b16 %v1496
  %v1529 = vunpack.c.l.b16 %v1497
  %v1530 = vunpack.c.l.b16 %v1498
  %v1531 = vunpack.c.l.b16 %v1499
  %v1532 = vunpack.c.l.b16 %v1500
  %v1533 = vunpack.c.l.b16 %v1501
  %v1534 = vunpack.c.l.b16 %v1502
  %v1535 = vunpack.c.l.b16 %v1503
  %v1536 = vunpack.c.l.b16 %v1504
  %v1537 = vunpack.c.l.b16 %v1505
  %v1538 = vunpack.c.l.b16 %v1506
  %v1539 = vunpack.c.l.b16 %v1507
  %v1540 = vunpack.c.l.b16 %v1508
  %v1541 = vunpack.c.l.b16 %v1509
  %v1542 = vunpack.c.l.b16 %v1510
  %v1543 = vpack.c.b16 %v1528, %v1527
  %v1544 = vpack.c.b16 %v1530, %v1529
  %v1545 = vpack.c.b16 %v1532, %v1531
  %v1546 = vpack.c.b16 %v1534, %v1533
  %v1547 = vpack.c.b16 %v1536, %v1535
  %v1548 = vpack.c.b16 %v1538, %v1537
  %v1549 = vpack.c.b16 %v1540, %v1539
  %v1550 = vpack.c.b16 %v1542, %v1541
  %1559 = vmatprep.subr.bf16.mxu0 0
  %1560 = vmatpush1.bf16.msra.mxu0 %v1550
  %1561 = vmatprep.subr.bf16.mxu0 0
  %1562 = vmatpush1.bf16.msra.mxu0 %v1549
  %1563 = vmatprep.subr.bf16.mxu0 0
  %1564 = vmatpush1.bf16.msra.mxu0 %v1548
  %1565 = vmatprep.subr.bf16.mxu0 0
  %1566 = vmatpush1.bf16.msra.mxu0 %v1547
  %1567 = vmatprep.subr.bf16.mxu0 0
  %1568 = vmatpush1.bf16.msra.mxu0 %v1546
  %1569 = vmatprep.subr.bf16.mxu0 0
  %1570 = vmatpush1.bf16.msra.mxu0 %v1545
  %1571 = vmatprep.subr.bf16.mxu0 0
  %1572 = vmatpush1.bf16.msra.mxu0 %v1544
  %1573 = vmatprep.subr.bf16.mxu0 0
  %1574 = vmatpush1.bf16.msra.mxu0 %v1543
  %1575 = vmatprep.subr.bf16.mxu0 0
  %1576 = vmatpush2.bf16.msra.mxu0 0
  %1577 = vmatprep.subr.bf16.mxu0 0
  %1578 = vmatpush2.bf16.msra.mxu0 0
  %1579 = vmatprep.subr.bf16.mxu0 0
  %1580 = vmatpush2.bf16.msra.mxu0 0
  %1581 = vmatprep.subr.bf16.mxu0 0
  %1582 = vmatpush2.bf16.msra.mxu0 0
  %1583 = vmatprep.subr.bf16.mxu0 0
  %1584 = vmatpush2.bf16.msra.mxu0 0
  %1585 = vmatprep.subr.bf16.mxu0 0
  %1586 = vmatpush2.bf16.msra.mxu0 0
  %1587 = vmatprep.subr.bf16.mxu0 0
  %1588 = vmatpush2.bf16.msra.mxu0 0
  %1589 = vmatprep.subr.bf16.mxu0 0
  %1590 = vmatpush2.bf16.msra.mxu0 0
  %1591 = vmatprep.mubr.bf16.mxu0 0
  %1592 = vmatmul.mubr.bf16.gmra.mxu0 %v1492
  %v1593 = vpop.f32.mrf.mxu0
  %v1594 = vadd.f32 0.0, %v1593
  %v1595 = vpop.f32.mrf.mxu0
  %v1596 = vpop.f32.mrf.mxu0
  %v1597 = vadd.f32 0.0, %v1596
  %v1598 = vpop.f32.mrf.mxu0
  %1599 = vmatprep.mubr.bf16.mxu0 0
  %1600 = vmatmul.mubr.bf16.gmra.mxu0 %v1493
  %v1601 = vpop.f32.mrf.mxu0
  %v1602 = vadd.f32 0.0, %v1601
  %v1603 = vpop.f32.mrf.mxu0
  %v1604 = vpop.f32.mrf.mxu0
  %v1605 = vadd.f32 0.0, %v1604
  %v1606 = vpop.f32.mrf.mxu0
  %1607 = vdwg.mxu0
  %v1608 = vadd.f32 %v1417, %v1594
  %v1609 = vadd.f32 %v1418, %v1597
  %v1610 = vadd.f32 %v1419, %v1602
  %v1611 = vadd.f32 %v1420, %v1605
  %1612 = vset.pattern.permute.xlu0 6
  %1613 = vperm.xlu0 %1612, %v471
  %v1614 = vpop.permute.xlu0 %1613
  %1615 = vset.pattern.permute.xlu0 6
  %1616 = vperm.xlu0 %1615, %v472
  %v1617 = vpop.permute.xlu0 %1616
  %1618 = vset.pattern.permute.xlu0 6
  %1619 = vperm.xlu0 %1618, %v473
  %v1620 = vpop.permute.xlu0 %1619
  %1621 = vset.pattern.permute.xlu0 6
  %1622 = vperm.xlu0 %1621, %v474
  %v1623 = vpop.permute.xlu0 %1622
  %vm1624 = vcmp.eq.s32.totalorder %v470, %v1614
  %vm1625 = vcmp.eq.s32.totalorder %v470, %v1617
  %vm1626 = vcmp.eq.s32.totalorder %v470, %v1620
  %vm1627 = vcmp.eq.s32.totalorder %v470, %v1623
  %v1628 = vsel %vm1624, 1.0, 0.0
  %v1629 = vsel %vm1625, 1.0, 0.0
  %v1630 = vsel %vm1626, 1.0, 0.0
  %v1631 = vsel %vm1627, 1.0, 0.0
  %v1632 = vpack.c.bf16 %v1629, %v1628
  %v1633 = vpack.c.bf16 %v1631, %v1630
  %1634 = vmatprep.subr.bf16.mxu0 0
  %1635 = vmatpush1.bf16.msra.mxu0 %v468
  %1636 = vmatprep.subr.bf16.mxu0 0
  %1637 = vmatpush1.bf16.msra.mxu0 %v467
  %1638 = vmatprep.subr.bf16.mxu0 0
  %1639 = vmatpush1.bf16.msra.mxu0 %v466
  %1640 = vmatprep.subr.bf16.mxu0 0
  %1641 = vmatpush1.bf16.msra.mxu0 %v465
  %1642 = vmatprep.subr.bf16.mxu0 0
  %1643 = vmatpush1.bf16.msra.mxu0 %v464
  %1644 = vmatprep.subr.bf16.mxu0 0
  %1645 = vmatpush1.bf16.msra.mxu0 %v463
  %1646 = vmatprep.subr.bf16.mxu0 0
  %1647 = vmatpush1.bf16.msra.mxu0 %v462
  %1648 = vmatprep.subr.bf16.mxu0 0
  %1649 = vmatpush1.bf16.msra.mxu0 %v461
  %1650 = vmatprep.subr.bf16.mxu0 0
  %1651 = vmatpush2.bf16.msra.mxu0 0
  %1652 = vmatprep.subr.bf16.mxu0 0
  %1653 = vmatpush2.bf16.msra.mxu0 0
  %1654 = vmatprep.subr.bf16.mxu0 0
  %1655 = vmatpush2.bf16.msra.mxu0 0
  %1656 = vmatprep.subr.bf16.mxu0 0
  %1657 = vmatpush2.bf16.msra.mxu0 0
  %1658 = vmatprep.subr.bf16.mxu0 0
  %1659 = vmatpush2.bf16.msra.mxu0 0
  %1660 = vmatprep.subr.bf16.mxu0 0
  %1661 = vmatpush2.bf16.msra.mxu0 0
  %1662 = vmatprep.subr.bf16.mxu0 0
  %1663 = vmatpush2.bf16.msra.mxu0 0
  %1664 = vmatprep.subr.bf16.mxu0 0
  %1665 = vmatpush2.bf16.msra.mxu0 0
  %1666 = vmatprep.mubr.bf16.mxu0 0
  %1667 = vmatmul.mubr.bf16.gmra.mxu0 %v1632
  %v1668 = vpop.f32.mrf.mxu0
  %v1669 = vadd.f32 0.0, %v1668
  %v1670 = vpop.f32.mrf.mxu0
  %v1671 = vpop.f32.mrf.mxu0
  %v1672 = vadd.f32 0.0, %v1671
  %v1673 = vpop.f32.mrf.mxu0
  %1674 = vmatprep.mubr.bf16.mxu0 0
  %1675 = vmatmul.mubr.bf16.gmra.mxu0 %v1633
  %v1676 = vpop.f32.mrf.mxu0
  %v1677 = vadd.f32 0.0, %v1676
  %v1678 = vpop.f32.mrf.mxu0
  %v1679 = vpop.f32.mrf.mxu0
  %v1680 = vadd.f32 0.0, %v1679
  %v1681 = vpop.f32.mrf.mxu0
  %1682 = vdwg.mxu0
  %v1683 = vpack.c.bf16 %v1672, %v1669
  %v1684 = vpack.c.bf16 %v1680, %v1677
  %s1685 = scalar_lea.vmem %s5, 384
  %v1686 = vld [vmem:[%s1685] sm:$0xf]
  %v1687 = vld [vmem:[%s1685 + $0x4] sm:$0xf]
  %v1688 = vld [vmem:[%s1685 + $0x8] sm:$0xf]
  %v1689 = vld [vmem:[%s1685 + $0xc] sm:$0xf]
  %v1690 = vld [vmem:[%s1685 + $0x10] sm:$0xf]
  %v1691 = vld [vmem:[%s1685 + $0x14] sm:$0xf]
  %v1692 = vld [vmem:[%s1685 + $0x18] sm:$0xf]
  %v1693 = vld [vmem:[%s1685 + $0x1c] sm:$0xf]
  %v1694 = vld [vmem:[%s1685 + $0x20] sm:$0xf]
  %v1695 = vld [vmem:[%s1685 + $0x24] sm:$0xf]
  %v1696 = vld [vmem:[%s1685 + $0x28] sm:$0xf]
  %v1697 = vld [vmem:[%s1685 + $0x2c] sm:$0xf]
  %v1698 = vld [vmem:[%s1685 + $0x30] sm:$0xf]
  %v1699 = vld [vmem:[%s1685 + $0x34] sm:$0xf]
  %v1700 = vld [vmem:[%s1685 + $0x38] sm:$0xf]
  %v1701 = vld [vmem:[%s1685 + $0x3c] sm:$0xf]
  %v1718 = vunpack.c.l.b16 %v1686
  %v1719 = vunpack.c.l.b16 %v1687
  %v1720 = vunpack.c.l.b16 %v1688
  %v1721 = vunpack.c.l.b16 %v1689
  %v1722 = vunpack.c.l.b16 %v1690
  %v1723 = vunpack.c.l.b16 %v1691
  %v1724 = vunpack.c.l.b16 %v1692
  %v1725 = vunpack.c.l.b16 %v1693
  %v1726 = vunpack.c.l.b16 %v1694
  %v1727 = vunpack.c.l.b16 %v1695
  %v1728 = vunpack.c.l.b16 %v1696
  %v1729 = vunpack.c.l.b16 %v1697
  %v1730 = vunpack.c.l.b16 %v1698
  %v1731 = vunpack.c.l.b16 %v1699
  %v1732 = vunpack.c.l.b16 %v1700
  %v1733 = vunpack.c.l.b16 %v1701
  %v1734 = vpack.c.b16 %v1719, %v1718
  %v1735 = vpack.c.b16 %v1721, %v1720
  %v1736 = vpack.c.b16 %v1723, %v1722
  %v1737 = vpack.c.b16 %v1725, %v1724
  %v1738 = vpack.c.b16 %v1727, %v1726
  %v1739 = vpack.c.b16 %v1729, %v1728
  %v1740 = vpack.c.b16 %v1731, %v1730
  %v1741 = vpack.c.b16 %v1733, %v1732
  %1750 = vmatprep.subr.bf16.mxu0 0
  %1751 = vmatpush1.bf16.msra.mxu0 %v1741
  %1752 = vmatprep.subr.bf16.mxu0 0
  %1753 = vmatpush1.bf16.msra.mxu0 %v1740
  %1754 = vmatprep.subr.bf16.mxu0 0
  %1755 = vmatpush1.bf16.msra.mxu0 %v1739
  %1756 = vmatprep.subr.bf16.mxu0 0
  %1757 = vmatpush1.bf16.msra.mxu0 %v1738
  %1758 = vmatprep.subr.bf16.mxu0 0
  %1759 = vmatpush1.bf16.msra.mxu0 %v1737
  %1760 = vmatprep.subr.bf16.mxu0 0
  %1761 = vmatpush1.bf16.msra.mxu0 %v1736
  %1762 = vmatprep.subr.bf16.mxu0 0
  %1763 = vmatpush1.bf16.msra.mxu0 %v1735
  %1764 = vmatprep.subr.bf16.mxu0 0
  %1765 = vmatpush1.bf16.msra.mxu0 %v1734
  %1766 = vmatprep.subr.bf16.mxu0 0
  %1767 = vmatpush2.bf16.msra.mxu0 0
  %1768 = vmatprep.subr.bf16.mxu0 0
  %1769 = vmatpush2.bf16.msra.mxu0 0
  %1770 = vmatprep.subr.bf16.mxu0 0
  %1771 = vmatpush2.bf16.msra.mxu0 0
  %1772 = vmatprep.subr.bf16.mxu0 0
  %1773 = vmatpush2.bf16.msra.mxu0 0
  %1774 = vmatprep.subr.bf16.mxu0 0
  %1775 = vmatpush2.bf16.msra.mxu0 0
  %1776 = vmatprep.subr.bf16.mxu0 0
  %1777 = vmatpush2.bf16.msra.mxu0 0
  %1778 = vmatprep.subr.bf16.mxu0 0
  %1779 = vmatpush2.bf16.msra.mxu0 0
  %1780 = vmatprep.subr.bf16.mxu0 0
  %1781 = vmatpush2.bf16.msra.mxu0 0
  %1782 = vmatprep.mubr.bf16.mxu0 0
  %1783 = vmatmul.mubr.bf16.gmra.mxu0 %v1683
  %v1784 = vpop.f32.mrf.mxu0
  %v1785 = vadd.f32 0.0, %v1784
  %v1786 = vpop.f32.mrf.mxu0
  %v1787 = vpop.f32.mrf.mxu0
  %v1788 = vadd.f32 0.0, %v1787
  %v1789 = vpop.f32.mrf.mxu0
  %1790 = vmatprep.mubr.bf16.mxu0 0
  %1791 = vmatmul.mubr.bf16.gmra.mxu0 %v1684
  %v1792 = vpop.f32.mrf.mxu0
  %v1793 = vadd.f32 0.0, %v1792
  %v1794 = vpop.f32.mrf.mxu0
  %v1795 = vpop.f32.mrf.mxu0
  %v1796 = vadd.f32 0.0, %v1795
  %v1797 = vpop.f32.mrf.mxu0
  %1798 = vdwg.mxu0
  %v1799 = vadd.f32 %v1608, %v1785
  %v1800 = vadd.f32 %v1609, %v1788
  %v1801 = vadd.f32 %v1610, %v1793
  %v1802 = vadd.f32 %v1611, %v1796
  %1803 = vset.pattern.permute.xlu0 7
  %1804 = vperm.xlu0 %1803, %v471
  %v1805 = vpop.permute.xlu0 %1804
  %1806 = vset.pattern.permute.xlu0 7
  %1807 = vperm.xlu0 %1806, %v472
  %v1808 = vpop.permute.xlu0 %1807
  %1809 = vset.pattern.permute.xlu0 7
  %1810 = vperm.xlu0 %1809, %v473
  %v1811 = vpop.permute.xlu0 %1810
  %1812 = vset.pattern.permute.xlu0 7
  %1813 = vperm.xlu0 %1812, %v474
  %v1814 = vpop.permute.xlu0 %1813
  %vm1815 = vcmp.eq.s32.totalorder %v470, %v1805
  %vm1816 = vcmp.eq.s32.totalorder %v470, %v1808
  %vm1817 = vcmp.eq.s32.totalorder %v470, %v1811
  %vm1818 = vcmp.eq.s32.totalorder %v470, %v1814
  %v1819 = vsel %vm1815, 1.0, 0.0
  %v1820 = vsel %vm1816, 1.0, 0.0
  %v1821 = vsel %vm1817, 1.0, 0.0
  %v1822 = vsel %vm1818, 1.0, 0.0
  %v1823 = vpack.c.bf16 %v1820, %v1819
  %v1824 = vpack.c.bf16 %v1822, %v1821
  %1825 = vmatprep.subr.bf16.mxu0 0
  %1826 = vmatpush1.bf16.msra.mxu0 %v468
  %1827 = vmatprep.subr.bf16.mxu0 0
  %1828 = vmatpush1.bf16.msra.mxu0 %v467
  %1829 = vmatprep.subr.bf16.mxu0 0
  %1830 = vmatpush1.bf16.msra.mxu0 %v466
  %1831 = vmatprep.subr.bf16.mxu0 0
  %1832 = vmatpush1.bf16.msra.mxu0 %v465
  %1833 = vmatprep.subr.bf16.mxu0 0
  %1834 = vmatpush1.bf16.msra.mxu0 %v464
  %1835 = vmatprep.subr.bf16.mxu0 0
  %1836 = vmatpush1.bf16.msra.mxu0 %v463
  %1837 = vmatprep.subr.bf16.mxu0 0
  %1838 = vmatpush1.bf16.msra.mxu0 %v462
  %1839 = vmatprep.subr.bf16.mxu0 0
  %1840 = vmatpush1.bf16.msra.mxu0 %v461
  %1841 = vmatprep.subr.bf16.mxu0 0
  %1842 = vmatpush2.bf16.msra.mxu0 0
  %1843 = vmatprep.subr.bf16.mxu0 0
  %1844 = vmatpush2.bf16.msra.mxu0 0
  %1845 = vmatprep.subr.bf16.mxu0 0
  %1846 = vmatpush2.bf16.msra.mxu0 0
  %1847 = vmatprep.subr.bf16.mxu0 0
  %1848 = vmatpush2.bf16.msra.mxu0 0
  %1849 = vmatprep.subr.bf16.mxu0 0
  %1850 = vmatpush2.bf16.msra.mxu0 0
  %1851 = vmatprep.subr.bf16.mxu0 0
  %1852 = vmatpush2.bf16.msra.mxu0 0
  %1853 = vmatprep.subr.bf16.mxu0 0
  %1854 = vmatpush2.bf16.msra.mxu0 0
  %1855 = vmatprep.subr.bf16.mxu0 0
  %1856 = vmatpush2.bf16.msra.mxu0 0
  %1857 = vmatprep.mubr.bf16.mxu0 0
  %1858 = vmatmul.mubr.bf16.gmra.mxu0 %v1823
  %v1859 = vpop.f32.mrf.mxu0
  %v1860 = vadd.f32 0.0, %v1859
  %v1861 = vpop.f32.mrf.mxu0
  %v1862 = vpop.f32.mrf.mxu0
  %v1863 = vadd.f32 0.0, %v1862
  %v1864 = vpop.f32.mrf.mxu0
  %1865 = vmatprep.mubr.bf16.mxu0 0
  %1866 = vmatmul.mubr.bf16.gmra.mxu0 %v1824
  %v1867 = vpop.f32.mrf.mxu0
  %v1868 = vadd.f32 0.0, %v1867
  %v1869 = vpop.f32.mrf.mxu0
  %v1870 = vpop.f32.mrf.mxu0
  %v1871 = vadd.f32 0.0, %v1870
  %v1872 = vpop.f32.mrf.mxu0
  %1873 = vdwg.mxu0
  %v1874 = vpack.c.bf16 %v1863, %v1860
  %v1875 = vpack.c.bf16 %v1871, %v1868
  %s1876 = scalar_lea.vmem %s5, 448
  %v1877 = vld [vmem:[%s1876] sm:$0xf]
  %v1878 = vld [vmem:[%s1876 + $0x4] sm:$0xf]
  %v1879 = vld [vmem:[%s1876 + $0x8] sm:$0xf]
  %v1880 = vld [vmem:[%s1876 + $0xc] sm:$0xf]
  %v1881 = vld [vmem:[%s1876 + $0x10] sm:$0xf]
  %v1882 = vld [vmem:[%s1876 + $0x14] sm:$0xf]
  %v1883 = vld [vmem:[%s1876 + $0x18] sm:$0xf]
  %v1884 = vld [vmem:[%s1876 + $0x1c] sm:$0xf]
  %v1885 = vld [vmem:[%s1876 + $0x20] sm:$0xf]
  %v1886 = vld [vmem:[%s1876 + $0x24] sm:$0xf]
  %v1887 = vld [vmem:[%s1876 + $0x28] sm:$0xf]
  %v1888 = vld [vmem:[%s1876 + $0x2c] sm:$0xf]
  %v1889 = vld [vmem:[%s1876 + $0x30] sm:$0xf]
  %v1890 = vld [vmem:[%s1876 + $0x34] sm:$0xf]
  %v1891 = vld [vmem:[%s1876 + $0x38] sm:$0xf]
  %v1892 = vld [vmem:[%s1876 + $0x3c] sm:$0xf]
  %v1909 = vunpack.c.l.b16 %v1877
  %v1910 = vunpack.c.l.b16 %v1878
  %v1911 = vunpack.c.l.b16 %v1879
  %v1912 = vunpack.c.l.b16 %v1880
  %v1913 = vunpack.c.l.b16 %v1881
  %v1914 = vunpack.c.l.b16 %v1882
  %v1915 = vunpack.c.l.b16 %v1883
  %v1916 = vunpack.c.l.b16 %v1884
  %v1917 = vunpack.c.l.b16 %v1885
  %v1918 = vunpack.c.l.b16 %v1886
  %v1919 = vunpack.c.l.b16 %v1887
  %v1920 = vunpack.c.l.b16 %v1888
  %v1921 = vunpack.c.l.b16 %v1889
  %v1922 = vunpack.c.l.b16 %v1890
  %v1923 = vunpack.c.l.b16 %v1891
  %v1924 = vunpack.c.l.b16 %v1892
  %v1925 = vpack.c.b16 %v1910, %v1909
  %v1926 = vpack.c.b16 %v1912, %v1911
  %v1927 = vpack.c.b16 %v1914, %v1913
  %v1928 = vpack.c.b16 %v1916, %v1915
  %v1929 = vpack.c.b16 %v1918, %v1917
  %v1930 = vpack.c.b16 %v1920, %v1919
  %v1931 = vpack.c.b16 %v1922, %v1921
  %v1932 = vpack.c.b16 %v1924, %v1923
  %1941 = vmatprep.subr.bf16.mxu0 0
  %1942 = vmatpush1.bf16.msra.mxu0 %v1932
  %1943 = vmatprep.subr.bf16.mxu0 0
  %1944 = vmatpush1.bf16.msra.mxu0 %v1931
  %1945 = vmatprep.subr.bf16.mxu0 0
  %1946 = vmatpush1.bf16.msra.mxu0 %v1930
  %1947 = vmatprep.subr.bf16.mxu0 0
  %1948 = vmatpush1.bf16.msra.mxu0 %v1929
  %1949 = vmatprep.subr.bf16.mxu0 0
  %1950 = vmatpush1.bf16.msra.mxu0 %v1928
  %1951 = vmatprep.subr.bf16.mxu0 0
  %1952 = vmatpush1.bf16.msra.mxu0 %v1927
  %1953 = vmatprep.subr.bf16.mxu0 0
  %1954 = vmatpush1.bf16.msra.mxu0 %v1926
  %1955 = vmatprep.subr.bf16.mxu0 0
  %1956 = vmatpush1.bf16.msra.mxu0 %v1925
  %1957 = vmatprep.subr.bf16.mxu0 0
  %1958 = vmatpush2.bf16.msra.mxu0 0
  %1959 = vmatprep.subr.bf16.mxu0 0
  %1960 = vmatpush2.bf16.msra.mxu0 0
  %1961 = vmatprep.subr.bf16.mxu0 0
  %1962 = vmatpush2.bf16.msra.mxu0 0
  %1963 = vmatprep.subr.bf16.mxu0 0
  %1964 = vmatpush2.bf16.msra.mxu0 0
  %1965 = vmatprep.subr.bf16.mxu0 0
  %1966 = vmatpush2.bf16.msra.mxu0 0
  %1967 = vmatprep.subr.bf16.mxu0 0
  %1968 = vmatpush2.bf16.msra.mxu0 0
  %1969 = vmatprep.subr.bf16.mxu0 0
  %1970 = vmatpush2.bf16.msra.mxu0 0
  %1971 = vmatprep.subr.bf16.mxu0 0
  %1972 = vmatpush2.bf16.msra.mxu0 0
  %1973 = vmatprep.mubr.bf16.mxu0 0
  %1974 = vmatmul.mubr.bf16.gmra.mxu0 %v1874
  %v1975 = vpop.f32.mrf.mxu0
  %v1976 = vadd.f32 0.0, %v1975
  %v1977 = vpop.f32.mrf.mxu0
  %v1978 = vpop.f32.mrf.mxu0
  %v1979 = vadd.f32 0.0, %v1978
  %v1980 = vpop.f32.mrf.mxu0
  %1981 = vmatprep.mubr.bf16.mxu0 0
  %1982 = vmatmul.mubr.bf16.gmra.mxu0 %v1875
  %v1983 = vpop.f32.mrf.mxu0
  %v1984 = vadd.f32 0.0, %v1983
  %v1985 = vpop.f32.mrf.mxu0
  %v1986 = vpop.f32.mrf.mxu0
  %v1987 = vadd.f32 0.0, %v1986
  %v1988 = vpop.f32.mrf.mxu0
  %1989 = vdwg.mxu0
  %v1990 = vadd.f32 %v1799, %v1976
  %v1991 = vadd.f32 %v1800, %v1979
  %v1992 = vadd.f32 %v1801, %v1984
  %v1993 = vadd.f32 %v1802, %v1987
  %1994 = vset.pattern.permute.xlu0 8
  %1995 = vperm.xlu0 %1994, %v471
  %v1996 = vpop.permute.xlu0 %1995
  %1997 = vset.pattern.permute.xlu0 8
  %1998 = vperm.xlu0 %1997, %v472
  %v1999 = vpop.permute.xlu0 %1998
  %2000 = vset.pattern.permute.xlu0 8
  %2001 = vperm.xlu0 %2000, %v473
  %v2002 = vpop.permute.xlu0 %2001
  %2003 = vset.pattern.permute.xlu0 8
  %2004 = vperm.xlu0 %2003, %v474
  %v2005 = vpop.permute.xlu0 %2004
  %vm2006 = vcmp.eq.s32.totalorder %v470, %v1996
  %vm2007 = vcmp.eq.s32.totalorder %v470, %v1999
  %vm2008 = vcmp.eq.s32.totalorder %v470, %v2002
  %vm2009 = vcmp.eq.s32.totalorder %v470, %v2005
  %v2010 = vsel %vm2006, 1.0, 0.0
  %v2011 = vsel %vm2007, 1.0, 0.0
  %v2012 = vsel %vm2008, 1.0, 0.0
  %v2013 = vsel %vm2009, 1.0, 0.0
  %v2014 = vpack.c.bf16 %v2011, %v2010
  %v2015 = vpack.c.bf16 %v2013, %v2012
  %2016 = vmatprep.subr.bf16.mxu0 0
  %2017 = vmatpush1.bf16.msra.mxu0 %v468
  %2018 = vmatprep.subr.bf16.mxu0 0
  %2019 = vmatpush1.bf16.msra.mxu0 %v467
  %2020 = vmatprep.subr.bf16.mxu0 0
  %2021 = vmatpush1.bf16.msra.mxu0 %v466
  %2022 = vmatprep.subr.bf16.mxu0 0
  %2023 = vmatpush1.bf16.msra.mxu0 %v465
  %2024 = vmatprep.subr.bf16.mxu0 0
  %2025 = vmatpush1.bf16.msra.mxu0 %v464
  %2026 = vmatprep.subr.bf16.mxu0 0
  %2027 = vmatpush1.bf16.msra.mxu0 %v463
  %2028 = vmatprep.subr.bf16.mxu0 0
  %2029 = vmatpush1.bf16.msra.mxu0 %v462
  %2030 = vmatprep.subr.bf16.mxu0 0
  %2031 = vmatpush1.bf16.msra.mxu0 %v461
  %2032 = vmatprep.subr.bf16.mxu0 0
  %2033 = vmatpush2.bf16.msra.mxu0 0
  %2034 = vmatprep.subr.bf16.mxu0 0
  %2035 = vmatpush2.bf16.msra.mxu0 0
  %2036 = vmatprep.subr.bf16.mxu0 0
  %2037 = vmatpush2.bf16.msra.mxu0 0
  %2038 = vmatprep.subr.bf16.mxu0 0
  %2039 = vmatpush2.bf16.msra.mxu0 0
  %2040 = vmatprep.subr.bf16.mxu0 0
  %2041 = vmatpush2.bf16.msra.mxu0 0
  %2042 = vmatprep.subr.bf16.mxu0 0
  %2043 = vmatpush2.bf16.msra.mxu0 0
  %2044 = vmatprep.subr.bf16.mxu0 0
  %2045 = vmatpush2.bf16.msra.mxu0 0
  %2046 = vmatprep.subr.bf16.mxu0 0
  %2047 = vmatpush2.bf16.msra.mxu0 0
  %2048 = vmatprep.mubr.bf16.mxu0 0
  %2049 = vmatmul.mubr.bf16.gmra.mxu0 %v2014
  %v2050 = vpop.f32.mrf.mxu0
  %v2051 = vadd.f32 0.0, %v2050
  %v2052 = vpop.f32.mrf.mxu0
  %v2053 = vpop.f32.mrf.mxu0
  %v2054 = vadd.f32 0.0, %v2053
  %v2055 = vpop.f32.mrf.mxu0
  %2056 = vmatprep.mubr.bf16.mxu0 0
  %2057 = vmatmul.mubr.bf16.gmra.mxu0 %v2015
  %v2058 = vpop.f32.mrf.mxu0
  %v2059 = vadd.f32 0.0, %v2058
  %v2060 = vpop.f32.mrf.mxu0
  %v2061 = vpop.f32.mrf.mxu0
  %v2062 = vadd.f32 0.0, %v2061
  %v2063 = vpop.f32.mrf.mxu0
  %2064 = vdwg.mxu0
  %v2065 = vpack.c.bf16 %v2054, %v2051
  %v2066 = vpack.c.bf16 %v2062, %v2059
  %s2067 = scalar_lea.vmem %s5, 512
  %v2068 = vld [vmem:[%s2067] sm:$0xf]
  %v2069 = vld [vmem:[%s2067 + $0x4] sm:$0xf]
  %v2070 = vld [vmem:[%s2067 + $0x8] sm:$0xf]
  %v2071 = vld [vmem:[%s2067 + $0xc] sm:$0xf]
  %v2072 = vld [vmem:[%s2067 + $0x10] sm:$0xf]
  %v2073 = vld [vmem:[%s2067 + $0x14] sm:$0xf]
  %v2074 = vld [vmem:[%s2067 + $0x18] sm:$0xf]
  %v2075 = vld [vmem:[%s2067 + $0x1c] sm:$0xf]
  %v2076 = vld [vmem:[%s2067 + $0x20] sm:$0xf]
  %v2077 = vld [vmem:[%s2067 + $0x24] sm:$0xf]
  %v2078 = vld [vmem:[%s2067 + $0x28] sm:$0xf]
  %v2079 = vld [vmem:[%s2067 + $0x2c] sm:$0xf]
  %v2080 = vld [vmem:[%s2067 + $0x30] sm:$0xf]
  %v2081 = vld [vmem:[%s2067 + $0x34] sm:$0xf]
  %v2082 = vld [vmem:[%s2067 + $0x38] sm:$0xf]
  %v2083 = vld [vmem:[%s2067 + $0x3c] sm:$0xf]
  %v2100 = vunpack.c.l.b16 %v2068
  %v2101 = vunpack.c.l.b16 %v2069
  %v2102 = vunpack.c.l.b16 %v2070
  %v2103 = vunpack.c.l.b16 %v2071
  %v2104 = vunpack.c.l.b16 %v2072
  %v2105 = vunpack.c.l.b16 %v2073
  %v2106 = vunpack.c.l.b16 %v2074
  %v2107 = vunpack.c.l.b16 %v2075
  %v2108 = vunpack.c.l.b16 %v2076
  %v2109 = vunpack.c.l.b16 %v2077
  %v2110 = vunpack.c.l.b16 %v2078
  %v2111 = vunpack.c.l.b16 %v2079
  %v2112 = vunpack.c.l.b16 %v2080
  %v2113 = vunpack.c.l.b16 %v2081
  %v2114 = vunpack.c.l.b16 %v2082
  %v2115 = vunpack.c.l.b16 %v2083
  %v2116 = vpack.c.b16 %v2101, %v2100
  %v2117 = vpack.c.b16 %v2103, %v2102
  %v2118 = vpack.c.b16 %v2105, %v2104
  %v2119 = vpack.c.b16 %v2107, %v2106
  %v2120 = vpack.c.b16 %v2109, %v2108
  %v2121 = vpack.c.b16 %v2111, %v2110
  %v2122 = vpack.c.b16 %v2113, %v2112
  %v2123 = vpack.c.b16 %v2115, %v2114
  %2132 = vmatprep.subr.bf16.mxu0 0
  %2133 = vmatpush1.bf16.msra.mxu0 %v2123
  %2134 = vmatprep.subr.bf16.mxu0 0
  %2135 = vmatpush1.bf16.msra.mxu0 %v2122
  %2136 = vmatprep.subr.bf16.mxu0 0
  %2137 = vmatpush1.bf16.msra.mxu0 %v2121
  %2138 = vmatprep.subr.bf16.mxu0 0
  %2139 = vmatpush1.bf16.msra.mxu0 %v2120
  %2140 = vmatprep.subr.bf16.mxu0 0
  %2141 = vmatpush1.bf16.msra.mxu0 %v2119
  %2142 = vmatprep.subr.bf16.mxu0 0
  %2143 = vmatpush1.bf16.msra.mxu0 %v2118
  %2144 = vmatprep.subr.bf16.mxu0 0
  %2145 = vmatpush1.bf16.msra.mxu0 %v2117
  %2146 = vmatprep.subr.bf16.mxu0 0
  %2147 = vmatpush1.bf16.msra.mxu0 %v2116
  %2148 = vmatprep.subr.bf16.mxu0 0
  %2149 = vmatpush2.bf16.msra.mxu0 0
  %2150 = vmatprep.subr.bf16.mxu0 0
  %2151 = vmatpush2.bf16.msra.mxu0 0
  %2152 = vmatprep.subr.bf16.mxu0 0
  %2153 = vmatpush2.bf16.msra.mxu0 0
  %2154 = vmatprep.subr.bf16.mxu0 0
  %2155 = vmatpush2.bf16.msra.mxu0 0
  %2156 = vmatprep.subr.bf16.mxu0 0
  %2157 = vmatpush2.bf16.msra.mxu0 0
  %2158 = vmatprep.subr.bf16.mxu0 0
  %2159 = vmatpush2.bf16.msra.mxu0 0
  %2160 = vmatprep.subr.bf16.mxu0 0
  %2161 = vmatpush2.bf16.msra.mxu0 0
  %2162 = vmatprep.subr.bf16.mxu0 0
  %2163 = vmatpush2.bf16.msra.mxu0 0
  %2164 = vmatprep.mubr.bf16.mxu0 0
  %2165 = vmatmul.mubr.bf16.gmra.mxu0 %v2065
  %v2166 = vpop.f32.mrf.mxu0
  %v2167 = vadd.f32 0.0, %v2166
  %v2168 = vpop.f32.mrf.mxu0
  %v2169 = vpop.f32.mrf.mxu0
  %v2170 = vadd.f32 0.0, %v2169
  %v2171 = vpop.f32.mrf.mxu0
  %2172 = vmatprep.mubr.bf16.mxu0 0
  %2173 = vmatmul.mubr.bf16.gmra.mxu0 %v2066
  %v2174 = vpop.f32.mrf.mxu0
  %v2175 = vadd.f32 0.0, %v2174
  %v2176 = vpop.f32.mrf.mxu0
  %v2177 = vpop.f32.mrf.mxu0
  %v2178 = vadd.f32 0.0, %v2177
  %v2179 = vpop.f32.mrf.mxu0
  %2180 = vdwg.mxu0
  %v2181 = vadd.f32 %v1990, %v2167
  %v2182 = vadd.f32 %v1991, %v2170
  %v2183 = vadd.f32 %v1992, %v2175
  %v2184 = vadd.f32 %v1993, %v2178
  %2185 = vset.pattern.permute.xlu0 9
  %2186 = vperm.xlu0 %2185, %v471
  %v2187 = vpop.permute.xlu0 %2186
  %2188 = vset.pattern.permute.xlu0 9
  %2189 = vperm.xlu0 %2188, %v472
  %v2190 = vpop.permute.xlu0 %2189
  %2191 = vset.pattern.permute.xlu0 9
  %2192 = vperm.xlu0 %2191, %v473
  %v2193 = vpop.permute.xlu0 %2192
  %2194 = vset.pattern.permute.xlu0 9
  %2195 = vperm.xlu0 %2194, %v474
  %v2196 = vpop.permute.xlu0 %2195
  %vm2197 = vcmp.eq.s32.totalorder %v470, %v2187
  %vm2198 = vcmp.eq.s32.totalorder %v470, %v2190
  %vm2199 = vcmp.eq.s32.totalorder %v470, %v2193
  %vm2200 = vcmp.eq.s32.totalorder %v470, %v2196
  %v2201 = vsel %vm2197, 1.0, 0.0
  %v2202 = vsel %vm2198, 1.0, 0.0
  %v2203 = vsel %vm2199, 1.0, 0.0
  %v2204 = vsel %vm2200, 1.0, 0.0
  %v2205 = vpack.c.bf16 %v2202, %v2201
  %v2206 = vpack.c.bf16 %v2204, %v2203
  %2207 = vmatprep.subr.bf16.mxu0 0
  %2208 = vmatpush1.bf16.msra.mxu0 %v468
  %2209 = vmatprep.subr.bf16.mxu0 0
  %2210 = vmatpush1.bf16.msra.mxu0 %v467
  %2211 = vmatprep.subr.bf16.mxu0 0
  %2212 = vmatpush1.bf16.msra.mxu0 %v466
  %2213 = vmatprep.subr.bf16.mxu0 0
  %2214 = vmatpush1.bf16.msra.mxu0 %v465
  %2215 = vmatprep.subr.bf16.mxu0 0
  %2216 = vmatpush1.bf16.msra.mxu0 %v464
  %2217 = vmatprep.subr.bf16.mxu0 0
  %2218 = vmatpush1.bf16.msra.mxu0 %v463
  %2219 = vmatprep.subr.bf16.mxu0 0
  %2220 = vmatpush1.bf16.msra.mxu0 %v462
  %2221 = vmatprep.subr.bf16.mxu0 0
  %2222 = vmatpush1.bf16.msra.mxu0 %v461
  %2223 = vmatprep.subr.bf16.mxu0 0
  %2224 = vmatpush2.bf16.msra.mxu0 0
  %2225 = vmatprep.subr.bf16.mxu0 0
  %2226 = vmatpush2.bf16.msra.mxu0 0
  %2227 = vmatprep.subr.bf16.mxu0 0
  %2228 = vmatpush2.bf16.msra.mxu0 0
  %2229 = vmatprep.subr.bf16.mxu0 0
  %2230 = vmatpush2.bf16.msra.mxu0 0
  %2231 = vmatprep.subr.bf16.mxu0 0
  %2232 = vmatpush2.bf16.msra.mxu0 0
  %2233 = vmatprep.subr.bf16.mxu0 0
  %2234 = vmatpush2.bf16.msra.mxu0 0
  %2235 = vmatprep.subr.bf16.mxu0 0
  %2236 = vmatpush2.bf16.msra.mxu0 0
  %2237 = vmatprep.subr.bf16.mxu0 0
  %2238 = vmatpush2.bf16.msra.mxu0 0
  %2239 = vmatprep.mubr.bf16.mxu0 0
  %2240 = vmatmul.mubr.bf16.gmra.mxu0 %v2205
  %v2241 = vpop.f32.mrf.mxu0
  %v2242 = vadd.f32 0.0, %v2241
  %v2243 = vpop.f32.mrf.mxu0
  %v2244 = vpop.f32.mrf.mxu0
  %v2245 = vadd.f32 0.0, %v2244
  %v2246 = vpop.f32.mrf.mxu0
  %2247 = vmatprep.mubr.bf16.mxu0 0
  %2248 = vmatmul.mubr.bf16.gmra.mxu0 %v2206
  %v2249 = vpop.f32.mrf.mxu0
  %v2250 = vadd.f32 0.0, %v2249
  %v2251 = vpop.f32.mrf.mxu0
  %v2252 = vpop.f32.mrf.mxu0
  %v2253 = vadd.f32 0.0, %v2252
  %v2254 = vpop.f32.mrf.mxu0
  %2255 = vdwg.mxu0
  %v2256 = vpack.c.bf16 %v2245, %v2242
  %v2257 = vpack.c.bf16 %v2253, %v2250
  %s2258 = scalar_lea.vmem %s5, 576
  %v2259 = vld [vmem:[%s2258] sm:$0xf]
  %v2260 = vld [vmem:[%s2258 + $0x4] sm:$0xf]
  %v2261 = vld [vmem:[%s2258 + $0x8] sm:$0xf]
  %v2262 = vld [vmem:[%s2258 + $0xc] sm:$0xf]
  %v2263 = vld [vmem:[%s2258 + $0x10] sm:$0xf]
  %v2264 = vld [vmem:[%s2258 + $0x14] sm:$0xf]
  %v2265 = vld [vmem:[%s2258 + $0x18] sm:$0xf]
  %v2266 = vld [vmem:[%s2258 + $0x1c] sm:$0xf]
  %v2267 = vld [vmem:[%s2258 + $0x20] sm:$0xf]
  %v2268 = vld [vmem:[%s2258 + $0x24] sm:$0xf]
  %v2269 = vld [vmem:[%s2258 + $0x28] sm:$0xf]
  %v2270 = vld [vmem:[%s2258 + $0x2c] sm:$0xf]
  %v2271 = vld [vmem:[%s2258 + $0x30] sm:$0xf]
  %v2272 = vld [vmem:[%s2258 + $0x34] sm:$0xf]
  %v2273 = vld [vmem:[%s2258 + $0x38] sm:$0xf]
  %v2274 = vld [vmem:[%s2258 + $0x3c] sm:$0xf]
  %v2291 = vunpack.c.l.b16 %v2259
  %v2292 = vunpack.c.l.b16 %v2260
  %v2293 = vunpack.c.l.b16 %v2261
  %v2294 = vunpack.c.l.b16 %v2262
  %v2295 = vunpack.c.l.b16 %v2263
  %v2296 = vunpack.c.l.b16 %v2264
  %v2297 = vunpack.c.l.b16 %v2265
  %v2298 = vunpack.c.l.b16 %v2266
  %v2299 = vunpack.c.l.b16 %v2267
  %v2300 = vunpack.c.l.b16 %v2268
  %v2301 = vunpack.c.l.b16 %v2269
  %v2302 = vunpack.c.l.b16 %v2270
  %v2303 = vunpack.c.l.b16 %v2271
  %v2304 = vunpack.c.l.b16 %v2272
  %v2305 = vunpack.c.l.b16 %v2273
  %v2306 = vunpack.c.l.b16 %v2274
  %v2307 = vpack.c.b16 %v2292, %v2291
  %v2308 = vpack.c.b16 %v2294, %v2293
  %v2309 = vpack.c.b16 %v2296, %v2295
  %v2310 = vpack.c.b16 %v2298, %v2297
  %v2311 = vpack.c.b16 %v2300, %v2299
  %v2312 = vpack.c.b16 %v2302, %v2301
  %v2313 = vpack.c.b16 %v2304, %v2303
  %v2314 = vpack.c.b16 %v2306, %v2305
  %2323 = vmatprep.subr.bf16.mxu0 0
  %2324 = vmatpush1.bf16.msra.mxu0 %v2314
  %2325 = vmatprep.subr.bf16.mxu0 0
  %2326 = vmatpush1.bf16.msra.mxu0 %v2313
  %2327 = vmatprep.subr.bf16.mxu0 0
  %2328 = vmatpush1.bf16.msra.mxu0 %v2312
  %2329 = vmatprep.subr.bf16.mxu0 0
  %2330 = vmatpush1.bf16.msra.mxu0 %v2311
  %2331 = vmatprep.subr.bf16.mxu0 0
  %2332 = vmatpush1.bf16.msra.mxu0 %v2310
  %2333 = vmatprep.subr.bf16.mxu0 0
  %2334 = vmatpush1.bf16.msra.mxu0 %v2309
  %2335 = vmatprep.subr.bf16.mxu0 0
  %2336 = vmatpush1.bf16.msra.mxu0 %v2308
  %2337 = vmatprep.subr.bf16.mxu0 0
  %2338 = vmatpush1.bf16.msra.mxu0 %v2307
  %2339 = vmatprep.subr.bf16.mxu0 0
  %2340 = vmatpush2.bf16.msra.mxu0 0
  %2341 = vmatprep.subr.bf16.mxu0 0
  %2342 = vmatpush2.bf16.msra.mxu0 0
  %2343 = vmatprep.subr.bf16.mxu0 0
  %2344 = vmatpush2.bf16.msra.mxu0 0
  %2345 = vmatprep.subr.bf16.mxu0 0
  %2346 = vmatpush2.bf16.msra.mxu0 0
  %2347 = vmatprep.subr.bf16.mxu0 0
  %2348 = vmatpush2.bf16.msra.mxu0 0
  %2349 = vmatprep.subr.bf16.mxu0 0
  %2350 = vmatpush2.bf16.msra.mxu0 0
  %2351 = vmatprep.subr.bf16.mxu0 0
  %2352 = vmatpush2.bf16.msra.mxu0 0
  %2353 = vmatprep.subr.bf16.mxu0 0
  %2354 = vmatpush2.bf16.msra.mxu0 0
  %2355 = vmatprep.mubr.bf16.mxu0 0
  %2356 = vmatmul.mubr.bf16.gmra.mxu0 %v2256
  %v2357 = vpop.f32.mrf.mxu0
  %v2358 = vadd.f32 0.0, %v2357
  %v2359 = vpop.f32.mrf.mxu0
  %v2360 = vpop.f32.mrf.mxu0
  %v2361 = vadd.f32 0.0, %v2360
  %v2362 = vpop.f32.mrf.mxu0
  %2363 = vmatprep.mubr.bf16.mxu0 0
  %2364 = vmatmul.mubr.bf16.gmra.mxu0 %v2257
  %v2365 = vpop.f32.mrf.mxu0
  %v2366 = vadd.f32 0.0, %v2365
  %v2367 = vpop.f32.mrf.mxu0
  %v2368 = vpop.f32.mrf.mxu0
  %v2369 = vadd.f32 0.0, %v2368
  %v2370 = vpop.f32.mrf.mxu0
  %2371 = vdwg.mxu0
  %v2372 = vadd.f32 %v2181, %v2358
  %v2373 = vadd.f32 %v2182, %v2361
  %v2374 = vadd.f32 %v2183, %v2366
  %v2375 = vadd.f32 %v2184, %v2369
  %2376 = vset.pattern.permute.xlu0 10
  %2377 = vperm.xlu0 %2376, %v471
  %v2378 = vpop.permute.xlu0 %2377
  %2379 = vset.pattern.permute.xlu0 10
  %2380 = vperm.xlu0 %2379, %v472
  %v2381 = vpop.permute.xlu0 %2380
  %2382 = vset.pattern.permute.xlu0 10
  %2383 = vperm.xlu0 %2382, %v473
  %v2384 = vpop.permute.xlu0 %2383
  %2385 = vset.pattern.permute.xlu0 10
  %2386 = vperm.xlu0 %2385, %v474
  %v2387 = vpop.permute.xlu0 %2386
  %vm2388 = vcmp.eq.s32.totalorder %v470, %v2378
  %vm2389 = vcmp.eq.s32.totalorder %v470, %v2381
  %vm2390 = vcmp.eq.s32.totalorder %v470, %v2384
  %vm2391 = vcmp.eq.s32.totalorder %v470, %v2387
  %v2392 = vsel %vm2388, 1.0, 0.0
  %v2393 = vsel %vm2389, 1.0, 0.0
  %v2394 = vsel %vm2390, 1.0, 0.0
  %v2395 = vsel %vm2391, 1.0, 0.0
  %v2396 = vpack.c.bf16 %v2393, %v2392
  %v2397 = vpack.c.bf16 %v2395, %v2394
  %2398 = vmatprep.subr.bf16.mxu0 0
  %2399 = vmatpush1.bf16.msra.mxu0 %v468
  %2400 = vmatprep.subr.bf16.mxu0 0
  %2401 = vmatpush1.bf16.msra.mxu0 %v467
  %2402 = vmatprep.subr.bf16.mxu0 0
  %2403 = vmatpush1.bf16.msra.mxu0 %v466
  %2404 = vmatprep.subr.bf16.mxu0 0
  %2405 = vmatpush1.bf16.msra.mxu0 %v465
  %2406 = vmatprep.subr.bf16.mxu0 0
  %2407 = vmatpush1.bf16.msra.mxu0 %v464
  %2408 = vmatprep.subr.bf16.mxu0 0
  %2409 = vmatpush1.bf16.msra.mxu0 %v463
  %2410 = vmatprep.subr.bf16.mxu0 0
  %2411 = vmatpush1.bf16.msra.mxu0 %v462
  %2412 = vmatprep.subr.bf16.mxu0 0
  %2413 = vmatpush1.bf16.msra.mxu0 %v461
  %2414 = vmatprep.subr.bf16.mxu0 0
  %2415 = vmatpush2.bf16.msra.mxu0 0
  %2416 = vmatprep.subr.bf16.mxu0 0
  %2417 = vmatpush2.bf16.msra.mxu0 0
  %2418 = vmatprep.subr.bf16.mxu0 0
  %2419 = vmatpush2.bf16.msra.mxu0 0
  %2420 = vmatprep.subr.bf16.mxu0 0
  %2421 = vmatpush2.bf16.msra.mxu0 0
  %2422 = vmatprep.subr.bf16.mxu0 0
  %2423 = vmatpush2.bf16.msra.mxu0 0
  %2424 = vmatprep.subr.bf16.mxu0 0
  %2425 = vmatpush2.bf16.msra.mxu0 0
  %2426 = vmatprep.subr.bf16.mxu0 0
  %2427 = vmatpush2.bf16.msra.mxu0 0
  %2428 = vmatprep.subr.bf16.mxu0 0
  %2429 = vmatpush2.bf16.msra.mxu0 0
  %2430 = vmatprep.mubr.bf16.mxu0 0
  %2431 = vmatmul.mubr.bf16.gmra.mxu0 %v2396
  %v2432 = vpop.f32.mrf.mxu0
  %v2433 = vadd.f32 0.0, %v2432
  %v2434 = vpop.f32.mrf.mxu0
  %v2435 = vpop.f32.mrf.mxu0
  %v2436 = vadd.f32 0.0, %v2435
  %v2437 = vpop.f32.mrf.mxu0
  %2438 = vmatprep.mubr.bf16.mxu0 0
  %2439 = vmatmul.mubr.bf16.gmra.mxu0 %v2397
  %v2440 = vpop.f32.mrf.mxu0
  %v2441 = vadd.f32 0.0, %v2440
  %v2442 = vpop.f32.mrf.mxu0
  %v2443 = vpop.f32.mrf.mxu0
  %v2444 = vadd.f32 0.0, %v2443
  %v2445 = vpop.f32.mrf.mxu0
  %2446 = vdwg.mxu0
  %v2447 = vpack.c.bf16 %v2436, %v2433
  %v2448 = vpack.c.bf16 %v2444, %v2441
  %s2449 = scalar_lea.vmem %s5, 640
  %v2450 = vld [vmem:[%s2449] sm:$0xf]
  %v2451 = vld [vmem:[%s2449 + $0x4] sm:$0xf]
  %v2452 = vld [vmem:[%s2449 + $0x8] sm:$0xf]
  %v2453 = vld [vmem:[%s2449 + $0xc] sm:$0xf]
  %v2454 = vld [vmem:[%s2449 + $0x10] sm:$0xf]
  %v2455 = vld [vmem:[%s2449 + $0x14] sm:$0xf]
  %v2456 = vld [vmem:[%s2449 + $0x18] sm:$0xf]
  %v2457 = vld [vmem:[%s2449 + $0x1c] sm:$0xf]
  %v2458 = vld [vmem:[%s2449 + $0x20] sm:$0xf]
  %v2459 = vld [vmem:[%s2449 + $0x24] sm:$0xf]
  %v2460 = vld [vmem:[%s2449 + $0x28] sm:$0xf]
  %v2461 = vld [vmem:[%s2449 + $0x2c] sm:$0xf]
  %v2462 = vld [vmem:[%s2449 + $0x30] sm:$0xf]
  %v2463 = vld [vmem:[%s2449 + $0x34] sm:$0xf]
  %v2464 = vld [vmem:[%s2449 + $0x38] sm:$0xf]
  %v2465 = vld [vmem:[%s2449 + $0x3c] sm:$0xf]
  %v2482 = vunpack.c.l.b16 %v2450
  %v2483 = vunpack.c.l.b16 %v2451
  %v2484 = vunpack.c.l.b16 %v2452
  %v2485 = vunpack.c.l.b16 %v2453
  %v2486 = vunpack.c.l.b16 %v2454
  %v2487 = vunpack.c.l.b16 %v2455
  %v2488 = vunpack.c.l.b16 %v2456
  %v2489 = vunpack.c.l.b16 %v2457
  %v2490 = vunpack.c.l.b16 %v2458
  %v2491 = vunpack.c.l.b16 %v2459
  %v2492 = vunpack.c.l.b16 %v2460
  %v2493 = vunpack.c.l.b16 %v2461
  %v2494 = vunpack.c.l.b16 %v2462
  %v2495 = vunpack.c.l.b16 %v2463
  %v2496 = vunpack.c.l.b16 %v2464
  %v2497 = vunpack.c.l.b16 %v2465
  %v2498 = vpack.c.b16 %v2483, %v2482
  %v2499 = vpack.c.b16 %v2485, %v2484
  %v2500 = vpack.c.b16 %v2487, %v2486
  %v2501 = vpack.c.b16 %v2489, %v2488
  %v2502 = vpack.c.b16 %v2491, %v2490
  %v2503 = vpack.c.b16 %v2493, %v2492
  %v2504 = vpack.c.b16 %v2495, %v2494
  %v2505 = vpack.c.b16 %v2497, %v2496
  %2514 = vmatprep.subr.bf16.mxu0 0
  %2515 = vmatpush1.bf16.msra.mxu0 %v2505
  %2516 = vmatprep.subr.bf16.mxu0 0
  %2517 = vmatpush1.bf16.msra.mxu0 %v2504
  %2518 = vmatprep.subr.bf16.mxu0 0
  %2519 = vmatpush1.bf16.msra.mxu0 %v2503
  %2520 = vmatprep.subr.bf16.mxu0 0
  %2521 = vmatpush1.bf16.msra.mxu0 %v2502
  %2522 = vmatprep.subr.bf16.mxu0 0
  %2523 = vmatpush1.bf16.msra.mxu0 %v2501
  %2524 = vmatprep.subr.bf16.mxu0 0
  %2525 = vmatpush1.bf16.msra.mxu0 %v2500
  %2526 = vmatprep.subr.bf16.mxu0 0
  %2527 = vmatpush1.bf16.msra.mxu0 %v2499
  %2528 = vmatprep.subr.bf16.mxu0 0
  %2529 = vmatpush1.bf16.msra.mxu0 %v2498
  %2530 = vmatprep.subr.bf16.mxu0 0
  %2531 = vmatpush2.bf16.msra.mxu0 0
  %2532 = vmatprep.subr.bf16.mxu0 0
  %2533 = vmatpush2.bf16.msra.mxu0 0
  %2534 = vmatprep.subr.bf16.mxu0 0
  %2535 = vmatpush2.bf16.msra.mxu0 0
  %2536 = vmatprep.subr.bf16.mxu0 0
  %2537 = vmatpush2.bf16.msra.mxu0 0
  %2538 = vmatprep.subr.bf16.mxu0 0
  %2539 = vmatpush2.bf16.msra.mxu0 0
  %2540 = vmatprep.subr.bf16.mxu0 0
  %2541 = vmatpush2.bf16.msra.mxu0 0
  %2542 = vmatprep.subr.bf16.mxu0 0
  %2543 = vmatpush2.bf16.msra.mxu0 0
  %2544 = vmatprep.subr.bf16.mxu0 0
  %2545 = vmatpush2.bf16.msra.mxu0 0
  %2546 = vmatprep.mubr.bf16.mxu0 0
  %2547 = vmatmul.mubr.bf16.gmra.mxu0 %v2447
  %v2548 = vpop.f32.mrf.mxu0
  %v2549 = vadd.f32 0.0, %v2548
  %v2550 = vpop.f32.mrf.mxu0
  %v2551 = vpop.f32.mrf.mxu0
  %v2552 = vadd.f32 0.0, %v2551
  %v2553 = vpop.f32.mrf.mxu0
  %2554 = vmatprep.mubr.bf16.mxu0 0
  %2555 = vmatmul.mubr.bf16.gmra.mxu0 %v2448
  %v2556 = vpop.f32.mrf.mxu0
  %v2557 = vadd.f32 0.0, %v2556
  %v2558 = vpop.f32.mrf.mxu0
  %v2559 = vpop.f32.mrf.mxu0
  %v2560 = vadd.f32 0.0, %v2559
  %v2561 = vpop.f32.mrf.mxu0
  %2562 = vdwg.mxu0
  %v2563 = vadd.f32 %v2372, %v2549
  %v2564 = vadd.f32 %v2373, %v2552
  %v2565 = vadd.f32 %v2374, %v2557
  %v2566 = vadd.f32 %v2375, %v2560
  %2567 = vset.pattern.permute.xlu0 11
  %2568 = vperm.xlu0 %2567, %v471
  %v2569 = vpop.permute.xlu0 %2568
  %2570 = vset.pattern.permute.xlu0 11
  %2571 = vperm.xlu0 %2570, %v472
  %v2572 = vpop.permute.xlu0 %2571
  %2573 = vset.pattern.permute.xlu0 11
  %2574 = vperm.xlu0 %2573, %v473
  %v2575 = vpop.permute.xlu0 %2574
  %2576 = vset.pattern.permute.xlu0 11
  %2577 = vperm.xlu0 %2576, %v474
  %v2578 = vpop.permute.xlu0 %2577
  %vm2579 = vcmp.eq.s32.totalorder %v470, %v2569
  %vm2580 = vcmp.eq.s32.totalorder %v470, %v2572
  %vm2581 = vcmp.eq.s32.totalorder %v470, %v2575
  %vm2582 = vcmp.eq.s32.totalorder %v470, %v2578
  %v2583 = vsel %vm2579, 1.0, 0.0
  %v2584 = vsel %vm2580, 1.0, 0.0
  %v2585 = vsel %vm2581, 1.0, 0.0
  %v2586 = vsel %vm2582, 1.0, 0.0
  %v2587 = vpack.c.bf16 %v2584, %v2583
  %v2588 = vpack.c.bf16 %v2586, %v2585
  %2589 = vmatprep.subr.bf16.mxu0 0
  %2590 = vmatpush1.bf16.msra.mxu0 %v468
  %2591 = vmatprep.subr.bf16.mxu0 0
  %2592 = vmatpush1.bf16.msra.mxu0 %v467
  %2593 = vmatprep.subr.bf16.mxu0 0
  %2594 = vmatpush1.bf16.msra.mxu0 %v466
  %2595 = vmatprep.subr.bf16.mxu0 0
  %2596 = vmatpush1.bf16.msra.mxu0 %v465
  %2597 = vmatprep.subr.bf16.mxu0 0
  %2598 = vmatpush1.bf16.msra.mxu0 %v464
  %2599 = vmatprep.subr.bf16.mxu0 0
  %2600 = vmatpush1.bf16.msra.mxu0 %v463
  %2601 = vmatprep.subr.bf16.mxu0 0
  %2602 = vmatpush1.bf16.msra.mxu0 %v462
  %2603 = vmatprep.subr.bf16.mxu0 0
  %2604 = vmatpush1.bf16.msra.mxu0 %v461
  %2605 = vmatprep.subr.bf16.mxu0 0
  %2606 = vmatpush2.bf16.msra.mxu0 0
  %2607 = vmatprep.subr.bf16.mxu0 0
  %2608 = vmatpush2.bf16.msra.mxu0 0
  %2609 = vmatprep.subr.bf16.mxu0 0
  %2610 = vmatpush2.bf16.msra.mxu0 0
  %2611 = vmatprep.subr.bf16.mxu0 0
  %2612 = vmatpush2.bf16.msra.mxu0 0
  %2613 = vmatprep.subr.bf16.mxu0 0
  %2614 = vmatpush2.bf16.msra.mxu0 0
  %2615 = vmatprep.subr.bf16.mxu0 0
  %2616 = vmatpush2.bf16.msra.mxu0 0
  %2617 = vmatprep.subr.bf16.mxu0 0
  %2618 = vmatpush2.bf16.msra.mxu0 0
  %2619 = vmatprep.subr.bf16.mxu0 0
  %2620 = vmatpush2.bf16.msra.mxu0 0
  %2621 = vmatprep.mubr.bf16.mxu0 0
  %2622 = vmatmul.mubr.bf16.gmra.mxu0 %v2587
  %v2623 = vpop.f32.mrf.mxu0
  %v2624 = vadd.f32 0.0, %v2623
  %v2625 = vpop.f32.mrf.mxu0
  %v2626 = vpop.f32.mrf.mxu0
  %v2627 = vadd.f32 0.0, %v2626
  %v2628 = vpop.f32.mrf.mxu0
  %2629 = vmatprep.mubr.bf16.mxu0 0
  %2630 = vmatmul.mubr.bf16.gmra.mxu0 %v2588
  %v2631 = vpop.f32.mrf.mxu0
  %v2632 = vadd.f32 0.0, %v2631
  %v2633 = vpop.f32.mrf.mxu0
  %v2634 = vpop.f32.mrf.mxu0
  %v2635 = vadd.f32 0.0, %v2634
  %v2636 = vpop.f32.mrf.mxu0
  %2637 = vdwg.mxu0
  %v2638 = vpack.c.bf16 %v2627, %v2624
  %v2639 = vpack.c.bf16 %v2635, %v2632
  %s2640 = scalar_lea.vmem %s5, 704
  %v2641 = vld [vmem:[%s2640] sm:$0xf]
  %v2642 = vld [vmem:[%s2640 + $0x4] sm:$0xf]
  %v2643 = vld [vmem:[%s2640 + $0x8] sm:$0xf]
  %v2644 = vld [vmem:[%s2640 + $0xc] sm:$0xf]
  %v2645 = vld [vmem:[%s2640 + $0x10] sm:$0xf]
  %v2646 = vld [vmem:[%s2640 + $0x14] sm:$0xf]
  %v2647 = vld [vmem:[%s2640 + $0x18] sm:$0xf]
  %v2648 = vld [vmem:[%s2640 + $0x1c] sm:$0xf]
  %v2649 = vld [vmem:[%s2640 + $0x20] sm:$0xf]
  %v2650 = vld [vmem:[%s2640 + $0x24] sm:$0xf]
  %v2651 = vld [vmem:[%s2640 + $0x28] sm:$0xf]
  %v2652 = vld [vmem:[%s2640 + $0x2c] sm:$0xf]
  %v2653 = vld [vmem:[%s2640 + $0x30] sm:$0xf]
  %v2654 = vld [vmem:[%s2640 + $0x34] sm:$0xf]
  %v2655 = vld [vmem:[%s2640 + $0x38] sm:$0xf]
  %v2656 = vld [vmem:[%s2640 + $0x3c] sm:$0xf]
  %v2673 = vunpack.c.l.b16 %v2641
  %v2674 = vunpack.c.l.b16 %v2642
  %v2675 = vunpack.c.l.b16 %v2643
  %v2676 = vunpack.c.l.b16 %v2644
  %v2677 = vunpack.c.l.b16 %v2645
  %v2678 = vunpack.c.l.b16 %v2646
  %v2679 = vunpack.c.l.b16 %v2647
  %v2680 = vunpack.c.l.b16 %v2648
  %v2681 = vunpack.c.l.b16 %v2649
  %v2682 = vunpack.c.l.b16 %v2650
  %v2683 = vunpack.c.l.b16 %v2651
  %v2684 = vunpack.c.l.b16 %v2652
  %v2685 = vunpack.c.l.b16 %v2653
  %v2686 = vunpack.c.l.b16 %v2654
  %v2687 = vunpack.c.l.b16 %v2655
  %v2688 = vunpack.c.l.b16 %v2656
  %v2689 = vpack.c.b16 %v2674, %v2673
  %v2690 = vpack.c.b16 %v2676, %v2675
  %v2691 = vpack.c.b16 %v2678, %v2677
  %v2692 = vpack.c.b16 %v2680, %v2679
  %v2693 = vpack.c.b16 %v2682, %v2681
  %v2694 = vpack.c.b16 %v2684, %v2683
  %v2695 = vpack.c.b16 %v2686, %v2685
  %v2696 = vpack.c.b16 %v2688, %v2687
  %2705 = vmatprep.subr.bf16.mxu0 0
  %2706 = vmatpush1.bf16.msra.mxu0 %v2696
  %2707 = vmatprep.subr.bf16.mxu0 0
  %2708 = vmatpush1.bf16.msra.mxu0 %v2695
  %2709 = vmatprep.subr.bf16.mxu0 0
  %2710 = vmatpush1.bf16.msra.mxu0 %v2694
  %2711 = vmatprep.subr.bf16.mxu0 0
  %2712 = vmatpush1.bf16.msra.mxu0 %v2693
  %2713 = vmatprep.subr.bf16.mxu0 0
  %2714 = vmatpush1.bf16.msra.mxu0 %v2692
  %2715 = vmatprep.subr.bf16.mxu0 0
  %2716 = vmatpush1.bf16.msra.mxu0 %v2691
  %2717 = vmatprep.subr.bf16.mxu0 0
  %2718 = vmatpush1.bf16.msra.mxu0 %v2690
  %2719 = vmatprep.subr.bf16.mxu0 0
  %2720 = vmatpush1.bf16.msra.mxu0 %v2689
  %2721 = vmatprep.subr.bf16.mxu0 0
  %2722 = vmatpush2.bf16.msra.mxu0 0
  %2723 = vmatprep.subr.bf16.mxu0 0
  %2724 = vmatpush2.bf16.msra.mxu0 0
  %2725 = vmatprep.subr.bf16.mxu0 0
  %2726 = vmatpush2.bf16.msra.mxu0 0
  %2727 = vmatprep.subr.bf16.mxu0 0
  %2728 = vmatpush2.bf16.msra.mxu0 0
  %2729 = vmatprep.subr.bf16.mxu0 0
  %2730 = vmatpush2.bf16.msra.mxu0 0
  %2731 = vmatprep.subr.bf16.mxu0 0
  %2732 = vmatpush2.bf16.msra.mxu0 0
  %2733 = vmatprep.subr.bf16.mxu0 0
  %2734 = vmatpush2.bf16.msra.mxu0 0
  %2735 = vmatprep.subr.bf16.mxu0 0
  %2736 = vmatpush2.bf16.msra.mxu0 0
  %2737 = vmatprep.mubr.bf16.mxu0 0
  %2738 = vmatmul.mubr.bf16.gmra.mxu0 %v2638
  %v2739 = vpop.f32.mrf.mxu0
  %v2740 = vadd.f32 0.0, %v2739
  %v2741 = vpop.f32.mrf.mxu0
  %v2742 = vpop.f32.mrf.mxu0
  %v2743 = vadd.f32 0.0, %v2742
  %v2744 = vpop.f32.mrf.mxu0
  %2745 = vmatprep.mubr.bf16.mxu0 0
  %2746 = vmatmul.mubr.bf16.gmra.mxu0 %v2639
  %v2747 = vpop.f32.mrf.mxu0
  %v2748 = vadd.f32 0.0, %v2747
  %v2749 = vpop.f32.mrf.mxu0
  %v2750 = vpop.f32.mrf.mxu0
  %v2751 = vadd.f32 0.0, %v2750
  %v2752 = vpop.f32.mrf.mxu0
  %2753 = vdwg.mxu0
  %v2754 = vadd.f32 %v2563, %v2740
  %v2755 = vadd.f32 %v2564, %v2743
  %v2756 = vadd.f32 %v2565, %v2748
  %v2757 = vadd.f32 %v2566, %v2751
  %2758 = vset.pattern.permute.xlu0 12
  %2759 = vperm.xlu0 %2758, %v471
  %v2760 = vpop.permute.xlu0 %2759
  %2761 = vset.pattern.permute.xlu0 12
  %2762 = vperm.xlu0 %2761, %v472
  %v2763 = vpop.permute.xlu0 %2762
  %2764 = vset.pattern.permute.xlu0 12
  %2765 = vperm.xlu0 %2764, %v473
  %v2766 = vpop.permute.xlu0 %2765
  %2767 = vset.pattern.permute.xlu0 12
  %2768 = vperm.xlu0 %2767, %v474
  %v2769 = vpop.permute.xlu0 %2768
  %vm2770 = vcmp.eq.s32.totalorder %v470, %v2760
  %vm2771 = vcmp.eq.s32.totalorder %v470, %v2763
  %vm2772 = vcmp.eq.s32.totalorder %v470, %v2766
  %vm2773 = vcmp.eq.s32.totalorder %v470, %v2769
  %v2774 = vsel %vm2770, 1.0, 0.0
  %v2775 = vsel %vm2771, 1.0, 0.0
  %v2776 = vsel %vm2772, 1.0, 0.0
  %v2777 = vsel %vm2773, 1.0, 0.0
  %v2778 = vpack.c.bf16 %v2775, %v2774
  %v2779 = vpack.c.bf16 %v2777, %v2776
  %2780 = vmatprep.subr.bf16.mxu0 0
  %2781 = vmatpush1.bf16.msra.mxu0 %v468
  %2782 = vmatprep.subr.bf16.mxu0 0
  %2783 = vmatpush1.bf16.msra.mxu0 %v467
  %2784 = vmatprep.subr.bf16.mxu0 0
  %2785 = vmatpush1.bf16.msra.mxu0 %v466
  %2786 = vmatprep.subr.bf16.mxu0 0
  %2787 = vmatpush1.bf16.msra.mxu0 %v465
  %2788 = vmatprep.subr.bf16.mxu0 0
  %2789 = vmatpush1.bf16.msra.mxu0 %v464
  %2790 = vmatprep.subr.bf16.mxu0 0
  %2791 = vmatpush1.bf16.msra.mxu0 %v463
  %2792 = vmatprep.subr.bf16.mxu0 0
  %2793 = vmatpush1.bf16.msra.mxu0 %v462
  %2794 = vmatprep.subr.bf16.mxu0 0
  %2795 = vmatpush1.bf16.msra.mxu0 %v461
  %2796 = vmatprep.subr.bf16.mxu0 0
  %2797 = vmatpush2.bf16.msra.mxu0 0
  %2798 = vmatprep.subr.bf16.mxu0 0
  %2799 = vmatpush2.bf16.msra.mxu0 0
  %2800 = vmatprep.subr.bf16.mxu0 0
  %2801 = vmatpush2.bf16.msra.mxu0 0
  %2802 = vmatprep.subr.bf16.mxu0 0
  %2803 = vmatpush2.bf16.msra.mxu0 0
  %2804 = vmatprep.subr.bf16.mxu0 0
  %2805 = vmatpush2.bf16.msra.mxu0 0
  %2806 = vmatprep.subr.bf16.mxu0 0
  %2807 = vmatpush2.bf16.msra.mxu0 0
  %2808 = vmatprep.subr.bf16.mxu0 0
  %2809 = vmatpush2.bf16.msra.mxu0 0
  %2810 = vmatprep.subr.bf16.mxu0 0
  %2811 = vmatpush2.bf16.msra.mxu0 0
  %2812 = vmatprep.mubr.bf16.mxu0 0
  %2813 = vmatmul.mubr.bf16.gmra.mxu0 %v2778
  %v2814 = vpop.f32.mrf.mxu0
  %v2815 = vadd.f32 0.0, %v2814
  %v2816 = vpop.f32.mrf.mxu0
  %v2817 = vpop.f32.mrf.mxu0
  %v2818 = vadd.f32 0.0, %v2817
  %v2819 = vpop.f32.mrf.mxu0
  %2820 = vmatprep.mubr.bf16.mxu0 0
  %2821 = vmatmul.mubr.bf16.gmra.mxu0 %v2779
  %v2822 = vpop.f32.mrf.mxu0
  %v2823 = vadd.f32 0.0, %v2822
  %v2824 = vpop.f32.mrf.mxu0
  %v2825 = vpop.f32.mrf.mxu0
  %v2826 = vadd.f32 0.0, %v2825
  %v2827 = vpop.f32.mrf.mxu0
  %2828 = vdwg.mxu0
  %v2829 = vpack.c.bf16 %v2818, %v2815
  %v2830 = vpack.c.bf16 %v2826, %v2823
  %s2831 = scalar_lea.vmem %s5, 768
  %v2832 = vld [vmem:[%s2831] sm:$0xf]
  %v2833 = vld [vmem:[%s2831 + $0x4] sm:$0xf]
  %v2834 = vld [vmem:[%s2831 + $0x8] sm:$0xf]
  %v2835 = vld [vmem:[%s2831 + $0xc] sm:$0xf]
  %v2836 = vld [vmem:[%s2831 + $0x10] sm:$0xf]
  %v2837 = vld [vmem:[%s2831 + $0x14] sm:$0xf]
  %v2838 = vld [vmem:[%s2831 + $0x18] sm:$0xf]
  %v2839 = vld [vmem:[%s2831 + $0x1c] sm:$0xf]
  %v2840 = vld [vmem:[%s2831 + $0x20] sm:$0xf]
  %v2841 = vld [vmem:[%s2831 + $0x24] sm:$0xf]
  %v2842 = vld [vmem:[%s2831 + $0x28] sm:$0xf]
  %v2843 = vld [vmem:[%s2831 + $0x2c] sm:$0xf]
  %v2844 = vld [vmem:[%s2831 + $0x30] sm:$0xf]
  %v2845 = vld [vmem:[%s2831 + $0x34] sm:$0xf]
  %v2846 = vld [vmem:[%s2831 + $0x38] sm:$0xf]
  %v2847 = vld [vmem:[%s2831 + $0x3c] sm:$0xf]
  %v2864 = vunpack.c.l.b16 %v2832
  %v2865 = vunpack.c.l.b16 %v2833
  %v2866 = vunpack.c.l.b16 %v2834
  %v2867 = vunpack.c.l.b16 %v2835
  %v2868 = vunpack.c.l.b16 %v2836
  %v2869 = vunpack.c.l.b16 %v2837
  %v2870 = vunpack.c.l.b16 %v2838
  %v2871 = vunpack.c.l.b16 %v2839
  %v2872 = vunpack.c.l.b16 %v2840
  %v2873 = vunpack.c.l.b16 %v2841
  %v2874 = vunpack.c.l.b16 %v2842
  %v2875 = vunpack.c.l.b16 %v2843
  %v2876 = vunpack.c.l.b16 %v2844
  %v2877 = vunpack.c.l.b16 %v2845
  %v2878 = vunpack.c.l.b16 %v2846
  %v2879 = vunpack.c.l.b16 %v2847
  %v2880 = vpack.c.b16 %v2865, %v2864
  %v2881 = vpack.c.b16 %v2867, %v2866
  %v2882 = vpack.c.b16 %v2869, %v2868
  %v2883 = vpack.c.b16 %v2871, %v2870
  %v2884 = vpack.c.b16 %v2873, %v2872
  %v2885 = vpack.c.b16 %v2875, %v2874
  %v2886 = vpack.c.b16 %v2877, %v2876
  %v2887 = vpack.c.b16 %v2879, %v2878
  %2896 = vmatprep.subr.bf16.mxu0 0
  %2897 = vmatpush1.bf16.msra.mxu0 %v2887
  %2898 = vmatprep.subr.bf16.mxu0 0
  %2899 = vmatpush1.bf16.msra.mxu0 %v2886
  %2900 = vmatprep.subr.bf16.mxu0 0
  %2901 = vmatpush1.bf16.msra.mxu0 %v2885
  %2902 = vmatprep.subr.bf16.mxu0 0
  %2903 = vmatpush1.bf16.msra.mxu0 %v2884
  %2904 = vmatprep.subr.bf16.mxu0 0
  %2905 = vmatpush1.bf16.msra.mxu0 %v2883
  %2906 = vmatprep.subr.bf16.mxu0 0
  %2907 = vmatpush1.bf16.msra.mxu0 %v2882
  %2908 = vmatprep.subr.bf16.mxu0 0
  %2909 = vmatpush1.bf16.msra.mxu0 %v2881
  %2910 = vmatprep.subr.bf16.mxu0 0
  %2911 = vmatpush1.bf16.msra.mxu0 %v2880
  %2912 = vmatprep.subr.bf16.mxu0 0
  %2913 = vmatpush2.bf16.msra.mxu0 0
  %2914 = vmatprep.subr.bf16.mxu0 0
  %2915 = vmatpush2.bf16.msra.mxu0 0
  %2916 = vmatprep.subr.bf16.mxu0 0
  %2917 = vmatpush2.bf16.msra.mxu0 0
  %2918 = vmatprep.subr.bf16.mxu0 0
  %2919 = vmatpush2.bf16.msra.mxu0 0
  %2920 = vmatprep.subr.bf16.mxu0 0
  %2921 = vmatpush2.bf16.msra.mxu0 0
  %2922 = vmatprep.subr.bf16.mxu0 0
  %2923 = vmatpush2.bf16.msra.mxu0 0
  %2924 = vmatprep.subr.bf16.mxu0 0
  %2925 = vmatpush2.bf16.msra.mxu0 0
  %2926 = vmatprep.subr.bf16.mxu0 0
  %2927 = vmatpush2.bf16.msra.mxu0 0
  %2928 = vmatprep.mubr.bf16.mxu0 0
  %2929 = vmatmul.mubr.bf16.gmra.mxu0 %v2829
  %v2930 = vpop.f32.mrf.mxu0
  %v2931 = vadd.f32 0.0, %v2930
  %v2932 = vpop.f32.mrf.mxu0
  %v2933 = vpop.f32.mrf.mxu0
  %v2934 = vadd.f32 0.0, %v2933
  %v2935 = vpop.f32.mrf.mxu0
  %2936 = vmatprep.mubr.bf16.mxu0 0
  %2937 = vmatmul.mubr.bf16.gmra.mxu0 %v2830
  %v2938 = vpop.f32.mrf.mxu0
  %v2939 = vadd.f32 0.0, %v2938
  %v2940 = vpop.f32.mrf.mxu0
  %v2941 = vpop.f32.mrf.mxu0
  %v2942 = vadd.f32 0.0, %v2941
  %v2943 = vpop.f32.mrf.mxu0
  %2944 = vdwg.mxu0
  %v2945 = vadd.f32 %v2754, %v2931
  %v2946 = vadd.f32 %v2755, %v2934
  %v2947 = vadd.f32 %v2756, %v2939
  %v2948 = vadd.f32 %v2757, %v2942
  %2949 = vset.pattern.permute.xlu0 13
  %2950 = vperm.xlu0 %2949, %v471
  %v2951 = vpop.permute.xlu0 %2950
  %2952 = vset.pattern.permute.xlu0 13
  %2953 = vperm.xlu0 %2952, %v472
  %v2954 = vpop.permute.xlu0 %2953
  %2955 = vset.pattern.permute.xlu0 13
  %2956 = vperm.xlu0 %2955, %v473
  %v2957 = vpop.permute.xlu0 %2956
  %2958 = vset.pattern.permute.xlu0 13
  %2959 = vperm.xlu0 %2958, %v474
  %v2960 = vpop.permute.xlu0 %2959
  %vm2961 = vcmp.eq.s32.totalorder %v470, %v2951
  %vm2962 = vcmp.eq.s32.totalorder %v470, %v2954
  %vm2963 = vcmp.eq.s32.totalorder %v470, %v2957
  %vm2964 = vcmp.eq.s32.totalorder %v470, %v2960
  %v2965 = vsel %vm2961, 1.0, 0.0
  %v2966 = vsel %vm2962, 1.0, 0.0
  %v2967 = vsel %vm2963, 1.0, 0.0
  %v2968 = vsel %vm2964, 1.0, 0.0
  %v2969 = vpack.c.bf16 %v2966, %v2965
  %v2970 = vpack.c.bf16 %v2968, %v2967
  %2971 = vmatprep.subr.bf16.mxu0 0
  %2972 = vmatpush1.bf16.msra.mxu0 %v468
  %2973 = vmatprep.subr.bf16.mxu0 0
  %2974 = vmatpush1.bf16.msra.mxu0 %v467
  %2975 = vmatprep.subr.bf16.mxu0 0
  %2976 = vmatpush1.bf16.msra.mxu0 %v466
  %2977 = vmatprep.subr.bf16.mxu0 0
  %2978 = vmatpush1.bf16.msra.mxu0 %v465
  %2979 = vmatprep.subr.bf16.mxu0 0
  %2980 = vmatpush1.bf16.msra.mxu0 %v464
  %2981 = vmatprep.subr.bf16.mxu0 0
  %2982 = vmatpush1.bf16.msra.mxu0 %v463
  %2983 = vmatprep.subr.bf16.mxu0 0
  %2984 = vmatpush1.bf16.msra.mxu0 %v462
  %2985 = vmatprep.subr.bf16.mxu0 0
  %2986 = vmatpush1.bf16.msra.mxu0 %v461
  %2987 = vmatprep.subr.bf16.mxu0 0
  %2988 = vmatpush2.bf16.msra.mxu0 0
  %2989 = vmatprep.subr.bf16.mxu0 0
  %2990 = vmatpush2.bf16.msra.mxu0 0
  %2991 = vmatprep.subr.bf16.mxu0 0
  %2992 = vmatpush2.bf16.msra.mxu0 0
  %2993 = vmatprep.subr.bf16.mxu0 0
  %2994 = vmatpush2.bf16.msra.mxu0 0
  %2995 = vmatprep.subr.bf16.mxu0 0
  %2996 = vmatpush2.bf16.msra.mxu0 0
  %2997 = vmatprep.subr.bf16.mxu0 0
  %2998 = vmatpush2.bf16.msra.mxu0 0
  %2999 = vmatprep.subr.bf16.mxu0 0
  %3000 = vmatpush2.bf16.msra.mxu0 0
  %3001 = vmatprep.subr.bf16.mxu0 0
  %3002 = vmatpush2.bf16.msra.mxu0 0
  %3003 = vmatprep.mubr.bf16.mxu0 0
  %3004 = vmatmul.mubr.bf16.gmra.mxu0 %v2969
  %v3005 = vpop.f32.mrf.mxu0
  %v3006 = vadd.f32 0.0, %v3005
  %v3007 = vpop.f32.mrf.mxu0
  %v3008 = vpop.f32.mrf.mxu0
  %v3009 = vadd.f32 0.0, %v3008
  %v3010 = vpop.f32.mrf.mxu0
  %3011 = vmatprep.mubr.bf16.mxu0 0
  %3012 = vmatmul.mubr.bf16.gmra.mxu0 %v2970
  %v3013 = vpop.f32.mrf.mxu0
  %v3014 = vadd.f32 0.0, %v3013
  %v3015 = vpop.f32.mrf.mxu0
  %v3016 = vpop.f32.mrf.mxu0
  %v3017 = vadd.f32 0.0, %v3016
  %v3018 = vpop.f32.mrf.mxu0
  %3019 = vdwg.mxu0
  %v3020 = vpack.c.bf16 %v3009, %v3006
  %v3021 = vpack.c.bf16 %v3017, %v3014
  %s3022 = scalar_lea.vmem %s5, 832
  %v3023 = vld [vmem:[%s3022] sm:$0xf]
  %v3024 = vld [vmem:[%s3022 + $0x4] sm:$0xf]
  %v3025 = vld [vmem:[%s3022 + $0x8] sm:$0xf]
  %v3026 = vld [vmem:[%s3022 + $0xc] sm:$0xf]
  %v3027 = vld [vmem:[%s3022 + $0x10] sm:$0xf]
  %v3028 = vld [vmem:[%s3022 + $0x14] sm:$0xf]
  %v3029 = vld [vmem:[%s3022 + $0x18] sm:$0xf]
  %v3030 = vld [vmem:[%s3022 + $0x1c] sm:$0xf]
  %v3031 = vld [vmem:[%s3022 + $0x20] sm:$0xf]
  %v3032 = vld [vmem:[%s3022 + $0x24] sm:$0xf]
  %v3033 = vld [vmem:[%s3022 + $0x28] sm:$0xf]
  %v3034 = vld [vmem:[%s3022 + $0x2c] sm:$0xf]
  %v3035 = vld [vmem:[%s3022 + $0x30] sm:$0xf]
  %v3036 = vld [vmem:[%s3022 + $0x34] sm:$0xf]
  %v3037 = vld [vmem:[%s3022 + $0x38] sm:$0xf]
  %v3038 = vld [vmem:[%s3022 + $0x3c] sm:$0xf]
  %v3055 = vunpack.c.l.b16 %v3023
  %v3056 = vunpack.c.l.b16 %v3024
  %v3057 = vunpack.c.l.b16 %v3025
  %v3058 = vunpack.c.l.b16 %v3026
  %v3059 = vunpack.c.l.b16 %v3027
  %v3060 = vunpack.c.l.b16 %v3028
  %v3061 = vunpack.c.l.b16 %v3029
  %v3062 = vunpack.c.l.b16 %v3030
  %v3063 = vunpack.c.l.b16 %v3031
  %v3064 = vunpack.c.l.b16 %v3032
  %v3065 = vunpack.c.l.b16 %v3033
  %v3066 = vunpack.c.l.b16 %v3034
  %v3067 = vunpack.c.l.b16 %v3035
  %v3068 = vunpack.c.l.b16 %v3036
  %v3069 = vunpack.c.l.b16 %v3037
  %v3070 = vunpack.c.l.b16 %v3038
  %v3071 = vpack.c.b16 %v3056, %v3055
  %v3072 = vpack.c.b16 %v3058, %v3057
  %v3073 = vpack.c.b16 %v3060, %v3059
  %v3074 = vpack.c.b16 %v3062, %v3061
  %v3075 = vpack.c.b16 %v3064, %v3063
  %v3076 = vpack.c.b16 %v3066, %v3065
  %v3077 = vpack.c.b16 %v3068, %v3067
  %v3078 = vpack.c.b16 %v3070, %v3069
  %3087 = vmatprep.subr.bf16.mxu0 0
  %3088 = vmatpush1.bf16.msra.mxu0 %v3078
  %3089 = vmatprep.subr.bf16.mxu0 0
  %3090 = vmatpush1.bf16.msra.mxu0 %v3077
  %3091 = vmatprep.subr.bf16.mxu0 0
  %3092 = vmatpush1.bf16.msra.mxu0 %v3076
  %3093 = vmatprep.subr.bf16.mxu0 0
  %3094 = vmatpush1.bf16.msra.mxu0 %v3075
  %3095 = vmatprep.subr.bf16.mxu0 0
  %3096 = vmatpush1.bf16.msra.mxu0 %v3074
  %3097 = vmatprep.subr.bf16.mxu0 0
  %3098 = vmatpush1.bf16.msra.mxu0 %v3073
  %3099 = vmatprep.subr.bf16.mxu0 0
  %3100 = vmatpush1.bf16.msra.mxu0 %v3072
  %3101 = vmatprep.subr.bf16.mxu0 0
  %3102 = vmatpush1.bf16.msra.mxu0 %v3071
  %3103 = vmatprep.subr.bf16.mxu0 0
  %3104 = vmatpush2.bf16.msra.mxu0 0
  %3105 = vmatprep.subr.bf16.mxu0 0
  %3106 = vmatpush2.bf16.msra.mxu0 0
  %3107 = vmatprep.subr.bf16.mxu0 0
  %3108 = vmatpush2.bf16.msra.mxu0 0
  %3109 = vmatprep.subr.bf16.mxu0 0
  %3110 = vmatpush2.bf16.msra.mxu0 0
  %3111 = vmatprep.subr.bf16.mxu0 0
  %3112 = vmatpush2.bf16.msra.mxu0 0
  %3113 = vmatprep.subr.bf16.mxu0 0
  %3114 = vmatpush2.bf16.msra.mxu0 0
  %3115 = vmatprep.subr.bf16.mxu0 0
  %3116 = vmatpush2.bf16.msra.mxu0 0
  %3117 = vmatprep.subr.bf16.mxu0 0
  %3118 = vmatpush2.bf16.msra.mxu0 0
  %3119 = vmatprep.mubr.bf16.mxu0 0
  %3120 = vmatmul.mubr.bf16.gmra.mxu0 %v3020
  %v3121 = vpop.f32.mrf.mxu0
  %v3122 = vadd.f32 0.0, %v3121
  %v3123 = vpop.f32.mrf.mxu0
  %v3124 = vpop.f32.mrf.mxu0
  %v3125 = vadd.f32 0.0, %v3124
  %v3126 = vpop.f32.mrf.mxu0
  %3127 = vmatprep.mubr.bf16.mxu0 0
  %3128 = vmatmul.mubr.bf16.gmra.mxu0 %v3021
  %v3129 = vpop.f32.mrf.mxu0
  %v3130 = vadd.f32 0.0, %v3129
  %v3131 = vpop.f32.mrf.mxu0
  %v3132 = vpop.f32.mrf.mxu0
  %v3133 = vadd.f32 0.0, %v3132
  %v3134 = vpop.f32.mrf.mxu0
  %3135 = vdwg.mxu0
  %v3136 = vadd.f32 %v2945, %v3122
  %v3137 = vadd.f32 %v2946, %v3125
  %v3138 = vadd.f32 %v2947, %v3130
  %v3139 = vadd.f32 %v2948, %v3133
  %3140 = vset.pattern.permute.xlu0 14
  %3141 = vperm.xlu0 %3140, %v471
  %v3142 = vpop.permute.xlu0 %3141
  %3143 = vset.pattern.permute.xlu0 14
  %3144 = vperm.xlu0 %3143, %v472
  %v3145 = vpop.permute.xlu0 %3144
  %3146 = vset.pattern.permute.xlu0 14
  %3147 = vperm.xlu0 %3146, %v473
  %v3148 = vpop.permute.xlu0 %3147
  %3149 = vset.pattern.permute.xlu0 14
  %3150 = vperm.xlu0 %3149, %v474
  %v3151 = vpop.permute.xlu0 %3150
  %vm3152 = vcmp.eq.s32.totalorder %v470, %v3142
  %vm3153 = vcmp.eq.s32.totalorder %v470, %v3145
  %vm3154 = vcmp.eq.s32.totalorder %v470, %v3148
  %vm3155 = vcmp.eq.s32.totalorder %v470, %v3151
  %v3156 = vsel %vm3152, 1.0, 0.0
  %v3157 = vsel %vm3153, 1.0, 0.0
  %v3158 = vsel %vm3154, 1.0, 0.0
  %v3159 = vsel %vm3155, 1.0, 0.0
  %v3160 = vpack.c.bf16 %v3157, %v3156
  %v3161 = vpack.c.bf16 %v3159, %v3158
  %3162 = vmatprep.subr.bf16.mxu0 0
  %3163 = vmatpush1.bf16.msra.mxu0 %v468
  %3164 = vmatprep.subr.bf16.mxu0 0
  %3165 = vmatpush1.bf16.msra.mxu0 %v467
  %3166 = vmatprep.subr.bf16.mxu0 0
  %3167 = vmatpush1.bf16.msra.mxu0 %v466
  %3168 = vmatprep.subr.bf16.mxu0 0
  %3169 = vmatpush1.bf16.msra.mxu0 %v465
  %3170 = vmatprep.subr.bf16.mxu0 0
  %3171 = vmatpush1.bf16.msra.mxu0 %v464
  %3172 = vmatprep.subr.bf16.mxu0 0
  %3173 = vmatpush1.bf16.msra.mxu0 %v463
  %3174 = vmatprep.subr.bf16.mxu0 0
  %3175 = vmatpush1.bf16.msra.mxu0 %v462
  %3176 = vmatprep.subr.bf16.mxu0 0
  %3177 = vmatpush1.bf16.msra.mxu0 %v461
  %3178 = vmatprep.subr.bf16.mxu0 0
  %3179 = vmatpush2.bf16.msra.mxu0 0
  %3180 = vmatprep.subr.bf16.mxu0 0
  %3181 = vmatpush2.bf16.msra.mxu0 0
  %3182 = vmatprep.subr.bf16.mxu0 0
  %3183 = vmatpush2.bf16.msra.mxu0 0
  %3184 = vmatprep.subr.bf16.mxu0 0
  %3185 = vmatpush2.bf16.msra.mxu0 0
  %3186 = vmatprep.subr.bf16.mxu0 0
  %3187 = vmatpush2.bf16.msra.mxu0 0
  %3188 = vmatprep.subr.bf16.mxu0 0
  %3189 = vmatpush2.bf16.msra.mxu0 0
  %3190 = vmatprep.subr.bf16.mxu0 0
  %3191 = vmatpush2.bf16.msra.mxu0 0
  %3192 = vmatprep.subr.bf16.mxu0 0
  %3193 = vmatpush2.bf16.msra.mxu0 0
  %3194 = vmatprep.mubr.bf16.mxu0 0
  %3195 = vmatmul.mubr.bf16.gmra.mxu0 %v3160
  %v3196 = vpop.f32.mrf.mxu0
  %v3197 = vadd.f32 0.0, %v3196
  %v3198 = vpop.f32.mrf.mxu0
  %v3199 = vpop.f32.mrf.mxu0
  %v3200 = vadd.f32 0.0, %v3199
  %v3201 = vpop.f32.mrf.mxu0
  %3202 = vmatprep.mubr.bf16.mxu0 0
  %3203 = vmatmul.mubr.bf16.gmra.mxu0 %v3161
  %v3204 = vpop.f32.mrf.mxu0
  %v3205 = vadd.f32 0.0, %v3204
  %v3206 = vpop.f32.mrf.mxu0
  %v3207 = vpop.f32.mrf.mxu0
  %v3208 = vadd.f32 0.0, %v3207
  %v3209 = vpop.f32.mrf.mxu0
  %3210 = vdwg.mxu0
  %v3211 = vpack.c.bf16 %v3200, %v3197
  %v3212 = vpack.c.bf16 %v3208, %v3205
  %s3213 = scalar_lea.vmem %s5, 896
  %v3214 = vld [vmem:[%s3213] sm:$0xf]
  %v3215 = vld [vmem:[%s3213 + $0x4] sm:$0xf]
  %v3216 = vld [vmem:[%s3213 + $0x8] sm:$0xf]
  %v3217 = vld [vmem:[%s3213 + $0xc] sm:$0xf]
  %v3218 = vld [vmem:[%s3213 + $0x10] sm:$0xf]
  %v3219 = vld [vmem:[%s3213 + $0x14] sm:$0xf]
  %v3220 = vld [vmem:[%s3213 + $0x18] sm:$0xf]
  %v3221 = vld [vmem:[%s3213 + $0x1c] sm:$0xf]
  %v3222 = vld [vmem:[%s3213 + $0x20] sm:$0xf]
  %v3223 = vld [vmem:[%s3213 + $0x24] sm:$0xf]
  %v3224 = vld [vmem:[%s3213 + $0x28] sm:$0xf]
  %v3225 = vld [vmem:[%s3213 + $0x2c] sm:$0xf]
  %v3226 = vld [vmem:[%s3213 + $0x30] sm:$0xf]
  %v3227 = vld [vmem:[%s3213 + $0x34] sm:$0xf]
  %v3228 = vld [vmem:[%s3213 + $0x38] sm:$0xf]
  %v3229 = vld [vmem:[%s3213 + $0x3c] sm:$0xf]
  %v3246 = vunpack.c.l.b16 %v3214
  %v3247 = vunpack.c.l.b16 %v3215
  %v3248 = vunpack.c.l.b16 %v3216
  %v3249 = vunpack.c.l.b16 %v3217
  %v3250 = vunpack.c.l.b16 %v3218
  %v3251 = vunpack.c.l.b16 %v3219
  %v3252 = vunpack.c.l.b16 %v3220
  %v3253 = vunpack.c.l.b16 %v3221
  %v3254 = vunpack.c.l.b16 %v3222
  %v3255 = vunpack.c.l.b16 %v3223
  %v3256 = vunpack.c.l.b16 %v3224
  %v3257 = vunpack.c.l.b16 %v3225
  %v3258 = vunpack.c.l.b16 %v3226
  %v3259 = vunpack.c.l.b16 %v3227
  %v3260 = vunpack.c.l.b16 %v3228
  %v3261 = vunpack.c.l.b16 %v3229
  %v3262 = vpack.c.b16 %v3247, %v3246
  %v3263 = vpack.c.b16 %v3249, %v3248
  %v3264 = vpack.c.b16 %v3251, %v3250
  %v3265 = vpack.c.b16 %v3253, %v3252
  %v3266 = vpack.c.b16 %v3255, %v3254
  %v3267 = vpack.c.b16 %v3257, %v3256
  %v3268 = vpack.c.b16 %v3259, %v3258
  %v3269 = vpack.c.b16 %v3261, %v3260
  %3278 = vmatprep.subr.bf16.mxu0 0
  %3279 = vmatpush1.bf16.msra.mxu0 %v3269
  %3280 = vmatprep.subr.bf16.mxu0 0
  %3281 = vmatpush1.bf16.msra.mxu0 %v3268
  %3282 = vmatprep.subr.bf16.mxu0 0
  %3283 = vmatpush1.bf16.msra.mxu0 %v3267
  %3284 = vmatprep.subr.bf16.mxu0 0
  %3285 = vmatpush1.bf16.msra.mxu0 %v3266
  %3286 = vmatprep.subr.bf16.mxu0 0
  %3287 = vmatpush1.bf16.msra.mxu0 %v3265
  %3288 = vmatprep.subr.bf16.mxu0 0
  %3289 = vmatpush1.bf16.msra.mxu0 %v3264
  %3290 = vmatprep.subr.bf16.mxu0 0
  %3291 = vmatpush1.bf16.msra.mxu0 %v3263
  %3292 = vmatprep.subr.bf16.mxu0 0
  %3293 = vmatpush1.bf16.msra.mxu0 %v3262
  %3294 = vmatprep.subr.bf16.mxu0 0
  %3295 = vmatpush2.bf16.msra.mxu0 0
  %3296 = vmatprep.subr.bf16.mxu0 0
  %3297 = vmatpush2.bf16.msra.mxu0 0
  %3298 = vmatprep.subr.bf16.mxu0 0
  %3299 = vmatpush2.bf16.msra.mxu0 0
  %3300 = vmatprep.subr.bf16.mxu0 0
  %3301 = vmatpush2.bf16.msra.mxu0 0
  %3302 = vmatprep.subr.bf16.mxu0 0
  %3303 = vmatpush2.bf16.msra.mxu0 0
  %3304 = vmatprep.subr.bf16.mxu0 0
  %3305 = vmatpush2.bf16.msra.mxu0 0
  %3306 = vmatprep.subr.bf16.mxu0 0
  %3307 = vmatpush2.bf16.msra.mxu0 0
  %3308 = vmatprep.subr.bf16.mxu0 0
  %3309 = vmatpush2.bf16.msra.mxu0 0
  %3310 = vmatprep.mubr.bf16.mxu0 0
  %3311 = vmatmul.mubr.bf16.gmra.mxu0 %v3211
  %v3312 = vpop.f32.mrf.mxu0
  %v3313 = vadd.f32 0.0, %v3312
  %v3314 = vpop.f32.mrf.mxu0
  %v3315 = vpop.f32.mrf.mxu0
  %v3316 = vadd.f32 0.0, %v3315
  %v3317 = vpop.f32.mrf.mxu0
  %3318 = vmatprep.mubr.bf16.mxu0 0
  %3319 = vmatmul.mubr.bf16.gmra.mxu0 %v3212
  %v3320 = vpop.f32.mrf.mxu0
  %v3321 = vadd.f32 0.0, %v3320
  %v3322 = vpop.f32.mrf.mxu0
  %v3323 = vpop.f32.mrf.mxu0
  %v3324 = vadd.f32 0.0, %v3323
  %v3325 = vpop.f32.mrf.mxu0
  %3326 = vdwg.mxu0
  %v3327 = vadd.f32 %v3136, %v3313
  %v3328 = vadd.f32 %v3137, %v3316
  %v3329 = vadd.f32 %v3138, %v3321
  %v3330 = vadd.f32 %v3139, %v3324
  %3331 = vset.pattern.permute.xlu0 15
  %3332 = vperm.xlu0 %3331, %v471
  %v3333 = vpop.permute.xlu0 %3332
  %3334 = vset.pattern.permute.xlu0 15
  %3335 = vperm.xlu0 %3334, %v472
  %v3336 = vpop.permute.xlu0 %3335
  %3337 = vset.pattern.permute.xlu0 15
  %3338 = vperm.xlu0 %3337, %v473
  %v3339 = vpop.permute.xlu0 %3338
  %3340 = vset.pattern.permute.xlu0 15
  %3341 = vperm.xlu0 %3340, %v474
  %v3342 = vpop.permute.xlu0 %3341
  %vm3343 = vcmp.eq.s32.totalorder %v470, %v3333
  %vm3344 = vcmp.eq.s32.totalorder %v470, %v3336
  %vm3345 = vcmp.eq.s32.totalorder %v470, %v3339
  %vm3346 = vcmp.eq.s32.totalorder %v470, %v3342
  %v3347 = vsel %vm3343, 1.0, 0.0
  %v3348 = vsel %vm3344, 1.0, 0.0
  %v3349 = vsel %vm3345, 1.0, 0.0
  %v3350 = vsel %vm3346, 1.0, 0.0
  %v3351 = vpack.c.bf16 %v3348, %v3347
  %v3352 = vpack.c.bf16 %v3350, %v3349
  %3353 = vmatprep.subr.bf16.mxu0 0
  %3354 = vmatpush1.bf16.msra.mxu0 %v468
  %3355 = vmatprep.subr.bf16.mxu0 0
  %3356 = vmatpush1.bf16.msra.mxu0 %v467
  %3357 = vmatprep.subr.bf16.mxu0 0
  %3358 = vmatpush1.bf16.msra.mxu0 %v466
  %3359 = vmatprep.subr.bf16.mxu0 0
  %3360 = vmatpush1.bf16.msra.mxu0 %v465
  %3361 = vmatprep.subr.bf16.mxu0 0
  %3362 = vmatpush1.bf16.msra.mxu0 %v464
  %3363 = vmatprep.subr.bf16.mxu0 0
  %3364 = vmatpush1.bf16.msra.mxu0 %v463
  %3365 = vmatprep.subr.bf16.mxu0 0
  %3366 = vmatpush1.bf16.msra.mxu0 %v462
  %3367 = vmatprep.subr.bf16.mxu0 0
  %3368 = vmatpush1.bf16.msra.mxu0 %v461
  %3369 = vmatprep.subr.bf16.mxu0 0
  %3370 = vmatpush2.bf16.msra.mxu0 0
  %3371 = vmatprep.subr.bf16.mxu0 0
  %3372 = vmatpush2.bf16.msra.mxu0 0
  %3373 = vmatprep.subr.bf16.mxu0 0
  %3374 = vmatpush2.bf16.msra.mxu0 0
  %3375 = vmatprep.subr.bf16.mxu0 0
  %3376 = vmatpush2.bf16.msra.mxu0 0
  %3377 = vmatprep.subr.bf16.mxu0 0
  %3378 = vmatpush2.bf16.msra.mxu0 0
  %3379 = vmatprep.subr.bf16.mxu0 0
  %3380 = vmatpush2.bf16.msra.mxu0 0
  %3381 = vmatprep.subr.bf16.mxu0 0
  %3382 = vmatpush2.bf16.msra.mxu0 0
  %3383 = vmatprep.subr.bf16.mxu0 0
  %3384 = vmatpush2.bf16.msra.mxu0 0
  %3385 = vmatprep.mubr.bf16.mxu0 0
  %3386 = vmatmul.mubr.bf16.gmra.mxu0 %v3351
  %v3387 = vpop.f32.mrf.mxu0
  %v3388 = vadd.f32 0.0, %v3387
  %v3389 = vpop.f32.mrf.mxu0
  %v3390 = vpop.f32.mrf.mxu0
  %v3391 = vadd.f32 0.0, %v3390
  %v3392 = vpop.f32.mrf.mxu0
  %3393 = vmatprep.mubr.bf16.mxu0 0
  %3394 = vmatmul.mubr.bf16.gmra.mxu0 %v3352
  %v3395 = vpop.f32.mrf.mxu0
  %v3396 = vadd.f32 0.0, %v3395
  %v3397 = vpop.f32.mrf.mxu0
  %v3398 = vpop.f32.mrf.mxu0
  %v3399 = vadd.f32 0.0, %v3398
  %v3400 = vpop.f32.mrf.mxu0
  %3401 = vdwg.mxu0
  %v3402 = vpack.c.bf16 %v3391, %v3388
  %v3403 = vpack.c.bf16 %v3399, %v3396
  %s3404 = scalar_lea.vmem %s5, 960
  %v3405 = vld [vmem:[%s3404] sm:$0xf]
  %v3406 = vld [vmem:[%s3404 + $0x4] sm:$0xf]
  %v3407 = vld [vmem:[%s3404 + $0x8] sm:$0xf]
  %v3408 = vld [vmem:[%s3404 + $0xc] sm:$0xf]
  %v3409 = vld [vmem:[%s3404 + $0x10] sm:$0xf]
  %v3410 = vld [vmem:[%s3404 + $0x14] sm:$0xf]
  %v3411 = vld [vmem:[%s3404 + $0x18] sm:$0xf]
  %v3412 = vld [vmem:[%s3404 + $0x1c] sm:$0xf]
  %v3413 = vld [vmem:[%s3404 + $0x20] sm:$0xf]
  %v3414 = vld [vmem:[%s3404 + $0x24] sm:$0xf]
  %v3415 = vld [vmem:[%s3404 + $0x28] sm:$0xf]
  %v3416 = vld [vmem:[%s3404 + $0x2c] sm:$0xf]
  %v3417 = vld [vmem:[%s3404 + $0x30] sm:$0xf]
  %v3418 = vld [vmem:[%s3404 + $0x34] sm:$0xf]
  %v3419 = vld [vmem:[%s3404 + $0x38] sm:$0xf]
  %v3420 = vld [vmem:[%s3404 + $0x3c] sm:$0xf]
  %v3437 = vunpack.c.l.b16 %v3405
  %v3438 = vunpack.c.l.b16 %v3406
  %v3439 = vunpack.c.l.b16 %v3407
  %v3440 = vunpack.c.l.b16 %v3408
  %v3441 = vunpack.c.l.b16 %v3409
  %v3442 = vunpack.c.l.b16 %v3410
  %v3443 = vunpack.c.l.b16 %v3411
  %v3444 = vunpack.c.l.b16 %v3412
  %v3445 = vunpack.c.l.b16 %v3413
  %v3446 = vunpack.c.l.b16 %v3414
  %v3447 = vunpack.c.l.b16 %v3415
  %v3448 = vunpack.c.l.b16 %v3416
  %v3449 = vunpack.c.l.b16 %v3417
  %v3450 = vunpack.c.l.b16 %v3418
  %v3451 = vunpack.c.l.b16 %v3419
  %v3452 = vunpack.c.l.b16 %v3420
  %v3453 = vpack.c.b16 %v3438, %v3437
  %v3454 = vpack.c.b16 %v3440, %v3439
  %v3455 = vpack.c.b16 %v3442, %v3441
  %v3456 = vpack.c.b16 %v3444, %v3443
  %v3457 = vpack.c.b16 %v3446, %v3445
  %v3458 = vpack.c.b16 %v3448, %v3447
  %v3459 = vpack.c.b16 %v3450, %v3449
  %v3460 = vpack.c.b16 %v3452, %v3451
  %3469 = vmatprep.subr.bf16.mxu0 0
  %3470 = vmatpush1.bf16.msra.mxu0 %v3460
  %3471 = vmatprep.subr.bf16.mxu0 0
  %3472 = vmatpush1.bf16.msra.mxu0 %v3459
  %3473 = vmatprep.subr.bf16.mxu0 0
  %3474 = vmatpush1.bf16.msra.mxu0 %v3458
  %3475 = vmatprep.subr.bf16.mxu0 0
  %3476 = vmatpush1.bf16.msra.mxu0 %v3457
  %3477 = vmatprep.subr.bf16.mxu0 0
  %3478 = vmatpush1.bf16.msra.mxu0 %v3456
  %3479 = vmatprep.subr.bf16.mxu0 0
  %3480 = vmatpush1.bf16.msra.mxu0 %v3455
  %3481 = vmatprep.subr.bf16.mxu0 0
  %3482 = vmatpush1.bf16.msra.mxu0 %v3454
  %3483 = vmatprep.subr.bf16.mxu0 0
  %3484 = vmatpush1.bf16.msra.mxu0 %v3453
  %3485 = vmatprep.subr.bf16.mxu0 0
  %3486 = vmatpush2.bf16.msra.mxu0 0
  %3487 = vmatprep.subr.bf16.mxu0 0
  %3488 = vmatpush2.bf16.msra.mxu0 0
  %3489 = vmatprep.subr.bf16.mxu0 0
  %3490 = vmatpush2.bf16.msra.mxu0 0
  %3491 = vmatprep.subr.bf16.mxu0 0
  %3492 = vmatpush2.bf16.msra.mxu0 0
  %3493 = vmatprep.subr.bf16.mxu0 0
  %3494 = vmatpush2.bf16.msra.mxu0 0
  %3495 = vmatprep.subr.bf16.mxu0 0
  %3496 = vmatpush2.bf16.msra.mxu0 0
  %3497 = vmatprep.subr.bf16.mxu0 0
  %3498 = vmatpush2.bf16.msra.mxu0 0
  %3499 = vmatprep.subr.bf16.mxu0 0
  %3500 = vmatpush2.bf16.msra.mxu0 0
  %3501 = vmatprep.mubr.bf16.mxu0 0
  %3502 = vmatmul.mubr.bf16.gmra.mxu0 %v3402
  %v3503 = vpop.f32.mrf.mxu0
  %v3504 = vadd.f32 0.0, %v3503
  %v3505 = vpop.f32.mrf.mxu0
  %v3506 = vpop.f32.mrf.mxu0
  %v3507 = vadd.f32 0.0, %v3506
  %v3508 = vpop.f32.mrf.mxu0
  %3509 = vmatprep.mubr.bf16.mxu0 0
  %3510 = vmatmul.mubr.bf16.gmra.mxu0 %v3403
  %v3511 = vpop.f32.mrf.mxu0
  %v3512 = vadd.f32 0.0, %v3511
  %v3513 = vpop.f32.mrf.mxu0
  %v3514 = vpop.f32.mrf.mxu0
  %v3515 = vadd.f32 0.0, %v3514
  %v3516 = vpop.f32.mrf.mxu0
  %3517 = vdwg.mxu0
  %v3518 = vadd.f32 %v3327, %v3504
  %v3519 = vadd.f32 %v3328, %v3507
  %v3520 = vadd.f32 %v3329, %v3512
  %v3521 = vadd.f32 %v3330, %v3515
  %vm3522 = vcmp.ge.f32.partialorder %v3518, 0.0
  %vm3523 = vcmp.ge.f32.partialorder %v3519, 0.0
  %vm3524 = vcmp.ge.f32.partialorder %v3520, 0.0
  %vm3525 = vcmp.ge.f32.partialorder %v3521, 0.0
  %v3526 = vmul.f32 %v3518, 0.2
  %v3527 = vmul.f32 %v3519, 0.2
  %v3528 = vmul.f32 %v3520, 0.2
  %v3529 = vmul.f32 %v3521, 0.2
  %v3530 = vsel %vm3522, %v3518, %v3526
  %v3531 = vsel %vm3523, %v3519, %v3527
  %v3532 = vsel %vm3524, %v3520, %v3528
  %v3533 = vsel %vm3525, %v3521, %v3529
  %v3534 = vadd.f32 %v3530, %v3531
  %v3535 = vadd.f32 %v3534, %v3532
  %v3536 = vadd.f32 %v3535, %v3533
  %v3537 = vrot.slane %v3536, 4
  %v3538 = vadd.f32 %v3536, %v3537
  %v3539 = vrot.slane %v3538, 2
  %v3540 = vadd.f32 %v3538, %v3539
  %v3541 = vrot.slane %v3540, 1
  %v3542 = vadd.f32 %v3540, %v3541
  %v3543 = vmul.f32 %v3542, 0.03125
  %v3544 = vsub.f32 %v3530, %v3543
  %v3545 = vsub.f32 %v3531, %v3543
  %v3546 = vsub.f32 %v3532, %v3543
  %v3547 = vsub.f32 %v3533, %v3543
  %v3548 = vmul.f32 %v3544, %v3544
  %v3549 = vmul.f32 %v3545, %v3545
  %v3550 = vmul.f32 %v3546, %v3546
  %v3551 = vmul.f32 %v3547, %v3547
  %v3552 = vadd.f32 %v3548, %v3549
  %v3553 = vadd.f32 %v3552, %v3550
  %v3554 = vadd.f32 %v3553, %v3551
  %v3555 = vrot.slane %v3554, 4
  %v3556 = vadd.f32 %v3554, %v3555
  %v3557 = vrot.slane %v3556, 2
  %v3558 = vadd.f32 %v3556, %v3557
  %v3559 = vrot.slane %v3558, 1
  %v3560 = vadd.f32 %v3558, %v3559
  %v3561 = vmul.f32 %v3560, 0.03125
  %v3562 = vadd.f32 %v3561, 1e-05
  %v3563 = vrsqrt.pop %v3562
  %v3564 = vmul.f32 %v3544, %v3563
  %v3565 = vmul.f32 %v3545, %v3563
  %v3566 = vmul.f32 %v3546, %v3563
  %v3567 = vmul.f32 %v3547, %v3563
  %v3568 = vld [vmem:[%s6] sm:$0x1]
  %v3570 = vlaneseq
  %v3571 = vshrl.u32 %v3570, 7
  %v3572 = vsub.s32 0, %v3571
  %v3573 = vrot.slane %v3568, %v3572
  %v3575 = vmul.f32 %v3564, %v3573
  %v3576 = vmul.f32 %v3565, %v3573
  %v3577 = vmul.f32 %v3566, %v3573
  %v3578 = vmul.f32 %v3567, %v3573
  %v3579 = vld [vmem:[%s7] sm:$0x1]
  %v3581 = vlaneseq
  %v3582 = vshrl.u32 %v3581, 7
  %v3583 = vsub.s32 0, %v3582
  %v3584 = vrot.slane %v3579, %v3583
  %v3586 = vadd.f32 %v3575, %v3584
  %v3587 = vadd.f32 %v3576, %v3584
  %v3588 = vadd.f32 %v3577, %v3584
  %v3589 = vadd.f32 %v3578, %v3584
  %v3590 = vpack.c.bf16 %v3587, %v3586
  %v3591 = vpack.c.bf16 %v3589, %v3588
  %v3592 = vld [vmem:[%s8] sm:$0xff]
  %3593 = vset.pattern.permute.xlu0 0
  %3594 = vperm.xlu0 %3593, %v3592
  %v3595 = vpop.permute.xlu0 %3594
  %vm3596 = vcmp.eq.s32.totalorder %v470, %v3595
  %v3597 = vsel %vm3596, 1.0, 0.0
  %v3598 = vpack.c.bf16 %v3597, %v3597
  %vm3599 = vcmask 261120
  %v3601 = vsel %vm3599, %v3598, 0
  %3603 = vmatprep.subr.bf16.mxu0 0
  %3604 = vmatpush1.bf16.msra.mxu0 0
  %3605 = vmatprep.subr.bf16.mxu0 0
  %3606 = vmatpush1.bf16.msra.mxu0 0
  %3607 = vmatprep.subr.bf16.mxu0 0
  %3608 = vmatpush1.bf16.msra.mxu0 0
  %3609 = vmatprep.subr.bf16.mxu0 0
  %3610 = vmatpush1.bf16.msra.mxu0 0
  %3611 = vmatprep.subr.bf16.mxu0 0
  %3612 = vmatpush1.bf16.msra.mxu0 0
  %3613 = vmatprep.subr.bf16.mxu0 0
  %3614 = vmatpush1.bf16.msra.mxu0 0
  %3615 = vmatprep.subr.bf16.mxu0 0
  %3616 = vmatpush1.bf16.msra.mxu0 %v3591
  %3617 = vmatprep.subr.bf16.mxu0 0
  %3618 = vmatpush1.bf16.msra.mxu0 %v3590
  %3619 = vmatprep.subr.bf16.mxu0 0
  %3620 = vmatpush2.bf16.msra.mxu0 0
  %3621 = vmatprep.subr.bf16.mxu0 0
  %3622 = vmatpush2.bf16.msra.mxu0 0
  %3623 = vmatprep.subr.bf16.mxu0 0
  %3624 = vmatpush2.bf16.msra.mxu0 0
  %3625 = vmatprep.subr.bf16.mxu0 0
  %3626 = vmatpush2.bf16.msra.mxu0 0
  %3627 = vmatprep.subr.bf16.mxu0 0
  %3628 = vmatpush2.bf16.msra.mxu0 0
  %3629 = vmatprep.subr.bf16.mxu0 0
  %3630 = vmatpush2.bf16.msra.mxu0 0
  %3631 = vmatprep.subr.bf16.mxu0 0
  %3632 = vmatpush2.bf16.msra.mxu0 0
  %3633 = vmatprep.subr.bf16.mxu0 0
  %3634 = vmatpush2.bf16.msra.mxu0 0
  %3635 = vmatprep.mubr.bf16.mxu0 0
  %3636 = vmatmul.mubr.bf16.gmra.mxu0 %v3601
  %v3637 = vpop.f32.mrf.mxu0
  %v3638 = vadd.f32 0.0, %v3637
  %v3639 = vpop.f32.mrf.mxu0
  %v3640 = vpop.f32.mrf.mxu0
  %v3641 = vpop.f32.mrf.mxu0
  %3642 = vdwg.mxu0
  %v3643 = vpack.c.bf16 %v3638, %v3638
  %v3644 = vld [vmem:[%s9] sm:$0xf]
  %v3645 = vld [vmem:[%s9 + $0x4] sm:$0xf]
  %v3646 = vld [vmem:[%s9 + $0x8] sm:$0xf]
  %v3647 = vld [vmem:[%s9 + $0xc] sm:$0xf]
  %v3648 = vld [vmem:[%s9 + $0x10] sm:$0xf]
  %v3649 = vld [vmem:[%s9 + $0x14] sm:$0xf]
  %v3650 = vld [vmem:[%s9 + $0x18] sm:$0xf]
  %v3651 = vld [vmem:[%s9 + $0x1c] sm:$0xf]
  %v3652 = vld [vmem:[%s9 + $0x20] sm:$0xf]
  %v3653 = vld [vmem:[%s9 + $0x24] sm:$0xf]
  %v3654 = vld [vmem:[%s9 + $0x28] sm:$0xf]
  %v3655 = vld [vmem:[%s9 + $0x2c] sm:$0xf]
  %v3656 = vld [vmem:[%s9 + $0x30] sm:$0xf]
  %v3657 = vld [vmem:[%s9 + $0x34] sm:$0xf]
  %v3658 = vld [vmem:[%s9 + $0x38] sm:$0xf]
  %v3659 = vld [vmem:[%s9 + $0x3c] sm:$0xf]
  %3660 = vset.pattern.permute.xlu0 1
  %3661 = vperm.xlu0 %3660, %v3592
  %v3662 = vpop.permute.xlu0 %3661
  %vm3663 = vcmp.eq.s32.totalorder %v470, %v3662
  %v3664 = vsel %vm3663, 1.0, 0.0
  %v3665 = vpack.c.bf16 %v3664, %v3664
  %v3667 = vsel %vm3599, %v3665, 0
  %3669 = vmatprep.subr.bf16.mxu0 0
  %3670 = vmatpush1.bf16.msra.mxu0 0
  %3671 = vmatprep.subr.bf16.mxu0 0
  %3672 = vmatpush1.bf16.msra.mxu0 0
  %3673 = vmatprep.subr.bf16.mxu0 0
  %3674 = vmatpush1.bf16.msra.mxu0 0
  %3675 = vmatprep.subr.bf16.mxu0 0
  %3676 = vmatpush1.bf16.msra.mxu0 0
  %3677 = vmatprep.subr.bf16.mxu0 0
  %3678 = vmatpush1.bf16.msra.mxu0 0
  %3679 = vmatprep.subr.bf16.mxu0 0
  %3680 = vmatpush1.bf16.msra.mxu0 0
  %3681 = vmatprep.subr.bf16.mxu0 0
  %3682 = vmatpush1.bf16.msra.mxu0 %v3591
  %3683 = vmatprep.subr.bf16.mxu0 0
  %3684 = vmatpush1.bf16.msra.mxu0 %v3590
  %3685 = vmatprep.subr.bf16.mxu0 0
  %3686 = vmatpush2.bf16.msra.mxu0 0
  %3687 = vmatprep.subr.bf16.mxu0 0
  %3688 = vmatpush2.bf16.msra.mxu0 0
  %3689 = vmatprep.subr.bf16.mxu0 0
  %3690 = vmatpush2.bf16.msra.mxu0 0
  %3691 = vmatprep.subr.bf16.mxu0 0
  %3692 = vmatpush2.bf16.msra.mxu0 0
  %3693 = vmatprep.subr.bf16.mxu0 0
  %3694 = vmatpush2.bf16.msra.mxu0 0
  %3695 = vmatprep.subr.bf16.mxu0 0
  %3696 = vmatpush2.bf16.msra.mxu0 0
  %3697 = vmatprep.subr.bf16.mxu0 0
  %3698 = vmatpush2.bf16.msra.mxu0 0
  %3699 = vmatprep.subr.bf16.mxu0 0
  %3700 = vmatpush2.bf16.msra.mxu0 0
  %3701 = vmatprep.mubr.bf16.mxu0 0
  %3702 = vmatmul.mubr.bf16.gmra.mxu0 %v3667
  %v3703 = vpop.f32.mrf.mxu0
  %v3704 = vadd.f32 0.0, %v3703
  %v3705 = vpop.f32.mrf.mxu0
  %v3706 = vpop.f32.mrf.mxu0
  %v3707 = vpop.f32.mrf.mxu0
  %3708 = vdwg.mxu0
  %v3709 = vpack.c.bf16 %v3704, %v3704
  %s3710 = scalar_lea.vmem %s9, 64
  %v3711 = vld [vmem:[%s3710] sm:$0xf]
  %v3712 = vld [vmem:[%s3710 + $0x4] sm:$0xf]
  %v3713 = vld [vmem:[%s3710 + $0x8] sm:$0xf]
  %v3714 = vld [vmem:[%s3710 + $0xc] sm:$0xf]
  %v3715 = vld [vmem:[%s3710 + $0x10] sm:$0xf]
  %v3716 = vld [vmem:[%s3710 + $0x14] sm:$0xf]
  %v3717 = vld [vmem:[%s3710 + $0x18] sm:$0xf]
  %v3718 = vld [vmem:[%s3710 + $0x1c] sm:$0xf]
  %v3719 = vld [vmem:[%s3710 + $0x20] sm:$0xf]
  %v3720 = vld [vmem:[%s3710 + $0x24] sm:$0xf]
  %v3721 = vld [vmem:[%s3710 + $0x28] sm:$0xf]
  %v3722 = vld [vmem:[%s3710 + $0x2c] sm:$0xf]
  %v3723 = vld [vmem:[%s3710 + $0x30] sm:$0xf]
  %v3724 = vld [vmem:[%s3710 + $0x34] sm:$0xf]
  %v3725 = vld [vmem:[%s3710 + $0x38] sm:$0xf]
  %v3726 = vld [vmem:[%s3710 + $0x3c] sm:$0xf]
  %v3743 = vunpack.c.l.b16 %v3711
  %v3744 = vunpack.c.l.b16 %v3712
  %v3745 = vunpack.c.l.b16 %v3713
  %v3746 = vunpack.c.l.b16 %v3714
  %v3747 = vunpack.c.l.b16 %v3715
  %v3748 = vunpack.c.l.b16 %v3716
  %v3749 = vunpack.c.l.b16 %v3717
  %v3750 = vunpack.c.l.b16 %v3718
  %v3751 = vunpack.c.l.b16 %v3719
  %v3752 = vunpack.c.l.b16 %v3720
  %v3753 = vunpack.c.l.b16 %v3721
  %v3754 = vunpack.c.l.b16 %v3722
  %v3755 = vunpack.c.l.b16 %v3723
  %v3756 = vunpack.c.l.b16 %v3724
  %v3757 = vunpack.c.l.b16 %v3725
  %v3758 = vunpack.c.l.b16 %v3726
  %v3759 = vpack.c.b16 %v3744, %v3743
  %v3760 = vpack.c.b16 %v3746, %v3745
  %v3761 = vpack.c.b16 %v3748, %v3747
  %v3762 = vpack.c.b16 %v3750, %v3749
  %v3763 = vpack.c.b16 %v3752, %v3751
  %v3764 = vpack.c.b16 %v3754, %v3753
  %v3765 = vpack.c.b16 %v3756, %v3755
  %v3766 = vpack.c.b16 %v3758, %v3757
  %3775 = vmatprep.subr.bf16.mxu0 0
  %3776 = vmatpush1.bf16.msra.mxu0 %v3766
  %3777 = vmatprep.subr.bf16.mxu0 0
  %3778 = vmatpush1.bf16.msra.mxu0 %v3765
  %3779 = vmatprep.subr.bf16.mxu0 0
  %3780 = vmatpush1.bf16.msra.mxu0 %v3764
  %3781 = vmatprep.subr.bf16.mxu0 0
  %3782 = vmatpush1.bf16.msra.mxu0 %v3763
  %3783 = vmatprep.subr.bf16.mxu0 0
  %3784 = vmatpush1.bf16.msra.mxu0 %v3762
  %3785 = vmatprep.subr.bf16.mxu0 0
  %3786 = vmatpush1.bf16.msra.mxu0 %v3761
  %3787 = vmatprep.subr.bf16.mxu0 0
  %3788 = vmatpush1.bf16.msra.mxu0 %v3760
  %3789 = vmatprep.subr.bf16.mxu0 0
  %3790 = vmatpush1.bf16.msra.mxu0 %v3759
  %3791 = vmatprep.subr.bf16.mxu0 0
  %3792 = vmatpush2.bf16.msra.mxu0 0
  %3793 = vmatprep.subr.bf16.mxu0 0
  %3794 = vmatpush2.bf16.msra.mxu0 0
  %3795 = vmatprep.subr.bf16.mxu0 0
  %3796 = vmatpush2.bf16.msra.mxu0 0
  %3797 = vmatprep.subr.bf16.mxu0 0
  %3798 = vmatpush2.bf16.msra.mxu0 0
  %3799 = vmatprep.subr.bf16.mxu0 0
  %3800 = vmatpush2.bf16.msra.mxu0 0
  %3801 = vmatprep.subr.bf16.mxu0 0
  %3802 = vmatpush2.bf16.msra.mxu0 0
  %3803 = vmatprep.subr.bf16.mxu0 0
  %3804 = vmatpush2.bf16.msra.mxu0 0
  %3805 = vmatprep.subr.bf16.mxu0 0
  %3806 = vmatpush2.bf16.msra.mxu0 0
  %3807 = vmatprep.mubr.bf16.mxu0 0
  %3808 = vmatmul.mubr.bf16.gmra.mxu0 %v3709
  %v3809 = vpop.f32.mrf.mxu0
  %v3810 = vadd.f32 0.0, %v3809
  %v3811 = vpop.f32.mrf.mxu0
  %v3812 = vpop.f32.mrf.mxu0
  %v3813 = vpop.f32.mrf.mxu0
  %3814 = vdwg.mxu0
  %v3831 = vunpack.c.l.b16 %v3644
  %v3832 = vunpack.c.l.b16 %v3645
  %v3833 = vunpack.c.l.b16 %v3646
  %v3834 = vunpack.c.l.b16 %v3647
  %v3835 = vunpack.c.l.b16 %v3648
  %v3836 = vunpack.c.l.b16 %v3649
  %v3837 = vunpack.c.l.b16 %v3650
  %v3838 = vunpack.c.l.b16 %v3651
  %v3839 = vunpack.c.l.b16 %v3652
  %v3840 = vunpack.c.l.b16 %v3653
  %v3841 = vunpack.c.l.b16 %v3654
  %v3842 = vunpack.c.l.b16 %v3655
  %v3843 = vunpack.c.l.b16 %v3656
  %v3844 = vunpack.c.l.b16 %v3657
  %v3845 = vunpack.c.l.b16 %v3658
  %v3846 = vunpack.c.l.b16 %v3659
  %v3847 = vpack.c.b16 %v3832, %v3831
  %v3848 = vpack.c.b16 %v3834, %v3833
  %v3849 = vpack.c.b16 %v3836, %v3835
  %v3850 = vpack.c.b16 %v3838, %v3837
  %v3851 = vpack.c.b16 %v3840, %v3839
  %v3852 = vpack.c.b16 %v3842, %v3841
  %v3853 = vpack.c.b16 %v3844, %v3843
  %v3854 = vpack.c.b16 %v3846, %v3845
  %3863 = vmatprep.subr.bf16.mxu0 0
  %3864 = vmatpush1.bf16.msra.mxu0 %v3854
  %3865 = vmatprep.subr.bf16.mxu0 0
  %3866 = vmatpush1.bf16.msra.mxu0 %v3853
  %3867 = vmatprep.subr.bf16.mxu0 0
  %3868 = vmatpush1.bf16.msra.mxu0 %v3852
  %3869 = vmatprep.subr.bf16.mxu0 0
  %3870 = vmatpush1.bf16.msra.mxu0 %v3851
  %3871 = vmatprep.subr.bf16.mxu0 0
  %3872 = vmatpush1.bf16.msra.mxu0 %v3850
  %3873 = vmatprep.subr.bf16.mxu0 0
  %3874 = vmatpush1.bf16.msra.mxu0 %v3849
  %3875 = vmatprep.subr.bf16.mxu0 0
  %3876 = vmatpush1.bf16.msra.mxu0 %v3848
  %3877 = vmatprep.subr.bf16.mxu0 0
  %3878 = vmatpush1.bf16.msra.mxu0 %v3847
  %3879 = vmatprep.subr.bf16.mxu0 0
  %3880 = vmatpush2.bf16.msra.mxu0 0
  %3881 = vmatprep.subr.bf16.mxu0 0
  %3882 = vmatpush2.bf16.msra.mxu0 0
  %3883 = vmatprep.subr.bf16.mxu0 0
  %3884 = vmatpush2.bf16.msra.mxu0 0
  %3885 = vmatprep.subr.bf16.mxu0 0
  %3886 = vmatpush2.bf16.msra.mxu0 0
  %3887 = vmatprep.subr.bf16.mxu0 0
  %3888 = vmatpush2.bf16.msra.mxu0 0
  %3889 = vmatprep.subr.bf16.mxu0 0
  %3890 = vmatpush2.bf16.msra.mxu0 0
  %3891 = vmatprep.subr.bf16.mxu0 0
  %3892 = vmatpush2.bf16.msra.mxu0 0
  %3893 = vmatprep.subr.bf16.mxu0 0
  %3894 = vmatpush2.bf16.msra.mxu0 0
  %3895 = vmatprep.mubr.bf16.mxu0 0
  %3896 = vmatmul.mubr.bf16.gmra.mxu0 %v3643
  %v3897 = vpop.f32.mrf.mxu0
  %v3898 = vadd.f32 %v3810, %v3897
  %v3899 = vpop.f32.mrf.mxu0
  %v3900 = vpop.f32.mrf.mxu0
  %v3901 = vpop.f32.mrf.mxu0
  %3902 = vdwg.mxu0
  %3903 = vset.pattern.permute.xlu0 2
  %3904 = vperm.xlu0 %3903, %v3592
  %v3905 = vpop.permute.xlu0 %3904
  %vm3906 = vcmp.eq.s32.totalorder %v470, %v3905
  %v3907 = vsel %vm3906, 1.0, 0.0
  %v3908 = vpack.c.bf16 %v3907, %v3907
  %v3910 = vsel %vm3599, %v3908, 0
  %3912 = vmatprep.subr.bf16.mxu0 0
  %3913 = vmatpush1.bf16.msra.mxu0 0
  %3914 = vmatprep.subr.bf16.mxu0 0
  %3915 = vmatpush1.bf16.msra.mxu0 0
  %3916 = vmatprep.subr.bf16.mxu0 0
  %3917 = vmatpush1.bf16.msra.mxu0 0
  %3918 = vmatprep.subr.bf16.mxu0 0
  %3919 = vmatpush1.bf16.msra.mxu0 0
  %3920 = vmatprep.subr.bf16.mxu0 0
  %3921 = vmatpush1.bf16.msra.mxu0 0
  %3922 = vmatprep.subr.bf16.mxu0 0
  %3923 = vmatpush1.bf16.msra.mxu0 0
  %3924 = vmatprep.subr.bf16.mxu0 0
  %3925 = vmatpush1.bf16.msra.mxu0 %v3591
  %3926 = vmatprep.subr.bf16.mxu0 0
  %3927 = vmatpush1.bf16.msra.mxu0 %v3590
  %3928 = vmatprep.subr.bf16.mxu0 0
  %3929 = vmatpush2.bf16.msra.mxu0 0
  %3930 = vmatprep.subr.bf16.mxu0 0
  %3931 = vmatpush2.bf16.msra.mxu0 0
  %3932 = vmatprep.subr.bf16.mxu0 0
  %3933 = vmatpush2.bf16.msra.mxu0 0
  %3934 = vmatprep.subr.bf16.mxu0 0
  %3935 = vmatpush2.bf16.msra.mxu0 0
  %3936 = vmatprep.subr.bf16.mxu0 0
  %3937 = vmatpush2.bf16.msra.mxu0 0
  %3938 = vmatprep.subr.bf16.mxu0 0
  %3939 = vmatpush2.bf16.msra.mxu0 0
  %3940 = vmatprep.subr.bf16.mxu0 0
  %3941 = vmatpush2.bf16.msra.mxu0 0
  %3942 = vmatprep.subr.bf16.mxu0 0
  %3943 = vmatpush2.bf16.msra.mxu0 0
  %3944 = vmatprep.mubr.bf16.mxu0 0
  %3945 = vmatmul.mubr.bf16.gmra.mxu0 %v3910
  %v3946 = vpop.f32.mrf.mxu0
  %v3947 = vadd.f32 0.0, %v3946
  %v3948 = vpop.f32.mrf.mxu0
  %v3949 = vpop.f32.mrf.mxu0
  %v3950 = vpop.f32.mrf.mxu0
  %3951 = vdwg.mxu0
  %v3952 = vpack.c.bf16 %v3947, %v3947
  %s3953 = scalar_lea.vmem %s9, 128
  %v3954 = vld [vmem:[%s3953] sm:$0xf]
  %v3955 = vld [vmem:[%s3953 + $0x4] sm:$0xf]
  %v3956 = vld [vmem:[%s3953 + $0x8] sm:$0xf]
  %v3957 = vld [vmem:[%s3953 + $0xc] sm:$0xf]
  %v3958 = vld [vmem:[%s3953 + $0x10] sm:$0xf]
  %v3959 = vld [vmem:[%s3953 + $0x14] sm:$0xf]
  %v3960 = vld [vmem:[%s3953 + $0x18] sm:$0xf]
  %v3961 = vld [vmem:[%s3953 + $0x1c] sm:$0xf]
  %v3962 = vld [vmem:[%s3953 + $0x20] sm:$0xf]
  %v3963 = vld [vmem:[%s3953 + $0x24] sm:$0xf]
  %v3964 = vld [vmem:[%s3953 + $0x28] sm:$0xf]
  %v3965 = vld [vmem:[%s3953 + $0x2c] sm:$0xf]
  %v3966 = vld [vmem:[%s3953 + $0x30] sm:$0xf]
  %v3967 = vld [vmem:[%s3953 + $0x34] sm:$0xf]
  %v3968 = vld [vmem:[%s3953 + $0x38] sm:$0xf]
  %v3969 = vld [vmem:[%s3953 + $0x3c] sm:$0xf]
  %v3986 = vunpack.c.l.b16 %v3954
  %v3987 = vunpack.c.l.b16 %v3955
  %v3988 = vunpack.c.l.b16 %v3956
  %v3989 = vunpack.c.l.b16 %v3957
  %v3990 = vunpack.c.l.b16 %v3958
  %v3991 = vunpack.c.l.b16 %v3959
  %v3992 = vunpack.c.l.b16 %v3960
  %v3993 = vunpack.c.l.b16 %v3961
  %v3994 = vunpack.c.l.b16 %v3962
  %v3995 = vunpack.c.l.b16 %v3963
  %v3996 = vunpack.c.l.b16 %v3964
  %v3997 = vunpack.c.l.b16 %v3965
  %v3998 = vunpack.c.l.b16 %v3966
  %v3999 = vunpack.c.l.b16 %v3967
  %v4000 = vunpack.c.l.b16 %v3968
  %v4001 = vunpack.c.l.b16 %v3969
  %v4002 = vpack.c.b16 %v3987, %v3986
  %v4003 = vpack.c.b16 %v3989, %v3988
  %v4004 = vpack.c.b16 %v3991, %v3990
  %v4005 = vpack.c.b16 %v3993, %v3992
  %v4006 = vpack.c.b16 %v3995, %v3994
  %v4007 = vpack.c.b16 %v3997, %v3996
  %v4008 = vpack.c.b16 %v3999, %v3998
  %v4009 = vpack.c.b16 %v4001, %v4000
  %4018 = vmatprep.subr.bf16.mxu0 0
  %4019 = vmatpush1.bf16.msra.mxu0 %v4009
  %4020 = vmatprep.subr.bf16.mxu0 0
  %4021 = vmatpush1.bf16.msra.mxu0 %v4008
  %4022 = vmatprep.subr.bf16.mxu0 0
  %4023 = vmatpush1.bf16.msra.mxu0 %v4007
  %4024 = vmatprep.subr.bf16.mxu0 0
  %4025 = vmatpush1.bf16.msra.mxu0 %v4006
  %4026 = vmatprep.subr.bf16.mxu0 0
  %4027 = vmatpush1.bf16.msra.mxu0 %v4005
  %4028 = vmatprep.subr.bf16.mxu0 0
  %4029 = vmatpush1.bf16.msra.mxu0 %v4004
  %4030 = vmatprep.subr.bf16.mxu0 0
  %4031 = vmatpush1.bf16.msra.mxu0 %v4003
  %4032 = vmatprep.subr.bf16.mxu0 0
  %4033 = vmatpush1.bf16.msra.mxu0 %v4002
  %4034 = vmatprep.subr.bf16.mxu0 0
  %4035 = vmatpush2.bf16.msra.mxu0 0
  %4036 = vmatprep.subr.bf16.mxu0 0
  %4037 = vmatpush2.bf16.msra.mxu0 0
  %4038 = vmatprep.subr.bf16.mxu0 0
  %4039 = vmatpush2.bf16.msra.mxu0 0
  %4040 = vmatprep.subr.bf16.mxu0 0
  %4041 = vmatpush2.bf16.msra.mxu0 0
  %4042 = vmatprep.subr.bf16.mxu0 0
  %4043 = vmatpush2.bf16.msra.mxu0 0
  %4044 = vmatprep.subr.bf16.mxu0 0
  %4045 = vmatpush2.bf16.msra.mxu0 0
  %4046 = vmatprep.subr.bf16.mxu0 0
  %4047 = vmatpush2.bf16.msra.mxu0 0
  %4048 = vmatprep.subr.bf16.mxu0 0
  %4049 = vmatpush2.bf16.msra.mxu0 0
  %4050 = vmatprep.mubr.bf16.mxu0 0
  %4051 = vmatmul.mubr.bf16.gmra.mxu0 %v3952
  %v4052 = vpop.f32.mrf.mxu0
  %v4053 = vadd.f32 0.0, %v4052
  %v4054 = vpop.f32.mrf.mxu0
  %v4055 = vpop.f32.mrf.mxu0
  %v4056 = vpop.f32.mrf.mxu0
  %4057 = vdwg.mxu0
  %v4058 = vadd.f32 %v3898, %v4053
  %4059 = vset.pattern.permute.xlu0 3
  %4060 = vperm.xlu0 %4059, %v3592
  %v4061 = vpop.permute.xlu0 %4060
  %vm4062 = vcmp.eq.s32.totalorder %v470, %v4061
  %v4063 = vsel %vm4062, 1.0, 0.0
  %v4064 = vpack.c.bf16 %v4063, %v4063
  %v4066 = vsel %vm3599, %v4064, 0
  %4068 = vmatprep.subr.bf16.mxu0 0
  %4069 = vmatpush1.bf16.msra.mxu0 0
  %4070 = vmatprep.subr.bf16.mxu0 0
  %4071 = vmatpush1.bf16.msra.mxu0 0
  %4072 = vmatprep.subr.bf16.mxu0 0
  %4073 = vmatpush1.bf16.msra.mxu0 0
  %4074 = vmatprep.subr.bf16.mxu0 0
  %4075 = vmatpush1.bf16.msra.mxu0 0
  %4076 = vmatprep.subr.bf16.mxu0 0
  %4077 = vmatpush1.bf16.msra.mxu0 0
  %4078 = vmatprep.subr.bf16.mxu0 0
  %4079 = vmatpush1.bf16.msra.mxu0 0
  %4080 = vmatprep.subr.bf16.mxu0 0
  %4081 = vmatpush1.bf16.msra.mxu0 %v3591
  %4082 = vmatprep.subr.bf16.mxu0 0
  %4083 = vmatpush1.bf16.msra.mxu0 %v3590
  %4084 = vmatprep.subr.bf16.mxu0 0
  %4085 = vmatpush2.bf16.msra.mxu0 0
  %4086 = vmatprep.subr.bf16.mxu0 0
  %4087 = vmatpush2.bf16.msra.mxu0 0
  %4088 = vmatprep.subr.bf16.mxu0 0
  %4089 = vmatpush2.bf16.msra.mxu0 0
  %4090 = vmatprep.subr.bf16.mxu0 0
  %4091 = vmatpush2.bf16.msra.mxu0 0
  %4092 = vmatprep.subr.bf16.mxu0 0
  %4093 = vmatpush2.bf16.msra.mxu0 0
  %4094 = vmatprep.subr.bf16.mxu0 0
  %4095 = vmatpush2.bf16.msra.mxu0 0
  %4096 = vmatprep.subr.bf16.mxu0 0
  %4097 = vmatpush2.bf16.msra.mxu0 0
  %4098 = vmatprep.subr.bf16.mxu0 0
  %4099 = vmatpush2.bf16.msra.mxu0 0
  %4100 = vmatprep.mubr.bf16.mxu0 0
  %4101 = vmatmul.mubr.bf16.gmra.mxu0 %v4066
  %v4102 = vpop.f32.mrf.mxu0
  %v4103 = vadd.f32 0.0, %v4102
  %v4104 = vpop.f32.mrf.mxu0
  %v4105 = vpop.f32.mrf.mxu0
  %v4106 = vpop.f32.mrf.mxu0
  %4107 = vdwg.mxu0
  %v4108 = vpack.c.bf16 %v4103, %v4103
  %s4109 = scalar_lea.vmem %s9, 192
  %v4110 = vld [vmem:[%s4109] sm:$0xf]
  %v4111 = vld [vmem:[%s4109 + $0x4] sm:$0xf]
  %v4112 = vld [vmem:[%s4109 + $0x8] sm:$0xf]
  %v4113 = vld [vmem:[%s4109 + $0xc] sm:$0xf]
  %v4114 = vld [vmem:[%s4109 + $0x10] sm:$0xf]
  %v4115 = vld [vmem:[%s4109 + $0x14] sm:$0xf]
  %v4116 = vld [vmem:[%s4109 + $0x18] sm:$0xf]
  %v4117 = vld [vmem:[%s4109 + $0x1c] sm:$0xf]
  %v4118 = vld [vmem:[%s4109 + $0x20] sm:$0xf]
  %v4119 = vld [vmem:[%s4109 + $0x24] sm:$0xf]
  %v4120 = vld [vmem:[%s4109 + $0x28] sm:$0xf]
  %v4121 = vld [vmem:[%s4109 + $0x2c] sm:$0xf]
  %v4122 = vld [vmem:[%s4109 + $0x30] sm:$0xf]
  %v4123 = vld [vmem:[%s4109 + $0x34] sm:$0xf]
  %v4124 = vld [vmem:[%s4109 + $0x38] sm:$0xf]
  %v4125 = vld [vmem:[%s4109 + $0x3c] sm:$0xf]
  %v4142 = vunpack.c.l.b16 %v4110
  %v4143 = vunpack.c.l.b16 %v4111
  %v4144 = vunpack.c.l.b16 %v4112
  %v4145 = vunpack.c.l.b16 %v4113
  %v4146 = vunpack.c.l.b16 %v4114
  %v4147 = vunpack.c.l.b16 %v4115
  %v4148 = vunpack.c.l.b16 %v4116
  %v4149 = vunpack.c.l.b16 %v4117
  %v4150 = vunpack.c.l.b16 %v4118
  %v4151 = vunpack.c.l.b16 %v4119
  %v4152 = vunpack.c.l.b16 %v4120
  %v4153 = vunpack.c.l.b16 %v4121
  %v4154 = vunpack.c.l.b16 %v4122
  %v4155 = vunpack.c.l.b16 %v4123
  %v4156 = vunpack.c.l.b16 %v4124
  %v4157 = vunpack.c.l.b16 %v4125
  %v4158 = vpack.c.b16 %v4143, %v4142
  %v4159 = vpack.c.b16 %v4145, %v4144
  %v4160 = vpack.c.b16 %v4147, %v4146
  %v4161 = vpack.c.b16 %v4149, %v4148
  %v4162 = vpack.c.b16 %v4151, %v4150
  %v4163 = vpack.c.b16 %v4153, %v4152
  %v4164 = vpack.c.b16 %v4155, %v4154
  %v4165 = vpack.c.b16 %v4157, %v4156
  %4174 = vmatprep.subr.bf16.mxu0 0
  %4175 = vmatpush1.bf16.msra.mxu0 %v4165
  %4176 = vmatprep.subr.bf16.mxu0 0
  %4177 = vmatpush1.bf16.msra.mxu0 %v4164
  %4178 = vmatprep.subr.bf16.mxu0 0
  %4179 = vmatpush1.bf16.msra.mxu0 %v4163
  %4180 = vmatprep.subr.bf16.mxu0 0
  %4181 = vmatpush1.bf16.msra.mxu0 %v4162
  %4182 = vmatprep.subr.bf16.mxu0 0
  %4183 = vmatpush1.bf16.msra.mxu0 %v4161
  %4184 = vmatprep.subr.bf16.mxu0 0
  %4185 = vmatpush1.bf16.msra.mxu0 %v4160
  %4186 = vmatprep.subr.bf16.mxu0 0
  %4187 = vmatpush1.bf16.msra.mxu0 %v4159
  %4188 = vmatprep.subr.bf16.mxu0 0
  %4189 = vmatpush1.bf16.msra.mxu0 %v4158
  %4190 = vmatprep.subr.bf16.mxu0 0
  %4191 = vmatpush2.bf16.msra.mxu0 0
  %4192 = vmatprep.subr.bf16.mxu0 0
  %4193 = vmatpush2.bf16.msra.mxu0 0
  %4194 = vmatprep.subr.bf16.mxu0 0
  %4195 = vmatpush2.bf16.msra.mxu0 0
  %4196 = vmatprep.subr.bf16.mxu0 0
  %4197 = vmatpush2.bf16.msra.mxu0 0
  %4198 = vmatprep.subr.bf16.mxu0 0
  %4199 = vmatpush2.bf16.msra.mxu0 0
  %4200 = vmatprep.subr.bf16.mxu0 0
  %4201 = vmatpush2.bf16.msra.mxu0 0
  %4202 = vmatprep.subr.bf16.mxu0 0
  %4203 = vmatpush2.bf16.msra.mxu0 0
  %4204 = vmatprep.subr.bf16.mxu0 0
  %4205 = vmatpush2.bf16.msra.mxu0 0
  %4206 = vmatprep.mubr.bf16.mxu0 0
  %4207 = vmatmul.mubr.bf16.gmra.mxu0 %v4108
  %v4208 = vpop.f32.mrf.mxu0
  %v4209 = vadd.f32 0.0, %v4208
  %v4210 = vpop.f32.mrf.mxu0
  %v4211 = vpop.f32.mrf.mxu0
  %v4212 = vpop.f32.mrf.mxu0
  %4213 = vdwg.mxu0
  %v4214 = vadd.f32 %v4058, %v4209
  %4215 = vset.pattern.permute.xlu0 4
  %4216 = vperm.xlu0 %4215, %v3592
  %v4217 = vpop.permute.xlu0 %4216
  %vm4218 = vcmp.eq.s32.totalorder %v470, %v4217
  %v4219 = vsel %vm4218, 1.0, 0.0
  %v4220 = vpack.c.bf16 %v4219, %v4219
  %v4222 = vsel %vm3599, %v4220, 0
  %4224 = vmatprep.subr.bf16.mxu0 0
  %4225 = vmatpush1.bf16.msra.mxu0 0
  %4226 = vmatprep.subr.bf16.mxu0 0
  %4227 = vmatpush1.bf16.msra.mxu0 0
  %4228 = vmatprep.subr.bf16.mxu0 0
  %4229 = vmatpush1.bf16.msra.mxu0 0
  %4230 = vmatprep.subr.bf16.mxu0 0
  %4231 = vmatpush1.bf16.msra.mxu0 0
  %4232 = vmatprep.subr.bf16.mxu0 0
  %4233 = vmatpush1.bf16.msra.mxu0 0
  %4234 = vmatprep.subr.bf16.mxu0 0
  %4235 = vmatpush1.bf16.msra.mxu0 0
  %4236 = vmatprep.subr.bf16.mxu0 0
  %4237 = vmatpush1.bf16.msra.mxu0 %v3591
  %4238 = vmatprep.subr.bf16.mxu0 0
  %4239 = vmatpush1.bf16.msra.mxu0 %v3590
  %4240 = vmatprep.subr.bf16.mxu0 0
  %4241 = vmatpush2.bf16.msra.mxu0 0
  %4242 = vmatprep.subr.bf16.mxu0 0
  %4243 = vmatpush2.bf16.msra.mxu0 0
  %4244 = vmatprep.subr.bf16.mxu0 0
  %4245 = vmatpush2.bf16.msra.mxu0 0
  %4246 = vmatprep.subr.bf16.mxu0 0
  %4247 = vmatpush2.bf16.msra.mxu0 0
  %4248 = vmatprep.subr.bf16.mxu0 0
  %4249 = vmatpush2.bf16.msra.mxu0 0
  %4250 = vmatprep.subr.bf16.mxu0 0
  %4251 = vmatpush2.bf16.msra.mxu0 0
  %4252 = vmatprep.subr.bf16.mxu0 0
  %4253 = vmatpush2.bf16.msra.mxu0 0
  %4254 = vmatprep.subr.bf16.mxu0 0
  %4255 = vmatpush2.bf16.msra.mxu0 0
  %4256 = vmatprep.mubr.bf16.mxu0 0
  %4257 = vmatmul.mubr.bf16.gmra.mxu0 %v4222
  %v4258 = vpop.f32.mrf.mxu0
  %v4259 = vadd.f32 0.0, %v4258
  %v4260 = vpop.f32.mrf.mxu0
  %v4261 = vpop.f32.mrf.mxu0
  %v4262 = vpop.f32.mrf.mxu0
  %4263 = vdwg.mxu0
  %v4264 = vpack.c.bf16 %v4259, %v4259
  %s4265 = scalar_lea.vmem %s9, 256
  %v4266 = vld [vmem:[%s4265] sm:$0xf]
  %v4267 = vld [vmem:[%s4265 + $0x4] sm:$0xf]
  %v4268 = vld [vmem:[%s4265 + $0x8] sm:$0xf]
  %v4269 = vld [vmem:[%s4265 + $0xc] sm:$0xf]
  %v4270 = vld [vmem:[%s4265 + $0x10] sm:$0xf]
  %v4271 = vld [vmem:[%s4265 + $0x14] sm:$0xf]
  %v4272 = vld [vmem:[%s4265 + $0x18] sm:$0xf]
  %v4273 = vld [vmem:[%s4265 + $0x1c] sm:$0xf]
  %v4274 = vld [vmem:[%s4265 + $0x20] sm:$0xf]
  %v4275 = vld [vmem:[%s4265 + $0x24] sm:$0xf]
  %v4276 = vld [vmem:[%s4265 + $0x28] sm:$0xf]
  %v4277 = vld [vmem:[%s4265 + $0x2c] sm:$0xf]
  %v4278 = vld [vmem:[%s4265 + $0x30] sm:$0xf]
  %v4279 = vld [vmem:[%s4265 + $0x34] sm:$0xf]
  %v4280 = vld [vmem:[%s4265 + $0x38] sm:$0xf]
  %v4281 = vld [vmem:[%s4265 + $0x3c] sm:$0xf]
  %v4298 = vunpack.c.l.b16 %v4266
  %v4299 = vunpack.c.l.b16 %v4267
  %v4300 = vunpack.c.l.b16 %v4268
  %v4301 = vunpack.c.l.b16 %v4269
  %v4302 = vunpack.c.l.b16 %v4270
  %v4303 = vunpack.c.l.b16 %v4271
  %v4304 = vunpack.c.l.b16 %v4272
  %v4305 = vunpack.c.l.b16 %v4273
  %v4306 = vunpack.c.l.b16 %v4274
  %v4307 = vunpack.c.l.b16 %v4275
  %v4308 = vunpack.c.l.b16 %v4276
  %v4309 = vunpack.c.l.b16 %v4277
  %v4310 = vunpack.c.l.b16 %v4278
  %v4311 = vunpack.c.l.b16 %v4279
  %v4312 = vunpack.c.l.b16 %v4280
  %v4313 = vunpack.c.l.b16 %v4281
  %v4314 = vpack.c.b16 %v4299, %v4298
  %v4315 = vpack.c.b16 %v4301, %v4300
  %v4316 = vpack.c.b16 %v4303, %v4302
  %v4317 = vpack.c.b16 %v4305, %v4304
  %v4318 = vpack.c.b16 %v4307, %v4306
  %v4319 = vpack.c.b16 %v4309, %v4308
  %v4320 = vpack.c.b16 %v4311, %v4310
  %v4321 = vpack.c.b16 %v4313, %v4312
  %4330 = vmatprep.subr.bf16.mxu0 0
  %4331 = vmatpush1.bf16.msra.mxu0 %v4321
  %4332 = vmatprep.subr.bf16.mxu0 0
  %4333 = vmatpush1.bf16.msra.mxu0 %v4320
  %4334 = vmatprep.subr.bf16.mxu0 0
  %4335 = vmatpush1.bf16.msra.mxu0 %v4319
  %4336 = vmatprep.subr.bf16.mxu0 0
  %4337 = vmatpush1.bf16.msra.mxu0 %v4318
  %4338 = vmatprep.subr.bf16.mxu0 0
  %4339 = vmatpush1.bf16.msra.mxu0 %v4317
  %4340 = vmatprep.subr.bf16.mxu0 0
  %4341 = vmatpush1.bf16.msra.mxu0 %v4316
  %4342 = vmatprep.subr.bf16.mxu0 0
  %4343 = vmatpush1.bf16.msra.mxu0 %v4315
  %4344 = vmatprep.subr.bf16.mxu0 0
  %4345 = vmatpush1.bf16.msra.mxu0 %v4314
  %4346 = vmatprep.subr.bf16.mxu0 0
  %4347 = vmatpush2.bf16.msra.mxu0 0
  %4348 = vmatprep.subr.bf16.mxu0 0
  %4349 = vmatpush2.bf16.msra.mxu0 0
  %4350 = vmatprep.subr.bf16.mxu0 0
  %4351 = vmatpush2.bf16.msra.mxu0 0
  %4352 = vmatprep.subr.bf16.mxu0 0
  %4353 = vmatpush2.bf16.msra.mxu0 0
  %4354 = vmatprep.subr.bf16.mxu0 0
  %4355 = vmatpush2.bf16.msra.mxu0 0
  %4356 = vmatprep.subr.bf16.mxu0 0
  %4357 = vmatpush2.bf16.msra.mxu0 0
  %4358 = vmatprep.subr.bf16.mxu0 0
  %4359 = vmatpush2.bf16.msra.mxu0 0
  %4360 = vmatprep.subr.bf16.mxu0 0
  %4361 = vmatpush2.bf16.msra.mxu0 0
  %4362 = vmatprep.mubr.bf16.mxu0 0
  %4363 = vmatmul.mubr.bf16.gmra.mxu0 %v4264
  %v4364 = vpop.f32.mrf.mxu0
  %v4365 = vadd.f32 0.0, %v4364
  %v4366 = vpop.f32.mrf.mxu0
  %v4367 = vpop.f32.mrf.mxu0
  %v4368 = vpop.f32.mrf.mxu0
  %4369 = vdwg.mxu0
  %v4370 = vadd.f32 %v4214, %v4365
  %4371 = vset.pattern.permute.xlu0 5
  %4372 = vperm.xlu0 %4371, %v3592
  %v4373 = vpop.permute.xlu0 %4372
  %vm4374 = vcmp.eq.s32.totalorder %v470, %v4373
  %v4375 = vsel %vm4374, 1.0, 0.0
  %v4376 = vpack.c.bf16 %v4375, %v4375
  %v4378 = vsel %vm3599, %v4376, 0
  %4380 = vmatprep.subr.bf16.mxu0 0
  %4381 = vmatpush1.bf16.msra.mxu0 0
  %4382 = vmatprep.subr.bf16.mxu0 0
  %4383 = vmatpush1.bf16.msra.mxu0 0
  %4384 = vmatprep.subr.bf16.mxu0 0
  %4385 = vmatpush1.bf16.msra.mxu0 0
  %4386 = vmatprep.subr.bf16.mxu0 0
  %4387 = vmatpush1.bf16.msra.mxu0 0
  %4388 = vmatprep.subr.bf16.mxu0 0
  %4389 = vmatpush1.bf16.msra.mxu0 0
  %4390 = vmatprep.subr.bf16.mxu0 0
  %4391 = vmatpush1.bf16.msra.mxu0 0
  %4392 = vmatprep.subr.bf16.mxu0 0
  %4393 = vmatpush1.bf16.msra.mxu0 %v3591
  %4394 = vmatprep.subr.bf16.mxu0 0
  %4395 = vmatpush1.bf16.msra.mxu0 %v3590
  %4396 = vmatprep.subr.bf16.mxu0 0
  %4397 = vmatpush2.bf16.msra.mxu0 0
  %4398 = vmatprep.subr.bf16.mxu0 0
  %4399 = vmatpush2.bf16.msra.mxu0 0
  %4400 = vmatprep.subr.bf16.mxu0 0
  %4401 = vmatpush2.bf16.msra.mxu0 0
  %4402 = vmatprep.subr.bf16.mxu0 0
  %4403 = vmatpush2.bf16.msra.mxu0 0
  %4404 = vmatprep.subr.bf16.mxu0 0
  %4405 = vmatpush2.bf16.msra.mxu0 0
  %4406 = vmatprep.subr.bf16.mxu0 0
  %4407 = vmatpush2.bf16.msra.mxu0 0
  %4408 = vmatprep.subr.bf16.mxu0 0
  %4409 = vmatpush2.bf16.msra.mxu0 0
  %4410 = vmatprep.subr.bf16.mxu0 0
  %4411 = vmatpush2.bf16.msra.mxu0 0
  %4412 = vmatprep.mubr.bf16.mxu0 0
  %4413 = vmatmul.mubr.bf16.gmra.mxu0 %v4378
  %v4414 = vpop.f32.mrf.mxu0
  %v4415 = vadd.f32 0.0, %v4414
  %v4416 = vpop.f32.mrf.mxu0
  %v4417 = vpop.f32.mrf.mxu0
  %v4418 = vpop.f32.mrf.mxu0
  %4419 = vdwg.mxu0
  %v4420 = vpack.c.bf16 %v4415, %v4415
  %s4421 = scalar_lea.vmem %s9, 320
  %v4422 = vld [vmem:[%s4421] sm:$0xf]
  %v4423 = vld [vmem:[%s4421 + $0x4] sm:$0xf]
  %v4424 = vld [vmem:[%s4421 + $0x8] sm:$0xf]
  %v4425 = vld [vmem:[%s4421 + $0xc] sm:$0xf]
  %v4426 = vld [vmem:[%s4421 + $0x10] sm:$0xf]
  %v4427 = vld [vmem:[%s4421 + $0x14] sm:$0xf]
  %v4428 = vld [vmem:[%s4421 + $0x18] sm:$0xf]
  %v4429 = vld [vmem:[%s4421 + $0x1c] sm:$0xf]
  %v4430 = vld [vmem:[%s4421 + $0x20] sm:$0xf]
  %v4431 = vld [vmem:[%s4421 + $0x24] sm:$0xf]
  %v4432 = vld [vmem:[%s4421 + $0x28] sm:$0xf]
  %v4433 = vld [vmem:[%s4421 + $0x2c] sm:$0xf]
  %v4434 = vld [vmem:[%s4421 + $0x30] sm:$0xf]
  %v4435 = vld [vmem:[%s4421 + $0x34] sm:$0xf]
  %v4436 = vld [vmem:[%s4421 + $0x38] sm:$0xf]
  %v4437 = vld [vmem:[%s4421 + $0x3c] sm:$0xf]
  %v4454 = vunpack.c.l.b16 %v4422
  %v4455 = vunpack.c.l.b16 %v4423
  %v4456 = vunpack.c.l.b16 %v4424
  %v4457 = vunpack.c.l.b16 %v4425
  %v4458 = vunpack.c.l.b16 %v4426
  %v4459 = vunpack.c.l.b16 %v4427
  %v4460 = vunpack.c.l.b16 %v4428
  %v4461 = vunpack.c.l.b16 %v4429
  %v4462 = vunpack.c.l.b16 %v4430
  %v4463 = vunpack.c.l.b16 %v4431
  %v4464 = vunpack.c.l.b16 %v4432
  %v4465 = vunpack.c.l.b16 %v4433
  %v4466 = vunpack.c.l.b16 %v4434
  %v4467 = vunpack.c.l.b16 %v4435
  %v4468 = vunpack.c.l.b16 %v4436
  %v4469 = vunpack.c.l.b16 %v4437
  %v4470 = vpack.c.b16 %v4455, %v4454
  %v4471 = vpack.c.b16 %v4457, %v4456
  %v4472 = vpack.c.b16 %v4459, %v4458
  %v4473 = vpack.c.b16 %v4461, %v4460
  %v4474 = vpack.c.b16 %v4463, %v4462
  %v4475 = vpack.c.b16 %v4465, %v4464
  %v4476 = vpack.c.b16 %v4467, %v4466
  %v4477 = vpack.c.b16 %v4469, %v4468
  %4486 = vmatprep.subr.bf16.mxu0 0
  %4487 = vmatpush1.bf16.msra.mxu0 %v4477
  %4488 = vmatprep.subr.bf16.mxu0 0
  %4489 = vmatpush1.bf16.msra.mxu0 %v4476
  %4490 = vmatprep.subr.bf16.mxu0 0
  %4491 = vmatpush1.bf16.msra.mxu0 %v4475
  %4492 = vmatprep.subr.bf16.mxu0 0
  %4493 = vmatpush1.bf16.msra.mxu0 %v4474
  %4494 = vmatprep.subr.bf16.mxu0 0
  %4495 = vmatpush1.bf16.msra.mxu0 %v4473
  %4496 = vmatprep.subr.bf16.mxu0 0
  %4497 = vmatpush1.bf16.msra.mxu0 %v4472
  %4498 = vmatprep.subr.bf16.mxu0 0
  %4499 = vmatpush1.bf16.msra.mxu0 %v4471
  %4500 = vmatprep.subr.bf16.mxu0 0
  %4501 = vmatpush1.bf16.msra.mxu0 %v4470
  %4502 = vmatprep.subr.bf16.mxu0 0
  %4503 = vmatpush2.bf16.msra.mxu0 0
  %4504 = vmatprep.subr.bf16.mxu0 0
  %4505 = vmatpush2.bf16.msra.mxu0 0
  %4506 = vmatprep.subr.bf16.mxu0 0
  %4507 = vmatpush2.bf16.msra.mxu0 0
  %4508 = vmatprep.subr.bf16.mxu0 0
  %4509 = vmatpush2.bf16.msra.mxu0 0
  %4510 = vmatprep.subr.bf16.mxu0 0
  %4511 = vmatpush2.bf16.msra.mxu0 0
  %4512 = vmatprep.subr.bf16.mxu0 0
  %4513 = vmatpush2.bf16.msra.mxu0 0
  %4514 = vmatprep.subr.bf16.mxu0 0
  %4515 = vmatpush2.bf16.msra.mxu0 0
  %4516 = vmatprep.subr.bf16.mxu0 0
  %4517 = vmatpush2.bf16.msra.mxu0 0
  %4518 = vmatprep.mubr.bf16.mxu0 0
  %4519 = vmatmul.mubr.bf16.gmra.mxu0 %v4420
  %v4520 = vpop.f32.mrf.mxu0
  %v4521 = vadd.f32 0.0, %v4520
  %v4522 = vpop.f32.mrf.mxu0
  %v4523 = vpop.f32.mrf.mxu0
  %v4524 = vpop.f32.mrf.mxu0
  %4525 = vdwg.mxu0
  %v4526 = vadd.f32 %v4370, %v4521
  %4527 = vset.pattern.permute.xlu0 6
  %4528 = vperm.xlu0 %4527, %v3592
  %v4529 = vpop.permute.xlu0 %4528
  %vm4530 = vcmp.eq.s32.totalorder %v470, %v4529
  %v4531 = vsel %vm4530, 1.0, 0.0
  %v4532 = vpack.c.bf16 %v4531, %v4531
  %v4534 = vsel %vm3599, %v4532, 0
  %4536 = vmatprep.subr.bf16.mxu0 0
  %4537 = vmatpush1.bf16.msra.mxu0 0
  %4538 = vmatprep.subr.bf16.mxu0 0
  %4539 = vmatpush1.bf16.msra.mxu0 0
  %4540 = vmatprep.subr.bf16.mxu0 0
  %4541 = vmatpush1.bf16.msra.mxu0 0
  %4542 = vmatprep.subr.bf16.mxu0 0
  %4543 = vmatpush1.bf16.msra.mxu0 0
  %4544 = vmatprep.subr.bf16.mxu0 0
  %4545 = vmatpush1.bf16.msra.mxu0 0
  %4546 = vmatprep.subr.bf16.mxu0 0
  %4547 = vmatpush1.bf16.msra.mxu0 0
  %4548 = vmatprep.subr.bf16.mxu0 0
  %4549 = vmatpush1.bf16.msra.mxu0 %v3591
  %4550 = vmatprep.subr.bf16.mxu0 0
  %4551 = vmatpush1.bf16.msra.mxu0 %v3590
  %4552 = vmatprep.subr.bf16.mxu0 0
  %4553 = vmatpush2.bf16.msra.mxu0 0
  %4554 = vmatprep.subr.bf16.mxu0 0
  %4555 = vmatpush2.bf16.msra.mxu0 0
  %4556 = vmatprep.subr.bf16.mxu0 0
  %4557 = vmatpush2.bf16.msra.mxu0 0
  %4558 = vmatprep.subr.bf16.mxu0 0
  %4559 = vmatpush2.bf16.msra.mxu0 0
  %4560 = vmatprep.subr.bf16.mxu0 0
  %4561 = vmatpush2.bf16.msra.mxu0 0
  %4562 = vmatprep.subr.bf16.mxu0 0
  %4563 = vmatpush2.bf16.msra.mxu0 0
  %4564 = vmatprep.subr.bf16.mxu0 0
  %4565 = vmatpush2.bf16.msra.mxu0 0
  %4566 = vmatprep.subr.bf16.mxu0 0
  %4567 = vmatpush2.bf16.msra.mxu0 0
  %4568 = vmatprep.mubr.bf16.mxu0 0
  %4569 = vmatmul.mubr.bf16.gmra.mxu0 %v4534
  %v4570 = vpop.f32.mrf.mxu0
  %v4571 = vadd.f32 0.0, %v4570
  %v4572 = vpop.f32.mrf.mxu0
  %v4573 = vpop.f32.mrf.mxu0
  %v4574 = vpop.f32.mrf.mxu0
  %4575 = vdwg.mxu0
  %v4576 = vpack.c.bf16 %v4571, %v4571
  %s4577 = scalar_lea.vmem %s9, 384
  %v4578 = vld [vmem:[%s4577] sm:$0xf]
  %v4579 = vld [vmem:[%s4577 + $0x4] sm:$0xf]
  %v4580 = vld [vmem:[%s4577 + $0x8] sm:$0xf]
  %v4581 = vld [vmem:[%s4577 + $0xc] sm:$0xf]
  %v4582 = vld [vmem:[%s4577 + $0x10] sm:$0xf]
  %v4583 = vld [vmem:[%s4577 + $0x14] sm:$0xf]
  %v4584 = vld [vmem:[%s4577 + $0x18] sm:$0xf]
  %v4585 = vld [vmem:[%s4577 + $0x1c] sm:$0xf]
  %v4586 = vld [vmem:[%s4577 + $0x20] sm:$0xf]
  %v4587 = vld [vmem:[%s4577 + $0x24] sm:$0xf]
  %v4588 = vld [vmem:[%s4577 + $0x28] sm:$0xf]
  %v4589 = vld [vmem:[%s4577 + $0x2c] sm:$0xf]
  %v4590 = vld [vmem:[%s4577 + $0x30] sm:$0xf]
  %v4591 = vld [vmem:[%s4577 + $0x34] sm:$0xf]
  %v4592 = vld [vmem:[%s4577 + $0x38] sm:$0xf]
  %v4593 = vld [vmem:[%s4577 + $0x3c] sm:$0xf]
  %v4610 = vunpack.c.l.b16 %v4578
  %v4611 = vunpack.c.l.b16 %v4579
  %v4612 = vunpack.c.l.b16 %v4580
  %v4613 = vunpack.c.l.b16 %v4581
  %v4614 = vunpack.c.l.b16 %v4582
  %v4615 = vunpack.c.l.b16 %v4583
  %v4616 = vunpack.c.l.b16 %v4584
  %v4617 = vunpack.c.l.b16 %v4585
  %v4618 = vunpack.c.l.b16 %v4586
  %v4619 = vunpack.c.l.b16 %v4587
  %v4620 = vunpack.c.l.b16 %v4588
  %v4621 = vunpack.c.l.b16 %v4589
  %v4622 = vunpack.c.l.b16 %v4590
  %v4623 = vunpack.c.l.b16 %v4591
  %v4624 = vunpack.c.l.b16 %v4592
  %v4625 = vunpack.c.l.b16 %v4593
  %v4626 = vpack.c.b16 %v4611, %v4610
  %v4627 = vpack.c.b16 %v4613, %v4612
  %v4628 = vpack.c.b16 %v4615, %v4614
  %v4629 = vpack.c.b16 %v4617, %v4616
  %v4630 = vpack.c.b16 %v4619, %v4618
  %v4631 = vpack.c.b16 %v4621, %v4620
  %v4632 = vpack.c.b16 %v4623, %v4622
  %v4633 = vpack.c.b16 %v4625, %v4624
  %4642 = vmatprep.subr.bf16.mxu0 0
  %4643 = vmatpush1.bf16.msra.mxu0 %v4633
  %4644 = vmatprep.subr.bf16.mxu0 0
  %4645 = vmatpush1.bf16.msra.mxu0 %v4632
  %4646 = vmatprep.subr.bf16.mxu0 0
  %4647 = vmatpush1.bf16.msra.mxu0 %v4631
  %4648 = vmatprep.subr.bf16.mxu0 0
  %4649 = vmatpush1.bf16.msra.mxu0 %v4630
  %4650 = vmatprep.subr.bf16.mxu0 0
  %4651 = vmatpush1.bf16.msra.mxu0 %v4629
  %4652 = vmatprep.subr.bf16.mxu0 0
  %4653 = vmatpush1.bf16.msra.mxu0 %v4628
  %4654 = vmatprep.subr.bf16.mxu0 0
  %4655 = vmatpush1.bf16.msra.mxu0 %v4627
  %4656 = vmatprep.subr.bf16.mxu0 0
  %4657 = vmatpush1.bf16.msra.mxu0 %v4626
  %4658 = vmatprep.subr.bf16.mxu0 0
  %4659 = vmatpush2.bf16.msra.mxu0 0
  %4660 = vmatprep.subr.bf16.mxu0 0
  %4661 = vmatpush2.bf16.msra.mxu0 0
  %4662 = vmatprep.subr.bf16.mxu0 0
  %4663 = vmatpush2.bf16.msra.mxu0 0
  %4664 = vmatprep.subr.bf16.mxu0 0
  %4665 = vmatpush2.bf16.msra.mxu0 0
  %4666 = vmatprep.subr.bf16.mxu0 0
  %4667 = vmatpush2.bf16.msra.mxu0 0
  %4668 = vmatprep.subr.bf16.mxu0 0
  %4669 = vmatpush2.bf16.msra.mxu0 0
  %4670 = vmatprep.subr.bf16.mxu0 0
  %4671 = vmatpush2.bf16.msra.mxu0 0
  %4672 = vmatprep.subr.bf16.mxu0 0
  %4673 = vmatpush2.bf16.msra.mxu0 0
  %4674 = vmatprep.mubr.bf16.mxu0 0
  %4675 = vmatmul.mubr.bf16.gmra.mxu0 %v4576
  %v4676 = vpop.f32.mrf.mxu0
  %v4677 = vadd.f32 0.0, %v4676
  %v4678 = vpop.f32.mrf.mxu0
  %v4679 = vpop.f32.mrf.mxu0
  %v4680 = vpop.f32.mrf.mxu0
  %4681 = vdwg.mxu0
  %v4682 = vadd.f32 %v4526, %v4677
  %4683 = vset.pattern.permute.xlu0 7
  %4684 = vperm.xlu0 %4683, %v3592
  %v4685 = vpop.permute.xlu0 %4684
  %vm4686 = vcmp.eq.s32.totalorder %v470, %v4685
  %v4687 = vsel %vm4686, 1.0, 0.0
  %v4688 = vpack.c.bf16 %v4687, %v4687
  %v4690 = vsel %vm3599, %v4688, 0
  %4692 = vmatprep.subr.bf16.mxu0 0
  %4693 = vmatpush1.bf16.msra.mxu0 0
  %4694 = vmatprep.subr.bf16.mxu0 0
  %4695 = vmatpush1.bf16.msra.mxu0 0
  %4696 = vmatprep.subr.bf16.mxu0 0
  %4697 = vmatpush1.bf16.msra.mxu0 0
  %4698 = vmatprep.subr.bf16.mxu0 0
  %4699 = vmatpush1.bf16.msra.mxu0 0
  %4700 = vmatprep.subr.bf16.mxu0 0
  %4701 = vmatpush1.bf16.msra.mxu0 0
  %4702 = vmatprep.subr.bf16.mxu0 0
  %4703 = vmatpush1.bf16.msra.mxu0 0
  %4704 = vmatprep.subr.bf16.mxu0 0
  %4705 = vmatpush1.bf16.msra.mxu0 %v3591
  %4706 = vmatprep.subr.bf16.mxu0 0
  %4707 = vmatpush1.bf16.msra.mxu0 %v3590
  %4708 = vmatprep.subr.bf16.mxu0 0
  %4709 = vmatpush2.bf16.msra.mxu0 0
  %4710 = vmatprep.subr.bf16.mxu0 0
  %4711 = vmatpush2.bf16.msra.mxu0 0
  %4712 = vmatprep.subr.bf16.mxu0 0
  %4713 = vmatpush2.bf16.msra.mxu0 0
  %4714 = vmatprep.subr.bf16.mxu0 0
  %4715 = vmatpush2.bf16.msra.mxu0 0
  %4716 = vmatprep.subr.bf16.mxu0 0
  %4717 = vmatpush2.bf16.msra.mxu0 0
  %4718 = vmatprep.subr.bf16.mxu0 0
  %4719 = vmatpush2.bf16.msra.mxu0 0
  %4720 = vmatprep.subr.bf16.mxu0 0
  %4721 = vmatpush2.bf16.msra.mxu0 0
  %4722 = vmatprep.subr.bf16.mxu0 0
  %4723 = vmatpush2.bf16.msra.mxu0 0
  %4724 = vmatprep.mubr.bf16.mxu0 0
  %4725 = vmatmul.mubr.bf16.gmra.mxu0 %v4690
  %v4726 = vpop.f32.mrf.mxu0
  %v4727 = vadd.f32 0.0, %v4726
  %v4728 = vpop.f32.mrf.mxu0
  %v4729 = vpop.f32.mrf.mxu0
  %v4730 = vpop.f32.mrf.mxu0
  %4731 = vdwg.mxu0
  %v4732 = vpack.c.bf16 %v4727, %v4727
  %s4733 = scalar_lea.vmem %s9, 448
  %v4734 = vld [vmem:[%s4733] sm:$0xf]
  %v4735 = vld [vmem:[%s4733 + $0x4] sm:$0xf]
  %v4736 = vld [vmem:[%s4733 + $0x8] sm:$0xf]
  %v4737 = vld [vmem:[%s4733 + $0xc] sm:$0xf]
  %v4738 = vld [vmem:[%s4733 + $0x10] sm:$0xf]
  %v4739 = vld [vmem:[%s4733 + $0x14] sm:$0xf]
  %v4740 = vld [vmem:[%s4733 + $0x18] sm:$0xf]
  %v4741 = vld [vmem:[%s4733 + $0x1c] sm:$0xf]
  %v4742 = vld [vmem:[%s4733 + $0x20] sm:$0xf]
  %v4743 = vld [vmem:[%s4733 + $0x24] sm:$0xf]
  %v4744 = vld [vmem:[%s4733 + $0x28] sm:$0xf]
  %v4745 = vld [vmem:[%s4733 + $0x2c] sm:$0xf]
  %v4746 = vld [vmem:[%s4733 + $0x30] sm:$0xf]
  %v4747 = vld [vmem:[%s4733 + $0x34] sm:$0xf]
  %v4748 = vld [vmem:[%s4733 + $0x38] sm:$0xf]
  %v4749 = vld [vmem:[%s4733 + $0x3c] sm:$0xf]
  %v4766 = vunpack.c.l.b16 %v4734
  %v4767 = vunpack.c.l.b16 %v4735
  %v4768 = vunpack.c.l.b16 %v4736
  %v4769 = vunpack.c.l.b16 %v4737
  %v4770 = vunpack.c.l.b16 %v4738
  %v4771 = vunpack.c.l.b16 %v4739
  %v4772 = vunpack.c.l.b16 %v4740
  %v4773 = vunpack.c.l.b16 %v4741
  %v4774 = vunpack.c.l.b16 %v4742
  %v4775 = vunpack.c.l.b16 %v4743
  %v4776 = vunpack.c.l.b16 %v4744
  %v4777 = vunpack.c.l.b16 %v4745
  %v4778 = vunpack.c.l.b16 %v4746
  %v4779 = vunpack.c.l.b16 %v4747
  %v4780 = vunpack.c.l.b16 %v4748
  %v4781 = vunpack.c.l.b16 %v4749
  %v4782 = vpack.c.b16 %v4767, %v4766
  %v4783 = vpack.c.b16 %v4769, %v4768
  %v4784 = vpack.c.b16 %v4771, %v4770
  %v4785 = vpack.c.b16 %v4773, %v4772
  %v4786 = vpack.c.b16 %v4775, %v4774
  %v4787 = vpack.c.b16 %v4777, %v4776
  %v4788 = vpack.c.b16 %v4779, %v4778
  %v4789 = vpack.c.b16 %v4781, %v4780
  %4798 = vmatprep.subr.bf16.mxu0 0
  %4799 = vmatpush1.bf16.msra.mxu0 %v4789
  %4800 = vmatprep.subr.bf16.mxu0 0
  %4801 = vmatpush1.bf16.msra.mxu0 %v4788
  %4802 = vmatprep.subr.bf16.mxu0 0
  %4803 = vmatpush1.bf16.msra.mxu0 %v4787
  %4804 = vmatprep.subr.bf16.mxu0 0
  %4805 = vmatpush1.bf16.msra.mxu0 %v4786
  %4806 = vmatprep.subr.bf16.mxu0 0
  %4807 = vmatpush1.bf16.msra.mxu0 %v4785
  %4808 = vmatprep.subr.bf16.mxu0 0
  %4809 = vmatpush1.bf16.msra.mxu0 %v4784
  %4810 = vmatprep.subr.bf16.mxu0 0
  %4811 = vmatpush1.bf16.msra.mxu0 %v4783
  %4812 = vmatprep.subr.bf16.mxu0 0
  %4813 = vmatpush1.bf16.msra.mxu0 %v4782
  %4814 = vmatprep.subr.bf16.mxu0 0
  %4815 = vmatpush2.bf16.msra.mxu0 0
  %4816 = vmatprep.subr.bf16.mxu0 0
  %4817 = vmatpush2.bf16.msra.mxu0 0
  %4818 = vmatprep.subr.bf16.mxu0 0
  %4819 = vmatpush2.bf16.msra.mxu0 0
  %4820 = vmatprep.subr.bf16.mxu0 0
  %4821 = vmatpush2.bf16.msra.mxu0 0
  %4822 = vmatprep.subr.bf16.mxu0 0
  %4823 = vmatpush2.bf16.msra.mxu0 0
  %4824 = vmatprep.subr.bf16.mxu0 0
  %4825 = vmatpush2.bf16.msra.mxu0 0
  %4826 = vmatprep.subr.bf16.mxu0 0
  %4827 = vmatpush2.bf16.msra.mxu0 0
  %4828 = vmatprep.subr.bf16.mxu0 0
  %4829 = vmatpush2.bf16.msra.mxu0 0
  %4830 = vmatprep.mubr.bf16.mxu0 0
  %4831 = vmatmul.mubr.bf16.gmra.mxu0 %v4732
  %v4832 = vpop.f32.mrf.mxu0
  %v4833 = vadd.f32 0.0, %v4832
  %v4834 = vpop.f32.mrf.mxu0
  %v4835 = vpop.f32.mrf.mxu0
  %v4836 = vpop.f32.mrf.mxu0
  %4837 = vdwg.mxu0
  %v4838 = vadd.f32 %v4682, %v4833
  %4839 = vset.pattern.permute.xlu0 8
  %4840 = vperm.xlu0 %4839, %v3592
  %v4841 = vpop.permute.xlu0 %4840
  %vm4842 = vcmp.eq.s32.totalorder %v470, %v4841
  %v4843 = vsel %vm4842, 1.0, 0.0
  %v4844 = vpack.c.bf16 %v4843, %v4843
  %v4846 = vsel %vm3599, %v4844, 0
  %4848 = vmatprep.subr.bf16.mxu0 0
  %4849 = vmatpush1.bf16.msra.mxu0 0
  %4850 = vmatprep.subr.bf16.mxu0 0
  %4851 = vmatpush1.bf16.msra.mxu0 0
  %4852 = vmatprep.subr.bf16.mxu0 0
  %4853 = vmatpush1.bf16.msra.mxu0 0
  %4854 = vmatprep.subr.bf16.mxu0 0
  %4855 = vmatpush1.bf16.msra.mxu0 0
  %4856 = vmatprep.subr.bf16.mxu0 0
  %4857 = vmatpush1.bf16.msra.mxu0 0
  %4858 = vmatprep.subr.bf16.mxu0 0
  %4859 = vmatpush1.bf16.msra.mxu0 0
  %4860 = vmatprep.subr.bf16.mxu0 0
  %4861 = vmatpush1.bf16.msra.mxu0 %v3591
  %4862 = vmatprep.subr.bf16.mxu0 0
  %4863 = vmatpush1.bf16.msra.mxu0 %v3590
  %4864 = vmatprep.subr.bf16.mxu0 0
  %4865 = vmatpush2.bf16.msra.mxu0 0
  %4866 = vmatprep.subr.bf16.mxu0 0
  %4867 = vmatpush2.bf16.msra.mxu0 0
  %4868 = vmatprep.subr.bf16.mxu0 0
  %4869 = vmatpush2.bf16.msra.mxu0 0
  %4870 = vmatprep.subr.bf16.mxu0 0
  %4871 = vmatpush2.bf16.msra.mxu0 0
  %4872 = vmatprep.subr.bf16.mxu0 0
  %4873 = vmatpush2.bf16.msra.mxu0 0
  %4874 = vmatprep.subr.bf16.mxu0 0
  %4875 = vmatpush2.bf16.msra.mxu0 0
  %4876 = vmatprep.subr.bf16.mxu0 0
  %4877 = vmatpush2.bf16.msra.mxu0 0
  %4878 = vmatprep.subr.bf16.mxu0 0
  %4879 = vmatpush2.bf16.msra.mxu0 0
  %4880 = vmatprep.mubr.bf16.mxu0 0
  %4881 = vmatmul.mubr.bf16.gmra.mxu0 %v4846
  %v4882 = vpop.f32.mrf.mxu0
  %v4883 = vadd.f32 0.0, %v4882
  %v4884 = vpop.f32.mrf.mxu0
  %v4885 = vpop.f32.mrf.mxu0
  %v4886 = vpop.f32.mrf.mxu0
  %4887 = vdwg.mxu0
  %v4888 = vpack.c.bf16 %v4883, %v4883
  %s4889 = scalar_lea.vmem %s9, 512
  %v4890 = vld [vmem:[%s4889] sm:$0xf]
  %v4891 = vld [vmem:[%s4889 + $0x4] sm:$0xf]
  %v4892 = vld [vmem:[%s4889 + $0x8] sm:$0xf]
  %v4893 = vld [vmem:[%s4889 + $0xc] sm:$0xf]
  %v4894 = vld [vmem:[%s4889 + $0x10] sm:$0xf]
  %v4895 = vld [vmem:[%s4889 + $0x14] sm:$0xf]
  %v4896 = vld [vmem:[%s4889 + $0x18] sm:$0xf]
  %v4897 = vld [vmem:[%s4889 + $0x1c] sm:$0xf]
  %v4898 = vld [vmem:[%s4889 + $0x20] sm:$0xf]
  %v4899 = vld [vmem:[%s4889 + $0x24] sm:$0xf]
  %v4900 = vld [vmem:[%s4889 + $0x28] sm:$0xf]
  %v4901 = vld [vmem:[%s4889 + $0x2c] sm:$0xf]
  %v4902 = vld [vmem:[%s4889 + $0x30] sm:$0xf]
  %v4903 = vld [vmem:[%s4889 + $0x34] sm:$0xf]
  %v4904 = vld [vmem:[%s4889 + $0x38] sm:$0xf]
  %v4905 = vld [vmem:[%s4889 + $0x3c] sm:$0xf]
  %v4922 = vunpack.c.l.b16 %v4890
  %v4923 = vunpack.c.l.b16 %v4891
  %v4924 = vunpack.c.l.b16 %v4892
  %v4925 = vunpack.c.l.b16 %v4893
  %v4926 = vunpack.c.l.b16 %v4894
  %v4927 = vunpack.c.l.b16 %v4895
  %v4928 = vunpack.c.l.b16 %v4896
  %v4929 = vunpack.c.l.b16 %v4897
  %v4930 = vunpack.c.l.b16 %v4898
  %v4931 = vunpack.c.l.b16 %v4899
  %v4932 = vunpack.c.l.b16 %v4900
  %v4933 = vunpack.c.l.b16 %v4901
  %v4934 = vunpack.c.l.b16 %v4902
  %v4935 = vunpack.c.l.b16 %v4903
  %v4936 = vunpack.c.l.b16 %v4904
  %v4937 = vunpack.c.l.b16 %v4905
  %v4938 = vpack.c.b16 %v4923, %v4922
  %v4939 = vpack.c.b16 %v4925, %v4924
  %v4940 = vpack.c.b16 %v4927, %v4926
  %v4941 = vpack.c.b16 %v4929, %v4928
  %v4942 = vpack.c.b16 %v4931, %v4930
  %v4943 = vpack.c.b16 %v4933, %v4932
  %v4944 = vpack.c.b16 %v4935, %v4934
  %v4945 = vpack.c.b16 %v4937, %v4936
  %4954 = vmatprep.subr.bf16.mxu0 0
  %4955 = vmatpush1.bf16.msra.mxu0 %v4945
  %4956 = vmatprep.subr.bf16.mxu0 0
  %4957 = vmatpush1.bf16.msra.mxu0 %v4944
  %4958 = vmatprep.subr.bf16.mxu0 0
  %4959 = vmatpush1.bf16.msra.mxu0 %v4943
  %4960 = vmatprep.subr.bf16.mxu0 0
  %4961 = vmatpush1.bf16.msra.mxu0 %v4942
  %4962 = vmatprep.subr.bf16.mxu0 0
  %4963 = vmatpush1.bf16.msra.mxu0 %v4941
  %4964 = vmatprep.subr.bf16.mxu0 0
  %4965 = vmatpush1.bf16.msra.mxu0 %v4940
  %4966 = vmatprep.subr.bf16.mxu0 0
  %4967 = vmatpush1.bf16.msra.mxu0 %v4939
  %4968 = vmatprep.subr.bf16.mxu0 0
  %4969 = vmatpush1.bf16.msra.mxu0 %v4938
  %4970 = vmatprep.subr.bf16.mxu0 0
  %4971 = vmatpush2.bf16.msra.mxu0 0
  %4972 = vmatprep.subr.bf16.mxu0 0
  %4973 = vmatpush2.bf16.msra.mxu0 0
  %4974 = vmatprep.subr.bf16.mxu0 0
  %4975 = vmatpush2.bf16.msra.mxu0 0
  %4976 = vmatprep.subr.bf16.mxu0 0
  %4977 = vmatpush2.bf16.msra.mxu0 0
  %4978 = vmatprep.subr.bf16.mxu0 0
  %4979 = vmatpush2.bf16.msra.mxu0 0
  %4980 = vmatprep.subr.bf16.mxu0 0
  %4981 = vmatpush2.bf16.msra.mxu0 0
  %4982 = vmatprep.subr.bf16.mxu0 0
  %4983 = vmatpush2.bf16.msra.mxu0 0
  %4984 = vmatprep.subr.bf16.mxu0 0
  %4985 = vmatpush2.bf16.msra.mxu0 0
  %4986 = vmatprep.mubr.bf16.mxu0 0
  %4987 = vmatmul.mubr.bf16.gmra.mxu0 %v4888
  %v4988 = vpop.f32.mrf.mxu0
  %v4989 = vadd.f32 0.0, %v4988
  %v4990 = vpop.f32.mrf.mxu0
  %v4991 = vpop.f32.mrf.mxu0
  %v4992 = vpop.f32.mrf.mxu0
  %4993 = vdwg.mxu0
  %v4994 = vadd.f32 %v4838, %v4989
  %4995 = vset.pattern.permute.xlu0 9
  %4996 = vperm.xlu0 %4995, %v3592
  %v4997 = vpop.permute.xlu0 %4996
  %vm4998 = vcmp.eq.s32.totalorder %v470, %v4997
  %v4999 = vsel %vm4998, 1.0, 0.0
  %v5000 = vpack.c.bf16 %v4999, %v4999
  %v5002 = vsel %vm3599, %v5000, 0
  %5004 = vmatprep.subr.bf16.mxu0 0
  %5005 = vmatpush1.bf16.msra.mxu0 0
  %5006 = vmatprep.subr.bf16.mxu0 0
  %5007 = vmatpush1.bf16.msra.mxu0 0
  %5008 = vmatprep.subr.bf16.mxu0 0
  %5009 = vmatpush1.bf16.msra.mxu0 0
  %5010 = vmatprep.subr.bf16.mxu0 0
  %5011 = vmatpush1.bf16.msra.mxu0 0
  %5012 = vmatprep.subr.bf16.mxu0 0
  %5013 = vmatpush1.bf16.msra.mxu0 0
  %5014 = vmatprep.subr.bf16.mxu0 0
  %5015 = vmatpush1.bf16.msra.mxu0 0
  %5016 = vmatprep.subr.bf16.mxu0 0
  %5017 = vmatpush1.bf16.msra.mxu0 %v3591
  %5018 = vmatprep.subr.bf16.mxu0 0
  %5019 = vmatpush1.bf16.msra.mxu0 %v3590
  %5020 = vmatprep.subr.bf16.mxu0 0
  %5021 = vmatpush2.bf16.msra.mxu0 0
  %5022 = vmatprep.subr.bf16.mxu0 0
  %5023 = vmatpush2.bf16.msra.mxu0 0
  %5024 = vmatprep.subr.bf16.mxu0 0
  %5025 = vmatpush2.bf16.msra.mxu0 0
  %5026 = vmatprep.subr.bf16.mxu0 0
  %5027 = vmatpush2.bf16.msra.mxu0 0
  %5028 = vmatprep.subr.bf16.mxu0 0
  %5029 = vmatpush2.bf16.msra.mxu0 0
  %5030 = vmatprep.subr.bf16.mxu0 0
  %5031 = vmatpush2.bf16.msra.mxu0 0
  %5032 = vmatprep.subr.bf16.mxu0 0
  %5033 = vmatpush2.bf16.msra.mxu0 0
  %5034 = vmatprep.subr.bf16.mxu0 0
  %5035 = vmatpush2.bf16.msra.mxu0 0
  %5036 = vmatprep.mubr.bf16.mxu0 0
  %5037 = vmatmul.mubr.bf16.gmra.mxu0 %v5002
  %v5038 = vpop.f32.mrf.mxu0
  %v5039 = vadd.f32 0.0, %v5038
  %v5040 = vpop.f32.mrf.mxu0
  %v5041 = vpop.f32.mrf.mxu0
  %v5042 = vpop.f32.mrf.mxu0
  %5043 = vdwg.mxu0
  %v5044 = vpack.c.bf16 %v5039, %v5039
  %s5045 = scalar_lea.vmem %s9, 576
  %v5046 = vld [vmem:[%s5045] sm:$0xf]
  %v5047 = vld [vmem:[%s5045 + $0x4] sm:$0xf]
  %v5048 = vld [vmem:[%s5045 + $0x8] sm:$0xf]
  %v5049 = vld [vmem:[%s5045 + $0xc] sm:$0xf]
  %v5050 = vld [vmem:[%s5045 + $0x10] sm:$0xf]
  %v5051 = vld [vmem:[%s5045 + $0x14] sm:$0xf]
  %v5052 = vld [vmem:[%s5045 + $0x18] sm:$0xf]
  %v5053 = vld [vmem:[%s5045 + $0x1c] sm:$0xf]
  %v5054 = vld [vmem:[%s5045 + $0x20] sm:$0xf]
  %v5055 = vld [vmem:[%s5045 + $0x24] sm:$0xf]
  %v5056 = vld [vmem:[%s5045 + $0x28] sm:$0xf]
  %v5057 = vld [vmem:[%s5045 + $0x2c] sm:$0xf]
  %v5058 = vld [vmem:[%s5045 + $0x30] sm:$0xf]
  %v5059 = vld [vmem:[%s5045 + $0x34] sm:$0xf]
  %v5060 = vld [vmem:[%s5045 + $0x38] sm:$0xf]
  %v5061 = vld [vmem:[%s5045 + $0x3c] sm:$0xf]
  %v5078 = vunpack.c.l.b16 %v5046
  %v5079 = vunpack.c.l.b16 %v5047
  %v5080 = vunpack.c.l.b16 %v5048
  %v5081 = vunpack.c.l.b16 %v5049
  %v5082 = vunpack.c.l.b16 %v5050
  %v5083 = vunpack.c.l.b16 %v5051
  %v5084 = vunpack.c.l.b16 %v5052
  %v5085 = vunpack.c.l.b16 %v5053
  %v5086 = vunpack.c.l.b16 %v5054
  %v5087 = vunpack.c.l.b16 %v5055
  %v5088 = vunpack.c.l.b16 %v5056
  %v5089 = vunpack.c.l.b16 %v5057
  %v5090 = vunpack.c.l.b16 %v5058
  %v5091 = vunpack.c.l.b16 %v5059
  %v5092 = vunpack.c.l.b16 %v5060
  %v5093 = vunpack.c.l.b16 %v5061
  %v5094 = vpack.c.b16 %v5079, %v5078
  %v5095 = vpack.c.b16 %v5081, %v5080
  %v5096 = vpack.c.b16 %v5083, %v5082
  %v5097 = vpack.c.b16 %v5085, %v5084
  %v5098 = vpack.c.b16 %v5087, %v5086
  %v5099 = vpack.c.b16 %v5089, %v5088
  %v5100 = vpack.c.b16 %v5091, %v5090
  %v5101 = vpack.c.b16 %v5093, %v5092
  %5110 = vmatprep.subr.bf16.mxu0 0
  %5111 = vmatpush1.bf16.msra.mxu0 %v5101
  %5112 = vmatprep.subr.bf16.mxu0 0
  %5113 = vmatpush1.bf16.msra.mxu0 %v5100
  %5114 = vmatprep.subr.bf16.mxu0 0
  %5115 = vmatpush1.bf16.msra.mxu0 %v5099
  %5116 = vmatprep.subr.bf16.mxu0 0
  %5117 = vmatpush1.bf16.msra.mxu0 %v5098
  %5118 = vmatprep.subr.bf16.mxu0 0
  %5119 = vmatpush1.bf16.msra.mxu0 %v5097
  %5120 = vmatprep.subr.bf16.mxu0 0
  %5121 = vmatpush1.bf16.msra.mxu0 %v5096
  %5122 = vmatprep.subr.bf16.mxu0 0
  %5123 = vmatpush1.bf16.msra.mxu0 %v5095
  %5124 = vmatprep.subr.bf16.mxu0 0
  %5125 = vmatpush1.bf16.msra.mxu0 %v5094
  %5126 = vmatprep.subr.bf16.mxu0 0
  %5127 = vmatpush2.bf16.msra.mxu0 0
  %5128 = vmatprep.subr.bf16.mxu0 0
  %5129 = vmatpush2.bf16.msra.mxu0 0
  %5130 = vmatprep.subr.bf16.mxu0 0
  %5131 = vmatpush2.bf16.msra.mxu0 0
  %5132 = vmatprep.subr.bf16.mxu0 0
  %5133 = vmatpush2.bf16.msra.mxu0 0
  %5134 = vmatprep.subr.bf16.mxu0 0
  %5135 = vmatpush2.bf16.msra.mxu0 0
  %5136 = vmatprep.subr.bf16.mxu0 0
  %5137 = vmatpush2.bf16.msra.mxu0 0
  %5138 = vmatprep.subr.bf16.mxu0 0
  %5139 = vmatpush2.bf16.msra.mxu0 0
  %5140 = vmatprep.subr.bf16.mxu0 0
  %5141 = vmatpush2.bf16.msra.mxu0 0
  %5142 = vmatprep.mubr.bf16.mxu0 0
  %5143 = vmatmul.mubr.bf16.gmra.mxu0 %v5044
  %v5144 = vpop.f32.mrf.mxu0
  %v5145 = vadd.f32 0.0, %v5144
  %v5146 = vpop.f32.mrf.mxu0
  %v5147 = vpop.f32.mrf.mxu0
  %v5148 = vpop.f32.mrf.mxu0
  %5149 = vdwg.mxu0
  %v5150 = vadd.f32 %v4994, %v5145
  %5151 = vset.pattern.permute.xlu0 10
  %5152 = vperm.xlu0 %5151, %v3592
  %v5153 = vpop.permute.xlu0 %5152
  %vm5154 = vcmp.eq.s32.totalorder %v470, %v5153
  %v5155 = vsel %vm5154, 1.0, 0.0
  %v5156 = vpack.c.bf16 %v5155, %v5155
  %v5158 = vsel %vm3599, %v5156, 0
  %5160 = vmatprep.subr.bf16.mxu0 0
  %5161 = vmatpush1.bf16.msra.mxu0 0
  %5162 = vmatprep.subr.bf16.mxu0 0
  %5163 = vmatpush1.bf16.msra.mxu0 0
  %5164 = vmatprep.subr.bf16.mxu0 0
  %5165 = vmatpush1.bf16.msra.mxu0 0
  %5166 = vmatprep.subr.bf16.mxu0 0
  %5167 = vmatpush1.bf16.msra.mxu0 0
  %5168 = vmatprep.subr.bf16.mxu0 0
  %5169 = vmatpush1.bf16.msra.mxu0 0
  %5170 = vmatprep.subr.bf16.mxu0 0
  %5171 = vmatpush1.bf16.msra.mxu0 0
  %5172 = vmatprep.subr.bf16.mxu0 0
  %5173 = vmatpush1.bf16.msra.mxu0 %v3591
  %5174 = vmatprep.subr.bf16.mxu0 0
  %5175 = vmatpush1.bf16.msra.mxu0 %v3590
  %5176 = vmatprep.subr.bf16.mxu0 0
  %5177 = vmatpush2.bf16.msra.mxu0 0
  %5178 = vmatprep.subr.bf16.mxu0 0
  %5179 = vmatpush2.bf16.msra.mxu0 0
  %5180 = vmatprep.subr.bf16.mxu0 0
  %5181 = vmatpush2.bf16.msra.mxu0 0
  %5182 = vmatprep.subr.bf16.mxu0 0
  %5183 = vmatpush2.bf16.msra.mxu0 0
  %5184 = vmatprep.subr.bf16.mxu0 0
  %5185 = vmatpush2.bf16.msra.mxu0 0
  %5186 = vmatprep.subr.bf16.mxu0 0
  %5187 = vmatpush2.bf16.msra.mxu0 0
  %5188 = vmatprep.subr.bf16.mxu0 0
  %5189 = vmatpush2.bf16.msra.mxu0 0
  %5190 = vmatprep.subr.bf16.mxu0 0
  %5191 = vmatpush2.bf16.msra.mxu0 0
  %5192 = vmatprep.mubr.bf16.mxu0 0
  %5193 = vmatmul.mubr.bf16.gmra.mxu0 %v5158
  %v5194 = vpop.f32.mrf.mxu0
  %v5195 = vadd.f32 0.0, %v5194
  %v5196 = vpop.f32.mrf.mxu0
  %v5197 = vpop.f32.mrf.mxu0
  %v5198 = vpop.f32.mrf.mxu0
  %5199 = vdwg.mxu0
  %v5200 = vpack.c.bf16 %v5195, %v5195
  %s5201 = scalar_lea.vmem %s9, 640
  %v5202 = vld [vmem:[%s5201] sm:$0xf]
  %v5203 = vld [vmem:[%s5201 + $0x4] sm:$0xf]
  %v5204 = vld [vmem:[%s5201 + $0x8] sm:$0xf]
  %v5205 = vld [vmem:[%s5201 + $0xc] sm:$0xf]
  %v5206 = vld [vmem:[%s5201 + $0x10] sm:$0xf]
  %v5207 = vld [vmem:[%s5201 + $0x14] sm:$0xf]
  %v5208 = vld [vmem:[%s5201 + $0x18] sm:$0xf]
  %v5209 = vld [vmem:[%s5201 + $0x1c] sm:$0xf]
  %v5210 = vld [vmem:[%s5201 + $0x20] sm:$0xf]
  %v5211 = vld [vmem:[%s5201 + $0x24] sm:$0xf]
  %v5212 = vld [vmem:[%s5201 + $0x28] sm:$0xf]
  %v5213 = vld [vmem:[%s5201 + $0x2c] sm:$0xf]
  %v5214 = vld [vmem:[%s5201 + $0x30] sm:$0xf]
  %v5215 = vld [vmem:[%s5201 + $0x34] sm:$0xf]
  %v5216 = vld [vmem:[%s5201 + $0x38] sm:$0xf]
  %v5217 = vld [vmem:[%s5201 + $0x3c] sm:$0xf]
  %v5234 = vunpack.c.l.b16 %v5202
  %v5235 = vunpack.c.l.b16 %v5203
  %v5236 = vunpack.c.l.b16 %v5204
  %v5237 = vunpack.c.l.b16 %v5205
  %v5238 = vunpack.c.l.b16 %v5206
  %v5239 = vunpack.c.l.b16 %v5207
  %v5240 = vunpack.c.l.b16 %v5208
  %v5241 = vunpack.c.l.b16 %v5209
  %v5242 = vunpack.c.l.b16 %v5210
  %v5243 = vunpack.c.l.b16 %v5211
  %v5244 = vunpack.c.l.b16 %v5212
  %v5245 = vunpack.c.l.b16 %v5213
  %v5246 = vunpack.c.l.b16 %v5214
  %v5247 = vunpack.c.l.b16 %v5215
  %v5248 = vunpack.c.l.b16 %v5216
  %v5249 = vunpack.c.l.b16 %v5217
  %v5250 = vpack.c.b16 %v5235, %v5234
  %v5251 = vpack.c.b16 %v5237, %v5236
  %v5252 = vpack.c.b16 %v5239, %v5238
  %v5253 = vpack.c.b16 %v5241, %v5240
  %v5254 = vpack.c.b16 %v5243, %v5242
  %v5255 = vpack.c.b16 %v5245, %v5244
  %v5256 = vpack.c.b16 %v5247, %v5246
  %v5257 = vpack.c.b16 %v5249, %v5248
  %5266 = vmatprep.subr.bf16.mxu0 0
  %5267 = vmatpush1.bf16.msra.mxu0 %v5257
  %5268 = vmatprep.subr.bf16.mxu0 0
  %5269 = vmatpush1.bf16.msra.mxu0 %v5256
  %5270 = vmatprep.subr.bf16.mxu0 0
  %5271 = vmatpush1.bf16.msra.mxu0 %v5255
  %5272 = vmatprep.subr.bf16.mxu0 0
  %5273 = vmatpush1.bf16.msra.mxu0 %v5254
  %5274 = vmatprep.subr.bf16.mxu0 0
  %5275 = vmatpush1.bf16.msra.mxu0 %v5253
  %5276 = vmatprep.subr.bf16.mxu0 0
  %5277 = vmatpush1.bf16.msra.mxu0 %v5252
  %5278 = vmatprep.subr.bf16.mxu0 0
  %5279 = vmatpush1.bf16.msra.mxu0 %v5251
  %5280 = vmatprep.subr.bf16.mxu0 0
  %5281 = vmatpush1.bf16.msra.mxu0 %v5250
  %5282 = vmatprep.subr.bf16.mxu0 0
  %5283 = vmatpush2.bf16.msra.mxu0 0
  %5284 = vmatprep.subr.bf16.mxu0 0
  %5285 = vmatpush2.bf16.msra.mxu0 0
  %5286 = vmatprep.subr.bf16.mxu0 0
  %5287 = vmatpush2.bf16.msra.mxu0 0
  %5288 = vmatprep.subr.bf16.mxu0 0
  %5289 = vmatpush2.bf16.msra.mxu0 0
  %5290 = vmatprep.subr.bf16.mxu0 0
  %5291 = vmatpush2.bf16.msra.mxu0 0
  %5292 = vmatprep.subr.bf16.mxu0 0
  %5293 = vmatpush2.bf16.msra.mxu0 0
  %5294 = vmatprep.subr.bf16.mxu0 0
  %5295 = vmatpush2.bf16.msra.mxu0 0
  %5296 = vmatprep.subr.bf16.mxu0 0
  %5297 = vmatpush2.bf16.msra.mxu0 0
  %5298 = vmatprep.mubr.bf16.mxu0 0
  %5299 = vmatmul.mubr.bf16.gmra.mxu0 %v5200
  %v5300 = vpop.f32.mrf.mxu0
  %v5301 = vadd.f32 0.0, %v5300
  %v5302 = vpop.f32.mrf.mxu0
  %v5303 = vpop.f32.mrf.mxu0
  %v5304 = vpop.f32.mrf.mxu0
  %5305 = vdwg.mxu0
  %v5306 = vadd.f32 %v5150, %v5301
  %5307 = vset.pattern.permute.xlu0 11
  %5308 = vperm.xlu0 %5307, %v3592
  %v5309 = vpop.permute.xlu0 %5308
  %vm5310 = vcmp.eq.s32.totalorder %v470, %v5309
  %v5311 = vsel %vm5310, 1.0, 0.0
  %v5312 = vpack.c.bf16 %v5311, %v5311
  %v5314 = vsel %vm3599, %v5312, 0
  %5316 = vmatprep.subr.bf16.mxu0 0
  %5317 = vmatpush1.bf16.msra.mxu0 0
  %5318 = vmatprep.subr.bf16.mxu0 0
  %5319 = vmatpush1.bf16.msra.mxu0 0
  %5320 = vmatprep.subr.bf16.mxu0 0
  %5321 = vmatpush1.bf16.msra.mxu0 0
  %5322 = vmatprep.subr.bf16.mxu0 0
  %5323 = vmatpush1.bf16.msra.mxu0 0
  %5324 = vmatprep.subr.bf16.mxu0 0
  %5325 = vmatpush1.bf16.msra.mxu0 0
  %5326 = vmatprep.subr.bf16.mxu0 0
  %5327 = vmatpush1.bf16.msra.mxu0 0
  %5328 = vmatprep.subr.bf16.mxu0 0
  %5329 = vmatpush1.bf16.msra.mxu0 %v3591
  %5330 = vmatprep.subr.bf16.mxu0 0
  %5331 = vmatpush1.bf16.msra.mxu0 %v3590
  %5332 = vmatprep.subr.bf16.mxu0 0
  %5333 = vmatpush2.bf16.msra.mxu0 0
  %5334 = vmatprep.subr.bf16.mxu0 0
  %5335 = vmatpush2.bf16.msra.mxu0 0
  %5336 = vmatprep.subr.bf16.mxu0 0
  %5337 = vmatpush2.bf16.msra.mxu0 0
  %5338 = vmatprep.subr.bf16.mxu0 0
  %5339 = vmatpush2.bf16.msra.mxu0 0
  %5340 = vmatprep.subr.bf16.mxu0 0
  %5341 = vmatpush2.bf16.msra.mxu0 0
  %5342 = vmatprep.subr.bf16.mxu0 0
  %5343 = vmatpush2.bf16.msra.mxu0 0
  %5344 = vmatprep.subr.bf16.mxu0 0
  %5345 = vmatpush2.bf16.msra.mxu0 0
  %5346 = vmatprep.subr.bf16.mxu0 0
  %5347 = vmatpush2.bf16.msra.mxu0 0
  %5348 = vmatprep.mubr.bf16.mxu0 0
  %5349 = vmatmul.mubr.bf16.gmra.mxu0 %v5314
  %v5350 = vpop.f32.mrf.mxu0
  %v5351 = vadd.f32 0.0, %v5350
  %v5352 = vpop.f32.mrf.mxu0
  %v5353 = vpop.f32.mrf.mxu0
  %v5354 = vpop.f32.mrf.mxu0
  %5355 = vdwg.mxu0
  %v5356 = vpack.c.bf16 %v5351, %v5351
  %s5357 = scalar_lea.vmem %s9, 704
  %v5358 = vld [vmem:[%s5357] sm:$0xf]
  %v5359 = vld [vmem:[%s5357 + $0x4] sm:$0xf]
  %v5360 = vld [vmem:[%s5357 + $0x8] sm:$0xf]
  %v5361 = vld [vmem:[%s5357 + $0xc] sm:$0xf]
  %v5362 = vld [vmem:[%s5357 + $0x10] sm:$0xf]
  %v5363 = vld [vmem:[%s5357 + $0x14] sm:$0xf]
  %v5364 = vld [vmem:[%s5357 + $0x18] sm:$0xf]
  %v5365 = vld [vmem:[%s5357 + $0x1c] sm:$0xf]
  %v5366 = vld [vmem:[%s5357 + $0x20] sm:$0xf]
  %v5367 = vld [vmem:[%s5357 + $0x24] sm:$0xf]
  %v5368 = vld [vmem:[%s5357 + $0x28] sm:$0xf]
  %v5369 = vld [vmem:[%s5357 + $0x2c] sm:$0xf]
  %v5370 = vld [vmem:[%s5357 + $0x30] sm:$0xf]
  %v5371 = vld [vmem:[%s5357 + $0x34] sm:$0xf]
  %v5372 = vld [vmem:[%s5357 + $0x38] sm:$0xf]
  %v5373 = vld [vmem:[%s5357 + $0x3c] sm:$0xf]
  %v5390 = vunpack.c.l.b16 %v5358
  %v5391 = vunpack.c.l.b16 %v5359
  %v5392 = vunpack.c.l.b16 %v5360
  %v5393 = vunpack.c.l.b16 %v5361
  %v5394 = vunpack.c.l.b16 %v5362
  %v5395 = vunpack.c.l.b16 %v5363
  %v5396 = vunpack.c.l.b16 %v5364
  %v5397 = vunpack.c.l.b16 %v5365
  %v5398 = vunpack.c.l.b16 %v5366
  %v5399 = vunpack.c.l.b16 %v5367
  %v5400 = vunpack.c.l.b16 %v5368
  %v5401 = vunpack.c.l.b16 %v5369
  %v5402 = vunpack.c.l.b16 %v5370
  %v5403 = vunpack.c.l.b16 %v5371
  %v5404 = vunpack.c.l.b16 %v5372
  %v5405 = vunpack.c.l.b16 %v5373
  %v5406 = vpack.c.b16 %v5391, %v5390
  %v5407 = vpack.c.b16 %v5393, %v5392
  %v5408 = vpack.c.b16 %v5395, %v5394
  %v5409 = vpack.c.b16 %v5397, %v5396
  %v5410 = vpack.c.b16 %v5399, %v5398
  %v5411 = vpack.c.b16 %v5401, %v5400
  %v5412 = vpack.c.b16 %v5403, %v5402
  %v5413 = vpack.c.b16 %v5405, %v5404
  %5422 = vmatprep.subr.bf16.mxu0 0
  %5423 = vmatpush1.bf16.msra.mxu0 %v5413
  %5424 = vmatprep.subr.bf16.mxu0 0
  %5425 = vmatpush1.bf16.msra.mxu0 %v5412
  %5426 = vmatprep.subr.bf16.mxu0 0
  %5427 = vmatpush1.bf16.msra.mxu0 %v5411
  %5428 = vmatprep.subr.bf16.mxu0 0
  %5429 = vmatpush1.bf16.msra.mxu0 %v5410
  %5430 = vmatprep.subr.bf16.mxu0 0
  %5431 = vmatpush1.bf16.msra.mxu0 %v5409
  %5432 = vmatprep.subr.bf16.mxu0 0
  %5433 = vmatpush1.bf16.msra.mxu0 %v5408
  %5434 = vmatprep.subr.bf16.mxu0 0
  %5435 = vmatpush1.bf16.msra.mxu0 %v5407
  %5436 = vmatprep.subr.bf16.mxu0 0
  %5437 = vmatpush1.bf16.msra.mxu0 %v5406
  %5438 = vmatprep.subr.bf16.mxu0 0
  %5439 = vmatpush2.bf16.msra.mxu0 0
  %5440 = vmatprep.subr.bf16.mxu0 0
  %5441 = vmatpush2.bf16.msra.mxu0 0
  %5442 = vmatprep.subr.bf16.mxu0 0
  %5443 = vmatpush2.bf16.msra.mxu0 0
  %5444 = vmatprep.subr.bf16.mxu0 0
  %5445 = vmatpush2.bf16.msra.mxu0 0
  %5446 = vmatprep.subr.bf16.mxu0 0
  %5447 = vmatpush2.bf16.msra.mxu0 0
  %5448 = vmatprep.subr.bf16.mxu0 0
  %5449 = vmatpush2.bf16.msra.mxu0 0
  %5450 = vmatprep.subr.bf16.mxu0 0
  %5451 = vmatpush2.bf16.msra.mxu0 0
  %5452 = vmatprep.subr.bf16.mxu0 0
  %5453 = vmatpush2.bf16.msra.mxu0 0
  %5454 = vmatprep.mubr.bf16.mxu0 0
  %5455 = vmatmul.mubr.bf16.gmra.mxu0 %v5356
  %v5456 = vpop.f32.mrf.mxu0
  %v5457 = vadd.f32 0.0, %v5456
  %v5458 = vpop.f32.mrf.mxu0
  %v5459 = vpop.f32.mrf.mxu0
  %v5460 = vpop.f32.mrf.mxu0
  %5461 = vdwg.mxu0
  %v5462 = vadd.f32 %v5306, %v5457
  %5463 = vset.pattern.permute.xlu0 12
  %5464 = vperm.xlu0 %5463, %v3592
  %v5465 = vpop.permute.xlu0 %5464
  %vm5466 = vcmp.eq.s32.totalorder %v470, %v5465
  %v5467 = vsel %vm5466, 1.0, 0.0
  %v5468 = vpack.c.bf16 %v5467, %v5467
  %v5470 = vsel %vm3599, %v5468, 0
  %5472 = vmatprep.subr.bf16.mxu0 0
  %5473 = vmatpush1.bf16.msra.mxu0 0
  %5474 = vmatprep.subr.bf16.mxu0 0
  %5475 = vmatpush1.bf16.msra.mxu0 0
  %5476 = vmatprep.subr.bf16.mxu0 0
  %5477 = vmatpush1.bf16.msra.mxu0 0
  %5478 = vmatprep.subr.bf16.mxu0 0
  %5479 = vmatpush1.bf16.msra.mxu0 0
  %5480 = vmatprep.subr.bf16.mxu0 0
  %5481 = vmatpush1.bf16.msra.mxu0 0
  %5482 = vmatprep.subr.bf16.mxu0 0
  %5483 = vmatpush1.bf16.msra.mxu0 0
  %5484 = vmatprep.subr.bf16.mxu0 0
  %5485 = vmatpush1.bf16.msra.mxu0 %v3591
  %5486 = vmatprep.subr.bf16.mxu0 0
  %5487 = vmatpush1.bf16.msra.mxu0 %v3590
  %5488 = vmatprep.subr.bf16.mxu0 0
  %5489 = vmatpush2.bf16.msra.mxu0 0
  %5490 = vmatprep.subr.bf16.mxu0 0
  %5491 = vmatpush2.bf16.msra.mxu0 0
  %5492 = vmatprep.subr.bf16.mxu0 0
  %5493 = vmatpush2.bf16.msra.mxu0 0
  %5494 = vmatprep.subr.bf16.mxu0 0
  %5495 = vmatpush2.bf16.msra.mxu0 0
  %5496 = vmatprep.subr.bf16.mxu0 0
  %5497 = vmatpush2.bf16.msra.mxu0 0
  %5498 = vmatprep.subr.bf16.mxu0 0
  %5499 = vmatpush2.bf16.msra.mxu0 0
  %5500 = vmatprep.subr.bf16.mxu0 0
  %5501 = vmatpush2.bf16.msra.mxu0 0
  %5502 = vmatprep.subr.bf16.mxu0 0
  %5503 = vmatpush2.bf16.msra.mxu0 0
  %5504 = vmatprep.mubr.bf16.mxu0 0
  %5505 = vmatmul.mubr.bf16.gmra.mxu0 %v5470
  %v5506 = vpop.f32.mrf.mxu0
  %v5507 = vadd.f32 0.0, %v5506
  %v5508 = vpop.f32.mrf.mxu0
  %v5509 = vpop.f32.mrf.mxu0
  %v5510 = vpop.f32.mrf.mxu0
  %5511 = vdwg.mxu0
  %v5512 = vpack.c.bf16 %v5507, %v5507
  %s5513 = scalar_lea.vmem %s9, 768
  %v5514 = vld [vmem:[%s5513] sm:$0xf]
  %v5515 = vld [vmem:[%s5513 + $0x4] sm:$0xf]
  %v5516 = vld [vmem:[%s5513 + $0x8] sm:$0xf]
  %v5517 = vld [vmem:[%s5513 + $0xc] sm:$0xf]
  %v5518 = vld [vmem:[%s5513 + $0x10] sm:$0xf]
  %v5519 = vld [vmem:[%s5513 + $0x14] sm:$0xf]
  %v5520 = vld [vmem:[%s5513 + $0x18] sm:$0xf]
  %v5521 = vld [vmem:[%s5513 + $0x1c] sm:$0xf]
  %v5522 = vld [vmem:[%s5513 + $0x20] sm:$0xf]
  %v5523 = vld [vmem:[%s5513 + $0x24] sm:$0xf]
  %v5524 = vld [vmem:[%s5513 + $0x28] sm:$0xf]
  %v5525 = vld [vmem:[%s5513 + $0x2c] sm:$0xf]
  %v5526 = vld [vmem:[%s5513 + $0x30] sm:$0xf]
  %v5527 = vld [vmem:[%s5513 + $0x34] sm:$0xf]
  %v5528 = vld [vmem:[%s5513 + $0x38] sm:$0xf]
  %v5529 = vld [vmem:[%s5513 + $0x3c] sm:$0xf]
  %v5546 = vunpack.c.l.b16 %v5514
  %v5547 = vunpack.c.l.b16 %v5515
  %v5548 = vunpack.c.l.b16 %v5516
  %v5549 = vunpack.c.l.b16 %v5517
  %v5550 = vunpack.c.l.b16 %v5518
  %v5551 = vunpack.c.l.b16 %v5519
  %v5552 = vunpack.c.l.b16 %v5520
  %v5553 = vunpack.c.l.b16 %v5521
  %v5554 = vunpack.c.l.b16 %v5522
  %v5555 = vunpack.c.l.b16 %v5523
  %v5556 = vunpack.c.l.b16 %v5524
  %v5557 = vunpack.c.l.b16 %v5525
  %v5558 = vunpack.c.l.b16 %v5526
  %v5559 = vunpack.c.l.b16 %v5527
  %v5560 = vunpack.c.l.b16 %v5528
  %v5561 = vunpack.c.l.b16 %v5529
  %v5562 = vpack.c.b16 %v5547, %v5546
  %v5563 = vpack.c.b16 %v5549, %v5548
  %v5564 = vpack.c.b16 %v5551, %v5550
  %v5565 = vpack.c.b16 %v5553, %v5552
  %v5566 = vpack.c.b16 %v5555, %v5554
  %v5567 = vpack.c.b16 %v5557, %v5556
  %v5568 = vpack.c.b16 %v5559, %v5558
  %v5569 = vpack.c.b16 %v5561, %v5560
  %5578 = vmatprep.subr.bf16.mxu0 0
  %5579 = vmatpush1.bf16.msra.mxu0 %v5569
  %5580 = vmatprep.subr.bf16.mxu0 0
  %5581 = vmatpush1.bf16.msra.mxu0 %v5568
  %5582 = vmatprep.subr.bf16.mxu0 0
  %5583 = vmatpush1.bf16.msra.mxu0 %v5567
  %5584 = vmatprep.subr.bf16.mxu0 0
  %5585 = vmatpush1.bf16.msra.mxu0 %v5566
  %5586 = vmatprep.subr.bf16.mxu0 0
  %5587 = vmatpush1.bf16.msra.mxu0 %v5565
  %5588 = vmatprep.subr.bf16.mxu0 0
  %5589 = vmatpush1.bf16.msra.mxu0 %v5564
  %5590 = vmatprep.subr.bf16.mxu0 0
  %5591 = vmatpush1.bf16.msra.mxu0 %v5563
  %5592 = vmatprep.subr.bf16.mxu0 0
  %5593 = vmatpush1.bf16.msra.mxu0 %v5562
  %5594 = vmatprep.subr.bf16.mxu0 0
  %5595 = vmatpush2.bf16.msra.mxu0 0
  %5596 = vmatprep.subr.bf16.mxu0 0
  %5597 = vmatpush2.bf16.msra.mxu0 0
  %5598 = vmatprep.subr.bf16.mxu0 0
  %5599 = vmatpush2.bf16.msra.mxu0 0
  %5600 = vmatprep.subr.bf16.mxu0 0
  %5601 = vmatpush2.bf16.msra.mxu0 0
  %5602 = vmatprep.subr.bf16.mxu0 0
  %5603 = vmatpush2.bf16.msra.mxu0 0
  %5604 = vmatprep.subr.bf16.mxu0 0
  %5605 = vmatpush2.bf16.msra.mxu0 0
  %5606 = vmatprep.subr.bf16.mxu0 0
  %5607 = vmatpush2.bf16.msra.mxu0 0
  %5608 = vmatprep.subr.bf16.mxu0 0
  %5609 = vmatpush2.bf16.msra.mxu0 0
  %5610 = vmatprep.mubr.bf16.mxu0 0
  %5611 = vmatmul.mubr.bf16.gmra.mxu0 %v5512
  %v5612 = vpop.f32.mrf.mxu0
  %v5613 = vadd.f32 0.0, %v5612
  %v5614 = vpop.f32.mrf.mxu0
  %v5615 = vpop.f32.mrf.mxu0
  %v5616 = vpop.f32.mrf.mxu0
  %5617 = vdwg.mxu0
  %v5618 = vadd.f32 %v5462, %v5613
  %5619 = vset.pattern.permute.xlu0 13
  %5620 = vperm.xlu0 %5619, %v3592
  %v5621 = vpop.permute.xlu0 %5620
  %vm5622 = vcmp.eq.s32.totalorder %v470, %v5621
  %v5623 = vsel %vm5622, 1.0, 0.0
  %v5624 = vpack.c.bf16 %v5623, %v5623
  %v5626 = vsel %vm3599, %v5624, 0
  %5628 = vmatprep.subr.bf16.mxu0 0
  %5629 = vmatpush1.bf16.msra.mxu0 0
  %5630 = vmatprep.subr.bf16.mxu0 0
  %5631 = vmatpush1.bf16.msra.mxu0 0
  %5632 = vmatprep.subr.bf16.mxu0 0
  %5633 = vmatpush1.bf16.msra.mxu0 0
  %5634 = vmatprep.subr.bf16.mxu0 0
  %5635 = vmatpush1.bf16.msra.mxu0 0
  %5636 = vmatprep.subr.bf16.mxu0 0
  %5637 = vmatpush1.bf16.msra.mxu0 0
  %5638 = vmatprep.subr.bf16.mxu0 0
  %5639 = vmatpush1.bf16.msra.mxu0 0
  %5640 = vmatprep.subr.bf16.mxu0 0
  %5641 = vmatpush1.bf16.msra.mxu0 %v3591
  %5642 = vmatprep.subr.bf16.mxu0 0
  %5643 = vmatpush1.bf16.msra.mxu0 %v3590
  %5644 = vmatprep.subr.bf16.mxu0 0
  %5645 = vmatpush2.bf16.msra.mxu0 0
  %5646 = vmatprep.subr.bf16.mxu0 0
  %5647 = vmatpush2.bf16.msra.mxu0 0
  %5648 = vmatprep.subr.bf16.mxu0 0
  %5649 = vmatpush2.bf16.msra.mxu0 0
  %5650 = vmatprep.subr.bf16.mxu0 0
  %5651 = vmatpush2.bf16.msra.mxu0 0
  %5652 = vmatprep.subr.bf16.mxu0 0
  %5653 = vmatpush2.bf16.msra.mxu0 0
  %5654 = vmatprep.subr.bf16.mxu0 0
  %5655 = vmatpush2.bf16.msra.mxu0 0
  %5656 = vmatprep.subr.bf16.mxu0 0
  %5657 = vmatpush2.bf16.msra.mxu0 0
  %5658 = vmatprep.subr.bf16.mxu0 0
  %5659 = vmatpush2.bf16.msra.mxu0 0
  %5660 = vmatprep.mubr.bf16.mxu0 0
  %5661 = vmatmul.mubr.bf16.gmra.mxu0 %v5626
  %v5662 = vpop.f32.mrf.mxu0
  %v5663 = vadd.f32 0.0, %v5662
  %v5664 = vpop.f32.mrf.mxu0
  %v5665 = vpop.f32.mrf.mxu0
  %v5666 = vpop.f32.mrf.mxu0
  %5667 = vdwg.mxu0
  %v5668 = vpack.c.bf16 %v5663, %v5663
  %s5669 = scalar_lea.vmem %s9, 832
  %v5670 = vld [vmem:[%s5669] sm:$0xf]
  %v5671 = vld [vmem:[%s5669 + $0x4] sm:$0xf]
  %v5672 = vld [vmem:[%s5669 + $0x8] sm:$0xf]
  %v5673 = vld [vmem:[%s5669 + $0xc] sm:$0xf]
  %v5674 = vld [vmem:[%s5669 + $0x10] sm:$0xf]
  %v5675 = vld [vmem:[%s5669 + $0x14] sm:$0xf]
  %v5676 = vld [vmem:[%s5669 + $0x18] sm:$0xf]
  %v5677 = vld [vmem:[%s5669 + $0x1c] sm:$0xf]
  %v5678 = vld [vmem:[%s5669 + $0x20] sm:$0xf]
  %v5679 = vld [vmem:[%s5669 + $0x24] sm:$0xf]
  %v5680 = vld [vmem:[%s5669 + $0x28] sm:$0xf]
  %v5681 = vld [vmem:[%s5669 + $0x2c] sm:$0xf]
  %v5682 = vld [vmem:[%s5669 + $0x30] sm:$0xf]
  %v5683 = vld [vmem:[%s5669 + $0x34] sm:$0xf]
  %v5684 = vld [vmem:[%s5669 + $0x38] sm:$0xf]
  %v5685 = vld [vmem:[%s5669 + $0x3c] sm:$0xf]
  %v5702 = vunpack.c.l.b16 %v5670
  %v5703 = vunpack.c.l.b16 %v5671
  %v5704 = vunpack.c.l.b16 %v5672
  %v5705 = vunpack.c.l.b16 %v5673
  %v5706 = vunpack.c.l.b16 %v5674
  %v5707 = vunpack.c.l.b16 %v5675
  %v5708 = vunpack.c.l.b16 %v5676
  %v5709 = vunpack.c.l.b16 %v5677
  %v5710 = vunpack.c.l.b16 %v5678
  %v5711 = vunpack.c.l.b16 %v5679
  %v5712 = vunpack.c.l.b16 %v5680
  %v5713 = vunpack.c.l.b16 %v5681
  %v5714 = vunpack.c.l.b16 %v5682
  %v5715 = vunpack.c.l.b16 %v5683
  %v5716 = vunpack.c.l.b16 %v5684
  %v5717 = vunpack.c.l.b16 %v5685
  %v5718 = vpack.c.b16 %v5703, %v5702
  %v5719 = vpack.c.b16 %v5705, %v5704
  %v5720 = vpack.c.b16 %v5707, %v5706
  %v5721 = vpack.c.b16 %v5709, %v5708
  %v5722 = vpack.c.b16 %v5711, %v5710
  %v5723 = vpack.c.b16 %v5713, %v5712
  %v5724 = vpack.c.b16 %v5715, %v5714
  %v5725 = vpack.c.b16 %v5717, %v5716
  %5734 = vmatprep.subr.bf16.mxu0 0
  %5735 = vmatpush1.bf16.msra.mxu0 %v5725
  %5736 = vmatprep.subr.bf16.mxu0 0
  %5737 = vmatpush1.bf16.msra.mxu0 %v5724
  %5738 = vmatprep.subr.bf16.mxu0 0
  %5739 = vmatpush1.bf16.msra.mxu0 %v5723
  %5740 = vmatprep.subr.bf16.mxu0 0
  %5741 = vmatpush1.bf16.msra.mxu0 %v5722
  %5742 = vmatprep.subr.bf16.mxu0 0
  %5743 = vmatpush1.bf16.msra.mxu0 %v5721
  %5744 = vmatprep.subr.bf16.mxu0 0
  %5745 = vmatpush1.bf16.msra.mxu0 %v5720
  %5746 = vmatprep.subr.bf16.mxu0 0
  %5747 = vmatpush1.bf16.msra.mxu0 %v5719
  %5748 = vmatprep.subr.bf16.mxu0 0
  %5749 = vmatpush1.bf16.msra.mxu0 %v5718
  %5750 = vmatprep.subr.bf16.mxu0 0
  %5751 = vmatpush2.bf16.msra.mxu0 0
  %5752 = vmatprep.subr.bf16.mxu0 0
  %5753 = vmatpush2.bf16.msra.mxu0 0
  %5754 = vmatprep.subr.bf16.mxu0 0
  %5755 = vmatpush2.bf16.msra.mxu0 0
  %5756 = vmatprep.subr.bf16.mxu0 0
  %5757 = vmatpush2.bf16.msra.mxu0 0
  %5758 = vmatprep.subr.bf16.mxu0 0
  %5759 = vmatpush2.bf16.msra.mxu0 0
  %5760 = vmatprep.subr.bf16.mxu0 0
  %5761 = vmatpush2.bf16.msra.mxu0 0
  %5762 = vmatprep.subr.bf16.mxu0 0
  %5763 = vmatpush2.bf16.msra.mxu0 0
  %5764 = vmatprep.subr.bf16.mxu0 0
  %5765 = vmatpush2.bf16.msra.mxu0 0
  %5766 = vmatprep.mubr.bf16.mxu0 0
  %5767 = vmatmul.mubr.bf16.gmra.mxu0 %v5668
  %v5768 = vpop.f32.mrf.mxu0
  %v5769 = vadd.f32 0.0, %v5768
  %v5770 = vpop.f32.mrf.mxu0
  %v5771 = vpop.f32.mrf.mxu0
  %v5772 = vpop.f32.mrf.mxu0
  %5773 = vdwg.mxu0
  %v5774 = vadd.f32 %v5618, %v5769
  %5775 = vset.pattern.permute.xlu0 14
  %5776 = vperm.xlu0 %5775, %v3592
  %v5777 = vpop.permute.xlu0 %5776
  %vm5778 = vcmp.eq.s32.totalorder %v470, %v5777
  %v5779 = vsel %vm5778, 1.0, 0.0
  %v5780 = vpack.c.bf16 %v5779, %v5779
  %v5782 = vsel %vm3599, %v5780, 0
  %5784 = vmatprep.subr.bf16.mxu0 0
  %5785 = vmatpush1.bf16.msra.mxu0 0
  %5786 = vmatprep.subr.bf16.mxu0 0
  %5787 = vmatpush1.bf16.msra.mxu0 0
  %5788 = vmatprep.subr.bf16.mxu0 0
  %5789 = vmatpush1.bf16.msra.mxu0 0
  %5790 = vmatprep.subr.bf16.mxu0 0
  %5791 = vmatpush1.bf16.msra.mxu0 0
  %5792 = vmatprep.subr.bf16.mxu0 0
  %5793 = vmatpush1.bf16.msra.mxu0 0
  %5794 = vmatprep.subr.bf16.mxu0 0
  %5795 = vmatpush1.bf16.msra.mxu0 0
  %5796 = vmatprep.subr.bf16.mxu0 0
  %5797 = vmatpush1.bf16.msra.mxu0 %v3591
  %5798 = vmatprep.subr.bf16.mxu0 0
  %5799 = vmatpush1.bf16.msra.mxu0 %v3590
  %5800 = vmatprep.subr.bf16.mxu0 0
  %5801 = vmatpush2.bf16.msra.mxu0 0
  %5802 = vmatprep.subr.bf16.mxu0 0
  %5803 = vmatpush2.bf16.msra.mxu0 0
  %5804 = vmatprep.subr.bf16.mxu0 0
  %5805 = vmatpush2.bf16.msra.mxu0 0
  %5806 = vmatprep.subr.bf16.mxu0 0
  %5807 = vmatpush2.bf16.msra.mxu0 0
  %5808 = vmatprep.subr.bf16.mxu0 0
  %5809 = vmatpush2.bf16.msra.mxu0 0
  %5810 = vmatprep.subr.bf16.mxu0 0
  %5811 = vmatpush2.bf16.msra.mxu0 0
  %5812 = vmatprep.subr.bf16.mxu0 0
  %5813 = vmatpush2.bf16.msra.mxu0 0
  %5814 = vmatprep.subr.bf16.mxu0 0
  %5815 = vmatpush2.bf16.msra.mxu0 0
  %5816 = vmatprep.mubr.bf16.mxu0 0
  %5817 = vmatmul.mubr.bf16.gmra.mxu0 %v5782
  %v5818 = vpop.f32.mrf.mxu0
  %v5819 = vadd.f32 0.0, %v5818
  %v5820 = vpop.f32.mrf.mxu0
  %v5821 = vpop.f32.mrf.mxu0
  %v5822 = vpop.f32.mrf.mxu0
  %5823 = vdwg.mxu0
  %v5824 = vpack.c.bf16 %v5819, %v5819
  %s5825 = scalar_lea.vmem %s9, 896
  %v5826 = vld [vmem:[%s5825] sm:$0xf]
  %v5827 = vld [vmem:[%s5825 + $0x4] sm:$0xf]
  %v5828 = vld [vmem:[%s5825 + $0x8] sm:$0xf]
  %v5829 = vld [vmem:[%s5825 + $0xc] sm:$0xf]
  %v5830 = vld [vmem:[%s5825 + $0x10] sm:$0xf]
  %v5831 = vld [vmem:[%s5825 + $0x14] sm:$0xf]
  %v5832 = vld [vmem:[%s5825 + $0x18] sm:$0xf]
  %v5833 = vld [vmem:[%s5825 + $0x1c] sm:$0xf]
  %v5834 = vld [vmem:[%s5825 + $0x20] sm:$0xf]
  %v5835 = vld [vmem:[%s5825 + $0x24] sm:$0xf]
  %v5836 = vld [vmem:[%s5825 + $0x28] sm:$0xf]
  %v5837 = vld [vmem:[%s5825 + $0x2c] sm:$0xf]
  %v5838 = vld [vmem:[%s5825 + $0x30] sm:$0xf]
  %v5839 = vld [vmem:[%s5825 + $0x34] sm:$0xf]
  %v5840 = vld [vmem:[%s5825 + $0x38] sm:$0xf]
  %v5841 = vld [vmem:[%s5825 + $0x3c] sm:$0xf]
  %v5858 = vunpack.c.l.b16 %v5826
  %v5859 = vunpack.c.l.b16 %v5827
  %v5860 = vunpack.c.l.b16 %v5828
  %v5861 = vunpack.c.l.b16 %v5829
  %v5862 = vunpack.c.l.b16 %v5830
  %v5863 = vunpack.c.l.b16 %v5831
  %v5864 = vunpack.c.l.b16 %v5832
  %v5865 = vunpack.c.l.b16 %v5833
  %v5866 = vunpack.c.l.b16 %v5834
  %v5867 = vunpack.c.l.b16 %v5835
  %v5868 = vunpack.c.l.b16 %v5836
  %v5869 = vunpack.c.l.b16 %v5837
  %v5870 = vunpack.c.l.b16 %v5838
  %v5871 = vunpack.c.l.b16 %v5839
  %v5872 = vunpack.c.l.b16 %v5840
  %v5873 = vunpack.c.l.b16 %v5841
  %v5874 = vpack.c.b16 %v5859, %v5858
  %v5875 = vpack.c.b16 %v5861, %v5860
  %v5876 = vpack.c.b16 %v5863, %v5862
  %v5877 = vpack.c.b16 %v5865, %v5864
  %v5878 = vpack.c.b16 %v5867, %v5866
  %v5879 = vpack.c.b16 %v5869, %v5868
  %v5880 = vpack.c.b16 %v5871, %v5870
  %v5881 = vpack.c.b16 %v5873, %v5872
  %5890 = vmatprep.subr.bf16.mxu0 0
  %5891 = vmatpush1.bf16.msra.mxu0 %v5881
  %5892 = vmatprep.subr.bf16.mxu0 0
  %5893 = vmatpush1.bf16.msra.mxu0 %v5880
  %5894 = vmatprep.subr.bf16.mxu0 0
  %5895 = vmatpush1.bf16.msra.mxu0 %v5879
  %5896 = vmatprep.subr.bf16.mxu0 0
  %5897 = vmatpush1.bf16.msra.mxu0 %v5878
  %5898 = vmatprep.subr.bf16.mxu0 0
  %5899 = vmatpush1.bf16.msra.mxu0 %v5877
  %5900 = vmatprep.subr.bf16.mxu0 0
  %5901 = vmatpush1.bf16.msra.mxu0 %v5876
  %5902 = vmatprep.subr.bf16.mxu0 0
  %5903 = vmatpush1.bf16.msra.mxu0 %v5875
  %5904 = vmatprep.subr.bf16.mxu0 0
  %5905 = vmatpush1.bf16.msra.mxu0 %v5874
  %5906 = vmatprep.subr.bf16.mxu0 0
  %5907 = vmatpush2.bf16.msra.mxu0 0
  %5908 = vmatprep.subr.bf16.mxu0 0
  %5909 = vmatpush2.bf16.msra.mxu0 0
  %5910 = vmatprep.subr.bf16.mxu0 0
  %5911 = vmatpush2.bf16.msra.mxu0 0
  %5912 = vmatprep.subr.bf16.mxu0 0
  %5913 = vmatpush2.bf16.msra.mxu0 0
  %5914 = vmatprep.subr.bf16.mxu0 0
  %5915 = vmatpush2.bf16.msra.mxu0 0
  %5916 = vmatprep.subr.bf16.mxu0 0
  %5917 = vmatpush2.bf16.msra.mxu0 0
  %5918 = vmatprep.subr.bf16.mxu0 0
  %5919 = vmatpush2.bf16.msra.mxu0 0
  %5920 = vmatprep.subr.bf16.mxu0 0
  %5921 = vmatpush2.bf16.msra.mxu0 0
  %5922 = vmatprep.mubr.bf16.mxu0 0
  %5923 = vmatmul.mubr.bf16.gmra.mxu0 %v5824
  %v5924 = vpop.f32.mrf.mxu0
  %v5925 = vadd.f32 0.0, %v5924
  %v5926 = vpop.f32.mrf.mxu0
  %v5927 = vpop.f32.mrf.mxu0
  %v5928 = vpop.f32.mrf.mxu0
  %5929 = vdwg.mxu0
  %v5930 = vadd.f32 %v5774, %v5925
  %5931 = vset.pattern.permute.xlu0 15
  %5932 = vperm.xlu0 %5931, %v3592
  %v5933 = vpop.permute.xlu0 %5932
  %vm5934 = vcmp.eq.s32.totalorder %v470, %v5933
  %v5935 = vsel %vm5934, 1.0, 0.0
  %v5936 = vpack.c.bf16 %v5935, %v5935
  %v5938 = vsel %vm3599, %v5936, 0
  %5940 = vmatprep.subr.bf16.mxu0 0
  %5941 = vmatpush1.bf16.msra.mxu0 0
  %5942 = vmatprep.subr.bf16.mxu0 0
  %5943 = vmatpush1.bf16.msra.mxu0 0
  %5944 = vmatprep.subr.bf16.mxu0 0
  %5945 = vmatpush1.bf16.msra.mxu0 0
  %5946 = vmatprep.subr.bf16.mxu0 0
  %5947 = vmatpush1.bf16.msra.mxu0 0
  %5948 = vmatprep.subr.bf16.mxu0 0
  %5949 = vmatpush1.bf16.msra.mxu0 0
  %5950 = vmatprep.subr.bf16.mxu0 0
  %5951 = vmatpush1.bf16.msra.mxu0 0
  %5952 = vmatprep.subr.bf16.mxu0 0
  %5953 = vmatpush1.bf16.msra.mxu0 %v3591
  %5954 = vmatprep.subr.bf16.mxu0 0
  %5955 = vmatpush1.bf16.msra.mxu0 %v3590
  %5956 = vmatprep.subr.bf16.mxu0 0
  %5957 = vmatpush2.bf16.msra.mxu0 0
  %5958 = vmatprep.subr.bf16.mxu0 0
  %5959 = vmatpush2.bf16.msra.mxu0 0
  %5960 = vmatprep.subr.bf16.mxu0 0
  %5961 = vmatpush2.bf16.msra.mxu0 0
  %5962 = vmatprep.subr.bf16.mxu0 0
  %5963 = vmatpush2.bf16.msra.mxu0 0
  %5964 = vmatprep.subr.bf16.mxu0 0
  %5965 = vmatpush2.bf16.msra.mxu0 0
  %5966 = vmatprep.subr.bf16.mxu0 0
  %5967 = vmatpush2.bf16.msra.mxu0 0
  %5968 = vmatprep.subr.bf16.mxu0 0
  %5969 = vmatpush2.bf16.msra.mxu0 0
  %5970 = vmatprep.subr.bf16.mxu0 0
  %5971 = vmatpush2.bf16.msra.mxu0 0
  %5972 = vmatprep.mubr.bf16.mxu0 0
  %5973 = vmatmul.mubr.bf16.gmra.mxu0 %v5938
  %v5974 = vpop.f32.mrf.mxu0
  %v5975 = vadd.f32 0.0, %v5974
  %v5976 = vpop.f32.mrf.mxu0
  %v5977 = vpop.f32.mrf.mxu0
  %v5978 = vpop.f32.mrf.mxu0
  %5979 = vdwg.mxu0
  %v5980 = vpack.c.bf16 %v5975, %v5975
  %s5981 = scalar_lea.vmem %s9, 960
  %v5982 = vld [vmem:[%s5981] sm:$0xf]
  %v5983 = vld [vmem:[%s5981 + $0x4] sm:$0xf]
  %v5984 = vld [vmem:[%s5981 + $0x8] sm:$0xf]
  %v5985 = vld [vmem:[%s5981 + $0xc] sm:$0xf]
  %v5986 = vld [vmem:[%s5981 + $0x10] sm:$0xf]
  %v5987 = vld [vmem:[%s5981 + $0x14] sm:$0xf]
  %v5988 = vld [vmem:[%s5981 + $0x18] sm:$0xf]
  %v5989 = vld [vmem:[%s5981 + $0x1c] sm:$0xf]
  %v5990 = vld [vmem:[%s5981 + $0x20] sm:$0xf]
  %v5991 = vld [vmem:[%s5981 + $0x24] sm:$0xf]
  %v5992 = vld [vmem:[%s5981 + $0x28] sm:$0xf]
  %v5993 = vld [vmem:[%s5981 + $0x2c] sm:$0xf]
  %v5994 = vld [vmem:[%s5981 + $0x30] sm:$0xf]
  %v5995 = vld [vmem:[%s5981 + $0x34] sm:$0xf]
  %v5996 = vld [vmem:[%s5981 + $0x38] sm:$0xf]
  %v5997 = vld [vmem:[%s5981 + $0x3c] sm:$0xf]
  %v6014 = vunpack.c.l.b16 %v5982
  %v6015 = vunpack.c.l.b16 %v5983
  %v6016 = vunpack.c.l.b16 %v5984
  %v6017 = vunpack.c.l.b16 %v5985
  %v6018 = vunpack.c.l.b16 %v5986
  %v6019 = vunpack.c.l.b16 %v5987
  %v6020 = vunpack.c.l.b16 %v5988
  %v6021 = vunpack.c.l.b16 %v5989
  %v6022 = vunpack.c.l.b16 %v5990
  %v6023 = vunpack.c.l.b16 %v5991
  %v6024 = vunpack.c.l.b16 %v5992
  %v6025 = vunpack.c.l.b16 %v5993
  %v6026 = vunpack.c.l.b16 %v5994
  %v6027 = vunpack.c.l.b16 %v5995
  %v6028 = vunpack.c.l.b16 %v5996
  %v6029 = vunpack.c.l.b16 %v5997
  %v6030 = vpack.c.b16 %v6015, %v6014
  %v6031 = vpack.c.b16 %v6017, %v6016
  %v6032 = vpack.c.b16 %v6019, %v6018
  %v6033 = vpack.c.b16 %v6021, %v6020
  %v6034 = vpack.c.b16 %v6023, %v6022
  %v6035 = vpack.c.b16 %v6025, %v6024
  %v6036 = vpack.c.b16 %v6027, %v6026
  %v6037 = vpack.c.b16 %v6029, %v6028
  %6046 = vmatprep.subr.bf16.mxu0 0
  %6047 = vmatpush1.bf16.msra.mxu0 %v6037
  %6048 = vmatprep.subr.bf16.mxu0 0
  %6049 = vmatpush1.bf16.msra.mxu0 %v6036
  %6050 = vmatprep.subr.bf16.mxu0 0
  %6051 = vmatpush1.bf16.msra.mxu0 %v6035
  %6052 = vmatprep.subr.bf16.mxu0 0
  %6053 = vmatpush1.bf16.msra.mxu0 %v6034
  %6054 = vmatprep.subr.bf16.mxu0 0
  %6055 = vmatpush1.bf16.msra.mxu0 %v6033
  %6056 = vmatprep.subr.bf16.mxu0 0
  %6057 = vmatpush1.bf16.msra.mxu0 %v6032
  %6058 = vmatprep.subr.bf16.mxu0 0
  %6059 = vmatpush1.bf16.msra.mxu0 %v6031
  %6060 = vmatprep.subr.bf16.mxu0 0
  %6061 = vmatpush1.bf16.msra.mxu0 %v6030
  %6062 = vmatprep.subr.bf16.mxu0 0
  %6063 = vmatpush2.bf16.msra.mxu0 0
  %6064 = vmatprep.subr.bf16.mxu0 0
  %6065 = vmatpush2.bf16.msra.mxu0 0
  %6066 = vmatprep.subr.bf16.mxu0 0
  %6067 = vmatpush2.bf16.msra.mxu0 0
  %6068 = vmatprep.subr.bf16.mxu0 0
  %6069 = vmatpush2.bf16.msra.mxu0 0
  %6070 = vmatprep.subr.bf16.mxu0 0
  %6071 = vmatpush2.bf16.msra.mxu0 0
  %6072 = vmatprep.subr.bf16.mxu0 0
  %6073 = vmatpush2.bf16.msra.mxu0 0
  %6074 = vmatprep.subr.bf16.mxu0 0
  %6075 = vmatpush2.bf16.msra.mxu0 0
  %6076 = vmatprep.subr.bf16.mxu0 0
  %6077 = vmatpush2.bf16.msra.mxu0 0
  %6078 = vmatprep.mubr.bf16.mxu0 0
  %6079 = vmatmul.mubr.bf16.gmra.mxu0 %v5980
  %v6080 = vpop.f32.mrf.mxu0
  %v6081 = vadd.f32 0.0, %v6080
  %v6082 = vpop.f32.mrf.mxu0
  %v6083 = vpop.f32.mrf.mxu0
  %v6084 = vpop.f32.mrf.mxu0
  %6085 = vdwg.mxu0
  %v6086 = vadd.f32 %v5930, %v6081
  %vm6087 = vcmp.ge.f32.partialorder %v6086, 0.0
  %v6088 = vmul.f32 %v6086, 0.2
  %v6089 = vsel %vm6087, %v6086, %v6088
  %v6090 = vrot.slane %v6089, 4
  %v6091 = vadd.f32 %v6089, %v6090
  %v6092 = vrot.slane %v6091, 2
  %v6093 = vadd.f32 %v6091, %v6092
  %v6094 = vrot.slane %v6093, 1
  %v6095 = vadd.f32 %v6093, %v6094
  %v6096 = vmul.f32 %v6095, 0.125
  %v6097 = vsub.f32 %v6089, %v6096
  %v6098 = vmul.f32 %v6097, %v6097
  %v6099 = vrot.slane %v6098, 4
  %v6100 = vadd.f32 %v6098, %v6099
  %v6101 = vrot.slane %v6100, 2
  %v6102 = vadd.f32 %v6100, %v6101
  %v6103 = vrot.slane %v6102, 1
  %v6104 = vadd.f32 %v6102, %v6103
  %v6105 = vmul.f32 %v6104, 0.125
  %v6106 = vadd.f32 %v6105, 1e-05
  %v6107 = vrsqrt.pop %v6106
  %v6108 = vmul.f32 %v6097, %v6107
  %v6109 = vld [vmem:[%s10] sm:$0x1]
  %v6111 = vlaneseq
  %v6112 = vshrl.u32 %v6111, 7
  %v6113 = vsub.s32 0, %v6112
  %v6114 = vrot.slane %v6109, %v6113
  %v6116 = vmul.f32 %v6108, %v6114
  %v6117 = vld [vmem:[%s11] sm:$0x1]
  %v6119 = vlaneseq
  %v6120 = vshrl.u32 %v6119, 7
  %v6121 = vsub.s32 0, %v6120
  %v6122 = vrot.slane %v6117, %v6121
  %v6124 = vadd.f32 %v6116, %v6122
  %v6125 = vpack.c.bf16 %v6124, %v6124
  %v6126 = vld [vmem:[%s12] sm:$0x3]
  %6127 = vset.pattern.permute.xlu0 0
  %6128 = vperm.xlu0 %6127, %v6126
  %v6129 = vpop.permute.xlu0 %6128
  %vm6130 = vcmp.eq.s32.totalorder %v470, %v6129
  %v6131 = vsel %vm6130, 1.0, 0.0
  %v6132 = vpack.c.bf16 %v6131, %v6131
  %vm6133 = vcmask 64512
  %v6135 = vsel %vm6133, %v6132, 0
  %vm6137 = vcmask 1043456
  %v6139 = vsel %vm6137, %v6125, 0
  %6141 = vmatprep.subr.bf16.mxu0 0
  %6142 = vmatpush1.bf16.msra.mxu0 0
  %6143 = vmatprep.subr.bf16.mxu0 0
  %6144 = vmatpush1.bf16.msra.mxu0 0
  %6145 = vmatprep.subr.bf16.mxu0 0
  %6146 = vmatpush1.bf16.msra.mxu0 0
  %6147 = vmatprep.subr.bf16.mxu0 0
  %6148 = vmatpush1.bf16.msra.mxu0 0
  %6149 = vmatprep.subr.bf16.mxu0 0
  %6150 = vmatpush1.bf16.msra.mxu0 0
  %6151 = vmatprep.subr.bf16.mxu0 0
  %6152 = vmatpush1.bf16.msra.mxu0 0
  %6153 = vmatprep.subr.bf16.mxu0 0
  %6154 = vmatpush1.bf16.msra.mxu0 0
  %6155 = vmatprep.subr.bf16.mxu0 0
  %6156 = vmatpush1.bf16.msra.mxu0 %v6139
  %6157 = vmatprep.subr.bf16.mxu0 0
  %6158 = vmatpush2.bf16.msra.mxu0 0
  %6159 = vmatprep.subr.bf16.mxu0 0
  %6160 = vmatpush2.bf16.msra.mxu0 0
  %6161 = vmatprep.subr.bf16.mxu0 0
  %6162 = vmatpush2.bf16.msra.mxu0 0
  %6163 = vmatprep.subr.bf16.mxu0 0
  %6164 = vmatpush2.bf16.msra.mxu0 0
  %6165 = vmatprep.subr.bf16.mxu0 0
  %6166 = vmatpush2.bf16.msra.mxu0 0
  %6167 = vmatprep.subr.bf16.mxu0 0
  %6168 = vmatpush2.bf16.msra.mxu0 0
  %6169 = vmatprep.subr.bf16.mxu0 0
  %6170 = vmatpush2.bf16.msra.mxu0 0
  %6171 = vmatprep.subr.bf16.mxu0 0
  %6172 = vmatpush2.bf16.msra.mxu0 0
  %6173 = vmatprep.mubr.bf16.mxu0 0
  %6174 = vmatmul.mubr.bf16.gmra.mxu0 %v6135
  %v6175 = vpop.f32.mrf.mxu0
  %v6176 = vadd.f32 0.0, %v6175
  %v6177 = vpop.f32.mrf.mxu0
  %v6178 = vpop.f32.mrf.mxu0
  %v6179 = vpop.f32.mrf.mxu0
  %6180 = vdwg.mxu0
  %v6181 = vpack.c.bf16 %v6176, %v6176
  %v6182 = vld [vmem:[%s13] sm:$0xf]
  %v6183 = vld [vmem:[%s13 + $0x4] sm:$0xf]
  %v6184 = vld [vmem:[%s13 + $0x8] sm:$0xf]
  %v6185 = vld [vmem:[%s13 + $0xc] sm:$0xf]
  %v6186 = vld [vmem:[%s13 + $0x10] sm:$0xf]
  %v6187 = vld [vmem:[%s13 + $0x14] sm:$0xf]
  %v6188 = vld [vmem:[%s13 + $0x18] sm:$0xf]
  %v6189 = vld [vmem:[%s13 + $0x1c] sm:$0xf]
  %v6190 = vld [vmem:[%s13 + $0x20] sm:$0xf]
  %v6191 = vld [vmem:[%s13 + $0x24] sm:$0xf]
  %v6192 = vld [vmem:[%s13 + $0x28] sm:$0xf]
  %v6193 = vld [vmem:[%s13 + $0x2c] sm:$0xf]
  %v6194 = vld [vmem:[%s13 + $0x30] sm:$0xf]
  %v6195 = vld [vmem:[%s13 + $0x34] sm:$0xf]
  %v6196 = vld [vmem:[%s13 + $0x38] sm:$0xf]
  %v6197 = vld [vmem:[%s13 + $0x3c] sm:$0xf]
  %6198 = vset.pattern.permute.xlu0 1
  %6199 = vperm.xlu0 %6198, %v6126
  %v6200 = vpop.permute.xlu0 %6199
  %vm6201 = vcmp.eq.s32.totalorder %v470, %v6200
  %v6202 = vsel %vm6201, 1.0, 0.0
  %v6203 = vpack.c.bf16 %v6202, %v6202
  %v6205 = vsel %vm6133, %v6203, 0
  %6207 = vmatprep.subr.bf16.mxu0 0
  %6208 = vmatpush1.bf16.msra.mxu0 0
  %6209 = vmatprep.subr.bf16.mxu0 0
  %6210 = vmatpush1.bf16.msra.mxu0 0
  %6211 = vmatprep.subr.bf16.mxu0 0
  %6212 = vmatpush1.bf16.msra.mxu0 0
  %6213 = vmatprep.subr.bf16.mxu0 0
  %6214 = vmatpush1.bf16.msra.mxu0 0
  %6215 = vmatprep.subr.bf16.mxu0 0
  %6216 = vmatpush1.bf16.msra.mxu0 0
  %6217 = vmatprep.subr.bf16.mxu0 0
  %6218 = vmatpush1.bf16.msra.mxu0 0
  %6219 = vmatprep.subr.bf16.mxu0 0
  %6220 = vmatpush1.bf16.msra.mxu0 0
  %6221 = vmatprep.subr.bf16.mxu0 0
  %6222 = vmatpush1.bf16.msra.mxu0 %v6139
  %6223 = vmatprep.subr.bf16.mxu0 0
  %6224 = vmatpush2.bf16.msra.mxu0 0
  %6225 = vmatprep.subr.bf16.mxu0 0
  %6226 = vmatpush2.bf16.msra.mxu0 0
  %6227 = vmatprep.subr.bf16.mxu0 0
  %6228 = vmatpush2.bf16.msra.mxu0 0
  %6229 = vmatprep.subr.bf16.mxu0 0
  %6230 = vmatpush2.bf16.msra.mxu0 0
  %6231 = vmatprep.subr.bf16.mxu0 0
  %6232 = vmatpush2.bf16.msra.mxu0 0
  %6233 = vmatprep.subr.bf16.mxu0 0
  %6234 = vmatpush2.bf16.msra.mxu0 0
  %6235 = vmatprep.subr.bf16.mxu0 0
  %6236 = vmatpush2.bf16.msra.mxu0 0
  %6237 = vmatprep.subr.bf16.mxu0 0
  %6238 = vmatpush2.bf16.msra.mxu0 0
  %6239 = vmatprep.mubr.bf16.mxu0 0
  %6240 = vmatmul.mubr.bf16.gmra.mxu0 %v6205
  %v6241 = vpop.f32.mrf.mxu0
  %v6242 = vadd.f32 0.0, %v6241
  %v6243 = vpop.f32.mrf.mxu0
  %v6244 = vpop.f32.mrf.mxu0
  %v6245 = vpop.f32.mrf.mxu0
  %6246 = vdwg.mxu0
  %v6247 = vpack.c.bf16 %v6242, %v6242
  %s6248 = scalar_lea.vmem %s13, 64
  %v6249 = vld [vmem:[%s6248] sm:$0xf]
  %v6250 = vld [vmem:[%s6248 + $0x4] sm:$0xf]
  %v6251 = vld [vmem:[%s6248 + $0x8] sm:$0xf]
  %v6252 = vld [vmem:[%s6248 + $0xc] sm:$0xf]
  %v6253 = vld [vmem:[%s6248 + $0x10] sm:$0xf]
  %v6254 = vld [vmem:[%s6248 + $0x14] sm:$0xf]
  %v6255 = vld [vmem:[%s6248 + $0x18] sm:$0xf]
  %v6256 = vld [vmem:[%s6248 + $0x1c] sm:$0xf]
  %v6257 = vld [vmem:[%s6248 + $0x20] sm:$0xf]
  %v6258 = vld [vmem:[%s6248 + $0x24] sm:$0xf]
  %v6259 = vld [vmem:[%s6248 + $0x28] sm:$0xf]
  %v6260 = vld [vmem:[%s6248 + $0x2c] sm:$0xf]
  %v6261 = vld [vmem:[%s6248 + $0x30] sm:$0xf]
  %v6262 = vld [vmem:[%s6248 + $0x34] sm:$0xf]
  %v6263 = vld [vmem:[%s6248 + $0x38] sm:$0xf]
  %v6264 = vld [vmem:[%s6248 + $0x3c] sm:$0xf]
  %v6281 = vunpack.c.l.b16 %v6249
  %v6282 = vunpack.c.l.b16 %v6250
  %v6283 = vunpack.c.l.b16 %v6251
  %v6284 = vunpack.c.l.b16 %v6252
  %v6285 = vunpack.c.l.b16 %v6253
  %v6286 = vunpack.c.l.b16 %v6254
  %v6287 = vunpack.c.l.b16 %v6255
  %v6288 = vunpack.c.l.b16 %v6256
  %v6289 = vunpack.c.l.b16 %v6257
  %v6290 = vunpack.c.l.b16 %v6258
  %v6291 = vunpack.c.l.b16 %v6259
  %v6292 = vunpack.c.l.b16 %v6260
  %v6293 = vunpack.c.l.b16 %v6261
  %v6294 = vunpack.c.l.b16 %v6262
  %v6295 = vunpack.c.l.b16 %v6263
  %v6296 = vunpack.c.l.b16 %v6264
  %v6297 = vpack.c.b16 %v6282, %v6281
  %v6298 = vpack.c.b16 %v6284, %v6283
  %v6299 = vpack.c.b16 %v6286, %v6285
  %v6300 = vpack.c.b16 %v6288, %v6287
  %v6301 = vpack.c.b16 %v6290, %v6289
  %v6302 = vpack.c.b16 %v6292, %v6291
  %v6303 = vpack.c.b16 %v6294, %v6293
  %v6304 = vpack.c.b16 %v6296, %v6295
  %6313 = vmatprep.subr.bf16.mxu0 0
  %6314 = vmatpush1.bf16.msra.mxu0 %v6304
  %6315 = vmatprep.subr.bf16.mxu0 0
  %6316 = vmatpush1.bf16.msra.mxu0 %v6303
  %6317 = vmatprep.subr.bf16.mxu0 0
  %6318 = vmatpush1.bf16.msra.mxu0 %v6302
  %6319 = vmatprep.subr.bf16.mxu0 0
  %6320 = vmatpush1.bf16.msra.mxu0 %v6301
  %6321 = vmatprep.subr.bf16.mxu0 0
  %6322 = vmatpush1.bf16.msra.mxu0 %v6300
  %6323 = vmatprep.subr.bf16.mxu0 0
  %6324 = vmatpush1.bf16.msra.mxu0 %v6299
  %6325 = vmatprep.subr.bf16.mxu0 0
  %6326 = vmatpush1.bf16.msra.mxu0 %v6298
  %6327 = vmatprep.subr.bf16.mxu0 0
  %6328 = vmatpush1.bf16.msra.mxu0 %v6297
  %6329 = vmatprep.subr.bf16.mxu0 0
  %6330 = vmatpush2.bf16.msra.mxu0 0
  %6331 = vmatprep.subr.bf16.mxu0 0
  %6332 = vmatpush2.bf16.msra.mxu0 0
  %6333 = vmatprep.subr.bf16.mxu0 0
  %6334 = vmatpush2.bf16.msra.mxu0 0
  %6335 = vmatprep.subr.bf16.mxu0 0
  %6336 = vmatpush2.bf16.msra.mxu0 0
  %6337 = vmatprep.subr.bf16.mxu0 0
  %6338 = vmatpush2.bf16.msra.mxu0 0
  %6339 = vmatprep.subr.bf16.mxu0 0
  %6340 = vmatpush2.bf16.msra.mxu0 0
  %6341 = vmatprep.subr.bf16.mxu0 0
  %6342 = vmatpush2.bf16.msra.mxu0 0
  %6343 = vmatprep.subr.bf16.mxu0 0
  %6344 = vmatpush2.bf16.msra.mxu0 0
  %6345 = vmatprep.mubr.bf16.mxu0 0
  %6346 = vmatmul.mubr.bf16.gmra.mxu0 %v6247
  %v6347 = vpop.f32.mrf.mxu0
  %v6348 = vadd.f32 0.0, %v6347
  %v6349 = vpop.f32.mrf.mxu0
  %v6350 = vpop.f32.mrf.mxu0
  %v6351 = vpop.f32.mrf.mxu0
  %6352 = vdwg.mxu0
  %v6369 = vunpack.c.l.b16 %v6182
  %v6370 = vunpack.c.l.b16 %v6183
  %v6371 = vunpack.c.l.b16 %v6184
  %v6372 = vunpack.c.l.b16 %v6185
  %v6373 = vunpack.c.l.b16 %v6186
  %v6374 = vunpack.c.l.b16 %v6187
  %v6375 = vunpack.c.l.b16 %v6188
  %v6376 = vunpack.c.l.b16 %v6189
  %v6377 = vunpack.c.l.b16 %v6190
  %v6378 = vunpack.c.l.b16 %v6191
  %v6379 = vunpack.c.l.b16 %v6192
  %v6380 = vunpack.c.l.b16 %v6193
  %v6381 = vunpack.c.l.b16 %v6194
  %v6382 = vunpack.c.l.b16 %v6195
  %v6383 = vunpack.c.l.b16 %v6196
  %v6384 = vunpack.c.l.b16 %v6197
  %v6385 = vpack.c.b16 %v6370, %v6369
  %v6386 = vpack.c.b16 %v6372, %v6371
  %v6387 = vpack.c.b16 %v6374, %v6373
  %v6388 = vpack.c.b16 %v6376, %v6375
  %v6389 = vpack.c.b16 %v6378, %v6377
  %v6390 = vpack.c.b16 %v6380, %v6379
  %v6391 = vpack.c.b16 %v6382, %v6381
  %v6392 = vpack.c.b16 %v6384, %v6383
  %6401 = vmatprep.subr.bf16.mxu0 0
  %6402 = vmatpush1.bf16.msra.mxu0 %v6392
  %6403 = vmatprep.subr.bf16.mxu0 0
  %6404 = vmatpush1.bf16.msra.mxu0 %v6391
  %6405 = vmatprep.subr.bf16.mxu0 0
  %6406 = vmatpush1.bf16.msra.mxu0 %v6390
  %6407 = vmatprep.subr.bf16.mxu0 0
  %6408 = vmatpush1.bf16.msra.mxu0 %v6389
  %6409 = vmatprep.subr.bf16.mxu0 0
  %6410 = vmatpush1.bf16.msra.mxu0 %v6388
  %6411 = vmatprep.subr.bf16.mxu0 0
  %6412 = vmatpush1.bf16.msra.mxu0 %v6387
  %6413 = vmatprep.subr.bf16.mxu0 0
  %6414 = vmatpush1.bf16.msra.mxu0 %v6386
  %6415 = vmatprep.subr.bf16.mxu0 0
  %6416 = vmatpush1.bf16.msra.mxu0 %v6385
  %6417 = vmatprep.subr.bf16.mxu0 0
  %6418 = vmatpush2.bf16.msra.mxu0 0
  %6419 = vmatprep.subr.bf16.mxu0 0
  %6420 = vmatpush2.bf16.msra.mxu0 0
  %6421 = vmatprep.subr.bf16.mxu0 0
  %6422 = vmatpush2.bf16.msra.mxu0 0
  %6423 = vmatprep.subr.bf16.mxu0 0
  %6424 = vmatpush2.bf16.msra.mxu0 0
  %6425 = vmatprep.subr.bf16.mxu0 0
  %6426 = vmatpush2.bf16.msra.mxu0 0
  %6427 = vmatprep.subr.bf16.mxu0 0
  %6428 = vmatpush2.bf16.msra.mxu0 0
  %6429 = vmatprep.subr.bf16.mxu0 0
  %6430 = vmatpush2.bf16.msra.mxu0 0
  %6431 = vmatprep.subr.bf16.mxu0 0
  %6432 = vmatpush2.bf16.msra.mxu0 0
  %6433 = vmatprep.mubr.bf16.mxu0 0
  %6434 = vmatmul.mubr.bf16.gmra.mxu0 %v6181
  %v6435 = vpop.f32.mrf.mxu0
  %v6436 = vadd.f32 %v6348, %v6435
  %v6437 = vpop.f32.mrf.mxu0
  %v6438 = vpop.f32.mrf.mxu0
  %v6439 = vpop.f32.mrf.mxu0
  %6440 = vdwg.mxu0
  %6441 = vset.pattern.permute.xlu0 2
  %6442 = vperm.xlu0 %6441, %v6126
  %v6443 = vpop.permute.xlu0 %6442
  %vm6444 = vcmp.eq.s32.totalorder %v470, %v6443
  %v6445 = vsel %vm6444, 1.0, 0.0
  %v6446 = vpack.c.bf16 %v6445, %v6445
  %v6448 = vsel %vm6133, %v6446, 0
  %6450 = vmatprep.subr.bf16.mxu0 0
  %6451 = vmatpush1.bf16.msra.mxu0 0
  %6452 = vmatprep.subr.bf16.mxu0 0
  %6453 = vmatpush1.bf16.msra.mxu0 0
  %6454 = vmatprep.subr.bf16.mxu0 0
  %6455 = vmatpush1.bf16.msra.mxu0 0
  %6456 = vmatprep.subr.bf16.mxu0 0
  %6457 = vmatpush1.bf16.msra.mxu0 0
  %6458 = vmatprep.subr.bf16.mxu0 0
  %6459 = vmatpush1.bf16.msra.mxu0 0
  %6460 = vmatprep.subr.bf16.mxu0 0
  %6461 = vmatpush1.bf16.msra.mxu0 0
  %6462 = vmatprep.subr.bf16.mxu0 0
  %6463 = vmatpush1.bf16.msra.mxu0 0
  %6464 = vmatprep.subr.bf16.mxu0 0
  %6465 = vmatpush1.bf16.msra.mxu0 %v6139
  %6466 = vmatprep.subr.bf16.mxu0 0
  %6467 = vmatpush2.bf16.msra.mxu0 0
  %6468 = vmatprep.subr.bf16.mxu0 0
  %6469 = vmatpush2.bf16.msra.mxu0 0
  %6470 = vmatprep.subr.bf16.mxu0 0
  %6471 = vmatpush2.bf16.msra.mxu0 0
  %6472 = vmatprep.subr.bf16.mxu0 0
  %6473 = vmatpush2.bf16.msra.mxu0 0
  %6474 = vmatprep.subr.bf16.mxu0 0
  %6475 = vmatpush2.bf16.msra.mxu0 0
  %6476 = vmatprep.subr.bf16.mxu0 0
  %6477 = vmatpush2.bf16.msra.mxu0 0
  %6478 = vmatprep.subr.bf16.mxu0 0
  %6479 = vmatpush2.bf16.msra.mxu0 0
  %6480 = vmatprep.subr.bf16.mxu0 0
  %6481 = vmatpush2.bf16.msra.mxu0 0
  %6482 = vmatprep.mubr.bf16.mxu0 0
  %6483 = vmatmul.mubr.bf16.gmra.mxu0 %v6448
  %v6484 = vpop.f32.mrf.mxu0
  %v6485 = vadd.f32 0.0, %v6484
  %v6486 = vpop.f32.mrf.mxu0
  %v6487 = vpop.f32.mrf.mxu0
  %v6488 = vpop.f32.mrf.mxu0
  %6489 = vdwg.mxu0
  %v6490 = vpack.c.bf16 %v6485, %v6485
  %s6491 = scalar_lea.vmem %s13, 128
  %v6492 = vld [vmem:[%s6491] sm:$0xf]
  %v6493 = vld [vmem:[%s6491 + $0x4] sm:$0xf]
  %v6494 = vld [vmem:[%s6491 + $0x8] sm:$0xf]
  %v6495 = vld [vmem:[%s6491 + $0xc] sm:$0xf]
  %v6496 = vld [vmem:[%s6491 + $0x10] sm:$0xf]
  %v6497 = vld [vmem:[%s6491 + $0x14] sm:$0xf]
  %v6498 = vld [vmem:[%s6491 + $0x18] sm:$0xf]
  %v6499 = vld [vmem:[%s6491 + $0x1c] sm:$0xf]
  %v6500 = vld [vmem:[%s6491 + $0x20] sm:$0xf]
  %v6501 = vld [vmem:[%s6491 + $0x24] sm:$0xf]
  %v6502 = vld [vmem:[%s6491 + $0x28] sm:$0xf]
  %v6503 = vld [vmem:[%s6491 + $0x2c] sm:$0xf]
  %v6504 = vld [vmem:[%s6491 + $0x30] sm:$0xf]
  %v6505 = vld [vmem:[%s6491 + $0x34] sm:$0xf]
  %v6506 = vld [vmem:[%s6491 + $0x38] sm:$0xf]
  %v6507 = vld [vmem:[%s6491 + $0x3c] sm:$0xf]
  %v6524 = vunpack.c.l.b16 %v6492
  %v6525 = vunpack.c.l.b16 %v6493
  %v6526 = vunpack.c.l.b16 %v6494
  %v6527 = vunpack.c.l.b16 %v6495
  %v6528 = vunpack.c.l.b16 %v6496
  %v6529 = vunpack.c.l.b16 %v6497
  %v6530 = vunpack.c.l.b16 %v6498
  %v6531 = vunpack.c.l.b16 %v6499
  %v6532 = vunpack.c.l.b16 %v6500
  %v6533 = vunpack.c.l.b16 %v6501
  %v6534 = vunpack.c.l.b16 %v6502
  %v6535 = vunpack.c.l.b16 %v6503
  %v6536 = vunpack.c.l.b16 %v6504
  %v6537 = vunpack.c.l.b16 %v6505
  %v6538 = vunpack.c.l.b16 %v6506
  %v6539 = vunpack.c.l.b16 %v6507
  %v6540 = vpack.c.b16 %v6525, %v6524
  %v6541 = vpack.c.b16 %v6527, %v6526
  %v6542 = vpack.c.b16 %v6529, %v6528
  %v6543 = vpack.c.b16 %v6531, %v6530
  %v6544 = vpack.c.b16 %v6533, %v6532
  %v6545 = vpack.c.b16 %v6535, %v6534
  %v6546 = vpack.c.b16 %v6537, %v6536
  %v6547 = vpack.c.b16 %v6539, %v6538
  %6556 = vmatprep.subr.bf16.mxu0 0
  %6557 = vmatpush1.bf16.msra.mxu0 %v6547
  %6558 = vmatprep.subr.bf16.mxu0 0
  %6559 = vmatpush1.bf16.msra.mxu0 %v6546
  %6560 = vmatprep.subr.bf16.mxu0 0
  %6561 = vmatpush1.bf16.msra.mxu0 %v6545
  %6562 = vmatprep.subr.bf16.mxu0 0
  %6563 = vmatpush1.bf16.msra.mxu0 %v6544
  %6564 = vmatprep.subr.bf16.mxu0 0
  %6565 = vmatpush1.bf16.msra.mxu0 %v6543
  %6566 = vmatprep.subr.bf16.mxu0 0
  %6567 = vmatpush1.bf16.msra.mxu0 %v6542
  %6568 = vmatprep.subr.bf16.mxu0 0
  %6569 = vmatpush1.bf16.msra.mxu0 %v6541
  %6570 = vmatprep.subr.bf16.mxu0 0
  %6571 = vmatpush1.bf16.msra.mxu0 %v6540
  %6572 = vmatprep.subr.bf16.mxu0 0
  %6573 = vmatpush2.bf16.msra.mxu0 0
  %6574 = vmatprep.subr.bf16.mxu0 0
  %6575 = vmatpush2.bf16.msra.mxu0 0
  %6576 = vmatprep.subr.bf16.mxu0 0
  %6577 = vmatpush2.bf16.msra.mxu0 0
  %6578 = vmatprep.subr.bf16.mxu0 0
  %6579 = vmatpush2.bf16.msra.mxu0 0
  %6580 = vmatprep.subr.bf16.mxu0 0
  %6581 = vmatpush2.bf16.msra.mxu0 0
  %6582 = vmatprep.subr.bf16.mxu0 0
  %6583 = vmatpush2.bf16.msra.mxu0 0
  %6584 = vmatprep.subr.bf16.mxu0 0
  %6585 = vmatpush2.bf16.msra.mxu0 0
  %6586 = vmatprep.subr.bf16.mxu0 0
  %6587 = vmatpush2.bf16.msra.mxu0 0
  %6588 = vmatprep.mubr.bf16.mxu0 0
  %6589 = vmatmul.mubr.bf16.gmra.mxu0 %v6490
  %v6590 = vpop.f32.mrf.mxu0
  %v6591 = vadd.f32 0.0, %v6590
  %v6592 = vpop.f32.mrf.mxu0
  %v6593 = vpop.f32.mrf.mxu0
  %v6594 = vpop.f32.mrf.mxu0
  %6595 = vdwg.mxu0
  %v6596 = vadd.f32 %v6436, %v6591
  %6597 = vset.pattern.permute.xlu0 3
  %6598 = vperm.xlu0 %6597, %v6126
  %v6599 = vpop.permute.xlu0 %6598
  %vm6600 = vcmp.eq.s32.totalorder %v470, %v6599
  %v6601 = vsel %vm6600, 1.0, 0.0
  %v6602 = vpack.c.bf16 %v6601, %v6601
  %v6604 = vsel %vm6133, %v6602, 0
  %6606 = vmatprep.subr.bf16.mxu0 0
  %6607 = vmatpush1.bf16.msra.mxu0 0
  %6608 = vmatprep.subr.bf16.mxu0 0
  %6609 = vmatpush1.bf16.msra.mxu0 0
  %6610 = vmatprep.subr.bf16.mxu0 0
  %6611 = vmatpush1.bf16.msra.mxu0 0
  %6612 = vmatprep.subr.bf16.mxu0 0
  %6613 = vmatpush1.bf16.msra.mxu0 0
  %6614 = vmatprep.subr.bf16.mxu0 0
  %6615 = vmatpush1.bf16.msra.mxu0 0
  %6616 = vmatprep.subr.bf16.mxu0 0
  %6617 = vmatpush1.bf16.msra.mxu0 0
  %6618 = vmatprep.subr.bf16.mxu0 0
  %6619 = vmatpush1.bf16.msra.mxu0 0
  %6620 = vmatprep.subr.bf16.mxu0 0
  %6621 = vmatpush1.bf16.msra.mxu0 %v6139
  %6622 = vmatprep.subr.bf16.mxu0 0
  %6623 = vmatpush2.bf16.msra.mxu0 0
  %6624 = vmatprep.subr.bf16.mxu0 0
  %6625 = vmatpush2.bf16.msra.mxu0 0
  %6626 = vmatprep.subr.bf16.mxu0 0
  %6627 = vmatpush2.bf16.msra.mxu0 0
  %6628 = vmatprep.subr.bf16.mxu0 0
  %6629 = vmatpush2.bf16.msra.mxu0 0
  %6630 = vmatprep.subr.bf16.mxu0 0
  %6631 = vmatpush2.bf16.msra.mxu0 0
  %6632 = vmatprep.subr.bf16.mxu0 0
  %6633 = vmatpush2.bf16.msra.mxu0 0
  %6634 = vmatprep.subr.bf16.mxu0 0
  %6635 = vmatpush2.bf16.msra.mxu0 0
  %6636 = vmatprep.subr.bf16.mxu0 0
  %6637 = vmatpush2.bf16.msra.mxu0 0
  %6638 = vmatprep.mubr.bf16.mxu0 0
  %6639 = vmatmul.mubr.bf16.gmra.mxu0 %v6604
  %v6640 = vpop.f32.mrf.mxu0
  %v6641 = vadd.f32 0.0, %v6640
  %v6642 = vpop.f32.mrf.mxu0
  %v6643 = vpop.f32.mrf.mxu0
  %v6644 = vpop.f32.mrf.mxu0
  %6645 = vdwg.mxu0
  %v6646 = vpack.c.bf16 %v6641, %v6641
  %s6647 = scalar_lea.vmem %s13, 192
  %v6648 = vld [vmem:[%s6647] sm:$0xf]
  %v6649 = vld [vmem:[%s6647 + $0x4] sm:$0xf]
  %v6650 = vld [vmem:[%s6647 + $0x8] sm:$0xf]
  %v6651 = vld [vmem:[%s6647 + $0xc] sm:$0xf]
  %v6652 = vld [vmem:[%s6647 + $0x10] sm:$0xf]
  %v6653 = vld [vmem:[%s6647 + $0x14] sm:$0xf]
  %v6654 = vld [vmem:[%s6647 + $0x18] sm:$0xf]
  %v6655 = vld [vmem:[%s6647 + $0x1c] sm:$0xf]
  %v6656 = vld [vmem:[%s6647 + $0x20] sm:$0xf]
  %v6657 = vld [vmem:[%s6647 + $0x24] sm:$0xf]
  %v6658 = vld [vmem:[%s6647 + $0x28] sm:$0xf]
  %v6659 = vld [vmem:[%s6647 + $0x2c] sm:$0xf]
  %v6660 = vld [vmem:[%s6647 + $0x30] sm:$0xf]
  %v6661 = vld [vmem:[%s6647 + $0x34] sm:$0xf]
  %v6662 = vld [vmem:[%s6647 + $0x38] sm:$0xf]
  %v6663 = vld [vmem:[%s6647 + $0x3c] sm:$0xf]
  %v6680 = vunpack.c.l.b16 %v6648
  %v6681 = vunpack.c.l.b16 %v6649
  %v6682 = vunpack.c.l.b16 %v6650
  %v6683 = vunpack.c.l.b16 %v6651
  %v6684 = vunpack.c.l.b16 %v6652
  %v6685 = vunpack.c.l.b16 %v6653
  %v6686 = vunpack.c.l.b16 %v6654
  %v6687 = vunpack.c.l.b16 %v6655
  %v6688 = vunpack.c.l.b16 %v6656
  %v6689 = vunpack.c.l.b16 %v6657
  %v6690 = vunpack.c.l.b16 %v6658
  %v6691 = vunpack.c.l.b16 %v6659
  %v6692 = vunpack.c.l.b16 %v6660
  %v6693 = vunpack.c.l.b16 %v6661
  %v6694 = vunpack.c.l.b16 %v6662
  %v6695 = vunpack.c.l.b16 %v6663
  %v6696 = vpack.c.b16 %v6681, %v6680
  %v6697 = vpack.c.b16 %v6683, %v6682
  %v6698 = vpack.c.b16 %v6685, %v6684
  %v6699 = vpack.c.b16 %v6687, %v6686
  %v6700 = vpack.c.b16 %v6689, %v6688
  %v6701 = vpack.c.b16 %v6691, %v6690
  %v6702 = vpack.c.b16 %v6693, %v6692
  %v6703 = vpack.c.b16 %v6695, %v6694
  %6712 = vmatprep.subr.bf16.mxu0 0
  %6713 = vmatpush1.bf16.msra.mxu0 %v6703
  %6714 = vmatprep.subr.bf16.mxu0 0
  %6715 = vmatpush1.bf16.msra.mxu0 %v6702
  %6716 = vmatprep.subr.bf16.mxu0 0
  %6717 = vmatpush1.bf16.msra.mxu0 %v6701
  %6718 = vmatprep.subr.bf16.mxu0 0
  %6719 = vmatpush1.bf16.msra.mxu0 %v6700
  %6720 = vmatprep.subr.bf16.mxu0 0
  %6721 = vmatpush1.bf16.msra.mxu0 %v6699
  %6722 = vmatprep.subr.bf16.mxu0 0
  %6723 = vmatpush1.bf16.msra.mxu0 %v6698
  %6724 = vmatprep.subr.bf16.mxu0 0
  %6725 = vmatpush1.bf16.msra.mxu0 %v6697
  %6726 = vmatprep.subr.bf16.mxu0 0
  %6727 = vmatpush1.bf16.msra.mxu0 %v6696
  %6728 = vmatprep.subr.bf16.mxu0 0
  %6729 = vmatpush2.bf16.msra.mxu0 0
  %6730 = vmatprep.subr.bf16.mxu0 0
  %6731 = vmatpush2.bf16.msra.mxu0 0
  %6732 = vmatprep.subr.bf16.mxu0 0
  %6733 = vmatpush2.bf16.msra.mxu0 0
  %6734 = vmatprep.subr.bf16.mxu0 0
  %6735 = vmatpush2.bf16.msra.mxu0 0
  %6736 = vmatprep.subr.bf16.mxu0 0
  %6737 = vmatpush2.bf16.msra.mxu0 0
  %6738 = vmatprep.subr.bf16.mxu0 0
  %6739 = vmatpush2.bf16.msra.mxu0 0
  %6740 = vmatprep.subr.bf16.mxu0 0
  %6741 = vmatpush2.bf16.msra.mxu0 0
  %6742 = vmatprep.subr.bf16.mxu0 0
  %6743 = vmatpush2.bf16.msra.mxu0 0
  %6744 = vmatprep.mubr.bf16.mxu0 0
  %6745 = vmatmul.mubr.bf16.gmra.mxu0 %v6646
  %v6746 = vpop.f32.mrf.mxu0
  %v6747 = vadd.f32 0.0, %v6746
  %v6748 = vpop.f32.mrf.mxu0
  %v6749 = vpop.f32.mrf.mxu0
  %v6750 = vpop.f32.mrf.mxu0
  %6751 = vdwg.mxu0
  %v6752 = vadd.f32 %v6596, %v6747
  %v6753 = vxor.u32 %v6752, 2147483648
  %v6754 = vmul.f32 %v6753, 1.442695
  %v6755 = vpow.pop %v6754
  %v6756 = vadd.f32 %v6755, 1.0
  %v6757 = vrcp.pop %v6756
  %v6758 = vmul.f32 1.0, %v6757
  %6759 = vst [vmem:[%s14] sm:$0x3] %v6758
  // Predicated region
  $region58: #{_lambda_.1} parent=0 // pred_check
    _
  $region59: #{_lambda_.1} parent=0 // pred_check_branch
    %6761 = sbr.rel (0) target = $region61
  $region60: #{_lambda_.1} parent=0 // pred_region
    _
  $region61: #{_lambda_.1} parent=0 // pred_fallthru
    _
  // Predicated region
  $region62: #{_lambda_.1} parent=0 // pred_check
    _
  $region63: #{_lambda_.1} parent=0 // pred_check_branch
    %6763 = sbr.rel (0) target = $region65
  $region64: #{_lambda_.1} parent=0 // pred_region
    _
  $region65: #{_lambda_.1} parent=0 // pred_fallthru
    _

</llo_original>
